<compile_context>
chip_gen: v5e
topology: v5e:2x2
jax: 0.10.0
libtpu: 0.0.40
codegen_flags: <defaults>
</compile_context>

<pallas_src>
import numpy as np
import jax
import jax.numpy as jnp
from jax.experimental import pallas as pl
from jax.experimental.pallas import tpu as pltpu

# ----------------------------- configuration --------------------------------
IMG = 16          # img_size
PATCH = 2         # patch_size
EMBED = 16        # embed_dim
WS = 2            # window_size
HEADS = (2, 4)    # num_heads per stage
DEPTHS = (2, 2)   # depths per stage
NUM_CLASSES = 10
MLP_RATIO = 4     # standard Swin MLP ratio (reference Mlp internals not shown)
BATCH = 2
NEG_INF = -1e9    # hard mask: cross-window and cross-image attention entries

_VMEM = pl.BlockSpec(memory_space=pltpu.MemorySpace.VMEM)


# --------------------------- in-kernel helpers -------------------------------
def _gelu(x):
    # TODO(synk): torch nn.GELU defaults to exact erf; tanh approximation used here.
    return 0.5 * x * (1.0 + jnp.tanh(np.sqrt(2.0 / np.pi)
                                     * (x + 0.044715 * x * x * x)))


def _layernorm(x, g, b, eps=1e-5):
    mu = jnp.mean(x, axis=-1, keepdims=True)
    var = jnp.mean(jnp.square(x - mu), axis=-1, keepdims=True)
    return (x - mu) * jax.lax.rsqrt(var + eps) * g + b


def _mm(a, b_bf16):
    # bf16 operands on the MXU, f32 accumulation.
    return jnp.dot(a.astype(jnp.bfloat16), b_bf16,
                   preferred_element_type=jnp.float32)


def _swin_block(x, refs, heads, head_dim):
    """One Swin block on batch-flattened tokens x: (B*L, C), all in VMEM.

    Window partition / cyclic shift / window reverse / batch separation are
    all folded into the precomputed bias ref (heads, B*L, B*L) in bf16.
    """
    (n1g, n1b, qkvw, qkvb, projw, projb, bias,
     n2g, n2b, w1, b1, w2, b2) = refs
    c = heads * head_dim
    scale = head_dim ** -0.5

    # ---------------- attention branch ----------------
    xn = _layernorm(x, n1g[...], n1b[...])
    qkv = _mm(xn, qkvw[...]) + qkvb[...]                       # (M, 3C) f32

    attn = jnp.zeros((x.shape[0], c), jnp.float32)
    for h in range(heads):                                      # static unroll (2 or 4)
        q = qkv[:, h * head_dim:(h + 1) * head_dim] * scale
        k = qkv[:, c + h * head_dim:c + (h + 1) * head_dim]
        v = qkv[:, 2 * c + h * head_dim:2 * c + (h + 1) * head_dim]
        s = jax.lax.dot_general(q.astype(jnp.bfloat16), k.astype(jnp.bfloat16),
                                (((1,), (1,)), ((), ())),
                                preferred_element_type=jnp.float32)   # (M, M)
        s = s + bias[h]                                         # bf16 bias -> f32 scores
        s = s - jnp.max(s, axis=-1, keepdims=True)
        e = jnp.exp(s)
        p = e * pl.reciprocal(jnp.sum(e, axis=-1, keepdims=True), approx=True)
        oh = _mm(p, v.astype(jnp.bfloat16))                     # (M, D)
        # Accumulate straight through the output projection: no per-head concat.
        attn = attn + _mm(oh, projw[h * head_dim:(h + 1) * head_dim, :])
    x = x + attn + projb[...]

    # ------------------- MLP branch --------------------
    y = _layernorm(x, n2g[...], n2b[...])
    y = _mm(y, w1[...]) + b1[...]
    y = _gelu(y)
    y = _mm(y, w2[...]) + b2[...]
    return x + y


def _patch_merge(x, refs, eps=1e-5):
    """PatchMerging on batch-flattened tokens, fully in-kernel.

    The 2x2 sub-grid gather is a set of exact one-hot f32 selection matmuls;
    the LayerNorm over the concatenated 4C channels is computed with split
    statistics, and the 4C->2C reduction is accumulated piecewise — so no
    strided reshapes, no gathers, and no lane concat of sub-tile pieces.
    """
    sel, ng, nb, rw = refs            # sel (4, M/4, M) f32 one-hot; rw (4, C, 2C) bf16
    pieces = [jnp.dot(sel[k], x, preferred_element_type=jnp.float32)
              for k in range(4)]
    cdim = pieces[0].shape[-1]
    mu = sum(jnp.sum(p, axis=-1, keepdims=True) for p in pieces) / (4.0 * cdim)
    var = (sum(jnp.sum(jnp.square(p - mu), axis=-1, keepdims=True) for p in pieces)
           / (4.0 * cdim))
    inv = jax.lax.rsqrt(var + eps)
    out = None
    for k in range(4):
        xn = (pieces[k] - mu) * inv * ng[k] + nb[k]
        contrib = _mm(xn, rw[k])
        out = contrib if out is None else out + contrib
    return out


def _head(x, refs):
    """Final LayerNorm -> AdaptiveAvgPool1d(1) over tokens -> Linear."""
    pool, ng, nb, fcw, fcb = refs
    xn = _layernorm(x, ng[...], nb[...])                        # (B*L, C)
    pooled = jnp.dot(pool[...], xn, preferred_element_type=jnp.float32)  # (B, C)
    return _mm(pooled, fcw[...]) + fcb[...]


# ------------------------------ fused kernel ---------------------------------
def swin_kernel(*refs):
    """Whole Swin forward for the full batch in one kernel invocation."""
    out_ref = refs[-1]
    it = iter(refs[:-1])

    # Patch embedding: conv-as-matmul, K zero-padded 12 -> 16.
    patches = next(it)
    pw, pb = next(it), next(it)
    x = _mm(patches[...], pw[...]) + pb[...]                    # (B*hp*wp, EMBED)

    dim = EMBED
    for s, (depth, heads) in enumerate(zip(DEPTHS, HEADS)):
        head_dim = dim // heads
        for _ in range(depth):
            blk = tuple(next(it) for _ in range(13))
            x = _swin_block(x, blk, heads, head_dim)
        if s < len(DEPTHS) - 1:
            mrg = tuple(next(it) for _ in range(4))
            x = _patch_merge(x, mrg)
            dim *= 2

    head = tuple(next(it) for _ in range(5))
    out_ref[...] = _head(x, head)


# --------------------------- static (numpy) helpers ---------------------------
def _rel_position_index(ws):
    coords = np.stack(np.meshgrid(np.arange(ws), np.arange(ws), indexing="ij"))
    cf = coords.reshape(2, -1)
    rel = (cf[:, :, None] - cf[:, None, :]).transpose(1, 2, 0).astype(np.int64)
    rel[:, :, 0] += ws - 1
    rel[:, :, 1] += ws - 1
    rel[:, :, 0] *= 2 * ws - 1
    return rel.sum(-1)  # (N, N)


def _shift_attn_mask(h, w, ws, shift):
    img = np.zeros((h, w), np.float32)
    cnt = 0
    for hs in (slice(0, -ws), slice(-ws, -shift), slice(-shift, None)):
        for wsl in (slice(0, -ws), slice(-ws, -shift), slice(-shift, None)):
            img[hs, wsl] = cnt
            cnt += 1
    mw = img.reshape(h // ws, ws, w // ws, ws).transpose(0, 2, 1, 3)
    mw = mw.reshape(-1, ws * ws)
    am = mw[:, None, :] - mw[:, :, None]
    return np.where(am != 0, -100.0, 0.0).astype(np.float32)  # (nW, N, N)


def build_attn_bias(rel_table, heads, h, w, ws, shift, batch):
    """Fold rel-pos bias + window partition + cyclic shift mask + batch
    separation into one block-diagonal (heads, B*L, B*L) bf16 bias over
    raster-ordered, batch-flattened tokens."""
    n = ws * ws
    l = h * w
    rt = np.asarray(rel_table, np.float32)                      # ((2ws-1)^2, heads)
    rel = rt[_rel_position_index(ws).reshape(-1)]
    rel = rel.reshape(n, n, heads).transpose(2, 0, 1)           # (heads, N, N)

    r, c = np.arange(l) // w, np.arange(l) % w
    rr, cc = (r - shift) % h, (c - shift) % w                   # coords after roll(-shift)
    win = (rr // ws) * (w // ws) + (cc // ws)                   # window id per token
    pos = (rr % ws) * ws + (cc % ws)                            # within-window position
    same = win[:, None] == win[None, :]

    if shift > 0:
        sm = _shift_attn_mask(h, w, ws, shift)                  # (nW, N, N)
        mask = sm[win[:, None], pos[:, None], pos[None, :]]
    else:
        mask = np.zeros((l, l), np.float32)
    mask = np.where(same, mask, NEG_INF).astype(np.float32)
    per_img = rel[:, pos[:, None], pos[None, :]] + mask[None]   # (heads, L, L)

    bias = np.full((heads, batch * l, batch * l), NEG_INF, np.float32)
    for b in range(batch):
        bias[:, b * l:(b + 1) * l, b * l:(b + 1) * l] = per_img
    return jnp.asarray(bias, jnp.bfloat16)


def build_merge_select(h, w, batch):
    """One-hot selection matrices for the 2x2 PatchMerging sub-grids,
    operating on batch-flattened raster-ordered tokens."""
    offs = ((0, 0), (1, 0), (0, 1), (1, 1))                     # x0, x1, x2, x3 order
    ho, wo = h // 2, w // 2
    sel = np.zeros((4, batch * ho * wo, batch * h * w), np.float32)
    for k, (dr, dc) in enumerate(offs):
        for b in range(batch):
            for i in range(ho):
                for j in range(wo):
                    dst = b * ho * wo + i * wo + j
                    src = b * h * w + (2 * i + dr) * w + (2 * j + dc)
                    sel[k, dst, src] = 1.0
    return jnp.asarray(sel)


def build_pool(batch, l):
    """Block-diagonal mean-pool matrix: (B, B*L) with 1/L entries."""
    pm = np.zeros((batch, batch * l), np.float32)
    for b in range(batch):
        pm[b, b * l:(b + 1) * l] = 1.0 / l
    return jnp.asarray(pm)


def _rough_flops(batch):
    hp = IMG // PATCH
    m = batch * hp * hp
    dim = EMBED
    flops = 2 * m * 16 * EMBED
    trans = 0
    for s, (depth, heads) in enumerate(zip(DEPTHS, HEADS)):
        hd = dim // heads
        hidden = MLP_RATIO * dim
        per_blk = (2 * m * dim * 3 * dim
                   + heads * 2 * m * m * hd * 2
                   + heads * 2 * m * hd * dim
                   + 2 * m * dim * hidden * 2)
        flops += depth * per_blk
        trans += depth * (heads * m * m + m * hidden)
        if s < len(DEPTHS) - 1:
            flops += 4 * 2 * (m // 4) * m * dim + 4 * 2 * (m // 4) * dim * 2 * dim
            m //= 4
            dim *= 2
    flops += 2 * batch * m * dim + 2 * batch * dim * NUM_CLASSES
    return int(flops), int(trans)


# ------------------------------ forward pass ----------------------------------
def swin_forward(params, x):
    b, cin, h, w = x.shape
    hp, wp = h // PATCH, w // PATCH
    # PatchEmbedding: Conv2d(3, embed_dim, patch, stride=patch) == patch-flatten
    # + matmul; K padded 12 -> 16 for sublane alignment (matmul runs in-kernel).
    # TODO(synk): reference PatchEmbedding internals unavailable; conv-as-matmul,
    # (cin, ph, pw) flattening order, no post-embed norm.
    patches = x.reshape(b, cin, hp, PATCH, wp, PATCH)
    patches = patches.transpose(0, 2, 4, 1, 3, 5).reshape(b * hp * wp,
                                                          cin * PATCH * PATCH)
    patches = jnp.pad(patches, ((0, 0), (0, 16 - cin * PATCH * PATCH)))

    all_args = [patches] + list(params)
    flops, trans = _rough_flops(b)
    bytes_accessed = sum(int(np.prod(a.shape)) * a.dtype.itemsize for a in all_args)
    bytes_accessed += b * NUM_CLASSES * 4

    return pl.pallas_call(
        swin_kernel,
        out_shape=jax.ShapeDtypeStruct((b, NUM_CLASSES), jnp.float32),
        in_specs=[_VMEM] * len(all_args),
        out_specs=_VMEM,
        cost_estimate=pl.CostEstimate(flops=flops, transcendentals=trans,
                                      bytes_accessed=bytes_accessed),
    )(*all_args)


# ------------------------------ parameter init --------------------------------
def init_params(key, batch):
    """Returns the flat list of kernel arguments (everything except patches),
    in the exact order swin_kernel consumes them."""
    keys = iter(jax.random.split(key, 128))

    def nrm(shape, scale=0.02):
        return (scale * jax.random.normal(next(keys), shape)).astype(jnp.float32)

    def bf16(a):
        return a.astype(jnp.bfloat16)

    args = []
    # patch embedding weight, zero-padded K 12 -> 16
    pw = jnp.zeros((16, EMBED), jnp.float32)
    pw = pw.at[:3 * PATCH * PATCH].set(nrm((3 * PATCH * PATCH, EMBED)))
    args += [bf16(pw), jnp.zeros((1, EMBED), jnp.float32)]

    dim = EMBED
    res = (IMG // PATCH, IMG // PATCH)
    for s, (depth, heads) in enumerate(zip(DEPTHS, HEADS)):
        for blk in range(depth):
            shift = 0 if blk % 2 == 0 else WS // 2
            rel_table = np.asarray(nrm(((2 * WS - 1) ** 2, heads)))
            hidden = MLP_RATIO * dim
            args += [
                jnp.ones((1, dim), jnp.float32),            # norm1 gamma
                jnp.zeros((1, dim), jnp.float32),           # norm1 beta
                bf16(nrm((dim, 3 * dim))),                  # qkv weight
                jnp.zeros((1, 3 * dim), jnp.float32),       # qkv bias
                bf16(nrm((dim, dim))),                      # proj weight
                jnp.zeros((1, dim), jnp.float32),           # proj bias
                # rel-pos gather + window structure + shift mask + batch block-diag
                # folded into one bf16 bias at setup time
                build_attn_bias(rel_table, heads, res[0], res[1], WS, shift, batch),
                jnp.ones((1, dim), jnp.float32),            # norm2 gamma
                jnp.zeros((1, dim), jnp.float32),           # norm2 beta
                bf16(nrm((dim, hidden))),                   # mlp fc1 weight
                jnp.zeros((1, hidden), jnp.float32),        # mlp fc1 bias
                bf16(nrm((hidden, dim))),                   # mlp fc2 weight
                jnp.zeros((1, dim), jnp.float32),           # mlp fc2 bias
            ]
        if s < len(DEPTHS) - 1:
            args += [
                build_merge_select(res[0], res[1], batch),  # (4, M/4, M) one-hot f32
                jnp.ones((4, 1, dim), jnp.float32),         # merge LN gamma (split 4C)
                jnp.zeros((4, 1, dim), jnp.float32),        # merge LN beta (split 4C)
                bf16(nrm((4, dim, 2 * dim))),               # reduction weight (split 4C)
            ]
            dim *= 2
            res = (res[0] // 2, res[1] // 2)

    nf = EMBED * 2 ** (len(DEPTHS) - 1)
    l_final = res[0] * res[1]
    args += [
        build_pool(batch, l_final),                         # (B, B*L) mean-pool matrix
        jnp.ones((1, nf), jnp.float32),                     # final LN gamma
        jnp.zeros((1, nf), jnp.float32),                    # final LN beta
        bf16(nrm((nf, NUM_CLASSES))),                       # classifier weight
        jnp.zeros((1, NUM_CLASSES), jnp.float32),           # classifier bias
    ]
    return args


# ---------------------------------- main ---------------------------------------
if __name__ == "__main__":
    root = jax.random.PRNGKey(0)
    pkey, xkey = jax.random.split(root)
    params = init_params(pkey, BATCH)
    x = jax.random.normal(xkey, (BATCH, 3, IMG, IMG), jnp.float32)

    fwd = jax.jit(swin_forward)
    out = jax.block_until_ready(fwd(params, x))
    assert out.shape == (BATCH, NUM_CLASSES), out.shape
    assert bool(jnp.all(jnp.isfinite(out)))
    print("KERNEL_OK")
</pallas_src>

<mosaic_0001>
module attributes {stable_mosaic.version = 11 : i64} {
  func.func @swin_kernel(%arg0: memref<128x16xf32, #tpu.memory_space<vmem>>, %arg1: memref<16x16xbf16, #tpu.memory_space<vmem>>, %arg2: memref<1x16xf32, #tpu.memory_space<vmem>>, %arg3: memref<1x16xf32, #tpu.memory_space<vmem>>, %arg4: memref<1x16xf32, #tpu.memory_space<vmem>>, %arg5: memref<16x48xbf16, #tpu.memory_space<vmem>>, %arg6: memref<1x48xf32, #tpu.memory_space<vmem>>, %arg7: memref<16x16xbf16, #tpu.memory_space<vmem>>, %arg8: memref<1x16xf32, #tpu.memory_space<vmem>>, %arg9: memref<2x128x128xbf16, #tpu.memory_space<vmem>>, %arg10: memref<1x16xf32, #tpu.memory_space<vmem>>, %arg11: memref<1x16xf32, #tpu.memory_space<vmem>>, %arg12: memref<16x64xbf16, #tpu.memory_space<vmem>>, %arg13: memref<1x64xf32, #tpu.memory_space<vmem>>, %arg14: memref<64x16xbf16, #tpu.memory_space<vmem>>, %arg15: memref<1x16xf32, #tpu.memory_space<vmem>>, %arg16: memref<1x16xf32, #tpu.memory_space<vmem>>, %arg17: memref<1x16xf32, #tpu.memory_space<vmem>>, %arg18: memref<16x48xbf16, #tpu.memory_space<vmem>>, %arg19: memref<1x48xf32, #tpu.memory_space<vmem>>, %arg20: memref<16x16xbf16, #tpu.memory_space<vmem>>, %arg21: memref<1x16xf32, #tpu.memory_space<vmem>>, %arg22: memref<2x128x128xbf16, #tpu.memory_space<vmem>>, %arg23: memref<1x16xf32, #tpu.memory_space<vmem>>, %arg24: memref<1x16xf32, #tpu.memory_space<vmem>>, %arg25: memref<16x64xbf16, #tpu.memory_space<vmem>>, %arg26: memref<1x64xf32, #tpu.memory_space<vmem>>, %arg27: memref<64x16xbf16, #tpu.memory_space<vmem>>, %arg28: memref<1x16xf32, #tpu.memory_space<vmem>>, %arg29: memref<4x32x128xf32, #tpu.memory_space<vmem>>, %arg30: memref<4x1x16xf32, #tpu.memory_space<vmem>>, %arg31: memref<4x1x16xf32, #tpu.memory_space<vmem>>, %arg32: memref<4x16x32xbf16, #tpu.memory_space<vmem>>, %arg33: memref<1x32xf32, #tpu.memory_space<vmem>>, %arg34: memref<1x32xf32, #tpu.memory_space<vmem>>, %arg35: memref<32x96xbf16, #tpu.memory_space<vmem>>, %arg36: memref<1x96xf32, #tpu.memory_space<vmem>>, %arg37: memref<32x32xbf16, #tpu.memory_space<vmem>>, %arg38: memref<1x32xf32, #tpu.memory_space<vmem>>, %arg39: memref<4x32x32xbf16, #tpu.memory_space<vmem>>, %arg40: memref<1x32xf32, #tpu.memory_space<vmem>>, %arg41: memref<1x32xf32, #tpu.memory_space<vmem>>, %arg42: memref<32x128xbf16, #tpu.memory_space<vmem>>, %arg43: memref<1x128xf32, #tpu.memory_space<vmem>>, %arg44: memref<128x32xbf16, #tpu.memory_space<vmem>>, %arg45: memref<1x32xf32, #tpu.memory_space<vmem>>, %arg46: memref<1x32xf32, #tpu.memory_space<vmem>>, %arg47: memref<1x32xf32, #tpu.memory_space<vmem>>, %arg48: memref<32x96xbf16, #tpu.memory_space<vmem>>, %arg49: memref<1x96xf32, #tpu.memory_space<vmem>>, %arg50: memref<32x32xbf16, #tpu.memory_space<vmem>>, %arg51: memref<1x32xf32, #tpu.memory_space<vmem>>, %arg52: memref<4x32x32xbf16, #tpu.memory_space<vmem>>, %arg53: memref<1x32xf32, #tpu.memory_space<vmem>>, %arg54: memref<1x32xf32, #tpu.memory_space<vmem>>, %arg55: memref<32x128xbf16, #tpu.memory_space<vmem>>, %arg56: memref<1x128xf32, #tpu.memory_space<vmem>>, %arg57: memref<128x32xbf16, #tpu.memory_space<vmem>>, %arg58: memref<1x32xf32, #tpu.memory_space<vmem>>, %arg59: memref<2x32xf32, #tpu.memory_space<vmem>>, %arg60: memref<1x32xf32, #tpu.memory_space<vmem>>, %arg61: memref<1x32xf32, #tpu.memory_space<vmem>>, %arg62: memref<32x10xbf16, #tpu.memory_space<vmem>>, %arg63: memref<1x10xf32, #tpu.memory_space<vmem>>, %arg64: memref<2x10xf32, #tpu.memory_space<vmem>>) attributes {dimension_semantics = [], scalar_prefetch = 0 : i64, scratch_operands = 0 : i64, tpu.core_type = #tpu.core_type<tc>} {
    %c0 = arith.constant 0 : index
    %c0_0 = arith.constant 0 : index
    %0 = vector.load %arg0[%c0, %c0_0] : memref<128x16xf32, #tpu.memory_space<vmem>>, vector<128x16xf32>
    %c0_1 = arith.constant 0 : index
    %c0_2 = arith.constant 0 : index
    %1 = vector.load %arg1[%c0_1, %c0_2] : memref<16x16xbf16, #tpu.memory_space<vmem>>, vector<16x16xbf16>
    %2 = arith.truncf %0 : vector<128x16xf32> to vector<128x16xbf16>
    %cst = arith.constant dense<0.000000e+00> : vector<128x16xf32>
    %3 = tpu.matmul %2, %1, %cst {dimension_numbers = #tpu.dot_dimension_numbers<[1], [0], [0], [1], [0, 0, 1, 1], [], []>} : vector<128x16xbf16>, vector<16x16xbf16>, vector<128x16xf32> -> vector<128x16xf32>
    %c0_3 = arith.constant 0 : index
    %c0_4 = arith.constant 0 : index
    %4 = vector.load %arg2[%c0_3, %c0_4] : memref<1x16xf32, #tpu.memory_space<vmem>>, vector<1x16xf32>
    %5 = vector.broadcast %4 : vector<1x16xf32> to vector<128x16xf32>
    %6 = arith.addf %3, %5 : vector<128x16xf32>
    %c0_5 = arith.constant 0 : index
    %c0_6 = arith.constant 0 : index
    %7 = vector.load %arg3[%c0_5, %c0_6] : memref<1x16xf32, #tpu.memory_space<vmem>>, vector<1x16xf32>
    %c0_7 = arith.constant 0 : index
    %c0_8 = arith.constant 0 : index
    %8 = vector.load %arg4[%c0_7, %c0_8] : memref<1x16xf32, #tpu.memory_space<vmem>>, vector<1x16xf32>
    %cst_9 = arith.constant dense<0.000000e+00> : vector<128xf32>
    %9 = vector.multi_reduction <add>, %6, %cst_9 [1] : vector<128x16xf32> to vector<128xf32>
    %10 = vector.shape_cast %9 : vector<128xf32> to vector<128x1xf32>
    %cst_10 = arith.constant 1.600000e+01 : f32
    %11 = vector.broadcast %cst_10 : f32 to vector<128x1xf32>
    %12 = arith.divf %10, %11 : vector<128x1xf32>
    %13 = vector.broadcast %12 : vector<128x1xf32> to vector<128x16xf32>
    %14 = arith.subf %6, %13 : vector<128x16xf32>
    %15 = arith.mulf %14, %14 : vector<128x16xf32>
    %cst_11 = arith.constant dense<0.000000e+00> : vector<128xf32>
    %16 = vector.multi_reduction <add>, %15, %cst_11 [1] : vector<128x16xf32> to vector<128xf32>
    %17 = vector.shape_cast %16 : vector<128xf32> to vector<128x1xf32>
    %cst_12 = arith.constant 1.600000e+01 : f32
    %18 = vector.broadcast %cst_12 : f32 to vector<128x1xf32>
    %19 = arith.divf %17, %18 : vector<128x1xf32>
    %20 = vector.broadcast %12 : vector<128x1xf32> to vector<128x16xf32>
    %21 = arith.subf %6, %20 : vector<128x16xf32>
    %cst_13 = arith.constant 9.99999974E-6 : f32
    %22 = vector.broadcast %cst_13 : f32 to vector<128x1xf32>
    %23 = arith.addf %19, %22 : vector<128x1xf32>
    %24 = math.rsqrt %23 : vector<128x1xf32>
    %25 = vector.broadcast %24 : vector<128x1xf32> to vector<128x16xf32>
    %26 = arith.mulf %21, %25 : vector<128x16xf32>
    %27 = vector.broadcast %7 : vector<1x16xf32> to vector<128x16xf32>
    %28 = arith.mulf %26, %27 : vector<128x16xf32>
    %29 = vector.broadcast %8 : vector<1x16xf32> to vector<128x16xf32>
    %30 = arith.addf %28, %29 : vector<128x16xf32>
    %c0_14 = arith.constant 0 : index
    %c0_15 = arith.constant 0 : index
    %31 = vector.load %arg5[%c0_14, %c0_15] : memref<16x48xbf16, #tpu.memory_space<vmem>>, vector<16x48xbf16>
    %32 = arith.truncf %30 : vector<128x16xf32> to vector<128x16xbf16>
    %cst_16 = arith.constant dense<0.000000e+00> : vector<128x48xf32>
    %33 = tpu.matmul %32, %31, %cst_16 {dimension_numbers = #tpu.dot_dimension_numbers<[1], [0], [0], [1], [0, 0, 1, 1], [], []>} : vector<128x16xbf16>, vector<16x48xbf16>, vector<128x48xf32> -> vector<128x48xf32>
    %c0_17 = arith.constant 0 : index
    %c0_18 = arith.constant 0 : index
    %34 = vector.load %arg6[%c0_17, %c0_18] : memref<1x48xf32, #tpu.memory_space<vmem>>, vector<1x48xf32>
    %35 = vector.broadcast %34 : vector<1x48xf32> to vector<128x48xf32>
    %36 = arith.addf %33, %35 : vector<128x48xf32>
    %cst_19 = arith.constant 0.000000e+00 : f32
    %37 = vector.broadcast %cst_19 : f32 to vector<128x16xf32>
    %38 = vector.extract_strided_slice %36 {offsets = [0, 0], sizes = [128, 8], strides = [1, 1]} : vector<128x48xf32> to vector<128x8xf32>
    %cst_20 = arith.constant 0.353553385 : f32
    %39 = vector.broadcast %cst_20 : f32 to vector<128x8xf32>
    %40 = arith.mulf %38, %39 : vector<128x8xf32>
    %41 = vector.extract_strided_slice %36 {offsets = [0, 16], sizes = [128, 8], strides = [1, 1]} : vector<128x48xf32> to vector<128x8xf32>
    %42 = vector.extract_strided_slice %36 {offsets = [0, 32], sizes = [128, 8], strides = [1, 1]} : vector<128x48xf32> to vector<128x8xf32>
    %43 = arith.truncf %40 : vector<128x8xf32> to vector<128x8xbf16>
    %44 = arith.truncf %41 : vector<128x8xf32> to vector<128x8xbf16>
    %cst_21 = arith.constant dense<0.000000e+00> : vector<128x128xf32>
    %45 = tpu.matmul %43, %44, %cst_21 {dimension_numbers = #tpu.dot_dimension_numbers<[1], [1], [0], [0], [0, 0, 1, 0], [], []>} : vector<128x8xbf16>, vector<128x8xbf16>, vector<128x128xf32> -> vector<128x128xf32>
    %c0_22 = arith.constant 0 : index
    %c0_23 = arith.constant 0 : index
    %c0_24 = arith.constant 0 : index
    %46 = vector.load %arg9[%c0_22, %c0_23, %c0_24] : memref<2x128x128xbf16, #tpu.memory_space<vmem>>, vector<1x128x128xbf16>
    %47 = vector.shape_cast %46 : vector<1x128x128xbf16> to vector<128x128xbf16>
    %48 = arith.extf %47 : vector<128x128xbf16> to vector<128x128xf32>
    %49 = arith.addf %45, %48 : vector<128x128xf32>
    %cst_25 = arith.constant dense<0xFF800000> : vector<128xf32>
    %50 = vector.multi_reduction <maximumf>, %49, %cst_25 [1] : vector<128x128xf32> to vector<128xf32>
    %51 = vector.shape_cast %50 : vector<128xf32> to vector<128x1xf32>
    %52 = vector.broadcast %51 : vector<128x1xf32> to vector<128x128xf32>
    %53 = arith.subf %49, %52 : vector<128x128xf32>
    %54 = math.exp %53 : vector<128x128xf32>
    %cst_26 = arith.constant dense<0.000000e+00> : vector<128xf32>
    %55 = vector.multi_reduction <add>, %54, %cst_26 [1] : vector<128x128xf32> to vector<128xf32>
    %56 = vector.shape_cast %55 : vector<128xf32> to vector<128x1xf32>
    %57 = tpu.reciprocal %56 {approx = true} : vector<128x1xf32> -> vector<128x1xf32>
    %58 = vector.broadcast %57 : vector<128x1xf32> to vector<128x128xf32>
    %59 = arith.mulf %54, %58 : vector<128x128xf32>
    %60 = arith.truncf %42 : vector<128x8xf32> to vector<128x8xbf16>
    %61 = arith.truncf %59 : vector<128x128xf32> to vector<128x128xbf16>
    %cst_27 = arith.constant dense<0.000000e+00> : vector<128x8xf32>
    %62 = tpu.matmul %61, %60, %cst_27 {dimension_numbers = #tpu.dot_dimension_numbers<[1], [0], [0], [1], [0, 0, 1, 1], [], []>} : vector<128x128xbf16>, vector<128x8xbf16>, vector<128x8xf32> -> vector<128x8xf32>
    %c0_28 = arith.constant 0 : index
    %c0_29 = arith.constant 0 : index
    %63 = vector.load %arg7[%c0_28, %c0_29] : memref<16x16xbf16, #tpu.memory_space<vmem>>, vector<8x16xbf16>
    %64 = arith.truncf %62 : vector<128x8xf32> to vector<128x8xbf16>
    %cst_30 = arith.constant dense<0.000000e+00> : vector<128x16xf32>
    %65 = tpu.matmul %64, %63, %cst_30 {dimension_numbers = #tpu.dot_dimension_numbers<[1], [0], [0], [1], [0, 0, 1, 1], [], []>} : vector<128x8xbf16>, vector<8x16xbf16>, vector<128x16xf32> -> vector<128x16xf32>
    %66 = arith.addf %37, %65 : vector<128x16xf32>
    %67 = vector.extract_strided_slice %36 {offsets = [0, 8], sizes = [128, 8], strides = [1, 1]} : vector<128x48xf32> to vector<128x8xf32>
    %cst_31 = arith.constant 0.353553385 : f32
    %68 = vector.broadcast %cst_31 : f32 to vector<128x8xf32>
    %69 = arith.mulf %67, %68 : vector<128x8xf32>
    %70 = vector.extract_strided_slice %36 {offsets = [0, 24], sizes = [128, 8], strides = [1, 1]} : vector<128x48xf32> to vector<128x8xf32>
    %71 = vector.extract_strided_slice %36 {offsets = [0, 40], sizes = [128, 8], strides = [1, 1]} : vector<128x48xf32> to vector<128x8xf32>
    %72 = arith.truncf %69 : vector<128x8xf32> to vector<128x8xbf16>
    %73 = arith.truncf %70 : vector<128x8xf32> to vector<128x8xbf16>
    %cst_32 = arith.constant dense<0.000000e+00> : vector<128x128xf32>
    %74 = tpu.matmul %72, %73, %cst_32 {dimension_numbers = #tpu.dot_dimension_numbers<[1], [1], [0], [0], [0, 0, 1, 0], [], []>} : vector<128x8xbf16>, vector<128x8xbf16>, vector<128x128xf32> -> vector<128x128xf32>
    %c1 = arith.constant 1 : index
    %c0_33 = arith.constant 0 : index
    %c0_34 = arith.constant 0 : index
    %75 = vector.load %arg9[%c1, %c0_33, %c0_34] : memref<2x128x128xbf16, #tpu.memory_space<vmem>>, vector<1x128x128xbf16>
    %76 = vector.shape_cast %75 : vector<1x128x128xbf16> to vector<128x128xbf16>
    %77 = arith.extf %76 : vector<128x128xbf16> to vector<128x128xf32>
    %78 = arith.addf %74, %77 : vector<128x128xf32>
    %cst_35 = arith.constant dense<0xFF800000> : vector<128xf32>
    %79 = vector.multi_reduction <maximumf>, %78, %cst_35 [1] : vector<128x128xf32> to vector<128xf32>
    %80 = vector.shape_cast %79 : vector<128xf32> to vector<128x1xf32>
    %81 = vector.broadcast %80 : vector<128x1xf32> to vector<128x128xf32>
    %82 = arith.subf %78, %81 : vector<128x128xf32>
    %83 = math.exp %82 : vector<128x128xf32>
    %cst_36 = arith.constant dense<0.000000e+00> : vector<128xf32>
    %84 = vector.multi_reduction <add>, %83, %cst_36 [1] : vector<128x128xf32> to vector<128xf32>
    %85 = vector.shape_cast %84 : vector<128xf32> to vector<128x1xf32>
    %86 = tpu.reciprocal %85 {approx = true} : vector<128x1xf32> -> vector<128x1xf32>
    %87 = vector.broadcast %86 : vector<128x1xf32> to vector<128x128xf32>
    %88 = arith.mulf %83, %87 : vector<128x128xf32>
    %89 = arith.truncf %71 : vector<128x8xf32> to vector<128x8xbf16>
    %90 = arith.truncf %88 : vector<128x128xf32> to vector<128x128xbf16>
    %cst_37 = arith.constant dense<0.000000e+00> : vector<128x8xf32>
    %91 = tpu.matmul %90, %89, %cst_37 {dimension_numbers = #tpu.dot_dimension_numbers<[1], [0], [0], [1], [0, 0, 1, 1], [], []>} : vector<128x128xbf16>, vector<128x8xbf16>, vector<128x8xf32> -> vector<128x8xf32>
    %c8 = arith.constant 8 : index
    %c0_38 = arith.constant 0 : index
    %92 = vector.load %arg7[%c8, %c0_38] : memref<16x16xbf16, #tpu.memory_space<vmem>>, vector<8x16xbf16>
    %93 = arith.truncf %91 : vector<128x8xf32> to vector<128x8xbf16>
    %cst_39 = arith.constant dense<0.000000e+00> : vector<128x16xf32>
    %94 = tpu.matmul %93, %92, %cst_39 {dimension_numbers = #tpu.dot_dimension_numbers<[1], [0], [0], [1], [0, 0, 1, 1], [], []>} : vector<128x8xbf16>, vector<8x16xbf16>, vector<128x16xf32> -> vector<128x16xf32>
    %95 = arith.addf %66, %94 : vector<128x16xf32>
    %96 = arith.addf %6, %95 : vector<128x16xf32>
    %c0_40 = arith.constant 0 : index
    %c0_41 = arith.constant 0 : index
    %97 = vector.load %arg8[%c0_40, %c0_41] : memref<1x16xf32, #tpu.memory_space<vmem>>, vector<1x16xf32>
    %98 = vector.broadcast %97 : vector<1x16xf32> to vector<128x16xf32>
    %99 = arith.addf %96, %98 : vector<128x16xf32>
    %c0_42 = arith.constant 0 : index
    %c0_43 = arith.constant 0 : index
    %100 = vector.load %arg10[%c0_42, %c0_43] : memref<1x16xf32, #tpu.memory_space<vmem>>, vector<1x16xf32>
    %c0_44 = arith.constant 0 : index
    %c0_45 = arith.constant 0 : index
    %101 = vector.load %arg11[%c0_44, %c0_45] : memref<1x16xf32, #tpu.memory_space<vmem>>, vector<1x16xf32>
    %cst_46 = arith.constant dense<0.000000e+00> : vector<128xf32>
    %102 = vector.multi_reduction <add>, %99, %cst_46 [1] : vector<128x16xf32> to vector<128xf32>
    %103 = vector.shape_cast %102 : vector<128xf32> to vector<128x1xf32>
    %cst_47 = arith.constant 1.600000e+01 : f32
    %104 = vector.broadcast %cst_47 : f32 to vector<128x1xf32>
    %105 = arith.divf %103, %104 : vector<128x1xf32>
    %106 = vector.broadcast %105 : vector<128x1xf32> to vector<128x16xf32>
    %107 = arith.subf %99, %106 : vector<128x16xf32>
    %108 = arith.mulf %107, %107 : vector<128x16xf32>
    %cst_48 = arith.constant dense<0.000000e+00> : vector<128xf32>
    %109 = vector.multi_reduction <add>, %108, %cst_48 [1] : vector<128x16xf32> to vector<128xf32>
    %110 = vector.shape_cast %109 : vector<128xf32> to vector<128x1xf32>
    %cst_49 = arith.constant 1.600000e+01 : f32
    %111 = vector.broadcast %cst_49 : f32 to vector<128x1xf32>
    %112 = arith.divf %110, %111 : vector<128x1xf32>
    %113 = vector.broadcast %105 : vector<128x1xf32> to vector<128x16xf32>
    %114 = arith.subf %99, %113 : vector<128x16xf32>
    %cst_50 = arith.constant 9.99999974E-6 : f32
    %115 = vector.broadcast %cst_50 : f32 to vector<128x1xf32>
    %116 = arith.addf %112, %115 : vector<128x1xf32>
    %117 = math.rsqrt %116 : vector<128x1xf32>
    %118 = vector.broadcast %117 : vector<128x1xf32> to vector<128x16xf32>
    %119 = arith.mulf %114, %118 : vector<128x16xf32>
    %120 = vector.broadcast %100 : vector<1x16xf32> to vector<128x16xf32>
    %121 = arith.mulf %119, %120 : vector<128x16xf32>
    %122 = vector.broadcast %101 : vector<1x16xf32> to vector<128x16xf32>
    %123 = arith.addf %121, %122 : vector<128x16xf32>
    %c0_51 = arith.constant 0 : index
    %c0_52 = arith.constant 0 : index
    %124 = vector.load %arg12[%c0_51, %c0_52] : memref<16x64xbf16, #tpu.memory_space<vmem>>, vector<16x64xbf16>
    %125 = arith.truncf %123 : vector<128x16xf32> to vector<128x16xbf16>
    %cst_53 = arith.constant dense<0.000000e+00> : vector<128x64xf32>
    %126 = tpu.matmul %125, %124, %cst_53 {dimension_numbers = #tpu.dot_dimension_numbers<[1], [0], [0], [1], [0, 0, 1, 1], [], []>} : vector<128x16xbf16>, vector<16x64xbf16>, vector<128x64xf32> -> vector<128x64xf32>
    %c0_54 = arith.constant 0 : index
    %c0_55 = arith.constant 0 : index
    %127 = vector.load %arg13[%c0_54, %c0_55] : memref<1x64xf32, #tpu.memory_space<vmem>>, vector<1x64xf32>
    %128 = vector.broadcast %127 : vector<1x64xf32> to vector<128x64xf32>
    %129 = arith.addf %126, %128 : vector<128x64xf32>
    %cst_56 = arith.constant 5.000000e-01 : f32
    %130 = vector.broadcast %cst_56 : f32 to vector<128x64xf32>
    %131 = arith.mulf %130, %129 : vector<128x64xf32>
    %cst_57 = arith.constant 4.471500e-02 : f32
    %132 = vector.broadcast %cst_57 : f32 to vector<128x64xf32>
    %133 = arith.mulf %132, %129 : vector<128x64xf32>
    %134 = arith.mulf %133, %129 : vector<128x64xf32>
    %135 = arith.mulf %134, %129 : vector<128x64xf32>
    %136 = arith.addf %129, %135 : vector<128x64xf32>
    %cst_58 = arith.constant 0.797884583 : f32
    %137 = vector.broadcast %cst_58 : f32 to vector<128x64xf32>
    %138 = arith.mulf %137, %136 : vector<128x64xf32>
    %139 = math.tanh %138 : vector<128x64xf32>
    %cst_59 = arith.constant 1.000000e+00 : f32
    %140 = vector.broadcast %cst_59 : f32 to vector<128x64xf32>
    %141 = arith.addf %140, %139 : vector<128x64xf32>
    %142 = arith.mulf %131, %141 : vector<128x64xf32>
    %c0_60 = arith.constant 0 : index
    %c0_61 = arith.constant 0 : index
    %143 = vector.load %arg14[%c0_60, %c0_61] : memref<64x16xbf16, #tpu.memory_space<vmem>>, vector<64x16xbf16>
    %144 = arith.truncf %142 : vector<128x64xf32> to vector<128x64xbf16>
    %cst_62 = arith.constant dense<0.000000e+00> : vector<128x16xf32>
    %145 = tpu.matmul %144, %143, %cst_62 {dimension_numbers = #tpu.dot_dimension_numbers<[1], [0], [0], [1], [0, 0, 1, 1], [], []>} : vector<128x64xbf16>, vector<64x16xbf16>, vector<128x16xf32> -> vector<128x16xf32>
    %c0_63 = arith.constant 0 : index
    %c0_64 = arith.constant 0 : index
    %146 = vector.load %arg15[%c0_63, %c0_64] : memref<1x16xf32, #tpu.memory_space<vmem>>, vector<1x16xf32>
    %147 = vector.broadcast %146 : vector<1x16xf32> to vector<128x16xf32>
    %148 = arith.addf %145, %147 : vector<128x16xf32>
    %149 = arith.addf %99, %148 : vector<128x16xf32>
    %c0_65 = arith.constant 0 : index
    %c0_66 = arith.constant 0 : index
    %150 = vector.load %arg16[%c0_65, %c0_66] : memref<1x16xf32, #tpu.memory_space<vmem>>, vector<1x16xf32>
    %c0_67 = arith.constant 0 : index
    %c0_68 = arith.constant 0 : index
    %151 = vector.load %arg17[%c0_67, %c0_68] : memref<1x16xf32, #tpu.memory_space<vmem>>, vector<1x16xf32>
    %cst_69 = arith.constant dense<0.000000e+00> : vector<128xf32>
    %152 = vector.multi_reduction <add>, %149, %cst_69 [1] : vector<128x16xf32> to vector<128xf32>
    %153 = vector.shape_cast %152 : vector<128xf32> to vector<128x1xf32>
    %cst_70 = arith.constant 1.600000e+01 : f32
    %154 = vector.broadcast %cst_70 : f32 to vector<128x1xf32>
    %155 = arith.divf %153, %154 : vector<128x1xf32>
    %156 = vector.broadcast %155 : vector<128x1xf32> to vector<128x16xf32>
    %157 = arith.subf %149, %156 : vector<128x16xf32>
    %158 = arith.mulf %157, %157 : vector<128x16xf32>
    %cst_71 = arith.constant dense<0.000000e+00> : vector<128xf32>
    %159 = vector.multi_reduction <add>, %158, %cst_71 [1] : vector<128x16xf32> to vector<128xf32>
    %160 = vector.shape_cast %159 : vector<128xf32> to vector<128x1xf32>
    %cst_72 = arith.constant 1.600000e+01 : f32
    %161 = vector.broadcast %cst_72 : f32 to vector<128x1xf32>
    %162 = arith.divf %160, %161 : vector<128x1xf32>
    %163 = vector.broadcast %155 : vector<128x1xf32> to vector<128x16xf32>
    %164 = arith.subf %149, %163 : vector<128x16xf32>
    %cst_73 = arith.constant 9.99999974E-6 : f32
    %165 = vector.broadcast %cst_73 : f32 to vector<128x1xf32>
    %166 = arith.addf %162, %165 : vector<128x1xf32>
    %167 = math.rsqrt %166 : vector<128x1xf32>
    %168 = vector.broadcast %167 : vector<128x1xf32> to vector<128x16xf32>
    %169 = arith.mulf %164, %168 : vector<128x16xf32>
    %170 = vector.broadcast %150 : vector<1x16xf32> to vector<128x16xf32>
    %171 = arith.mulf %169, %170 : vector<128x16xf32>
    %172 = vector.broadcast %151 : vector<1x16xf32> to vector<128x16xf32>
    %173 = arith.addf %171, %172 : vector<128x16xf32>
    %c0_74 = arith.constant 0 : index
    %c0_75 = arith.constant 0 : index
    %174 = vector.load %arg18[%c0_74, %c0_75] : memref<16x48xbf16, #tpu.memory_space<vmem>>, vector<16x48xbf16>
    %175 = arith.truncf %173 : vector<128x16xf32> to vector<128x16xbf16>
    %cst_76 = arith.constant dense<0.000000e+00> : vector<128x48xf32>
    %176 = tpu.matmul %175, %174, %cst_76 {dimension_numbers = #tpu.dot_dimension_numbers<[1], [0], [0], [1], [0, 0, 1, 1], [], []>} : vector<128x16xbf16>, vector<16x48xbf16>, vector<128x48xf32> -> vector<128x48xf32>
    %c0_77 = arith.constant 0 : index
    %c0_78 = arith.constant 0 : index
    %177 = vector.load %arg19[%c0_77, %c0_78] : memref<1x48xf32, #tpu.memory_space<vmem>>, vector<1x48xf32>
    %178 = vector.broadcast %177 : vector<1x48xf32> to vector<128x48xf32>
    %179 = arith.addf %176, %178 : vector<128x48xf32>
    %cst_79 = arith.constant 0.000000e+00 : f32
    %180 = vector.broadcast %cst_79 : f32 to vector<128x16xf32>
    %181 = vector.extract_strided_slice %179 {offsets = [0, 0], sizes = [128, 8], strides = [1, 1]} : vector<128x48xf32> to vector<128x8xf32>
    %cst_80 = arith.constant 0.353553385 : f32
    %182 = vector.broadcast %cst_80 : f32 to vector<128x8xf32>
    %183 = arith.mulf %181, %182 : vector<128x8xf32>
    %184 = vector.extract_strided_slice %179 {offsets = [0, 16], sizes = [128, 8], strides = [1, 1]} : vector<128x48xf32> to vector<128x8xf32>
    %185 = vector.extract_strided_slice %179 {offsets = [0, 32], sizes = [128, 8], strides = [1, 1]} : vector<128x48xf32> to vector<128x8xf32>
    %186 = arith.truncf %183 : vector<128x8xf32> to vector<128x8xbf16>
    %187 = arith.truncf %184 : vector<128x8xf32> to vector<128x8xbf16>
    %cst_81 = arith.constant dense<0.000000e+00> : vector<128x128xf32>
    %188 = tpu.matmul %186, %187, %cst_81 {dimension_numbers = #tpu.dot_dimension_numbers<[1], [1], [0], [0], [0, 0, 1, 0], [], []>} : vector<128x8xbf16>, vector<128x8xbf16>, vector<128x128xf32> -> vector<128x128xf32>
    %c0_82 = arith.constant 0 : index
    %c0_83 = arith.constant 0 : index
    %c0_84 = arith.constant 0 : index
    %189 = vector.load %arg22[%c0_82, %c0_83, %c0_84] : memref<2x128x128xbf16, #tpu.memory_space<vmem>>, vector<1x128x128xbf16>
    %190 = vector.shape_cast %189 : vector<1x128x128xbf16> to vector<128x128xbf16>
    %191 = arith.extf %190 : vector<128x128xbf16> to vector<128x128xf32>
    %192 = arith.addf %188, %191 : vector<128x128xf32>
    %cst_85 = arith.constant dense<0xFF800000> : vector<128xf32>
    %193 = vector.multi_reduction <maximumf>, %192, %cst_85 [1] : vector<128x128xf32> to vector<128xf32>
    %194 = vector.shape_cast %193 : vector<128xf32> to vector<128x1xf32>
    %195 = vector.broadcast %194 : vector<128x1xf32> to vector<128x128xf32>
    %196 = arith.subf %192, %195 : vector<128x128xf32>
    %197 = math.exp %196 : vector<128x128xf32>
    %cst_86 = arith.constant dense<0.000000e+00> : vector<128xf32>
    %198 = vector.multi_reduction <add>, %197, %cst_86 [1] : vector<128x128xf32> to vector<128xf32>
    %199 = vector.shape_cast %198 : vector<128xf32> to vector<128x1xf32>
    %200 = tpu.reciprocal %199 {approx = true} : vector<128x1xf32> -> vector<128x1xf32>
    %201 = vector.broadcast %200 : vector<128x1xf32> to vector<128x128xf32>
    %202 = arith.mulf %197, %201 : vector<128x128xf32>
    %203 = arith.truncf %185 : vector<128x8xf32> to vector<128x8xbf16>
    %204 = arith.truncf %202 : vector<128x128xf32> to vector<128x128xbf16>
    %cst_87 = arith.constant dense<0.000000e+00> : vector<128x8xf32>
    %205 = tpu.matmul %204, %203, %cst_87 {dimension_numbers = #tpu.dot_dimension_numbers<[1], [0], [0], [1], [0, 0, 1, 1], [], []>} : vector<128x128xbf16>, vector<128x8xbf16>, vector<128x8xf32> -> vector<128x8xf32>
    %c0_88 = arith.constant 0 : index
    %c0_89 = arith.constant 0 : index
    %206 = vector.load %arg20[%c0_88, %c0_89] : memref<16x16xbf16, #tpu.memory_space<vmem>>, vector<8x16xbf16>
    %207 = arith.truncf %205 : vector<128x8xf32> to vector<128x8xbf16>
    %cst_90 = arith.constant dense<0.000000e+00> : vector<128x16xf32>
    %208 = tpu.matmul %207, %206, %cst_90 {dimension_numbers = #tpu.dot_dimension_numbers<[1], [0], [0], [1], [0, 0, 1, 1], [], []>} : vector<128x8xbf16>, vector<8x16xbf16>, vector<128x16xf32> -> vector<128x16xf32>
    %209 = arith.addf %180, %208 : vector<128x16xf32>
    %210 = vector.extract_strided_slice %179 {offsets = [0, 8], sizes = [128, 8], strides = [1, 1]} : vector<128x48xf32> to vector<128x8xf32>
    %cst_91 = arith.constant 0.353553385 : f32
    %211 = vector.broadcast %cst_91 : f32 to vector<128x8xf32>
    %212 = arith.mulf %210, %211 : vector<128x8xf32>
    %213 = vector.extract_strided_slice %179 {offsets = [0, 24], sizes = [128, 8], strides = [1, 1]} : vector<128x48xf32> to vector<128x8xf32>
    %214 = vector.extract_strided_slice %179 {offsets = [0, 40], sizes = [128, 8], strides = [1, 1]} : vector<128x48xf32> to vector<128x8xf32>
    %215 = arith.truncf %212 : vector<128x8xf32> to vector<128x8xbf16>
    %216 = arith.truncf %213 : vector<128x8xf32> to vector<128x8xbf16>
    %cst_92 = arith.constant dense<0.000000e+00> : vector<128x128xf32>
    %217 = tpu.matmul %215, %216, %cst_92 {dimension_numbers = #tpu.dot_dimension_numbers<[1], [1], [0], [0], [0, 0, 1, 0], [], []>} : vector<128x8xbf16>, vector<128x8xbf16>, vector<128x128xf32> -> vector<128x128xf32>
    %c1_93 = arith.constant 1 : index
    %c0_94 = arith.constant 0 : index
    %c0_95 = arith.constant 0 : index
    %218 = vector.load %arg22[%c1_93, %c0_94, %c0_95] : memref<2x128x128xbf16, #tpu.memory_space<vmem>>, vector<1x128x128xbf16>
    %219 = vector.shape_cast %218 : vector<1x128x128xbf16> to vector<128x128xbf16>
    %220 = arith.extf %219 : vector<128x128xbf16> to vector<128x128xf32>
    %221 = arith.addf %217, %220 : vector<128x128xf32>
    %cst_96 = arith.constant dense<0xFF800000> : vector<128xf32>
    %222 = vector.multi_reduction <maximumf>, %221, %cst_96 [1] : vector<128x128xf32> to vector<128xf32>
    %223 = vector.shape_cast %222 : vector<128xf32> to vector<128x1xf32>
    %224 = vector.broadcast %223 : vector<128x1xf32> to vector<128x128xf32>
    %225 = arith.subf %221, %224 : vector<128x128xf32>
    %226 = math.exp %225 : vector<128x128xf32>
    %cst_97 = arith.constant dense<0.000000e+00> : vector<128xf32>
    %227 = vector.multi_reduction <add>, %226, %cst_97 [1] : vector<128x128xf32> to vector<128xf32>
    %228 = vector.shape_cast %227 : vector<128xf32> to vector<128x1xf32>
    %229 = tpu.reciprocal %228 {approx = true} : vector<128x1xf32> -> vector<128x1xf32>
    %230 = vector.broadcast %229 : vector<128x1xf32> to vector<128x128xf32>
    %231 = arith.mulf %226, %230 : vector<128x128xf32>
    %232 = arith.truncf %214 : vector<128x8xf32> to vector<128x8xbf16>
    %233 = arith.truncf %231 : vector<128x128xf32> to vector<128x128xbf16>
    %cst_98 = arith.constant dense<0.000000e+00> : vector<128x8xf32>
    %234 = tpu.matmul %233, %232, %cst_98 {dimension_numbers = #tpu.dot_dimension_numbers<[1], [0], [0], [1], [0, 0, 1, 1], [], []>} : vector<128x128xbf16>, vector<128x8xbf16>, vector<128x8xf32> -> vector<128x8xf32>
    %c8_99 = arith.constant 8 : index
    %c0_100 = arith.constant 0 : index
    %235 = vector.load %arg20[%c8_99, %c0_100] : memref<16x16xbf16, #tpu.memory_space<vmem>>, vector<8x16xbf16>
    %236 = arith.truncf %234 : vector<128x8xf32> to vector<128x8xbf16>
    %cst_101 = arith.constant dense<0.000000e+00> : vector<128x16xf32>
    %237 = tpu.matmul %236, %235, %cst_101 {dimension_numbers = #tpu.dot_dimension_numbers<[1], [0], [0], [1], [0, 0, 1, 1], [], []>} : vector<128x8xbf16>, vector<8x16xbf16>, vector<128x16xf32> -> vector<128x16xf32>
    %238 = arith.addf %209, %237 : vector<128x16xf32>
    %239 = arith.addf %149, %238 : vector<128x16xf32>
    %c0_102 = arith.constant 0 : index
    %c0_103 = arith.constant 0 : index
    %240 = vector.load %arg21[%c0_102, %c0_103] : memref<1x16xf32, #tpu.memory_space<vmem>>, vector<1x16xf32>
    %241 = vector.broadcast %240 : vector<1x16xf32> to vector<128x16xf32>
    %242 = arith.addf %239, %241 : vector<128x16xf32>
    %c0_104 = arith.constant 0 : index
    %c0_105 = arith.constant 0 : index
    %243 = vector.load %arg23[%c0_104, %c0_105] : memref<1x16xf32, #tpu.memory_space<vmem>>, vector<1x16xf32>
    %c0_106 = arith.constant 0 : index
    %c0_107 = arith.constant 0 : index
    %244 = vector.load %arg24[%c0_106, %c0_107] : memref<1x16xf32, #tpu.memory_space<vmem>>, vector<1x16xf32>
    %cst_108 = arith.constant dense<0.000000e+00> : vector<128xf32>
    %245 = vector.multi_reduction <add>, %242, %cst_108 [1] : vector<128x16xf32> to vector<128xf32>
    %246 = vector.shape_cast %245 : vector<128xf32> to vector<128x1xf32>
    %cst_109 = arith.constant 1.600000e+01 : f32
    %247 = vector.broadcast %cst_109 : f32 to vector<128x1xf32>
    %248 = arith.divf %246, %247 : vector<128x1xf32>
    %249 = vector.broadcast %248 : vector<128x1xf32> to vector<128x16xf32>
    %250 = arith.subf %242, %249 : vector<128x16xf32>
    %251 = arith.mulf %250, %250 : vector<128x16xf32>
    %cst_110 = arith.constant dense<0.000000e+00> : vector<128xf32>
    %252 = vector.multi_reduction <add>, %251, %cst_110 [1] : vector<128x16xf32> to vector<128xf32>
    %253 = vector.shape_cast %252 : vector<128xf32> to vector<128x1xf32>
    %cst_111 = arith.constant 1.600000e+01 : f32
    %254 = vector.broadcast %cst_111 : f32 to vector<128x1xf32>
    %255 = arith.divf %253, %254 : vector<128x1xf32>
    %256 = vector.broadcast %248 : vector<128x1xf32> to vector<128x16xf32>
    %257 = arith.subf %242, %256 : vector<128x16xf32>
    %cst_112 = arith.constant 9.99999974E-6 : f32
    %258 = vector.broadcast %cst_112 : f32 to vector<128x1xf32>
    %259 = arith.addf %255, %258 : vector<128x1xf32>
    %260 = math.rsqrt %259 : vector<128x1xf32>
    %261 = vector.broadcast %260 : vector<128x1xf32> to vector<128x16xf32>
    %262 = arith.mulf %257, %261 : vector<128x16xf32>
    %263 = vector.broadcast %243 : vector<1x16xf32> to vector<128x16xf32>
    %264 = arith.mulf %262, %263 : vector<128x16xf32>
    %265 = vector.broadcast %244 : vector<1x16xf32> to vector<128x16xf32>
    %266 = arith.addf %264, %265 : vector<128x16xf32>
    %c0_113 = arith.constant 0 : index
    %c0_114 = arith.constant 0 : index
    %267 = vector.load %arg25[%c0_113, %c0_114] : memref<16x64xbf16, #tpu.memory_space<vmem>>, vector<16x64xbf16>
    %268 = arith.truncf %266 : vector<128x16xf32> to vector<128x16xbf16>
    %cst_115 = arith.constant dense<0.000000e+00> : vector<128x64xf32>
    %269 = tpu.matmul %268, %267, %cst_115 {dimension_numbers = #tpu.dot_dimension_numbers<[1], [0], [0], [1], [0, 0, 1, 1], [], []>} : vector<128x16xbf16>, vector<16x64xbf16>, vector<128x64xf32> -> vector<128x64xf32>
    %c0_116 = arith.constant 0 : index
    %c0_117 = arith.constant 0 : index
    %270 = vector.load %arg26[%c0_116, %c0_117] : memref<1x64xf32, #tpu.memory_space<vmem>>, vector<1x64xf32>
    %271 = vector.broadcast %270 : vector<1x64xf32> to vector<128x64xf32>
    %272 = arith.addf %269, %271 : vector<128x64xf32>
    %cst_118 = arith.constant 5.000000e-01 : f32
    %273 = vector.broadcast %cst_118 : f32 to vector<128x64xf32>
    %274 = arith.mulf %273, %272 : vector<128x64xf32>
    %cst_119 = arith.constant 4.471500e-02 : f32
    %275 = vector.broadcast %cst_119 : f32 to vector<128x64xf32>
    %276 = arith.mulf %275, %272 : vector<128x64xf32>
    %277 = arith.mulf %276, %272 : vector<128x64xf32>
    %278 = arith.mulf %277, %272 : vector<128x64xf32>
    %279 = arith.addf %272, %278 : vector<128x64xf32>
    %cst_120 = arith.constant 0.797884583 : f32
    %280 = vector.broadcast %cst_120 : f32 to vector<128x64xf32>
    %281 = arith.mulf %280, %279 : vector<128x64xf32>
    %282 = math.tanh %281 : vector<128x64xf32>
    %cst_121 = arith.constant 1.000000e+00 : f32
    %283 = vector.broadcast %cst_121 : f32 to vector<128x64xf32>
    %284 = arith.addf %283, %282 : vector<128x64xf32>
    %285 = arith.mulf %274, %284 : vector<128x64xf32>
    %c0_122 = arith.constant 0 : index
    %c0_123 = arith.constant 0 : index
    %286 = vector.load %arg27[%c0_122, %c0_123] : memref<64x16xbf16, #tpu.memory_space<vmem>>, vector<64x16xbf16>
    %287 = arith.truncf %285 : vector<128x64xf32> to vector<128x64xbf16>
    %cst_124 = arith.constant dense<0.000000e+00> : vector<128x16xf32>
    %288 = tpu.matmul %287, %286, %cst_124 {dimension_numbers = #tpu.dot_dimension_numbers<[1], [0], [0], [1], [0, 0, 1, 1], [], []>} : vector<128x64xbf16>, vector<64x16xbf16>, vector<128x16xf32> -> vector<128x16xf32>
    %c0_125 = arith.constant 0 : index
    %c0_126 = arith.constant 0 : index
    %289 = vector.load %arg28[%c0_125, %c0_126] : memref<1x16xf32, #tpu.memory_space<vmem>>, vector<1x16xf32>
    %290 = vector.broadcast %289 : vector<1x16xf32> to vector<128x16xf32>
    %291 = arith.addf %288, %290 : vector<128x16xf32>
    %292 = arith.addf %242, %291 : vector<128x16xf32>
    %c0_127 = arith.constant 0 : index
    %c0_128 = arith.constant 0 : index
    %c0_129 = arith.constant 0 : index
    %293 = vector.load %arg29[%c0_127, %c0_128, %c0_129] : memref<4x32x128xf32, #tpu.memory_space<vmem>>, vector<1x32x128xf32>
    %294 = vector.shape_cast %293 : vector<1x32x128xf32> to vector<32x128xf32>
    %cst_130 = arith.constant dense<0.000000e+00> : vector<32x16xf32>
    %295 = tpu.matmul %294, %292, %cst_130 {dimension_numbers = #tpu.dot_dimension_numbers<[1], [0], [0], [1], [0, 0, 1, 1], [], []>} : vector<32x128xf32>, vector<128x16xf32>, vector<32x16xf32> -> vector<32x16xf32>
    %c1_131 = arith.constant 1 : index
    %c0_132 = arith.constant 0 : index
    %c0_133 = arith.constant 0 : index
    %296 = vector.load %arg29[%c1_131, %c0_132, %c0_133] : memref<4x32x128xf32, #tpu.memory_space<vmem>>, vector<1x32x128xf32>
    %297 = vector.shape_cast %296 : vector<1x32x128xf32> to vector<32x128xf32>
    %cst_134 = arith.constant dense<0.000000e+00> : vector<32x16xf32>
    %298 = tpu.matmul %297, %292, %cst_134 {dimension_numbers = #tpu.dot_dimension_numbers<[1], [0], [0], [1], [0, 0, 1, 1], [], []>} : vector<32x128xf32>, vector<128x16xf32>, vector<32x16xf32> -> vector<32x16xf32>
    %c2 = arith.constant 2 : index
    %c0_135 = arith.constant 0 : index
    %c0_136 = arith.constant 0 : index
    %299 = vector.load %arg29[%c2, %c0_135, %c0_136] : memref<4x32x128xf32, #tpu.memory_space<vmem>>, vector<1x32x128xf32>
    %300 = vector.shape_cast %299 : vector<1x32x128xf32> to vector<32x128xf32>
    %cst_137 = arith.constant dense<0.000000e+00> : vector<32x16xf32>
    %301 = tpu.matmul %300, %292, %cst_137 {dimension_numbers = #tpu.dot_dimension_numbers<[1], [0], [0], [1], [0, 0, 1, 1], [], []>} : vector<32x128xf32>, vector<128x16xf32>, vector<32x16xf32> -> vector<32x16xf32>
    %c3 = arith.constant 3 : index
    %c0_138 = arith.constant 0 : index
    %c0_139 = arith.constant 0 : index
    %302 = vector.load %arg29[%c3, %c0_138, %c0_139] : memref<4x32x128xf32, #tpu.memory_space<vmem>>, vector<1x32x128xf32>
    %303 = vector.shape_cast %302 : vector<1x32x128xf32> to vector<32x128xf32>
    %cst_140 = arith.constant dense<0.000000e+00> : vector<32x16xf32>
    %304 = tpu.matmul %303, %292, %cst_140 {dimension_numbers = #tpu.dot_dimension_numbers<[1], [0], [0], [1], [0, 0, 1, 1], [], []>} : vector<32x128xf32>, vector<128x16xf32>, vector<32x16xf32> -> vector<32x16xf32>
    %cst_141 = arith.constant dense<0.000000e+00> : vector<32xf32>
    %305 = vector.multi_reduction <add>, %295, %cst_141 [1] : vector<32x16xf32> to vector<32xf32>
    %306 = vector.shape_cast %305 : vector<32xf32> to vector<32x1xf32>
    %cst_142 = arith.constant 0.000000e+00 : f32
    %307 = vector.broadcast %cst_142 : f32 to vector<32x1xf32>
    %308 = arith.addf %307, %306 : vector<32x1xf32>
    %cst_143 = arith.constant dense<0.000000e+00> : vector<32xf32>
    %309 = vector.multi_reduction <add>, %298, %cst_143 [1] : vector<32x16xf32> to vector<32xf32>
    %310 = vector.shape_cast %309 : vector<32xf32> to vector<32x1xf32>
    %311 = arith.addf %308, %310 : vector<32x1xf32>
    %cst_144 = arith.constant dense<0.000000e+00> : vector<32xf32>
    %312 = vector.multi_reduction <add>, %301, %cst_144 [1] : vector<32x16xf32> to vector<32xf32>
    %313 = vector.shape_cast %312 : vector<32xf32> to vector<32x1xf32>
    %314 = arith.addf %311, %313 : vector<32x1xf32>
    %cst_145 = arith.constant dense<0.000000e+00> : vector<32xf32>
    %315 = vector.multi_reduction <add>, %304, %cst_145 [1] : vector<32x16xf32> to vector<32xf32>
    %316 = vector.shape_cast %315 : vector<32xf32> to vector<32x1xf32>
    %317 = arith.addf %314, %316 : vector<32x1xf32>
    %cst_146 = arith.constant 6.400000e+01 : f32
    %318 = vector.broadcast %cst_146 : f32 to vector<32x1xf32>
    %319 = arith.divf %317, %318 : vector<32x1xf32>
    %320 = vector.broadcast %319 : vector<32x1xf32> to vector<32x16xf32>
    %321 = arith.subf %295, %320 : vector<32x16xf32>
    %322 = arith.mulf %321, %321 : vector<32x16xf32>
    %cst_147 = arith.constant dense<0.000000e+00> : vector<32xf32>
    %323 = vector.multi_reduction <add>, %322, %cst_147 [1] : vector<32x16xf32> to vector<32xf32>
    %324 = vector.shape_cast %323 : vector<32xf32> to vector<32x1xf32>
    %cst_148 = arith.constant 0.000000e+00 : f32
    %325 = vector.broadcast %cst_148 : f32 to vector<32x1xf32>
    %326 = arith.addf %325, %324 : vector<32x1xf32>
    %327 = vector.broadcast %319 : vector<32x1xf32> to vector<32x16xf32>
    %328 = arith.subf %298, %327 : vector<32x16xf32>
    %329 = arith.mulf %328, %328 : vector<32x16xf32>
    %cst_149 = arith.constant dense<0.000000e+00> : vector<32xf32>
    %330 = vector.multi_reduction <add>, %329, %cst_149 [1] : vector<32x16xf32> to vector<32xf32>
    %331 = vector.shape_cast %330 : vector<32xf32> to vector<32x1xf32>
    %332 = arith.addf %326, %331 : vector<32x1xf32>
    %333 = vector.broadcast %319 : vector<32x1xf32> to vector<32x16xf32>
    %334 = arith.subf %301, %333 : vector<32x16xf32>
    %335 = arith.mulf %334, %334 : vector<32x16xf32>
    %cst_150 = arith.constant dense<0.000000e+00> : vector<32xf32>
    %336 = vector.multi_reduction <add>, %335, %cst_150 [1] : vector<32x16xf32> to vector<32xf32>
    %337 = vector.shape_cast %336 : vector<32xf32> to vector<32x1xf32>
    %338 = arith.addf %332, %337 : vector<32x1xf32>
    %339 = vector.broadcast %319 : vector<32x1xf32> to vector<32x16xf32>
    %340 = arith.subf %304, %339 : vector<32x16xf32>
    %341 = arith.mulf %340, %340 : vector<32x16xf32>
    %cst_151 = arith.constant dense<0.000000e+00> : vector<32xf32>
    %342 = vector.multi_reduction <add>, %341, %cst_151 [1] : vector<32x16xf32> to vector<32xf32>
    %343 = vector.shape_cast %342 : vector<32xf32> to vector<32x1xf32>
    %344 = arith.addf %338, %343 : vector<32x1xf32>
    %cst_152 = arith.constant 6.400000e+01 : f32
    %345 = vector.broadcast %cst_152 : f32 to vector<32x1xf32>
    %346 = arith.divf %344, %345 : vector<32x1xf32>
    %cst_153 = arith.constant 9.99999974E-6 : f32
    %347 = vector.broadcast %cst_153 : f32 to vector<32x1xf32>
    %348 = arith.addf %346, %347 : vector<32x1xf32>
    %349 = math.rsqrt %348 : vector<32x1xf32>
    %350 = vector.broadcast %319 : vector<32x1xf32> to vector<32x16xf32>
    %351 = arith.subf %295, %350 : vector<32x16xf32>
    %352 = vector.broadcast %349 : vector<32x1xf32> to vector<32x16xf32>
    %353 = arith.mulf %351, %352 : vector<32x16xf32>
    %c0_154 = arith.constant 0 : index
    %c0_155 = arith.constant 0 : index
    %c0_156 = arith.constant 0 : index
    %354 = vector.load %arg30[%c0_154, %c0_155, %c0_156] : memref<4x1x16xf32, #tpu.memory_space<vmem>>, vector<1x1x16xf32>
    %355 = vector.shape_cast %354 : vector<1x1x16xf32> to vector<1x16xf32>
    %356 = vector.broadcast %355 : vector<1x16xf32> to vector<32x16xf32>
    %357 = arith.mulf %353, %356 : vector<32x16xf32>
    %c0_157 = arith.constant 0 : index
    %c0_158 = arith.constant 0 : index
    %c0_159 = arith.constant 0 : index
    %358 = vector.load %arg31[%c0_157, %c0_158, %c0_159] : memref<4x1x16xf32, #tpu.memory_space<vmem>>, vector<1x1x16xf32>
    %359 = vector.shape_cast %358 : vector<1x1x16xf32> to vector<1x16xf32>
    %360 = vector.broadcast %359 : vector<1x16xf32> to vector<32x16xf32>
    %361 = arith.addf %357, %360 : vector<32x16xf32>
    %c0_160 = arith.constant 0 : index
    %c0_161 = arith.constant 0 : index
    %c0_162 = arith.constant 0 : index
    %362 = vector.load %arg32[%c0_160, %c0_161, %c0_162] : memref<4x16x32xbf16, #tpu.memory_space<vmem>>, vector<1x16x32xbf16>
    %363 = vector.shape_cast %362 : vector<1x16x32xbf16> to vector<16x32xbf16>
    %364 = arith.truncf %361 : vector<32x16xf32> to vector<32x16xbf16>
    %cst_163 = arith.constant dense<0.000000e+00> : vector<32x32xf32>
    %365 = tpu.matmul %364, %363, %cst_163 {dimension_numbers = #tpu.dot_dimension_numbers<[1], [0], [0], [1], [0, 0, 1, 1], [], []>} : vector<32x16xbf16>, vector<16x32xbf16>, vector<32x32xf32> -> vector<32x32xf32>
    %366 = vector.broadcast %319 : vector<32x1xf32> to vector<32x16xf32>
    %367 = arith.subf %298, %366 : vector<32x16xf32>
    %368 = vector.broadcast %349 : vector<32x1xf32> to vector<32x16xf32>
    %369 = arith.mulf %367, %368 : vector<32x16xf32>
    %c1_164 = arith.constant 1 : index
    %c0_165 = arith.constant 0 : index
    %c0_166 = arith.constant 0 : index
    %370 = vector.load %arg30[%c1_164, %c0_165, %c0_166] : memref<4x1x16xf32, #tpu.memory_space<vmem>>, vector<1x1x16xf32>
    %371 = vector.shape_cast %370 : vector<1x1x16xf32> to vector<1x16xf32>
    %372 = vector.broadcast %371 : vector<1x16xf32> to vector<32x16xf32>
    %373 = arith.mulf %369, %372 : vector<32x16xf32>
    %c1_167 = arith.constant 1 : index
    %c0_168 = arith.constant 0 : index
    %c0_169 = arith.constant 0 : index
    %374 = vector.load %arg31[%c1_167, %c0_168, %c0_169] : memref<4x1x16xf32, #tpu.memory_space<vmem>>, vector<1x1x16xf32>
    %375 = vector.shape_cast %374 : vector<1x1x16xf32> to vector<1x16xf32>
    %376 = vector.broadcast %375 : vector<1x16xf32> to vector<32x16xf32>
    %377 = arith.addf %373, %376 : vector<32x16xf32>
    %c1_170 = arith.constant 1 : index
    %c0_171 = arith.constant 0 : index
    %c0_172 = arith.constant 0 : index
    %378 = vector.load %arg32[%c1_170, %c0_171, %c0_172] : memref<4x16x32xbf16, #tpu.memory_space<vmem>>, vector<1x16x32xbf16>
    %379 = vector.shape_cast %378 : vector<1x16x32xbf16> to vector<16x32xbf16>
    %380 = arith.truncf %377 : vector<32x16xf32> to vector<32x16xbf16>
    %cst_173 = arith.constant dense<0.000000e+00> : vector<32x32xf32>
    %381 = tpu.matmul %380, %379, %cst_173 {dimension_numbers = #tpu.dot_dimension_numbers<[1], [0], [0], [1], [0, 0, 1, 1], [], []>} : vector<32x16xbf16>, vector<16x32xbf16>, vector<32x32xf32> -> vector<32x32xf32>
    %382 = arith.addf %365, %381 : vector<32x32xf32>
    %383 = vector.broadcast %319 : vector<32x1xf32> to vector<32x16xf32>
    %384 = arith.subf %301, %383 : vector<32x16xf32>
    %385 = vector.broadcast %349 : vector<32x1xf32> to vector<32x16xf32>
    %386 = arith.mulf %384, %385 : vector<32x16xf32>
    %c2_174 = arith.constant 2 : index
    %c0_175 = arith.constant 0 : index
    %c0_176 = arith.constant 0 : index
    %387 = vector.load %arg30[%c2_174, %c0_175, %c0_176] : memref<4x1x16xf32, #tpu.memory_space<vmem>>, vector<1x1x16xf32>
    %388 = vector.shape_cast %387 : vector<1x1x16xf32> to vector<1x16xf32>
    %389 = vector.broadcast %388 : vector<1x16xf32> to vector<32x16xf32>
    %390 = arith.mulf %386, %389 : vector<32x16xf32>
    %c2_177 = arith.constant 2 : index
    %c0_178 = arith.constant 0 : index
    %c0_179 = arith.constant 0 : index
    %391 = vector.load %arg31[%c2_177, %c0_178, %c0_179] : memref<4x1x16xf32, #tpu.memory_space<vmem>>, vector<1x1x16xf32>
    %392 = vector.shape_cast %391 : vector<1x1x16xf32> to vector<1x16xf32>
    %393 = vector.broadcast %392 : vector<1x16xf32> to vector<32x16xf32>
    %394 = arith.addf %390, %393 : vector<32x16xf32>
    %c2_180 = arith.constant 2 : index
    %c0_181 = arith.constant 0 : index
    %c0_182 = arith.constant 0 : index
    %395 = vector.load %arg32[%c2_180, %c0_181, %c0_182] : memref<4x16x32xbf16, #tpu.memory_space<vmem>>, vector<1x16x32xbf16>
    %396 = vector.shape_cast %395 : vector<1x16x32xbf16> to vector<16x32xbf16>
    %397 = arith.truncf %394 : vector<32x16xf32> to vector<32x16xbf16>
    %cst_183 = arith.constant dense<0.000000e+00> : vector<32x32xf32>
    %398 = tpu.matmul %397, %396, %cst_183 {dimension_numbers = #tpu.dot_dimension_numbers<[1], [0], [0], [1], [0, 0, 1, 1], [], []>} : vector<32x16xbf16>, vector<16x32xbf16>, vector<32x32xf32> -> vector<32x32xf32>
    %399 = arith.addf %382, %398 : vector<32x32xf32>
    %400 = vector.broadcast %319 : vector<32x1xf32> to vector<32x16xf32>
    %401 = arith.subf %304, %400 : vector<32x16xf32>
    %402 = vector.broadcast %349 : vector<32x1xf32> to vector<32x16xf32>
    %403 = arith.mulf %401, %402 : vector<32x16xf32>
    %c3_184 = arith.constant 3 : index
    %c0_185 = arith.constant 0 : index
    %c0_186 = arith.constant 0 : index
    %404 = vector.load %arg30[%c3_184, %c0_185, %c0_186] : memref<4x1x16xf32, #tpu.memory_space<vmem>>, vector<1x1x16xf32>
    %405 = vector.shape_cast %404 : vector<1x1x16xf32> to vector<1x16xf32>
    %406 = vector.broadcast %405 : vector<1x16xf32> to vector<32x16xf32>
    %407 = arith.mulf %403, %406 : vector<32x16xf32>
    %c3_187 = arith.constant 3 : index
    %c0_188 = arith.constant 0 : index
    %c0_189 = arith.constant 0 : index
    %408 = vector.load %arg31[%c3_187, %c0_188, %c0_189] : memref<4x1x16xf32, #tpu.memory_space<vmem>>, vector<1x1x16xf32>
    %409 = vector.shape_cast %408 : vector<1x1x16xf32> to vector<1x16xf32>
    %410 = vector.broadcast %409 : vector<1x16xf32> to vector<32x16xf32>
    %411 = arith.addf %407, %410 : vector<32x16xf32>
    %c3_190 = arith.constant 3 : index
    %c0_191 = arith.constant 0 : index
    %c0_192 = arith.constant 0 : index
    %412 = vector.load %arg32[%c3_190, %c0_191, %c0_192] : memref<4x16x32xbf16, #tpu.memory_space<vmem>>, vector<1x16x32xbf16>
    %413 = vector.shape_cast %412 : vector<1x16x32xbf16> to vector<16x32xbf16>
    %414 = arith.truncf %411 : vector<32x16xf32> to vector<32x16xbf16>
    %cst_193 = arith.constant dense<0.000000e+00> : vector<32x32xf32>
    %415 = tpu.matmul %414, %413, %cst_193 {dimension_numbers = #tpu.dot_dimension_numbers<[1], [0], [0], [1], [0, 0, 1, 1], [], []>} : vector<32x16xbf16>, vector<16x32xbf16>, vector<32x32xf32> -> vector<32x32xf32>
    %416 = arith.addf %399, %415 : vector<32x32xf32>
    %c0_194 = arith.constant 0 : index
    %c0_195 = arith.constant 0 : index
    %417 = vector.load %arg33[%c0_194, %c0_195] : memref<1x32xf32, #tpu.memory_space<vmem>>, vector<1x32xf32>
    %c0_196 = arith.constant 0 : index
    %c0_197 = arith.constant 0 : index
    %418 = vector.load %arg34[%c0_196, %c0_197] : memref<1x32xf32, #tpu.memory_space<vmem>>, vector<1x32xf32>
    %cst_198 = arith.constant dense<0.000000e+00> : vector<32xf32>
    %419 = vector.multi_reduction <add>, %416, %cst_198 [1] : vector<32x32xf32> to vector<32xf32>
    %420 = vector.shape_cast %419 : vector<32xf32> to vector<32x1xf32>
    %cst_199 = arith.constant 3.200000e+01 : f32
    %421 = vector.broadcast %cst_199 : f32 to vector<32x1xf32>
    %422 = arith.divf %420, %421 : vector<32x1xf32>
    %423 = vector.broadcast %422 : vector<32x1xf32> to vector<32x32xf32>
    %424 = arith.subf %416, %423 : vector<32x32xf32>
    %425 = arith.mulf %424, %424 : vector<32x32xf32>
    %cst_200 = arith.constant dense<0.000000e+00> : vector<32xf32>
    %426 = vector.multi_reduction <add>, %425, %cst_200 [1] : vector<32x32xf32> to vector<32xf32>
    %427 = vector.shape_cast %426 : vector<32xf32> to vector<32x1xf32>
    %cst_201 = arith.constant 3.200000e+01 : f32
    %428 = vector.broadcast %cst_201 : f32 to vector<32x1xf32>
    %429 = arith.divf %427, %428 : vector<32x1xf32>
    %430 = vector.broadcast %422 : vector<32x1xf32> to vector<32x32xf32>
    %431 = arith.subf %416, %430 : vector<32x32xf32>
    %cst_202 = arith.constant 9.99999974E-6 : f32
    %432 = vector.broadcast %cst_202 : f32 to vector<32x1xf32>
    %433 = arith.addf %429, %432 : vector<32x1xf32>
    %434 = math.rsqrt %433 : vector<32x1xf32>
    %435 = vector.broadcast %434 : vector<32x1xf32> to vector<32x32xf32>
    %436 = arith.mulf %431, %435 : vector<32x32xf32>
    %437 = vector.broadcast %417 : vector<1x32xf32> to vector<32x32xf32>
    %438 = arith.mulf %436, %437 : vector<32x32xf32>
    %439 = vector.broadcast %418 : vector<1x32xf32> to vector<32x32xf32>
    %440 = arith.addf %438, %439 : vector<32x32xf32>
    %c0_203 = arith.constant 0 : index
    %c0_204 = arith.constant 0 : index
    %441 = vector.load %arg35[%c0_203, %c0_204] : memref<32x96xbf16, #tpu.memory_space<vmem>>, vector<32x96xbf16>
    %442 = arith.truncf %440 : vector<32x32xf32> to vector<32x32xbf16>
    %cst_205 = arith.constant dense<0.000000e+00> : vector<32x96xf32>
    %443 = tpu.matmul %442, %441, %cst_205 {dimension_numbers = #tpu.dot_dimension_numbers<[1], [0], [0], [1], [0, 0, 1, 1], [], []>} : vector<32x32xbf16>, vector<32x96xbf16>, vector<32x96xf32> -> vector<32x96xf32>
    %c0_206 = arith.constant 0 : index
    %c0_207 = arith.constant 0 : index
    %444 = vector.load %arg36[%c0_206, %c0_207] : memref<1x96xf32, #tpu.memory_space<vmem>>, vector<1x96xf32>
    %445 = vector.broadcast %444 : vector<1x96xf32> to vector<32x96xf32>
    %446 = arith.addf %443, %445 : vector<32x96xf32>
    %cst_208 = arith.constant 0.000000e+00 : f32
    %447 = vector.broadcast %cst_208 : f32 to vector<32x32xf32>
    %448 = vector.extract_strided_slice %446 {offsets = [0, 0], sizes = [32, 8], strides = [1, 1]} : vector<32x96xf32> to vector<32x8xf32>
    %cst_209 = arith.constant 0.353553385 : f32
    %449 = vector.broadcast %cst_209 : f32 to vector<32x8xf32>
    %450 = arith.mulf %448, %449 : vector<32x8xf32>
    %451 = vector.extract_strided_slice %446 {offsets = [0, 32], sizes = [32, 8], strides = [1, 1]} : vector<32x96xf32> to vector<32x8xf32>
    %452 = vector.extract_strided_slice %446 {offsets = [0, 64], sizes = [32, 8], strides = [1, 1]} : vector<32x96xf32> to vector<32x8xf32>
    %453 = arith.truncf %450 : vector<32x8xf32> to vector<32x8xbf16>
    %454 = arith.truncf %451 : vector<32x8xf32> to vector<32x8xbf16>
    %cst_210 = arith.constant dense<0.000000e+00> : vector<32x32xf32>
    %455 = tpu.matmul %453, %454, %cst_210 {dimension_numbers = #tpu.dot_dimension_numbers<[1], [1], [0], [0], [0, 0, 1, 0], [], []>} : vector<32x8xbf16>, vector<32x8xbf16>, vector<32x32xf32> -> vector<32x32xf32>
    %c0_211 = arith.constant 0 : index
    %c0_212 = arith.constant 0 : index
    %c0_213 = arith.constant 0 : index
    %456 = vector.load %arg39[%c0_211, %c0_212, %c0_213] : memref<4x32x32xbf16, #tpu.memory_space<vmem>>, vector<1x32x32xbf16>
    %457 = vector.shape_cast %456 : vector<1x32x32xbf16> to vector<32x32xbf16>
    %458 = arith.extf %457 : vector<32x32xbf16> to vector<32x32xf32>
    %459 = arith.addf %455, %458 : vector<32x32xf32>
    %cst_214 = arith.constant dense<0xFF800000> : vector<32xf32>
    %460 = vector.multi_reduction <maximumf>, %459, %cst_214 [1] : vector<32x32xf32> to vector<32xf32>
    %461 = vector.shape_cast %460 : vector<32xf32> to vector<32x1xf32>
    %462 = vector.broadcast %461 : vector<32x1xf32> to vector<32x32xf32>
    %463 = arith.subf %459, %462 : vector<32x32xf32>
    %464 = math.exp %463 : vector<32x32xf32>
    %cst_215 = arith.constant dense<0.000000e+00> : vector<32xf32>
    %465 = vector.multi_reduction <add>, %464, %cst_215 [1] : vector<32x32xf32> to vector<32xf32>
    %466 = vector.shape_cast %465 : vector<32xf32> to vector<32x1xf32>
    %467 = tpu.reciprocal %466 {approx = true} : vector<32x1xf32> -> vector<32x1xf32>
    %468 = vector.broadcast %467 : vector<32x1xf32> to vector<32x32xf32>
    %469 = arith.mulf %464, %468 : vector<32x32xf32>
    %470 = arith.truncf %452 : vector<32x8xf32> to vector<32x8xbf16>
    %471 = arith.truncf %469 : vector<32x32xf32> to vector<32x32xbf16>
    %cst_216 = arith.constant dense<0.000000e+00> : vector<32x8xf32>
    %472 = tpu.matmul %471, %470, %cst_216 {dimension_numbers = #tpu.dot_dimension_numbers<[1], [0], [0], [1], [0, 0, 1, 1], [], []>} : vector<32x32xbf16>, vector<32x8xbf16>, vector<32x8xf32> -> vector<32x8xf32>
    %c0_217 = arith.constant 0 : index
    %c0_218 = arith.constant 0 : index
    %473 = vector.load %arg37[%c0_217, %c0_218] : memref<32x32xbf16, #tpu.memory_space<vmem>>, vector<8x32xbf16>
    %474 = arith.truncf %472 : vector<32x8xf32> to vector<32x8xbf16>
    %cst_219 = arith.constant dense<0.000000e+00> : vector<32x32xf32>
    %475 = tpu.matmul %474, %473, %cst_219 {dimension_numbers = #tpu.dot_dimension_numbers<[1], [0], [0], [1], [0, 0, 1, 1], [], []>} : vector<32x8xbf16>, vector<8x32xbf16>, vector<32x32xf32> -> vector<32x32xf32>
    %476 = arith.addf %447, %475 : vector<32x32xf32>
    %477 = vector.extract_strided_slice %446 {offsets = [0, 8], sizes = [32, 8], strides = [1, 1]} : vector<32x96xf32> to vector<32x8xf32>
    %cst_220 = arith.constant 0.353553385 : f32
    %478 = vector.broadcast %cst_220 : f32 to vector<32x8xf32>
    %479 = arith.mulf %477, %478 : vector<32x8xf32>
    %480 = vector.extract_strided_slice %446 {offsets = [0, 40], sizes = [32, 8], strides = [1, 1]} : vector<32x96xf32> to vector<32x8xf32>
    %481 = vector.extract_strided_slice %446 {offsets = [0, 72], sizes = [32, 8], strides = [1, 1]} : vector<32x96xf32> to vector<32x8xf32>
    %482 = arith.truncf %479 : vector<32x8xf32> to vector<32x8xbf16>
    %483 = arith.truncf %480 : vector<32x8xf32> to vector<32x8xbf16>
    %cst_221 = arith.constant dense<0.000000e+00> : vector<32x32xf32>
    %484 = tpu.matmul %482, %483, %cst_221 {dimension_numbers = #tpu.dot_dimension_numbers<[1], [1], [0], [0], [0, 0, 1, 0], [], []>} : vector<32x8xbf16>, vector<32x8xbf16>, vector<32x32xf32> -> vector<32x32xf32>
    %c1_222 = arith.constant 1 : index
    %c0_223 = arith.constant 0 : index
    %c0_224 = arith.constant 0 : index
    %485 = vector.load %arg39[%c1_222, %c0_223, %c0_224] : memref<4x32x32xbf16, #tpu.memory_space<vmem>>, vector<1x32x32xbf16>
    %486 = vector.shape_cast %485 : vector<1x32x32xbf16> to vector<32x32xbf16>
    %487 = arith.extf %486 : vector<32x32xbf16> to vector<32x32xf32>
    %488 = arith.addf %484, %487 : vector<32x32xf32>
    %cst_225 = arith.constant dense<0xFF800000> : vector<32xf32>
    %489 = vector.multi_reduction <maximumf>, %488, %cst_225 [1] : vector<32x32xf32> to vector<32xf32>
    %490 = vector.shape_cast %489 : vector<32xf32> to vector<32x1xf32>
    %491 = vector.broadcast %490 : vector<32x1xf32> to vector<32x32xf32>
    %492 = arith.subf %488, %491 : vector<32x32xf32>
    %493 = math.exp %492 : vector<32x32xf32>
    %cst_226 = arith.constant dense<0.000000e+00> : vector<32xf32>
    %494 = vector.multi_reduction <add>, %493, %cst_226 [1] : vector<32x32xf32> to vector<32xf32>
    %495 = vector.shape_cast %494 : vector<32xf32> to vector<32x1xf32>
    %496 = tpu.reciprocal %495 {approx = true} : vector<32x1xf32> -> vector<32x1xf32>
    %497 = vector.broadcast %496 : vector<32x1xf32> to vector<32x32xf32>
    %498 = arith.mulf %493, %497 : vector<32x32xf32>
    %499 = arith.truncf %481 : vector<32x8xf32> to vector<32x8xbf16>
    %500 = arith.truncf %498 : vector<32x32xf32> to vector<32x32xbf16>
    %cst_227 = arith.constant dense<0.000000e+00> : vector<32x8xf32>
    %501 = tpu.matmul %500, %499, %cst_227 {dimension_numbers = #tpu.dot_dimension_numbers<[1], [0], [0], [1], [0, 0, 1, 1], [], []>} : vector<32x32xbf16>, vector<32x8xbf16>, vector<32x8xf32> -> vector<32x8xf32>
    %c8_228 = arith.constant 8 : index
    %c0_229 = arith.constant 0 : index
    %502 = vector.load %arg37[%c8_228, %c0_229] : memref<32x32xbf16, #tpu.memory_space<vmem>>, vector<8x32xbf16>
    %503 = arith.truncf %501 : vector<32x8xf32> to vector<32x8xbf16>
    %cst_230 = arith.constant dense<0.000000e+00> : vector<32x32xf32>
    %504 = tpu.matmul %503, %502, %cst_230 {dimension_numbers = #tpu.dot_dimension_numbers<[1], [0], [0], [1], [0, 0, 1, 1], [], []>} : vector<32x8xbf16>, vector<8x32xbf16>, vector<32x32xf32> -> vector<32x32xf32>
    %505 = arith.addf %476, %504 : vector<32x32xf32>
    %506 = vector.extract_strided_slice %446 {offsets = [0, 16], sizes = [32, 8], strides = [1, 1]} : vector<32x96xf32> to vector<32x8xf32>
    %cst_231 = arith.constant 0.353553385 : f32
    %507 = vector.broadcast %cst_231 : f32 to vector<32x8xf32>
    %508 = arith.mulf %506, %507 : vector<32x8xf32>
    %509 = vector.extract_strided_slice %446 {offsets = [0, 48], sizes = [32, 8], strides = [1, 1]} : vector<32x96xf32> to vector<32x8xf32>
    %510 = vector.extract_strided_slice %446 {offsets = [0, 80], sizes = [32, 8], strides = [1, 1]} : vector<32x96xf32> to vector<32x8xf32>
    %511 = arith.truncf %508 : vector<32x8xf32> to vector<32x8xbf16>
    %512 = arith.truncf %509 : vector<32x8xf32> to vector<32x8xbf16>
    %cst_232 = arith.constant dense<0.000000e+00> : vector<32x32xf32>
    %513 = tpu.matmul %511, %512, %cst_232 {dimension_numbers = #tpu.dot_dimension_numbers<[1], [1], [0], [0], [0, 0, 1, 0], [], []>} : vector<32x8xbf16>, vector<32x8xbf16>, vector<32x32xf32> -> vector<32x32xf32>
    %c2_233 = arith.constant 2 : index
    %c0_234 = arith.constant 0 : index
    %c0_235 = arith.constant 0 : index
    %514 = vector.load %arg39[%c2_233, %c0_234, %c0_235] : memref<4x32x32xbf16, #tpu.memory_space<vmem>>, vector<1x32x32xbf16>
    %515 = vector.shape_cast %514 : vector<1x32x32xbf16> to vector<32x32xbf16>
    %516 = arith.extf %515 : vector<32x32xbf16> to vector<32x32xf32>
    %517 = arith.addf %513, %516 : vector<32x32xf32>
    %cst_236 = arith.constant dense<0xFF800000> : vector<32xf32>
    %518 = vector.multi_reduction <maximumf>, %517, %cst_236 [1] : vector<32x32xf32> to vector<32xf32>
    %519 = vector.shape_cast %518 : vector<32xf32> to vector<32x1xf32>
    %520 = vector.broadcast %519 : vector<32x1xf32> to vector<32x32xf32>
    %521 = arith.subf %517, %520 : vector<32x32xf32>
    %522 = math.exp %521 : vector<32x32xf32>
    %cst_237 = arith.constant dense<0.000000e+00> : vector<32xf32>
    %523 = vector.multi_reduction <add>, %522, %cst_237 [1] : vector<32x32xf32> to vector<32xf32>
    %524 = vector.shape_cast %523 : vector<32xf32> to vector<32x1xf32>
    %525 = tpu.reciprocal %524 {approx = true} : vector<32x1xf32> -> vector<32x1xf32>
    %526 = vector.broadcast %525 : vector<32x1xf32> to vector<32x32xf32>
    %527 = arith.mulf %522, %526 : vector<32x32xf32>
    %528 = arith.truncf %510 : vector<32x8xf32> to vector<32x8xbf16>
    %529 = arith.truncf %527 : vector<32x32xf32> to vector<32x32xbf16>
    %cst_238 = arith.constant dense<0.000000e+00> : vector<32x8xf32>
    %530 = tpu.matmul %529, %528, %cst_238 {dimension_numbers = #tpu.dot_dimension_numbers<[1], [0], [0], [1], [0, 0, 1, 1], [], []>} : vector<32x32xbf16>, vector<32x8xbf16>, vector<32x8xf32> -> vector<32x8xf32>
    %c16 = arith.constant 16 : index
    %c0_239 = arith.constant 0 : index
    %531 = vector.load %arg37[%c16, %c0_239] : memref<32x32xbf16, #tpu.memory_space<vmem>>, vector<8x32xbf16>
    %532 = arith.truncf %530 : vector<32x8xf32> to vector<32x8xbf16>
    %cst_240 = arith.constant dense<0.000000e+00> : vector<32x32xf32>
    %533 = tpu.matmul %532, %531, %cst_240 {dimension_numbers = #tpu.dot_dimension_numbers<[1], [0], [0], [1], [0, 0, 1, 1], [], []>} : vector<32x8xbf16>, vector<8x32xbf16>, vector<32x32xf32> -> vector<32x32xf32>
    %534 = arith.addf %505, %533 : vector<32x32xf32>
    %535 = vector.extract_strided_slice %446 {offsets = [0, 24], sizes = [32, 8], strides = [1, 1]} : vector<32x96xf32> to vector<32x8xf32>
    %cst_241 = arith.constant 0.353553385 : f32
    %536 = vector.broadcast %cst_241 : f32 to vector<32x8xf32>
    %537 = arith.mulf %535, %536 : vector<32x8xf32>
    %538 = vector.extract_strided_slice %446 {offsets = [0, 56], sizes = [32, 8], strides = [1, 1]} : vector<32x96xf32> to vector<32x8xf32>
    %539 = vector.extract_strided_slice %446 {offsets = [0, 88], sizes = [32, 8], strides = [1, 1]} : vector<32x96xf32> to vector<32x8xf32>
    %540 = arith.truncf %537 : vector<32x8xf32> to vector<32x8xbf16>
    %541 = arith.truncf %538 : vector<32x8xf32> to vector<32x8xbf16>
    %cst_242 = arith.constant dense<0.000000e+00> : vector<32x32xf32>
    %542 = tpu.matmul %540, %541, %cst_242 {dimension_numbers = #tpu.dot_dimension_numbers<[1], [1], [0], [0], [0, 0, 1, 0], [], []>} : vector<32x8xbf16>, vector<32x8xbf16>, vector<32x32xf32> -> vector<32x32xf32>
    %c3_243 = arith.constant 3 : index
    %c0_244 = arith.constant 0 : index
    %c0_245 = arith.constant 0 : index
    %543 = vector.load %arg39[%c3_243, %c0_244, %c0_245] : memref<4x32x32xbf16, #tpu.memory_space<vmem>>, vector<1x32x32xbf16>
    %544 = vector.shape_cast %543 : vector<1x32x32xbf16> to vector<32x32xbf16>
    %545 = arith.extf %544 : vector<32x32xbf16> to vector<32x32xf32>
    %546 = arith.addf %542, %545 : vector<32x32xf32>
    %cst_246 = arith.constant dense<0xFF800000> : vector<32xf32>
    %547 = vector.multi_reduction <maximumf>, %546, %cst_246 [1] : vector<32x32xf32> to vector<32xf32>
    %548 = vector.shape_cast %547 : vector<32xf32> to vector<32x1xf32>
    %549 = vector.broadcast %548 : vector<32x1xf32> to vector<32x32xf32>
    %550 = arith.subf %546, %549 : vector<32x32xf32>
    %551 = math.exp %550 : vector<32x32xf32>
    %cst_247 = arith.constant dense<0.000000e+00> : vector<32xf32>
    %552 = vector.multi_reduction <add>, %551, %cst_247 [1] : vector<32x32xf32> to vector<32xf32>
    %553 = vector.shape_cast %552 : vector<32xf32> to vector<32x1xf32>
    %554 = tpu.reciprocal %553 {approx = true} : vector<32x1xf32> -> vector<32x1xf32>
    %555 = vector.broadcast %554 : vector<32x1xf32> to vector<32x32xf32>
    %556 = arith.mulf %551, %555 : vector<32x32xf32>
    %557 = arith.truncf %539 : vector<32x8xf32> to vector<32x8xbf16>
    %558 = arith.truncf %556 : vector<32x32xf32> to vector<32x32xbf16>
    %cst_248 = arith.constant dense<0.000000e+00> : vector<32x8xf32>
    %559 = tpu.matmul %558, %557, %cst_248 {dimension_numbers = #tpu.dot_dimension_numbers<[1], [0], [0], [1], [0, 0, 1, 1], [], []>} : vector<32x32xbf16>, vector<32x8xbf16>, vector<32x8xf32> -> vector<32x8xf32>
    %c24 = arith.constant 24 : index
    %c0_249 = arith.constant 0 : index
    %560 = vector.load %arg37[%c24, %c0_249] : memref<32x32xbf16, #tpu.memory_space<vmem>>, vector<8x32xbf16>
    %561 = arith.truncf %559 : vector<32x8xf32> to vector<32x8xbf16>
    %cst_250 = arith.constant dense<0.000000e+00> : vector<32x32xf32>
    %562 = tpu.matmul %561, %560, %cst_250 {dimension_numbers = #tpu.dot_dimension_numbers<[1], [0], [0], [1], [0, 0, 1, 1], [], []>} : vector<32x8xbf16>, vector<8x32xbf16>, vector<32x32xf32> -> vector<32x32xf32>
    %563 = arith.addf %534, %562 : vector<32x32xf32>
    %564 = arith.addf %416, %563 : vector<32x32xf32>
    %c0_251 = arith.constant 0 : index
    %c0_252 = arith.constant 0 : index
    %565 = vector.load %arg38[%c0_251, %c0_252] : memref<1x32xf32, #tpu.memory_space<vmem>>, vector<1x32xf32>
    %566 = vector.broadcast %565 : vector<1x32xf32> to vector<32x32xf32>
    %567 = arith.addf %564, %566 : vector<32x32xf32>
    %c0_253 = arith.constant 0 : index
    %c0_254 = arith.constant 0 : index
    %568 = vector.load %arg40[%c0_253, %c0_254] : memref<1x32xf32, #tpu.memory_space<vmem>>, vector<1x32xf32>
    %c0_255 = arith.constant 0 : index
    %c0_256 = arith.constant 0 : index
    %569 = vector.load %arg41[%c0_255, %c0_256] : memref<1x32xf32, #tpu.memory_space<vmem>>, vector<1x32xf32>
    %cst_257 = arith.constant dense<0.000000e+00> : vector<32xf32>
    %570 = vector.multi_reduction <add>, %567, %cst_257 [1] : vector<32x32xf32> to vector<32xf32>
    %571 = vector.shape_cast %570 : vector<32xf32> to vector<32x1xf32>
    %cst_258 = arith.constant 3.200000e+01 : f32
    %572 = vector.broadcast %cst_258 : f32 to vector<32x1xf32>
    %573 = arith.divf %571, %572 : vector<32x1xf32>
    %574 = vector.broadcast %573 : vector<32x1xf32> to vector<32x32xf32>
    %575 = arith.subf %567, %574 : vector<32x32xf32>
    %576 = arith.mulf %575, %575 : vector<32x32xf32>
    %cst_259 = arith.constant dense<0.000000e+00> : vector<32xf32>
    %577 = vector.multi_reduction <add>, %576, %cst_259 [1] : vector<32x32xf32> to vector<32xf32>
    %578 = vector.shape_cast %577 : vector<32xf32> to vector<32x1xf32>
    %cst_260 = arith.constant 3.200000e+01 : f32
    %579 = vector.broadcast %cst_260 : f32 to vector<32x1xf32>
    %580 = arith.divf %578, %579 : vector<32x1xf32>
    %581 = vector.broadcast %573 : vector<32x1xf32> to vector<32x32xf32>
    %582 = arith.subf %567, %581 : vector<32x32xf32>
    %cst_261 = arith.constant 9.99999974E-6 : f32
    %583 = vector.broadcast %cst_261 : f32 to vector<32x1xf32>
    %584 = arith.addf %580, %583 : vector<32x1xf32>
    %585 = math.rsqrt %584 : vector<32x1xf32>
    %586 = vector.broadcast %585 : vector<32x1xf32> to vector<32x32xf32>
    %587 = arith.mulf %582, %586 : vector<32x32xf32>
    %588 = vector.broadcast %568 : vector<1x32xf32> to vector<32x32xf32>
    %589 = arith.mulf %587, %588 : vector<32x32xf32>
    %590 = vector.broadcast %569 : vector<1x32xf32> to vector<32x32xf32>
    %591 = arith.addf %589, %590 : vector<32x32xf32>
    %c0_262 = arith.constant 0 : index
    %c0_263 = arith.constant 0 : index
    %592 = vector.load %arg42[%c0_262, %c0_263] : memref<32x128xbf16, #tpu.memory_space<vmem>>, vector<32x128xbf16>
    %593 = arith.truncf %591 : vector<32x32xf32> to vector<32x32xbf16>
    %cst_264 = arith.constant dense<0.000000e+00> : vector<32x128xf32>
    %594 = tpu.matmul %593, %592, %cst_264 {dimension_numbers = #tpu.dot_dimension_numbers<[1], [0], [0], [1], [0, 0, 1, 1], [], []>} : vector<32x32xbf16>, vector<32x128xbf16>, vector<32x128xf32> -> vector<32x128xf32>
    %c0_265 = arith.constant 0 : index
    %c0_266 = arith.constant 0 : index
    %595 = vector.load %arg43[%c0_265, %c0_266] : memref<1x128xf32, #tpu.memory_space<vmem>>, vector<1x128xf32>
    %596 = vector.broadcast %595 : vector<1x128xf32> to vector<32x128xf32>
    %597 = arith.addf %594, %596 : vector<32x128xf32>
    %cst_267 = arith.constant 5.000000e-01 : f32
    %598 = vector.broadcast %cst_267 : f32 to vector<32x128xf32>
    %599 = arith.mulf %598, %597 : vector<32x128xf32>
    %cst_268 = arith.constant 4.471500e-02 : f32
    %600 = vector.broadcast %cst_268 : f32 to vector<32x128xf32>
    %601 = arith.mulf %600, %597 : vector<32x128xf32>
    %602 = arith.mulf %601, %597 : vector<32x128xf32>
    %603 = arith.mulf %602, %597 : vector<32x128xf32>
    %604 = arith.addf %597, %603 : vector<32x128xf32>
    %cst_269 = arith.constant 0.797884583 : f32
    %605 = vector.broadcast %cst_269 : f32 to vector<32x128xf32>
    %606 = arith.mulf %605, %604 : vector<32x128xf32>
    %607 = math.tanh %606 : vector<32x128xf32>
    %cst_270 = arith.constant 1.000000e+00 : f32
    %608 = vector.broadcast %cst_270 : f32 to vector<32x128xf32>
    %609 = arith.addf %608, %607 : vector<32x128xf32>
    %610 = arith.mulf %599, %609 : vector<32x128xf32>
    %c0_271 = arith.constant 0 : index
    %c0_272 = arith.constant 0 : index
    %611 = vector.load %arg44[%c0_271, %c0_272] : memref<128x32xbf16, #tpu.memory_space<vmem>>, vector<128x32xbf16>
    %612 = arith.truncf %610 : vector<32x128xf32> to vector<32x128xbf16>
    %cst_273 = arith.constant dense<0.000000e+00> : vector<32x32xf32>
    %613 = tpu.matmul %612, %611, %cst_273 {dimension_numbers = #tpu.dot_dimension_numbers<[1], [0], [0], [1], [0, 0, 1, 1], [], []>} : vector<32x128xbf16>, vector<128x32xbf16>, vector<32x32xf32> -> vector<32x32xf32>
    %c0_274 = arith.constant 0 : index
    %c0_275 = arith.constant 0 : index
    %614 = vector.load %arg45[%c0_274, %c0_275] : memref<1x32xf32, #tpu.memory_space<vmem>>, vector<1x32xf32>
    %615 = vector.broadcast %614 : vector<1x32xf32> to vector<32x32xf32>
    %616 = arith.addf %613, %615 : vector<32x32xf32>
    %617 = arith.addf %567, %616 : vector<32x32xf32>
    %c0_276 = arith.constant 0 : index
    %c0_277 = arith.constant 0 : index
    %618 = vector.load %arg46[%c0_276, %c0_277] : memref<1x32xf32, #tpu.memory_space<vmem>>, vector<1x32xf32>
    %c0_278 = arith.constant 0 : index
    %c0_279 = arith.constant 0 : index
    %619 = vector.load %arg47[%c0_278, %c0_279] : memref<1x32xf32, #tpu.memory_space<vmem>>, vector<1x32xf32>
    %cst_280 = arith.constant dense<0.000000e+00> : vector<32xf32>
    %620 = vector.multi_reduction <add>, %617, %cst_280 [1] : vector<32x32xf32> to vector<32xf32>
    %621 = vector.shape_cast %620 : vector<32xf32> to vector<32x1xf32>
    %cst_281 = arith.constant 3.200000e+01 : f32
    %622 = vector.broadcast %cst_281 : f32 to vector<32x1xf32>
    %623 = arith.divf %621, %622 : vector<32x1xf32>
    %624 = vector.broadcast %623 : vector<32x1xf32> to vector<32x32xf32>
    %625 = arith.subf %617, %624 : vector<32x32xf32>
    %626 = arith.mulf %625, %625 : vector<32x32xf32>
    %cst_282 = arith.constant dense<0.000000e+00> : vector<32xf32>
    %627 = vector.multi_reduction <add>, %626, %cst_282 [1] : vector<32x32xf32> to vector<32xf32>
    %628 = vector.shape_cast %627 : vector<32xf32> to vector<32x1xf32>
    %cst_283 = arith.constant 3.200000e+01 : f32
    %629 = vector.broadcast %cst_283 : f32 to vector<32x1xf32>
    %630 = arith.divf %628, %629 : vector<32x1xf32>
    %631 = vector.broadcast %623 : vector<32x1xf32> to vector<32x32xf32>
    %632 = arith.subf %617, %631 : vector<32x32xf32>
    %cst_284 = arith.constant 9.99999974E-6 : f32
    %633 = vector.broadcast %cst_284 : f32 to vector<32x1xf32>
    %634 = arith.addf %630, %633 : vector<32x1xf32>
    %635 = math.rsqrt %634 : vector<32x1xf32>
    %636 = vector.broadcast %635 : vector<32x1xf32> to vector<32x32xf32>
    %637 = arith.mulf %632, %636 : vector<32x32xf32>
    %638 = vector.broadcast %618 : vector<1x32xf32> to vector<32x32xf32>
    %639 = arith.mulf %637, %638 : vector<32x32xf32>
    %640 = vector.broadcast %619 : vector<1x32xf32> to vector<32x32xf32>
    %641 = arith.addf %639, %640 : vector<32x32xf32>
    %c0_285 = arith.constant 0 : index
    %c0_286 = arith.constant 0 : index
    %642 = vector.load %arg48[%c0_285, %c0_286] : memref<32x96xbf16, #tpu.memory_space<vmem>>, vector<32x96xbf16>
    %643 = arith.truncf %641 : vector<32x32xf32> to vector<32x32xbf16>
    %cst_287 = arith.constant dense<0.000000e+00> : vector<32x96xf32>
    %644 = tpu.matmul %643, %642, %cst_287 {dimension_numbers = #tpu.dot_dimension_numbers<[1], [0], [0], [1], [0, 0, 1, 1], [], []>} : vector<32x32xbf16>, vector<32x96xbf16>, vector<32x96xf32> -> vector<32x96xf32>
    %c0_288 = arith.constant 0 : index
    %c0_289 = arith.constant 0 : index
    %645 = vector.load %arg49[%c0_288, %c0_289] : memref<1x96xf32, #tpu.memory_space<vmem>>, vector<1x96xf32>
    %646 = vector.broadcast %645 : vector<1x96xf32> to vector<32x96xf32>
    %647 = arith.addf %644, %646 : vector<32x96xf32>
    %cst_290 = arith.constant 0.000000e+00 : f32
    %648 = vector.broadcast %cst_290 : f32 to vector<32x32xf32>
    %649 = vector.extract_strided_slice %647 {offsets = [0, 0], sizes = [32, 8], strides = [1, 1]} : vector<32x96xf32> to vector<32x8xf32>
    %cst_291 = arith.constant 0.353553385 : f32
    %650 = vector.broadcast %cst_291 : f32 to vector<32x8xf32>
    %651 = arith.mulf %649, %650 : vector<32x8xf32>
    %652 = vector.extract_strided_slice %647 {offsets = [0, 32], sizes = [32, 8], strides = [1, 1]} : vector<32x96xf32> to vector<32x8xf32>
    %653 = vector.extract_strided_slice %647 {offsets = [0, 64], sizes = [32, 8], strides = [1, 1]} : vector<32x96xf32> to vector<32x8xf32>
    %654 = arith.truncf %651 : vector<32x8xf32> to vector<32x8xbf16>
    %655 = arith.truncf %652 : vector<32x8xf32> to vector<32x8xbf16>
    %cst_292 = arith.constant dense<0.000000e+00> : vector<32x32xf32>
    %656 = tpu.matmul %654, %655, %cst_292 {dimension_numbers = #tpu.dot_dimension_numbers<[1], [1], [0], [0], [0, 0, 1, 0], [], []>} : vector<32x8xbf16>, vector<32x8xbf16>, vector<32x32xf32> -> vector<32x32xf32>
    %c0_293 = arith.constant 0 : index
    %c0_294 = arith.constant 0 : index
    %c0_295 = arith.constant 0 : index
    %657 = vector.load %arg52[%c0_293, %c0_294, %c0_295] : memref<4x32x32xbf16, #tpu.memory_space<vmem>>, vector<1x32x32xbf16>
    %658 = vector.shape_cast %657 : vector<1x32x32xbf16> to vector<32x32xbf16>
    %659 = arith.extf %658 : vector<32x32xbf16> to vector<32x32xf32>
    %660 = arith.addf %656, %659 : vector<32x32xf32>
    %cst_296 = arith.constant dense<0xFF800000> : vector<32xf32>
    %661 = vector.multi_reduction <maximumf>, %660, %cst_296 [1] : vector<32x32xf32> to vector<32xf32>
    %662 = vector.shape_cast %661 : vector<32xf32> to vector<32x1xf32>
    %663 = vector.broadcast %662 : vector<32x1xf32> to vector<32x32xf32>
    %664 = arith.subf %660, %663 : vector<32x32xf32>
    %665 = math.exp %664 : vector<32x32xf32>
    %cst_297 = arith.constant dense<0.000000e+00> : vector<32xf32>
    %666 = vector.multi_reduction <add>, %665, %cst_297 [1] : vector<32x32xf32> to vector<32xf32>
    %667 = vector.shape_cast %666 : vector<32xf32> to vector<32x1xf32>
    %668 = tpu.reciprocal %667 {approx = true} : vector<32x1xf32> -> vector<32x1xf32>
    %669 = vector.broadcast %668 : vector<32x1xf32> to vector<32x32xf32>
    %670 = arith.mulf %665, %669 : vector<32x32xf32>
    %671 = arith.truncf %653 : vector<32x8xf32> to vector<32x8xbf16>
    %672 = arith.truncf %670 : vector<32x32xf32> to vector<32x32xbf16>
    %cst_298 = arith.constant dense<0.000000e+00> : vector<32x8xf32>
    %673 = tpu.matmul %672, %671, %cst_298 {dimension_numbers = #tpu.dot_dimension_numbers<[1], [0], [0], [1], [0, 0, 1, 1], [], []>} : vector<32x32xbf16>, vector<32x8xbf16>, vector<32x8xf32> -> vector<32x8xf32>
    %c0_299 = arith.constant 0 : index
    %c0_300 = arith.constant 0 : index
    %674 = vector.load %arg50[%c0_299, %c0_300] : memref<32x32xbf16, #tpu.memory_space<vmem>>, vector<8x32xbf16>
    %675 = arith.truncf %673 : vector<32x8xf32> to vector<32x8xbf16>
    %cst_301 = arith.constant dense<0.000000e+00> : vector<32x32xf32>
    %676 = tpu.matmul %675, %674, %cst_301 {dimension_numbers = #tpu.dot_dimension_numbers<[1], [0], [0], [1], [0, 0, 1, 1], [], []>} : vector<32x8xbf16>, vector<8x32xbf16>, vector<32x32xf32> -> vector<32x32xf32>
    %677 = arith.addf %648, %676 : vector<32x32xf32>
    %678 = vector.extract_strided_slice %647 {offsets = [0, 8], sizes = [32, 8], strides = [1, 1]} : vector<32x96xf32> to vector<32x8xf32>
    %cst_302 = arith.constant 0.353553385 : f32
    %679 = vector.broadcast %cst_302 : f32 to vector<32x8xf32>
    %680 = arith.mulf %678, %679 : vector<32x8xf32>
    %681 = vector.extract_strided_slice %647 {offsets = [0, 40], sizes = [32, 8], strides = [1, 1]} : vector<32x96xf32> to vector<32x8xf32>
    %682 = vector.extract_strided_slice %647 {offsets = [0, 72], sizes = [32, 8], strides = [1, 1]} : vector<32x96xf32> to vector<32x8xf32>
    %683 = arith.truncf %680 : vector<32x8xf32> to vector<32x8xbf16>
    %684 = arith.truncf %681 : vector<32x8xf32> to vector<32x8xbf16>
    %cst_303 = arith.constant dense<0.000000e+00> : vector<32x32xf32>
    %685 = tpu.matmul %683, %684, %cst_303 {dimension_numbers = #tpu.dot_dimension_numbers<[1], [1], [0], [0], [0, 0, 1, 0], [], []>} : vector<32x8xbf16>, vector<32x8xbf16>, vector<32x32xf32> -> vector<32x32xf32>
    %c1_304 = arith.constant 1 : index
    %c0_305 = arith.constant 0 : index
    %c0_306 = arith.constant 0 : index
    %686 = vector.load %arg52[%c1_304, %c0_305, %c0_306] : memref<4x32x32xbf16, #tpu.memory_space<vmem>>, vector<1x32x32xbf16>
    %687 = vector.shape_cast %686 : vector<1x32x32xbf16> to vector<32x32xbf16>
    %688 = arith.extf %687 : vector<32x32xbf16> to vector<32x32xf32>
    %689 = arith.addf %685, %688 : vector<32x32xf32>
    %cst_307 = arith.constant dense<0xFF800000> : vector<32xf32>
    %690 = vector.multi_reduction <maximumf>, %689, %cst_307 [1] : vector<32x32xf32> to vector<32xf32>
    %691 = vector.shape_cast %690 : vector<32xf32> to vector<32x1xf32>
    %692 = vector.broadcast %691 : vector<32x1xf32> to vector<32x32xf32>
    %693 = arith.subf %689, %692 : vector<32x32xf32>
    %694 = math.exp %693 : vector<32x32xf32>
    %cst_308 = arith.constant dense<0.000000e+00> : vector<32xf32>
    %695 = vector.multi_reduction <add>, %694, %cst_308 [1] : vector<32x32xf32> to vector<32xf32>
    %696 = vector.shape_cast %695 : vector<32xf32> to vector<32x1xf32>
    %697 = tpu.reciprocal %696 {approx = true} : vector<32x1xf32> -> vector<32x1xf32>
    %698 = vector.broadcast %697 : vector<32x1xf32> to vector<32x32xf32>
    %699 = arith.mulf %694, %698 : vector<32x32xf32>
    %700 = arith.truncf %682 : vector<32x8xf32> to vector<32x8xbf16>
    %701 = arith.truncf %699 : vector<32x32xf32> to vector<32x32xbf16>
    %cst_309 = arith.constant dense<0.000000e+00> : vector<32x8xf32>
    %702 = tpu.matmul %701, %700, %cst_309 {dimension_numbers = #tpu.dot_dimension_numbers<[1], [0], [0], [1], [0, 0, 1, 1], [], []>} : vector<32x32xbf16>, vector<32x8xbf16>, vector<32x8xf32> -> vector<32x8xf32>
    %c8_310 = arith.constant 8 : index
    %c0_311 = arith.constant 0 : index
    %703 = vector.load %arg50[%c8_310, %c0_311] : memref<32x32xbf16, #tpu.memory_space<vmem>>, vector<8x32xbf16>
    %704 = arith.truncf %702 : vector<32x8xf32> to vector<32x8xbf16>
    %cst_312 = arith.constant dense<0.000000e+00> : vector<32x32xf32>
    %705 = tpu.matmul %704, %703, %cst_312 {dimension_numbers = #tpu.dot_dimension_numbers<[1], [0], [0], [1], [0, 0, 1, 1], [], []>} : vector<32x8xbf16>, vector<8x32xbf16>, vector<32x32xf32> -> vector<32x32xf32>
    %706 = arith.addf %677, %705 : vector<32x32xf32>
    %707 = vector.extract_strided_slice %647 {offsets = [0, 16], sizes = [32, 8], strides = [1, 1]} : vector<32x96xf32> to vector<32x8xf32>
    %cst_313 = arith.constant 0.353553385 : f32
    %708 = vector.broadcast %cst_313 : f32 to vector<32x8xf32>
    %709 = arith.mulf %707, %708 : vector<32x8xf32>
    %710 = vector.extract_strided_slice %647 {offsets = [0, 48], sizes = [32, 8], strides = [1, 1]} : vector<32x96xf32> to vector<32x8xf32>
    %711 = vector.extract_strided_slice %647 {offsets = [0, 80], sizes = [32, 8], strides = [1, 1]} : vector<32x96xf32> to vector<32x8xf32>
    %712 = arith.truncf %709 : vector<32x8xf32> to vector<32x8xbf16>
    %713 = arith.truncf %710 : vector<32x8xf32> to vector<32x8xbf16>
    %cst_314 = arith.constant dense<0.000000e+00> : vector<32x32xf32>
    %714 = tpu.matmul %712, %713, %cst_314 {dimension_numbers = #tpu.dot_dimension_numbers<[1], [1], [0], [0], [0, 0, 1, 0], [], []>} : vector<32x8xbf16>, vector<32x8xbf16>, vector<32x32xf32> -> vector<32x32xf32>
    %c2_315 = arith.constant 2 : index
    %c0_316 = arith.constant 0 : index
    %c0_317 = arith.constant 0 : index
    %715 = vector.load %arg52[%c2_315, %c0_316, %c0_317] : memref<4x32x32xbf16, #tpu.memory_space<vmem>>, vector<1x32x32xbf16>
    %716 = vector.shape_cast %715 : vector<1x32x32xbf16> to vector<32x32xbf16>
    %717 = arith.extf %716 : vector<32x32xbf16> to vector<32x32xf32>
    %718 = arith.addf %714, %717 : vector<32x32xf32>
    %cst_318 = arith.constant dense<0xFF800000> : vector<32xf32>
    %719 = vector.multi_reduction <maximumf>, %718, %cst_318 [1] : vector<32x32xf32> to vector<32xf32>
    %720 = vector.shape_cast %719 : vector<32xf32> to vector<32x1xf32>
    %721 = vector.broadcast %720 : vector<32x1xf32> to vector<32x32xf32>
    %722 = arith.subf %718, %721 : vector<32x32xf32>
    %723 = math.exp %722 : vector<32x32xf32>
    %cst_319 = arith.constant dense<0.000000e+00> : vector<32xf32>
    %724 = vector.multi_reduction <add>, %723, %cst_319 [1] : vector<32x32xf32> to vector<32xf32>
    %725 = vector.shape_cast %724 : vector<32xf32> to vector<32x1xf32>
    %726 = tpu.reciprocal %725 {approx = true} : vector<32x1xf32> -> vector<32x1xf32>
    %727 = vector.broadcast %726 : vector<32x1xf32> to vector<32x32xf32>
    %728 = arith.mulf %723, %727 : vector<32x32xf32>
    %729 = arith.truncf %711 : vector<32x8xf32> to vector<32x8xbf16>
    %730 = arith.truncf %728 : vector<32x32xf32> to vector<32x32xbf16>
    %cst_320 = arith.constant dense<0.000000e+00> : vector<32x8xf32>
    %731 = tpu.matmul %730, %729, %cst_320 {dimension_numbers = #tpu.dot_dimension_numbers<[1], [0], [0], [1], [0, 0, 1, 1], [], []>} : vector<32x32xbf16>, vector<32x8xbf16>, vector<32x8xf32> -> vector<32x8xf32>
    %c16_321 = arith.constant 16 : index
    %c0_322 = arith.constant 0 : index
    %732 = vector.load %arg50[%c16_321, %c0_322] : memref<32x32xbf16, #tpu.memory_space<vmem>>, vector<8x32xbf16>
    %733 = arith.truncf %731 : vector<32x8xf32> to vector<32x8xbf16>
    %cst_323 = arith.constant dense<0.000000e+00> : vector<32x32xf32>
    %734 = tpu.matmul %733, %732, %cst_323 {dimension_numbers = #tpu.dot_dimension_numbers<[1], [0], [0], [1], [0, 0, 1, 1], [], []>} : vector<32x8xbf16>, vector<8x32xbf16>, vector<32x32xf32> -> vector<32x32xf32>
    %735 = arith.addf %706, %734 : vector<32x32xf32>
    %736 = vector.extract_strided_slice %647 {offsets = [0, 24], sizes = [32, 8], strides = [1, 1]} : vector<32x96xf32> to vector<32x8xf32>
    %cst_324 = arith.constant 0.353553385 : f32
    %737 = vector.broadcast %cst_324 : f32 to vector<32x8xf32>
    %738 = arith.mulf %736, %737 : vector<32x8xf32>
    %739 = vector.extract_strided_slice %647 {offsets = [0, 56], sizes = [32, 8], strides = [1, 1]} : vector<32x96xf32> to vector<32x8xf32>
    %740 = vector.extract_strided_slice %647 {offsets = [0, 88], sizes = [32, 8], strides = [1, 1]} : vector<32x96xf32> to vector<32x8xf32>
    %741 = arith.truncf %738 : vector<32x8xf32> to vector<32x8xbf16>
    %742 = arith.truncf %739 : vector<32x8xf32> to vector<32x8xbf16>
    %cst_325 = arith.constant dense<0.000000e+00> : vector<32x32xf32>
    %743 = tpu.matmul %741, %742, %cst_325 {dimension_numbers = #tpu.dot_dimension_numbers<[1], [1], [0], [0], [0, 0, 1, 0], [], []>} : vector<32x8xbf16>, vector<32x8xbf16>, vector<32x32xf32> -> vector<32x32xf32>
    %c3_326 = arith.constant 3 : index
    %c0_327 = arith.constant 0 : index
    %c0_328 = arith.constant 0 : index
    %744 = vector.load %arg52[%c3_326, %c0_327, %c0_328] : memref<4x32x32xbf16, #tpu.memory_space<vmem>>, vector<1x32x32xbf16>
    %745 = vector.shape_cast %744 : vector<1x32x32xbf16> to vector<32x32xbf16>
    %746 = arith.extf %745 : vector<32x32xbf16> to vector<32x32xf32>
    %747 = arith.addf %743, %746 : vector<32x32xf32>
    %cst_329 = arith.constant dense<0xFF800000> : vector<32xf32>
    %748 = vector.multi_reduction <maximumf>, %747, %cst_329 [1] : vector<32x32xf32> to vector<32xf32>
    %749 = vector.shape_cast %748 : vector<32xf32> to vector<32x1xf32>
    %750 = vector.broadcast %749 : vector<32x1xf32> to vector<32x32xf32>
    %751 = arith.subf %747, %750 : vector<32x32xf32>
    %752 = math.exp %751 : vector<32x32xf32>
    %cst_330 = arith.constant dense<0.000000e+00> : vector<32xf32>
    %753 = vector.multi_reduction <add>, %752, %cst_330 [1] : vector<32x32xf32> to vector<32xf32>
    %754 = vector.shape_cast %753 : vector<32xf32> to vector<32x1xf32>
    %755 = tpu.reciprocal %754 {approx = true} : vector<32x1xf32> -> vector<32x1xf32>
    %756 = vector.broadcast %755 : vector<32x1xf32> to vector<32x32xf32>
    %757 = arith.mulf %752, %756 : vector<32x32xf32>
    %758 = arith.truncf %740 : vector<32x8xf32> to vector<32x8xbf16>
    %759 = arith.truncf %757 : vector<32x32xf32> to vector<32x32xbf16>
    %cst_331 = arith.constant dense<0.000000e+00> : vector<32x8xf32>
    %760 = tpu.matmul %759, %758, %cst_331 {dimension_numbers = #tpu.dot_dimension_numbers<[1], [0], [0], [1], [0, 0, 1, 1], [], []>} : vector<32x32xbf16>, vector<32x8xbf16>, vector<32x8xf32> -> vector<32x8xf32>
    %c24_332 = arith.constant 24 : index
    %c0_333 = arith.constant 0 : index
    %761 = vector.load %arg50[%c24_332, %c0_333] : memref<32x32xbf16, #tpu.memory_space<vmem>>, vector<8x32xbf16>
    %762 = arith.truncf %760 : vector<32x8xf32> to vector<32x8xbf16>
    %cst_334 = arith.constant dense<0.000000e+00> : vector<32x32xf32>
    %763 = tpu.matmul %762, %761, %cst_334 {dimension_numbers = #tpu.dot_dimension_numbers<[1], [0], [0], [1], [0, 0, 1, 1], [], []>} : vector<32x8xbf16>, vector<8x32xbf16>, vector<32x32xf32> -> vector<32x32xf32>
    %764 = arith.addf %735, %763 : vector<32x32xf32>
    %765 = arith.addf %617, %764 : vector<32x32xf32>
    %c0_335 = arith.constant 0 : index
    %c0_336 = arith.constant 0 : index
    %766 = vector.load %arg51[%c0_335, %c0_336] : memref<1x32xf32, #tpu.memory_space<vmem>>, vector<1x32xf32>
    %767 = vector.broadcast %766 : vector<1x32xf32> to vector<32x32xf32>
    %768 = arith.addf %765, %767 : vector<32x32xf32>
    %c0_337 = arith.constant 0 : index
    %c0_338 = arith.constant 0 : index
    %769 = vector.load %arg53[%c0_337, %c0_338] : memref<1x32xf32, #tpu.memory_space<vmem>>, vector<1x32xf32>
    %c0_339 = arith.constant 0 : index
    %c0_340 = arith.constant 0 : index
    %770 = vector.load %arg54[%c0_339, %c0_340] : memref<1x32xf32, #tpu.memory_space<vmem>>, vector<1x32xf32>
    %cst_341 = arith.constant dense<0.000000e+00> : vector<32xf32>
    %771 = vector.multi_reduction <add>, %768, %cst_341 [1] : vector<32x32xf32> to vector<32xf32>
    %772 = vector.shape_cast %771 : vector<32xf32> to vector<32x1xf32>
    %cst_342 = arith.constant 3.200000e+01 : f32
    %773 = vector.broadcast %cst_342 : f32 to vector<32x1xf32>
    %774 = arith.divf %772, %773 : vector<32x1xf32>
    %775 = vector.broadcast %774 : vector<32x1xf32> to vector<32x32xf32>
    %776 = arith.subf %768, %775 : vector<32x32xf32>
    %777 = arith.mulf %776, %776 : vector<32x32xf32>
    %cst_343 = arith.constant dense<0.000000e+00> : vector<32xf32>
    %778 = vector.multi_reduction <add>, %777, %cst_343 [1] : vector<32x32xf32> to vector<32xf32>
    %779 = vector.shape_cast %778 : vector<32xf32> to vector<32x1xf32>
    %cst_344 = arith.constant 3.200000e+01 : f32
    %780 = vector.broadcast %cst_344 : f32 to vector<32x1xf32>
    %781 = arith.divf %779, %780 : vector<32x1xf32>
    %782 = vector.broadcast %774 : vector<32x1xf32> to vector<32x32xf32>
    %783 = arith.subf %768, %782 : vector<32x32xf32>
    %cst_345 = arith.constant 9.99999974E-6 : f32
    %784 = vector.broadcast %cst_345 : f32 to vector<32x1xf32>
    %785 = arith.addf %781, %784 : vector<32x1xf32>
    %786 = math.rsqrt %785 : vector<32x1xf32>
    %787 = vector.broadcast %786 : vector<32x1xf32> to vector<32x32xf32>
    %788 = arith.mulf %783, %787 : vector<32x32xf32>
    %789 = vector.broadcast %769 : vector<1x32xf32> to vector<32x32xf32>
    %790 = arith.mulf %788, %789 : vector<32x32xf32>
    %791 = vector.broadcast %770 : vector<1x32xf32> to vector<32x32xf32>
    %792 = arith.addf %790, %791 : vector<32x32xf32>
    %c0_346 = arith.constant 0 : index
    %c0_347 = arith.constant 0 : index
    %793 = vector.load %arg55[%c0_346, %c0_347] : memref<32x128xbf16, #tpu.memory_space<vmem>>, vector<32x128xbf16>
    %794 = arith.truncf %792 : vector<32x32xf32> to vector<32x32xbf16>
    %cst_348 = arith.constant dense<0.000000e+00> : vector<32x128xf32>
    %795 = tpu.matmul %794, %793, %cst_348 {dimension_numbers = #tpu.dot_dimension_numbers<[1], [0], [0], [1], [0, 0, 1, 1], [], []>} : vector<32x32xbf16>, vector<32x128xbf16>, vector<32x128xf32> -> vector<32x128xf32>
    %c0_349 = arith.constant 0 : index
    %c0_350 = arith.constant 0 : index
    %796 = vector.load %arg56[%c0_349, %c0_350] : memref<1x128xf32, #tpu.memory_space<vmem>>, vector<1x128xf32>
    %797 = vector.broadcast %796 : vector<1x128xf32> to vector<32x128xf32>
    %798 = arith.addf %795, %797 : vector<32x128xf32>
    %cst_351 = arith.constant 5.000000e-01 : f32
    %799 = vector.broadcast %cst_351 : f32 to vector<32x128xf32>
    %800 = arith.mulf %799, %798 : vector<32x128xf32>
    %cst_352 = arith.constant 4.471500e-02 : f32
    %801 = vector.broadcast %cst_352 : f32 to vector<32x128xf32>
    %802 = arith.mulf %801, %798 : vector<32x128xf32>
    %803 = arith.mulf %802, %798 : vector<32x128xf32>
    %804 = arith.mulf %803, %798 : vector<32x128xf32>
    %805 = arith.addf %798, %804 : vector<32x128xf32>
    %cst_353 = arith.constant 0.797884583 : f32
    %806 = vector.broadcast %cst_353 : f32 to vector<32x128xf32>
    %807 = arith.mulf %806, %805 : vector<32x128xf32>
    %808 = math.tanh %807 : vector<32x128xf32>
    %cst_354 = arith.constant 1.000000e+00 : f32
    %809 = vector.broadcast %cst_354 : f32 to vector<32x128xf32>
    %810 = arith.addf %809, %808 : vector<32x128xf32>
    %811 = arith.mulf %800, %810 : vector<32x128xf32>
    %c0_355 = arith.constant 0 : index
    %c0_356 = arith.constant 0 : index
    %812 = vector.load %arg57[%c0_355, %c0_356] : memref<128x32xbf16, #tpu.memory_space<vmem>>, vector<128x32xbf16>
    %813 = arith.truncf %811 : vector<32x128xf32> to vector<32x128xbf16>
    %cst_357 = arith.constant dense<0.000000e+00> : vector<32x32xf32>
    %814 = tpu.matmul %813, %812, %cst_357 {dimension_numbers = #tpu.dot_dimension_numbers<[1], [0], [0], [1], [0, 0, 1, 1], [], []>} : vector<32x128xbf16>, vector<128x32xbf16>, vector<32x32xf32> -> vector<32x32xf32>
    %c0_358 = arith.constant 0 : index
    %c0_359 = arith.constant 0 : index
    %815 = vector.load %arg58[%c0_358, %c0_359] : memref<1x32xf32, #tpu.memory_space<vmem>>, vector<1x32xf32>
    %816 = vector.broadcast %815 : vector<1x32xf32> to vector<32x32xf32>
    %817 = arith.addf %814, %816 : vector<32x32xf32>
    %818 = arith.addf %768, %817 : vector<32x32xf32>
    %c0_360 = arith.constant 0 : index
    %c0_361 = arith.constant 0 : index
    %819 = vector.load %arg60[%c0_360, %c0_361] : memref<1x32xf32, #tpu.memory_space<vmem>>, vector<1x32xf32>
    %c0_362 = arith.constant 0 : index
    %c0_363 = arith.constant 0 : index
    %820 = vector.load %arg61[%c0_362, %c0_363] : memref<1x32xf32, #tpu.memory_space<vmem>>, vector<1x32xf32>
    %cst_364 = arith.constant dense<0.000000e+00> : vector<32xf32>
    %821 = vector.multi_reduction <add>, %818, %cst_364 [1] : vector<32x32xf32> to vector<32xf32>
    %822 = vector.shape_cast %821 : vector<32xf32> to vector<32x1xf32>
    %cst_365 = arith.constant 3.200000e+01 : f32
    %823 = vector.broadcast %cst_365 : f32 to vector<32x1xf32>
    %824 = arith.divf %822, %823 : vector<32x1xf32>
    %825 = vector.broadcast %824 : vector<32x1xf32> to vector<32x32xf32>
    %826 = arith.subf %818, %825 : vector<32x32xf32>
    %827 = arith.mulf %826, %826 : vector<32x32xf32>
    %cst_366 = arith.constant dense<0.000000e+00> : vector<32xf32>
    %828 = vector.multi_reduction <add>, %827, %cst_366 [1] : vector<32x32xf32> to vector<32xf32>
    %829 = vector.shape_cast %828 : vector<32xf32> to vector<32x1xf32>
    %cst_367 = arith.constant 3.200000e+01 : f32
    %830 = vector.broadcast %cst_367 : f32 to vector<32x1xf32>
    %831 = arith.divf %829, %830 : vector<32x1xf32>
    %832 = vector.broadcast %824 : vector<32x1xf32> to vector<32x32xf32>
    %833 = arith.subf %818, %832 : vector<32x32xf32>
    %cst_368 = arith.constant 9.99999974E-6 : f32
    %834 = vector.broadcast %cst_368 : f32 to vector<32x1xf32>
    %835 = arith.addf %831, %834 : vector<32x1xf32>
    %836 = math.rsqrt %835 : vector<32x1xf32>
    %837 = vector.broadcast %836 : vector<32x1xf32> to vector<32x32xf32>
    %838 = arith.mulf %833, %837 : vector<32x32xf32>
    %839 = vector.broadcast %819 : vector<1x32xf32> to vector<32x32xf32>
    %840 = arith.mulf %838, %839 : vector<32x32xf32>
    %841 = vector.broadcast %820 : vector<1x32xf32> to vector<32x32xf32>
    %842 = arith.addf %840, %841 : vector<32x32xf32>
    %c0_369 = arith.constant 0 : index
    %c0_370 = arith.constant 0 : index
    %843 = vector.load %arg59[%c0_369, %c0_370] : memref<2x32xf32, #tpu.memory_space<vmem>>, vector<2x32xf32>
    %cst_371 = arith.constant dense<0.000000e+00> : vector<2x32xf32>
    %844 = tpu.matmul %843, %842, %cst_371 {dimension_numbers = #tpu.dot_dimension_numbers<[1], [0], [0], [1], [0, 0, 1, 1], [], []>} : vector<2x32xf32>, vector<32x32xf32>, vector<2x32xf32> -> vector<2x32xf32>
    %c0_372 = arith.constant 0 : index
    %c0_373 = arith.constant 0 : index
    %845 = vector.load %arg62[%c0_372, %c0_373] : memref<32x10xbf16, #tpu.memory_space<vmem>>, vector<32x10xbf16>
    %846 = arith.truncf %844 : vector<2x32xf32> to vector<2x32xbf16>
    %cst_374 = arith.constant dense<0.000000e+00> : vector<2x10xf32>
    %847 = tpu.matmul %846, %845, %cst_374 {dimension_numbers = #tpu.dot_dimension_numbers<[1], [0], [0], [1], [0, 0, 1, 1], [], []>} : vector<2x32xbf16>, vector<32x10xbf16>, vector<2x10xf32> -> vector<2x10xf32>
    %c0_375 = arith.constant 0 : index
    %c0_376 = arith.constant 0 : index
    %848 = vector.load %arg63[%c0_375, %c0_376] : memref<1x10xf32, #tpu.memory_space<vmem>>, vector<1x10xf32>
    %849 = vector.broadcast %848 : vector<1x10xf32> to vector<2x10xf32>
    %850 = arith.addf %847, %849 : vector<2x10xf32>
    %c0_377 = arith.constant 0 : index
    %c0_378 = arith.constant 0 : index
    %851 = vector.load %arg64[%c0_377, %c0_378] : memref<2x10xf32, #tpu.memory_space<vmem>>, vector<2x10xf32>
    tpu.vector_store %arg64[%c0_377, %c0_378], %850 {strides = array<i32>} : memref<2x10xf32, #tpu.memory_space<vmem>>, vector<2x10xf32>,
    return
  }
}

</mosaic_0001>

<llo_original>
// kernel: swin_forward.1
$region0: #{swin_forward.1}
  #allocation0 [shape = 'u32[]', space=smem, size = 0x4, offset = 0x4, fixed_abs, tag = 'smem constant byte address 0x4 - core index']
  #allocation1 [shape = 'u32[72,128]{1,0:T(1,128)}', space=vmem, size = 0x9000, scoped, tag = 'internal scratch']
  %s0 = inlined_call_operand.smem [shape: u32[65], index: -1, kind: input, shape index: {}]
  %s1 = sld [smem:[%s0]]
  %s2 = scalar_lea.smem %s0, 1
  %s3 = sld [smem:[%s2]]
  %s4 = scalar_lea.smem %s0, 2
  %s5 = sld [smem:[%s4]]
  %s6 = scalar_lea.smem %s0, 3
  %s7 = sld [smem:[%s6]]
  %s8 = scalar_lea.smem %s0, 4
  %s9 = sld [smem:[%s8]]
  %s10 = scalar_lea.smem %s0, 5
  %s11 = sld [smem:[%s10]]
  %s12 = scalar_lea.smem %s0, 6
  %s13 = sld [smem:[%s12]]
  %s14 = scalar_lea.smem %s0, 7
  %s15 = sld [smem:[%s14]]
  %s16 = scalar_lea.smem %s0, 8
  %s17 = sld [smem:[%s16]]
  %s18 = scalar_lea.smem %s0, 9
  %s19 = sld [smem:[%s18]]
  %s20 = scalar_lea.smem %s0, 10
  %s21 = sld [smem:[%s20]]
  %s22 = scalar_lea.smem %s0, 11
  %s23 = sld [smem:[%s22]]
  %s24 = scalar_lea.smem %s0, 12
  %s25 = sld [smem:[%s24]]
  %s26 = scalar_lea.smem %s0, 13
  %s27 = sld [smem:[%s26]]
  %s28 = scalar_lea.smem %s0, 14
  %s29 = sld [smem:[%s28]]
  %s30 = scalar_lea.smem %s0, 15
  %s31 = sld [smem:[%s30]]
  %s32 = scalar_lea.smem %s0, 16
  %s33 = sld [smem:[%s32]]
  %s34 = scalar_lea.smem %s0, 17
  %s35 = sld [smem:[%s34]]
  %s36 = scalar_lea.smem %s0, 18
  %s37 = sld [smem:[%s36]]
  %s38 = scalar_lea.smem %s0, 19
  %s39 = sld [smem:[%s38]]
  %s40 = scalar_lea.smem %s0, 20
  %s41 = sld [smem:[%s40]]
  %s42 = scalar_lea.smem %s0, 21
  %s43 = sld [smem:[%s42]]
  %s44 = scalar_lea.smem %s0, 22
  %s45 = sld [smem:[%s44]]
  %s46 = scalar_lea.smem %s0, 23
  %s47 = sld [smem:[%s46]]
  %s48 = scalar_lea.smem %s0, 24
  %s49 = sld [smem:[%s48]]
  %s50 = scalar_lea.smem %s0, 25
  %s51 = sld [smem:[%s50]]
  %s52 = scalar_lea.smem %s0, 26
  %s53 = sld [smem:[%s52]]
  %s54 = scalar_lea.smem %s0, 27
  %s55 = sld [smem:[%s54]]
  %s56 = scalar_lea.smem %s0, 28
  %s57 = sld [smem:[%s56]]
  %s58 = scalar_lea.smem %s0, 29
  %s59 = sld [smem:[%s58]]
  %s60 = scalar_lea.smem %s0, 30
  %s61 = sld [smem:[%s60]]
  %s62 = scalar_lea.smem %s0, 31
  %s63 = sld [smem:[%s62]]
  %s64 = scalar_lea.smem %s0, 32
  %s65 = sld [smem:[%s64]]
  %s66 = scalar_lea.smem %s0, 33
  %s67 = sld [smem:[%s66]]
  %s68 = scalar_lea.smem %s0, 34
  %s69 = sld [smem:[%s68]]
  %s70 = scalar_lea.smem %s0, 35
  %s71 = sld [smem:[%s70]]
  %s72 = scalar_lea.smem %s0, 36
  %s73 = sld [smem:[%s72]]
  %s74 = scalar_lea.smem %s0, 37
  %s75 = sld [smem:[%s74]]
  %s76 = scalar_lea.smem %s0, 38
  %s77 = sld [smem:[%s76]]
  %s78 = scalar_lea.smem %s0, 39
  %s79 = sld [smem:[%s78]]
  %s80 = scalar_lea.smem %s0, 40
  %s81 = sld [smem:[%s80]]
  %s82 = scalar_lea.smem %s0, 41
  %s83 = sld [smem:[%s82]]
  %s84 = scalar_lea.smem %s0, 42
  %s85 = sld [smem:[%s84]]
  %s86 = scalar_lea.smem %s0, 43
  %s87 = sld [smem:[%s86]]
  %s88 = scalar_lea.smem %s0, 44
  %s89 = sld [smem:[%s88]]
  %s90 = scalar_lea.smem %s0, 45
  %s91 = sld [smem:[%s90]]
  %s92 = scalar_lea.smem %s0, 46
  %s93 = sld [smem:[%s92]]
  %s94 = scalar_lea.smem %s0, 47
  %s95 = sld [smem:[%s94]]
  %s96 = scalar_lea.smem %s0, 48
  %s97 = sld [smem:[%s96]]
  %s98 = scalar_lea.smem %s0, 49
  %s99 = sld [smem:[%s98]]
  %s100 = scalar_lea.smem %s0, 50
  %s101 = sld [smem:[%s100]]
  %s102 = scalar_lea.smem %s0, 51
  %s103 = sld [smem:[%s102]]
  %s104 = scalar_lea.smem %s0, 52
  %s105 = sld [smem:[%s104]]
  %s106 = scalar_lea.smem %s0, 53
  %s107 = sld [smem:[%s106]]
  %s108 = scalar_lea.smem %s0, 54
  %s109 = sld [smem:[%s108]]
  %s110 = scalar_lea.smem %s0, 55
  %s111 = sld [smem:[%s110]]
  %s112 = scalar_lea.smem %s0, 56
  %s113 = sld [smem:[%s112]]
  %s114 = scalar_lea.smem %s0, 57
  %s115 = sld [smem:[%s114]]
  %s116 = scalar_lea.smem %s0, 58
  %s117 = sld [smem:[%s116]]
  %s118 = scalar_lea.smem %s0, 59
  %s119 = sld [smem:[%s118]]
  %s120 = scalar_lea.smem %s0, 60
  %s121 = sld [smem:[%s120]]
  %s122 = scalar_lea.smem %s0, 61
  %s123 = sld [smem:[%s122]]
  %s124 = scalar_lea.smem %s0, 62
  %s125 = sld [smem:[%s124]]
  %s126 = scalar_lea.smem %s0, 63
  %s127 = sld [smem:[%s126]]
  %s128 = scalar_lea.smem %s0, 64
  %s129 = sld [smem:[%s128]]
  %s130 = sld [smem:[#allocation0]]
  $region358: #{swin_forward.1} parent=0
    _
  %s132 = ssub.s32 1, %s130
  %s133 = scalar_select 0, %s132, %s130
  $region1: #{swin_forward.1} parent=0
    #allocation2 [shape = 'u8[512]{0}', space=vmem, size = 0x400, scoped, tag = 'input window, operand 23, single buffered']
    #allocation3 [shape = 's32[1]{0}', space=sflag, size = 0x4, scoped, tag = 'scoped memory for swin_forward.1']
    #allocation4 [shape = 's32[1]{0}', space=sflag, size = 0x4, scoped, tag = 'scoped memory for swin_forward.1']
    #allocation5 [shape = 'u8[512]{0}', space=vmem, size = 0x400, scoped, tag = 'input window, operand 24, single buffered']
    #allocation6 [shape = 's32[1]{0}', space=sflag, size = 0x4, scoped, tag = 'scoped memory for swin_forward.1']
    #allocation7 [shape = 'u8[512]{0}', space=vmem, size = 0x400, scoped, tag = 'input window, operand 26, single buffered']
    #allocation8 [shape = 'u8[512]{0}', space=vmem, size = 0x400, scoped, tag = 'input window, operand 28, single buffered']
    #allocation9 [shape = 's32[1]{0}', space=sflag, size = 0x4, scoped, tag = 'scoped memory for swin_forward.1']
    #allocation10 [shape = 'u8[512]{0}', space=vmem, size = 0x400, scoped, tag = 'input window, operand 33, single buffered']
    #allocation11 [shape = 'u8[512]{0}', space=vmem, size = 0x400, scoped, tag = 'input window, operand 34, single buffered']
    #allocation12 [shape = 's32[1]{0}', space=sflag, size = 0x4, scoped, tag = 'scoped memory for swin_forward.1']
    #allocation13 [shape = 'u8[512]{0}', space=vmem, size = 0x400, scoped, tag = 'input window, operand 36, single buffered']
    #allocation14 [shape = 'u8[512]{0}', space=vmem, size = 0x400, scoped, tag = 'input window, operand 38, single buffered']
    #allocation15 [shape = 's32[1]{0}', space=sflag, size = 0x4, scoped, tag = 'scoped memory for swin_forward.1']
    #allocation16 [shape = 'u8[512]{0}', space=vmem, size = 0x400, scoped, tag = 'input window, operand 40, single buffered']
    #allocation17 [shape = 'u8[512]{0}', space=vmem, size = 0x400, scoped, tag = 'input window, operand 41, single buffered']
    #allocation18 [shape = 's32[1]{0}', space=sflag, size = 0x4, scoped, tag = 'scoped memory for swin_forward.1']
    #allocation19 [shape = 'u8[512]{0}', space=vmem, size = 0x400, scoped, tag = 'input window, operand 43, single buffered']
    #allocation20 [shape = 'u8[512]{0}', space=vmem, size = 0x400, scoped, tag = 'input window, operand 45, single buffered']
    #allocation21 [shape = 's32[1]{0}', space=sflag, size = 0x4, scoped, tag = 'scoped memory for swin_forward.1']
    #allocation22 [shape = 'u8[512]{0}', space=vmem, size = 0x400, scoped, tag = 'input window, operand 46, single buffered']
    #allocation23 [shape = 'u8[512]{0}', space=vmem, size = 0x400, scoped, tag = 'input window, operand 47, single buffered']
    #allocation24 [shape = 's32[1]{0}', space=sflag, size = 0x4, scoped, tag = 'scoped memory for swin_forward.1']
    #allocation25 [shape = 'u8[512]{0}', space=vmem, size = 0x400, scoped, tag = 'input window, operand 49, single buffered']
    #allocation26 [shape = 'u8[512]{0}', space=vmem, size = 0x400, scoped, tag = 'input window, operand 51, single buffered']
    #allocation27 [shape = 's32[1]{0}', space=sflag, size = 0x4, scoped, tag = 'scoped memory for swin_forward.1']
    #allocation28 [shape = 'u8[512]{0}', space=vmem, size = 0x400, scoped, tag = 'input window, operand 53, single buffered']
    #allocation29 [shape = 'u8[512]{0}', space=vmem, size = 0x400, scoped, tag = 'input window, operand 54, single buffered']
    #allocation30 [shape = 's32[1]{0}', space=sflag, size = 0x4, scoped, tag = 'scoped memory for swin_forward.1']
    #allocation31 [shape = 'u8[512]{0}', space=vmem, size = 0x400, scoped, tag = 'input window, operand 56, single buffered']
    #allocation32 [shape = 'u8[512]{0}', space=vmem, size = 0x400, scoped, tag = 'input window, operand 58, single buffered']
    #allocation33 [shape = 's32[1]{0}', space=sflag, size = 0x4, scoped, tag = 'scoped memory for swin_forward.1']
    #allocation34 [shape = 'u8[512]{0}', space=vmem, size = 0x400, scoped, tag = 'input window, operand 60, single buffered']
    #allocation35 [shape = 'u8[512]{0}', space=vmem, size = 0x400, scoped, tag = 'input window, operand 61, single buffered']
    #allocation36 [shape = 's32[1]{0}', space=sflag, size = 0x4, scoped, tag = 'scoped memory for swin_forward.1']
    #allocation37 [shape = 'u8[512]{0}', space=vmem, size = 0x400, scoped, tag = 'input window, operand 63, single buffered']
    #allocation38 [shape = 'u8[1024]{0}', space=vmem, size = 0x400, scoped, tag = 'output window, operand 0, single buffered']
    %134 = vsyncpa [#allocation3], 0
    %135 = vsyncpa [#allocation6], 0
    %136 = vsyncpa [#allocation9], 0
    %137 = vsyncpa [#allocation12], 0
    %138 = vsyncpa [#allocation15], 0
    %139 = vsyncpa [#allocation18], 0
    %140 = vsyncpa [#allocation21], 0
    %141 = vsyncpa [#allocation24], 0
    %142 = vsyncpa [#allocation27], 0
    %143 = vsyncpa [#allocation30], 0
    %144 = vsyncpa [#allocation33], 0
    %145 = vsyncpa [#allocation36], 0
    %146 = vsyncpa [#allocation4], 0
    // Predicated region
    $region2: #{swin_forward.1} parent=1 // pred_check
      _
    $region3: #{swin_forward.1} parent=1 // pred_check_branch
      %148 = sbr.rel (0) target = $region5
    $region4: #{swin_forward.1} parent=1 // pred_region
      _
    $region5: #{swin_forward.1} parent=1 // pred_fallthru
      _
    // Predicated region
    $region6: #{swin_forward.1} parent=1 // pred_check
      _
    $region7: #{swin_forward.1} parent=1 // pred_check_branch
      %150 = sbr.rel (0) target = $region9
    $region8: #{swin_forward.1} parent=1 // pred_region
      _
    $region9: #{swin_forward.1} parent=1 // pred_fallthru
      _
    // Predicated region
    $region10: #{swin_forward.1} parent=1 // pred_check
      _
    $region11: #{swin_forward.1} parent=1 // pred_check_branch
      %152 = sbr.rel (0) target = $region13
    $region12: #{swin_forward.1} parent=1 // pred_region
      _
    $region13: #{swin_forward.1} parent=1 // pred_fallthru
      _
    // Predicated region
    $region14: #{swin_forward.1} parent=1 // pred_check
      _
    $region15: #{swin_forward.1} parent=1 // pred_check_branch
      %154 = sbr.rel (0) target = $region17
    $region16: #{swin_forward.1} parent=1 // pred_region
      _
    $region17: #{swin_forward.1} parent=1 // pred_fallthru
      _
    // Predicated region
    $region18: #{swin_forward.1} parent=1 // pred_check
      _
    $region19: #{swin_forward.1} parent=1 // pred_check_branch
      %156 = sbr.rel (0) target = $region21
    $region20: #{swin_forward.1} parent=1 // pred_region
      _
    $region21: #{swin_forward.1} parent=1 // pred_fallthru
      _
    // Predicated region
    $region22: #{swin_forward.1} parent=1 // pred_check
      _
    $region23: #{swin_forward.1} parent=1 // pred_check_branch
      %158 = sbr.rel (0) target = $region25
    $region24: #{swin_forward.1} parent=1 // pred_region
      _
    $region25: #{swin_forward.1} parent=1 // pred_fallthru
      _
    // Predicated region
    $region26: #{swin_forward.1} parent=1 // pred_check
      _
    $region27: #{swin_forward.1} parent=1 // pred_check_branch
      %160 = sbr.rel (0) target = $region29
    $region28: #{swin_forward.1} parent=1 // pred_region
      _
    $region29: #{swin_forward.1} parent=1 // pred_fallthru
      _
    // Predicated region
    $region30: #{swin_forward.1} parent=1 // pred_check
      _
    $region31: #{swin_forward.1} parent=1 // pred_check_branch
      %162 = sbr.rel (0) target = $region33
    $region32: #{swin_forward.1} parent=1 // pred_region
      _
    $region33: #{swin_forward.1} parent=1 // pred_fallthru
      _
    // Predicated region
    $region34: #{swin_forward.1} parent=1 // pred_check
      _
    $region35: #{swin_forward.1} parent=1 // pred_check_branch
      %164 = sbr.rel (0) target = $region37
    $region36: #{swin_forward.1} parent=1 // pred_region
      _
    $region37: #{swin_forward.1} parent=1 // pred_fallthru
      _
    // Predicated region
    $region38: #{swin_forward.1} parent=1 // pred_check
      _
    $region39: #{swin_forward.1} parent=1 // pred_check_branch
      %166 = sbr.rel (0) target = $region41
    $region40: #{swin_forward.1} parent=1 // pred_region
      _
    $region41: #{swin_forward.1} parent=1 // pred_fallthru
      _
    // Predicated region
    $region42: #{swin_forward.1} parent=1 // pred_check
      _
    $region43: #{swin_forward.1} parent=1 // pred_check_branch
      %168 = sbr.rel (0) target = $region45
    $region44: #{swin_forward.1} parent=1 // pred_region
      _
    $region45: #{swin_forward.1} parent=1 // pred_fallthru
      _
    // Predicated region
    $region46: #{swin_forward.1} parent=1 // pred_check
      _
    $region47: #{swin_forward.1} parent=1 // pred_check_branch
      %170 = sbr.rel (0) target = $region49
    $region48: #{swin_forward.1} parent=1 // pred_region
      _
    $region49: #{swin_forward.1} parent=1 // pred_fallthru
      _
    // Predicated region
    $region50: #{swin_forward.1} parent=1 // pred_check
      _
    $region51: #{swin_forward.1} parent=1 // pred_check_branch
      %172 = sbr.rel (0) target = $region53
    $region52: #{swin_forward.1} parent=1 // pred_region
      _
    $region53: #{swin_forward.1} parent=1 // pred_fallthru
      _
    // Predicated region
    $region54: #{swin_forward.1} parent=1 // pred_check
      _
    $region55: #{swin_forward.1} parent=1 // pred_check_branch
      %174 = sbr.rel (0) target = $region57
    $region56: #{swin_forward.1} parent=1 // pred_region
      _
    $region57: #{swin_forward.1} parent=1 // pred_fallthru
      _
    // Predicated region
    $region58: #{swin_forward.1} parent=1 // pred_check
      _
    $region59: #{swin_forward.1} parent=1 // pred_check_branch
      %176 = sbr.rel (0) target = $region61
    $region60: #{swin_forward.1} parent=1 // pred_region
      _
    $region61: #{swin_forward.1} parent=1 // pred_fallthru
      _
    // Predicated region
    $region62: #{swin_forward.1} parent=1 // pred_check
      _
    $region63: #{swin_forward.1} parent=1 // pred_check_branch
      %178 = sbr.rel (0) target = $region65
    $region64: #{swin_forward.1} parent=1 // pred_region
      _
    $region65: #{swin_forward.1} parent=1 // pred_fallthru
      _
    // Predicated region
    $region66: #{swin_forward.1} parent=1 // pred_check
      _
    $region67: #{swin_forward.1} parent=1 // pred_check_branch
      %180 = sbr.rel (0) target = $region69
    $region68: #{swin_forward.1} parent=1 // pred_region
      _
    $region69: #{swin_forward.1} parent=1 // pred_fallthru
      _
    // Predicated region
    $region70: #{swin_forward.1} parent=1 // pred_check
      _
    $region71: #{swin_forward.1} parent=1 // pred_check_branch
      %182 = sbr.rel (0) target = $region73
    $region72: #{swin_forward.1} parent=1 // pred_region
      _
    $region73: #{swin_forward.1} parent=1 // pred_fallthru
      _
    // Predicated region
    $region74: #{swin_forward.1} parent=1 // pred_check
      _
    $region75: #{swin_forward.1} parent=1 // pred_check_branch
      %184 = sbr.rel (0) target = $region77
    $region76: #{swin_forward.1} parent=1 // pred_region
      _
    $region77: #{swin_forward.1} parent=1 // pred_fallthru
      _
    // Predicated region
    $region78: #{swin_forward.1} parent=1 // pred_check
      _
    $region79: #{swin_forward.1} parent=1 // pred_check_branch
      %186 = sbr.rel (0) target = $region81
    $region80: #{swin_forward.1} parent=1 // pred_region
      _
    $region81: #{swin_forward.1} parent=1 // pred_fallthru
      _
    // Predicated region
    $region82: #{swin_forward.1} parent=1 // pred_check
      _
    $region83: #{swin_forward.1} parent=1 // pred_check_branch
      %188 = sbr.rel (0) target = $region85
    $region84: #{swin_forward.1} parent=1 // pred_region
      _
    $region85: #{swin_forward.1} parent=1 // pred_fallthru
      _
    // Predicated region
    $region86: #{swin_forward.1} parent=1 // pred_check
      _
    $region87: #{swin_forward.1} parent=1 // pred_check_branch
      %190 = sbr.rel (0) target = $region89
    $region88: #{swin_forward.1} parent=1 // pred_region
      _
    $region89: #{swin_forward.1} parent=1 // pred_fallthru
      _
    // Predicated region
    $region90: #{swin_forward.1} parent=1 // pred_check
      _
    $region91: #{swin_forward.1} parent=1 // pred_check_branch
      %192 = sbr.rel (0) target = $region93
    $region92: #{swin_forward.1} parent=1 // pred_region
      _
    $region93: #{swin_forward.1} parent=1 // pred_fallthru
      _
    // Predicated region
    $region94: #{swin_forward.1} parent=1 // pred_check
      _
    $region95: #{swin_forward.1} parent=1 // pred_check_branch
      %194 = sbr.rel (0) target = $region97
    $region96: #{swin_forward.1} parent=1 // pred_region
      %196 = vsyncadd [#allocation3], 0
      %s198 = sshll.u32 %s47, 4
      %s199 = int_to_ptr.hbm [resolvable:$true] %s198
      %s200 = sshll.u32 [#allocation2], 4
      %s201 = int_to_ptr.vmem [resolvable:$true] %s200
      %203 = dma.hbm_to_vmem [thread:$0]  %s199, 16, %s201, [#allocation3]
    $region97: #{swin_forward.1} parent=1 // pred_fallthru
      _
    // Predicated region
    $region98: #{swin_forward.1} parent=1 // pred_check
      _
    $region99: #{swin_forward.1} parent=1 // pred_check_branch
      %205 = sbr.rel (0) target = $region101
    $region100: #{swin_forward.1} parent=1 // pred_region
      %207 = vsyncadd [#allocation6], 0
      %s209 = sshll.u32 %s49, 4
      %s210 = int_to_ptr.hbm [resolvable:$true] %s209
      %s211 = sshll.u32 [#allocation5], 4
      %s212 = int_to_ptr.vmem [resolvable:$true] %s211
      %214 = dma.hbm_to_vmem [thread:$0]  %s210, 16, %s212, [#allocation6]
    $region101: #{swin_forward.1} parent=1 // pred_fallthru
      _
    // Predicated region
    $region102: #{swin_forward.1} parent=1 // pred_check
      _
    $region103: #{swin_forward.1} parent=1 // pred_check_branch
      %216 = sbr.rel (0) target = $region105
    $region104: #{swin_forward.1} parent=1 // pred_region
      _
    $region105: #{swin_forward.1} parent=1 // pred_fallthru
      _
    // Predicated region
    $region106: #{swin_forward.1} parent=1 // pred_check
      _
    $region107: #{swin_forward.1} parent=1 // pred_check_branch
      %218 = sbr.rel (0) target = $region109
    $region108: #{swin_forward.1} parent=1 // pred_region
      %220 = vsyncadd [#allocation6], 0
      %s222 = sshll.u32 %s53, 4
      %s223 = int_to_ptr.hbm [resolvable:$true] %s222
      %s224 = sshll.u32 [#allocation7], 4
      %s225 = int_to_ptr.vmem [resolvable:$true] %s224
      %227 = dma.hbm_to_vmem [thread:$0]  %s223, 16, %s225, [#allocation6]
    $region109: #{swin_forward.1} parent=1 // pred_fallthru
      _
    // Predicated region
    $region110: #{swin_forward.1} parent=1 // pred_check
      _
    $region111: #{swin_forward.1} parent=1 // pred_check_branch
      %229 = sbr.rel (0) target = $region113
    $region112: #{swin_forward.1} parent=1 // pred_region
      _
    $region113: #{swin_forward.1} parent=1 // pred_fallthru
      _
    // Predicated region
    $region114: #{swin_forward.1} parent=1 // pred_check
      _
    $region115: #{swin_forward.1} parent=1 // pred_check_branch
      %231 = sbr.rel (0) target = $region117
    $region116: #{swin_forward.1} parent=1 // pred_region
      %233 = vsyncadd [#allocation9], 0
      %s235 = sshll.u32 %s57, 4
      %s236 = int_to_ptr.hbm [resolvable:$true] %s235
      %s237 = sshll.u32 [#allocation8], 4
      %s238 = int_to_ptr.vmem [resolvable:$true] %s237
      %240 = dma.hbm_to_vmem [thread:$0]  %s236, 16, %s238, [#allocation9]
    $region117: #{swin_forward.1} parent=1 // pred_fallthru
      _
    // Predicated region
    $region118: #{swin_forward.1} parent=1 // pred_check
      _
    $region119: #{swin_forward.1} parent=1 // pred_check_branch
      %242 = sbr.rel (0) target = $region121
    $region120: #{swin_forward.1} parent=1 // pred_region
      _
    $region121: #{swin_forward.1} parent=1 // pred_fallthru
      _
    // Predicated region
    $region122: #{swin_forward.1} parent=1 // pred_check
      _
    $region123: #{swin_forward.1} parent=1 // pred_check_branch
      %244 = sbr.rel (0) target = $region125
    $region124: #{swin_forward.1} parent=1 // pred_region
      _
    $region125: #{swin_forward.1} parent=1 // pred_fallthru
      _
    // Predicated region
    $region126: #{swin_forward.1} parent=1 // pred_check
      _
    $region127: #{swin_forward.1} parent=1 // pred_check_branch
      %246 = sbr.rel (0) target = $region129
    $region128: #{swin_forward.1} parent=1 // pred_region
      _
    $region129: #{swin_forward.1} parent=1 // pred_fallthru
      _
    // Predicated region
    $region130: #{swin_forward.1} parent=1 // pred_check
      _
    $region131: #{swin_forward.1} parent=1 // pred_check_branch
      %248 = sbr.rel (0) target = $region133
    $region132: #{swin_forward.1} parent=1 // pred_region
      _
    $region133: #{swin_forward.1} parent=1 // pred_fallthru
      _
    // Predicated region
    $region134: #{swin_forward.1} parent=1 // pred_check
      _
    $region135: #{swin_forward.1} parent=1 // pred_check_branch
      %250 = sbr.rel (0) target = $region137
    $region136: #{swin_forward.1} parent=1 // pred_region
      %252 = vsyncadd [#allocation9], 0
      %s254 = sshll.u32 %s67, 4
      %s255 = int_to_ptr.hbm [resolvable:$true] %s254
      %s256 = sshll.u32 [#allocation10], 4
      %s257 = int_to_ptr.vmem [resolvable:$true] %s256
      %259 = dma.hbm_to_vmem [thread:$0]  %s255, 16, %s257, [#allocation9]
    $region137: #{swin_forward.1} parent=1 // pred_fallthru
      _
    // Predicated region
    $region138: #{swin_forward.1} parent=1 // pred_check
      _
    $region139: #{swin_forward.1} parent=1 // pred_check_branch
      %261 = sbr.rel (0) target = $region141
    $region140: #{swin_forward.1} parent=1 // pred_region
      %263 = vsyncadd [#allocation12], 0
      %s265 = sshll.u32 %s69, 4
      %s266 = int_to_ptr.hbm [resolvable:$true] %s265
      %s267 = sshll.u32 [#allocation11], 4
      %s268 = int_to_ptr.vmem [resolvable:$true] %s267
      %270 = dma.hbm_to_vmem [thread:$0]  %s266, 16, %s268, [#allocation12]
    $region141: #{swin_forward.1} parent=1 // pred_fallthru
      _
    // Predicated region
    $region142: #{swin_forward.1} parent=1 // pred_check
      _
    $region143: #{swin_forward.1} parent=1 // pred_check_branch
      %272 = sbr.rel (0) target = $region145
    $region144: #{swin_forward.1} parent=1 // pred_region
      _
    $region145: #{swin_forward.1} parent=1 // pred_fallthru
      _
    // Predicated region
    $region146: #{swin_forward.1} parent=1 // pred_check
      _
    $region147: #{swin_forward.1} parent=1 // pred_check_branch
      %274 = sbr.rel (0) target = $region149
    $region148: #{swin_forward.1} parent=1 // pred_region
      %276 = vsyncadd [#allocation12], 0
      %s278 = sshll.u32 %s73, 4
      %s279 = int_to_ptr.hbm [resolvable:$true] %s278
      %s280 = sshll.u32 [#allocation13], 4
      %s281 = int_to_ptr.vmem [resolvable:$true] %s280
      %283 = dma.hbm_to_vmem [thread:$0]  %s279, 16, %s281, [#allocation12]
    $region149: #{swin_forward.1} parent=1 // pred_fallthru
      _
    // Predicated region
    $region150: #{swin_forward.1} parent=1 // pred_check
      _
    $region151: #{swin_forward.1} parent=1 // pred_check_branch
      %285 = sbr.rel (0) target = $region153
    $region152: #{swin_forward.1} parent=1 // pred_region
      _
    $region153: #{swin_forward.1} parent=1 // pred_fallthru
      _
    // Predicated region
    $region154: #{swin_forward.1} parent=1 // pred_check
      _
    $region155: #{swin_forward.1} parent=1 // pred_check_branch
      %287 = sbr.rel (0) target = $region157
    $region156: #{swin_forward.1} parent=1 // pred_region
      %289 = vsyncadd [#allocation15], 0
      %s291 = sshll.u32 %s77, 4
      %s292 = int_to_ptr.hbm [resolvable:$true] %s291
      %s293 = sshll.u32 [#allocation14], 4
      %s294 = int_to_ptr.vmem [resolvable:$true] %s293
      %296 = dma.hbm_to_vmem [thread:$0]  %s292, 16, %s294, [#allocation15]
    $region157: #{swin_forward.1} parent=1 // pred_fallthru
      _
    // Predicated region
    $region158: #{swin_forward.1} parent=1 // pred_check
      _
    $region159: #{swin_forward.1} parent=1 // pred_check_branch
      %298 = sbr.rel (0) target = $region161
    $region160: #{swin_forward.1} parent=1 // pred_region
      _
    $region161: #{swin_forward.1} parent=1 // pred_fallthru
      _
    // Predicated region
    $region162: #{swin_forward.1} parent=1 // pred_check
      _
    $region163: #{swin_forward.1} parent=1 // pred_check_branch
      %300 = sbr.rel (0) target = $region165
    $region164: #{swin_forward.1} parent=1 // pred_region
      %302 = vsyncadd [#allocation15], 0
      %s304 = sshll.u32 %s81, 4
      %s305 = int_to_ptr.hbm [resolvable:$true] %s304
      %s306 = sshll.u32 [#allocation16], 4
      %s307 = int_to_ptr.vmem [resolvable:$true] %s306
      %309 = dma.hbm_to_vmem [thread:$0]  %s305, 16, %s307, [#allocation15]
    $region165: #{swin_forward.1} parent=1 // pred_fallthru
      _
    // Predicated region
    $region166: #{swin_forward.1} parent=1 // pred_check
      _
    $region167: #{swin_forward.1} parent=1 // pred_check_branch
      %311 = sbr.rel (0) target = $region169
    $region168: #{swin_forward.1} parent=1 // pred_region
      %313 = vsyncadd [#allocation18], 0
      %s315 = sshll.u32 %s83, 4
      %s316 = int_to_ptr.hbm [resolvable:$true] %s315
      %s317 = sshll.u32 [#allocation17], 4
      %s318 = int_to_ptr.vmem [resolvable:$true] %s317
      %320 = dma.hbm_to_vmem [thread:$0]  %s316, 16, %s318, [#allocation18]
    $region169: #{swin_forward.1} parent=1 // pred_fallthru
      _
    // Predicated region
    $region170: #{swin_forward.1} parent=1 // pred_check
      _
    $region171: #{swin_forward.1} parent=1 // pred_check_branch
      %322 = sbr.rel (0) target = $region173
    $region172: #{swin_forward.1} parent=1 // pred_region
      _
    $region173: #{swin_forward.1} parent=1 // pred_fallthru
      _
    // Predicated region
    $region174: #{swin_forward.1} parent=1 // pred_check
      _
    $region175: #{swin_forward.1} parent=1 // pred_check_branch
      %324 = sbr.rel (0) target = $region177
    $region176: #{swin_forward.1} parent=1 // pred_region
      %326 = vsyncadd [#allocation18], 0
      %s328 = sshll.u32 %s87, 4
      %s329 = int_to_ptr.hbm [resolvable:$true] %s328
      %s330 = sshll.u32 [#allocation19], 4
      %s331 = int_to_ptr.vmem [resolvable:$true] %s330
      %333 = dma.hbm_to_vmem [thread:$0]  %s329, 16, %s331, [#allocation18]
    $region177: #{swin_forward.1} parent=1 // pred_fallthru
      _
    // Predicated region
    $region178: #{swin_forward.1} parent=1 // pred_check
      _
    $region179: #{swin_forward.1} parent=1 // pred_check_branch
      %335 = sbr.rel (0) target = $region181
    $region180: #{swin_forward.1} parent=1 // pred_region
      _
    $region181: #{swin_forward.1} parent=1 // pred_fallthru
      _
    // Predicated region
    $region182: #{swin_forward.1} parent=1 // pred_check
      _
    $region183: #{swin_forward.1} parent=1 // pred_check_branch
      %337 = sbr.rel (0) target = $region185
    $region184: #{swin_forward.1} parent=1 // pred_region
      %339 = vsyncadd [#allocation21], 0
      %s341 = sshll.u32 %s91, 4
      %s342 = int_to_ptr.hbm [resolvable:$true] %s341
      %s343 = sshll.u32 [#allocation20], 4
      %s344 = int_to_ptr.vmem [resolvable:$true] %s343
      %346 = dma.hbm_to_vmem [thread:$0]  %s342, 16, %s344, [#allocation21]
    $region185: #{swin_forward.1} parent=1 // pred_fallthru
      _
    // Predicated region
    $region186: #{swin_forward.1} parent=1 // pred_check
      _
    $region187: #{swin_forward.1} parent=1 // pred_check_branch
      %348 = sbr.rel (0) target = $region189
    $region188: #{swin_forward.1} parent=1 // pred_region
      %350 = vsyncadd [#allocation21], 0
      %s352 = sshll.u32 %s93, 4
      %s353 = int_to_ptr.hbm [resolvable:$true] %s352
      %s354 = sshll.u32 [#allocation22], 4
      %s355 = int_to_ptr.vmem [resolvable:$true] %s354
      %357 = dma.hbm_to_vmem [thread:$0]  %s353, 16, %s355, [#allocation21]
    $region189: #{swin_forward.1} parent=1 // pred_fallthru
      _
    // Predicated region
    $region190: #{swin_forward.1} parent=1 // pred_check
      _
    $region191: #{swin_forward.1} parent=1 // pred_check_branch
      %359 = sbr.rel (0) target = $region193
    $region192: #{swin_forward.1} parent=1 // pred_region
      %361 = vsyncadd [#allocation24], 0
      %s363 = sshll.u32 %s95, 4
      %s364 = int_to_ptr.hbm [resolvable:$true] %s363
      %s365 = sshll.u32 [#allocation23], 4
      %s366 = int_to_ptr.vmem [resolvable:$true] %s365
      %368 = dma.hbm_to_vmem [thread:$0]  %s364, 16, %s366, [#allocation24]
    $region193: #{swin_forward.1} parent=1 // pred_fallthru
      _
    // Predicated region
    $region194: #{swin_forward.1} parent=1 // pred_check
      _
    $region195: #{swin_forward.1} parent=1 // pred_check_branch
      %370 = sbr.rel (0) target = $region197
    $region196: #{swin_forward.1} parent=1 // pred_region
      _
    $region197: #{swin_forward.1} parent=1 // pred_fallthru
      _
    // Predicated region
    $region198: #{swin_forward.1} parent=1 // pred_check
      _
    $region199: #{swin_forward.1} parent=1 // pred_check_branch
      %372 = sbr.rel (0) target = $region201
    $region200: #{swin_forward.1} parent=1 // pred_region
      %374 = vsyncadd [#allocation24], 0
      %s376 = sshll.u32 %s99, 4
      %s377 = int_to_ptr.hbm [resolvable:$true] %s376
      %s378 = sshll.u32 [#allocation25], 4
      %s379 = int_to_ptr.vmem [resolvable:$true] %s378
      %381 = dma.hbm_to_vmem [thread:$0]  %s377, 16, %s379, [#allocation24]
    $region201: #{swin_forward.1} parent=1 // pred_fallthru
      _
    // Predicated region
    $region202: #{swin_forward.1} parent=1 // pred_check
      _
    $region203: #{swin_forward.1} parent=1 // pred_check_branch
      %383 = sbr.rel (0) target = $region205
    $region204: #{swin_forward.1} parent=1 // pred_region
      _
    $region205: #{swin_forward.1} parent=1 // pred_fallthru
      _
    // Predicated region
    $region206: #{swin_forward.1} parent=1 // pred_check
      _
    $region207: #{swin_forward.1} parent=1 // pred_check_branch
      %385 = sbr.rel (0) target = $region209
    $region208: #{swin_forward.1} parent=1 // pred_region
      %387 = vsyncadd [#allocation27], 0
      %s389 = sshll.u32 %s103, 4
      %s390 = int_to_ptr.hbm [resolvable:$true] %s389
      %s391 = sshll.u32 [#allocation26], 4
      %s392 = int_to_ptr.vmem [resolvable:$true] %s391
      %394 = dma.hbm_to_vmem [thread:$0]  %s390, 16, %s392, [#allocation27]
    $region209: #{swin_forward.1} parent=1 // pred_fallthru
      _
    // Predicated region
    $region210: #{swin_forward.1} parent=1 // pred_check
      _
    $region211: #{swin_forward.1} parent=1 // pred_check_branch
      %396 = sbr.rel (0) target = $region213
    $region212: #{swin_forward.1} parent=1 // pred_region
      _
    $region213: #{swin_forward.1} parent=1 // pred_fallthru
      _
    // Predicated region
    $region214: #{swin_forward.1} parent=1 // pred_check
      _
    $region215: #{swin_forward.1} parent=1 // pred_check_branch
      %398 = sbr.rel (0) target = $region217
    $region216: #{swin_forward.1} parent=1 // pred_region
      %400 = vsyncadd [#allocation27], 0
      %s402 = sshll.u32 %s107, 4
      %s403 = int_to_ptr.hbm [resolvable:$true] %s402
      %s404 = sshll.u32 [#allocation28], 4
      %s405 = int_to_ptr.vmem [resolvable:$true] %s404
      %407 = dma.hbm_to_vmem [thread:$0]  %s403, 16, %s405, [#allocation27]
    $region217: #{swin_forward.1} parent=1 // pred_fallthru
      _
    // Predicated region
    $region218: #{swin_forward.1} parent=1 // pred_check
      _
    $region219: #{swin_forward.1} parent=1 // pred_check_branch
      %409 = sbr.rel (0) target = $region221
    $region220: #{swin_forward.1} parent=1 // pred_region
      %411 = vsyncadd [#allocation30], 0
      %s413 = sshll.u32 %s109, 4
      %s414 = int_to_ptr.hbm [resolvable:$true] %s413
      %s415 = sshll.u32 [#allocation29], 4
      %s416 = int_to_ptr.vmem [resolvable:$true] %s415
      %418 = dma.hbm_to_vmem [thread:$0]  %s414, 16, %s416, [#allocation30]
    $region221: #{swin_forward.1} parent=1 // pred_fallthru
      _
    // Predicated region
    $region222: #{swin_forward.1} parent=1 // pred_check
      _
    $region223: #{swin_forward.1} parent=1 // pred_check_branch
      %420 = sbr.rel (0) target = $region225
    $region224: #{swin_forward.1} parent=1 // pred_region
      _
    $region225: #{swin_forward.1} parent=1 // pred_fallthru
      _
    // Predicated region
    $region226: #{swin_forward.1} parent=1 // pred_check
      _
    $region227: #{swin_forward.1} parent=1 // pred_check_branch
      %422 = sbr.rel (0) target = $region229
    $region228: #{swin_forward.1} parent=1 // pred_region
      %424 = vsyncadd [#allocation30], 0
      %s426 = sshll.u32 %s113, 4
      %s427 = int_to_ptr.hbm [resolvable:$true] %s426
      %s428 = sshll.u32 [#allocation31], 4
      %s429 = int_to_ptr.vmem [resolvable:$true] %s428
      %431 = dma.hbm_to_vmem [thread:$0]  %s427, 16, %s429, [#allocation30]
    $region229: #{swin_forward.1} parent=1 // pred_fallthru
      _
    // Predicated region
    $region230: #{swin_forward.1} parent=1 // pred_check
      _
    $region231: #{swin_forward.1} parent=1 // pred_check_branch
      %433 = sbr.rel (0) target = $region233
    $region232: #{swin_forward.1} parent=1 // pred_region
      _
    $region233: #{swin_forward.1} parent=1 // pred_fallthru
      _
    // Predicated region
    $region234: #{swin_forward.1} parent=1 // pred_check
      _
    $region235: #{swin_forward.1} parent=1 // pred_check_branch
      %435 = sbr.rel (0) target = $region237
    $region236: #{swin_forward.1} parent=1 // pred_region
      %437 = vsyncadd [#allocation33], 0
      %s439 = sshll.u32 %s117, 4
      %s440 = int_to_ptr.hbm [resolvable:$true] %s439
      %s441 = sshll.u32 [#allocation32], 4
      %s442 = int_to_ptr.vmem [resolvable:$true] %s441
      %444 = dma.hbm_to_vmem [thread:$0]  %s440, 16, %s442, [#allocation33]
    $region237: #{swin_forward.1} parent=1 // pred_fallthru
      _
    // Predicated region
    $region238: #{swin_forward.1} parent=1 // pred_check
      _
    $region239: #{swin_forward.1} parent=1 // pred_check_branch
      %446 = sbr.rel (0) target = $region241
    $region240: #{swin_forward.1} parent=1 // pred_region
      _
    $region241: #{swin_forward.1} parent=1 // pred_fallthru
      _
    // Predicated region
    $region242: #{swin_forward.1} parent=1 // pred_check
      _
    $region243: #{swin_forward.1} parent=1 // pred_check_branch
      %448 = sbr.rel (0) target = $region245
    $region244: #{swin_forward.1} parent=1 // pred_region
      %450 = vsyncadd [#allocation33], 0
      %s452 = sshll.u32 %s121, 4
      %s453 = int_to_ptr.hbm [resolvable:$true] %s452
      %s454 = sshll.u32 [#allocation34], 4
      %s455 = int_to_ptr.vmem [resolvable:$true] %s454
      %457 = dma.hbm_to_vmem [thread:$0]  %s453, 16, %s455, [#allocation33]
    $region245: #{swin_forward.1} parent=1 // pred_fallthru
      _
    // Predicated region
    $region246: #{swin_forward.1} parent=1 // pred_check
      _
    $region247: #{swin_forward.1} parent=1 // pred_check_branch
      %459 = sbr.rel (0) target = $region249
    $region248: #{swin_forward.1} parent=1 // pred_region
      %461 = vsyncadd [#allocation36], 0
      %s463 = sshll.u32 %s123, 4
      %s464 = int_to_ptr.hbm [resolvable:$true] %s463
      %s465 = sshll.u32 [#allocation35], 4
      %s466 = int_to_ptr.vmem [resolvable:$true] %s465
      %468 = dma.hbm_to_vmem [thread:$0]  %s464, 16, %s466, [#allocation36]
    $region249: #{swin_forward.1} parent=1 // pred_fallthru
      _
    // Predicated region
    $region250: #{swin_forward.1} parent=1 // pred_check
      _
    $region251: #{swin_forward.1} parent=1 // pred_check_branch
      %470 = sbr.rel (0) target = $region253
    $region252: #{swin_forward.1} parent=1 // pred_region
      _
    $region253: #{swin_forward.1} parent=1 // pred_fallthru
      _
    // Predicated region
    $region254: #{swin_forward.1} parent=1 // pred_check
      _
    $region255: #{swin_forward.1} parent=1 // pred_check_branch
      %472 = sbr.rel (0) target = $region257
    $region256: #{swin_forward.1} parent=1 // pred_region
      %474 = vsyncadd [#allocation36], 0
      %s476 = sshll.u32 %s127, 4
      %s477 = int_to_ptr.hbm [resolvable:$true] %s476
      %s478 = sshll.u32 [#allocation37], 4
      %s479 = int_to_ptr.vmem [resolvable:$true] %s478
      %481 = dma.hbm_to_vmem [thread:$0]  %s477, 16, %s479, [#allocation36]
    $region257: #{swin_forward.1} parent=1 // pred_fallthru
      _
    // Predicated region
    $region258: #{swin_forward.1} parent=1 // pred_check
      _
    $region259: #{swin_forward.1} parent=1 // pred_check_branch
      %483 = sbr.rel (0) target = $region261
    $region260: #{swin_forward.1} parent=1 // pred_region
      %485 = dma.done [#allocation3], 16
    $region261: #{swin_forward.1} parent=1 // pred_fallthru
      _
    // Predicated region
    $region262: #{swin_forward.1} parent=1 // pred_check
      _
    $region263: #{swin_forward.1} parent=1 // pred_check_branch
      %487 = sbr.rel (0) target = $region265
    $region264: #{swin_forward.1} parent=1 // pred_region
      %489 = dma.done [#allocation6], 16
    $region265: #{swin_forward.1} parent=1 // pred_fallthru
      _
    // Predicated region
    $region266: #{swin_forward.1} parent=1 // pred_check
      _
    $region267: #{swin_forward.1} parent=1 // pred_check_branch
      %491 = sbr.rel (0) target = $region269
    $region268: #{swin_forward.1} parent=1 // pred_region
      %493 = dma.done [#allocation6], 16
    $region269: #{swin_forward.1} parent=1 // pred_fallthru
      _
    // Predicated region
    $region270: #{swin_forward.1} parent=1 // pred_check
      _
    $region271: #{swin_forward.1} parent=1 // pred_check_branch
      %495 = sbr.rel (0) target = $region273
    $region272: #{swin_forward.1} parent=1 // pred_region
      %497 = dma.done [#allocation9], 16
    $region273: #{swin_forward.1} parent=1 // pred_fallthru
      _
    // Predicated region
    $region274: #{swin_forward.1} parent=1 // pred_check
      _
    $region275: #{swin_forward.1} parent=1 // pred_check_branch
      %499 = sbr.rel (0) target = $region277
    $region276: #{swin_forward.1} parent=1 // pred_region
      %501 = dma.done [#allocation9], 16
    $region277: #{swin_forward.1} parent=1 // pred_fallthru
      _
    // Predicated region
    $region278: #{swin_forward.1} parent=1 // pred_check
      _
    $region279: #{swin_forward.1} parent=1 // pred_check_branch
      %503 = sbr.rel (0) target = $region281
    $region280: #{swin_forward.1} parent=1 // pred_region
      %505 = dma.done [#allocation12], 16
    $region281: #{swin_forward.1} parent=1 // pred_fallthru
      _
    // Predicated region
    $region282: #{swin_forward.1} parent=1 // pred_check
      _
    $region283: #{swin_forward.1} parent=1 // pred_check_branch
      %507 = sbr.rel (0) target = $region285
    $region284: #{swin_forward.1} parent=1 // pred_region
      %509 = dma.done [#allocation12], 16
    $region285: #{swin_forward.1} parent=1 // pred_fallthru
      _
    // Predicated region
    $region286: #{swin_forward.1} parent=1 // pred_check
      _
    $region287: #{swin_forward.1} parent=1 // pred_check_branch
      %511 = sbr.rel (0) target = $region289
    $region288: #{swin_forward.1} parent=1 // pred_region
      %513 = dma.done [#allocation15], 16
    $region289: #{swin_forward.1} parent=1 // pred_fallthru
      _
    // Predicated region
    $region290: #{swin_forward.1} parent=1 // pred_check
      _
    $region291: #{swin_forward.1} parent=1 // pred_check_branch
      %515 = sbr.rel (0) target = $region293
    $region292: #{swin_forward.1} parent=1 // pred_region
      %517 = dma.done [#allocation15], 16
    $region293: #{swin_forward.1} parent=1 // pred_fallthru
      _
    // Predicated region
    $region294: #{swin_forward.1} parent=1 // pred_check
      _
    $region295: #{swin_forward.1} parent=1 // pred_check_branch
      %519 = sbr.rel (0) target = $region297
    $region296: #{swin_forward.1} parent=1 // pred_region
      %521 = dma.done [#allocation18], 16
    $region297: #{swin_forward.1} parent=1 // pred_fallthru
      _
    // Predicated region
    $region298: #{swin_forward.1} parent=1 // pred_check
      _
    $region299: #{swin_forward.1} parent=1 // pred_check_branch
      %523 = sbr.rel (0) target = $region301
    $region300: #{swin_forward.1} parent=1 // pred_region
      %525 = dma.done [#allocation18], 16
    $region301: #{swin_forward.1} parent=1 // pred_fallthru
      _
    // Predicated region
    $region302: #{swin_forward.1} parent=1 // pred_check
      _
    $region303: #{swin_forward.1} parent=1 // pred_check_branch
      %527 = sbr.rel (0) target = $region305
    $region304: #{swin_forward.1} parent=1 // pred_region
      %529 = dma.done [#allocation21], 16
    $region305: #{swin_forward.1} parent=1 // pred_fallthru
      _
    // Predicated region
    $region306: #{swin_forward.1} parent=1 // pred_check
      _
    $region307: #{swin_forward.1} parent=1 // pred_check_branch
      %531 = sbr.rel (0) target = $region309
    $region308: #{swin_forward.1} parent=1 // pred_region
      %533 = dma.done [#allocation21], 16
    $region309: #{swin_forward.1} parent=1 // pred_fallthru
      _
    // Predicated region
    $region310: #{swin_forward.1} parent=1 // pred_check
      _
    $region311: #{swin_forward.1} parent=1 // pred_check_branch
      %535 = sbr.rel (0) target = $region313
    $region312: #{swin_forward.1} parent=1 // pred_region
      %537 = dma.done [#allocation24], 16
    $region313: #{swin_forward.1} parent=1 // pred_fallthru
      _
    // Predicated region
    $region314: #{swin_forward.1} parent=1 // pred_check
      _
    $region315: #{swin_forward.1} parent=1 // pred_check_branch
      %539 = sbr.rel (0) target = $region317
    $region316: #{swin_forward.1} parent=1 // pred_region
      %541 = dma.done [#allocation24], 16
    $region317: #{swin_forward.1} parent=1 // pred_fallthru
      _
    // Predicated region
    $region318: #{swin_forward.1} parent=1 // pred_check
      _
    $region319: #{swin_forward.1} parent=1 // pred_check_branch
      %543 = sbr.rel (0) target = $region321
    $region320: #{swin_forward.1} parent=1 // pred_region
      %545 = dma.done [#allocation27], 16
    $region321: #{swin_forward.1} parent=1 // pred_fallthru
      _
    // Predicated region
    $region322: #{swin_forward.1} parent=1 // pred_check
      _
    $region323: #{swin_forward.1} parent=1 // pred_check_branch
      %547 = sbr.rel (0) target = $region325
    $region324: #{swin_forward.1} parent=1 // pred_region
      %549 = dma.done [#allocation27], 16
    $region325: #{swin_forward.1} parent=1 // pred_fallthru
      _
    // Predicated region
    $region326: #{swin_forward.1} parent=1 // pred_check
      _
    $region327: #{swin_forward.1} parent=1 // pred_check_branch
      %551 = sbr.rel (0) target = $region329
    $region328: #{swin_forward.1} parent=1 // pred_region
      %553 = dma.done [#allocation30], 16
    $region329: #{swin_forward.1} parent=1 // pred_fallthru
      _
    // Predicated region
    $region330: #{swin_forward.1} parent=1 // pred_check
      _
    $region331: #{swin_forward.1} parent=1 // pred_check_branch
      %555 = sbr.rel (0) target = $region333
    $region332: #{swin_forward.1} parent=1 // pred_region
      %557 = dma.done [#allocation30], 16
    $region333: #{swin_forward.1} parent=1 // pred_fallthru
      _
    // Predicated region
    $region334: #{swin_forward.1} parent=1 // pred_check
      _
    $region335: #{swin_forward.1} parent=1 // pred_check_branch
      %559 = sbr.rel (0) target = $region337
    $region336: #{swin_forward.1} parent=1 // pred_region
      %561 = dma.done [#allocation33], 16
    $region337: #{swin_forward.1} parent=1 // pred_fallthru
      _
    // Predicated region
    $region338: #{swin_forward.1} parent=1 // pred_check
      _
    $region339: #{swin_forward.1} parent=1 // pred_check_branch
      %563 = sbr.rel (0) target = $region341
    $region340: #{swin_forward.1} parent=1 // pred_region
      %565 = dma.done [#allocation33], 16
    $region341: #{swin_forward.1} parent=1 // pred_fallthru
      _
    // Predicated region
    $region342: #{swin_forward.1} parent=1 // pred_check
      _
    $region343: #{swin_forward.1} parent=1 // pred_check_branch
      %567 = sbr.rel (0) target = $region345
    $region344: #{swin_forward.1} parent=1 // pred_region
      %569 = dma.done [#allocation36], 16
    $region345: #{swin_forward.1} parent=1 // pred_fallthru
      _
    // Predicated region
    $region346: #{swin_forward.1} parent=1 // pred_check
      _
    $region347: #{swin_forward.1} parent=1 // pred_check_branch
      %571 = sbr.rel (0) target = $region349
    $region348: #{swin_forward.1} parent=1 // pred_region
      %573 = dma.done [#allocation36], 16
    $region349: #{swin_forward.1} parent=1 // pred_fallthru
      _
    %v575 = vld [vmem:[%s1] sm:$0xff]
    %v576 = vld [vmem:[%s1 + $0x8] sm:$0xff]
    %v577 = vld [vmem:[%s1 + $0x10] sm:$0xff]
    %v578 = vld [vmem:[%s1 + $0x18] sm:$0xff]
    %v579 = vld [vmem:[%s1 + $0x20] sm:$0xff]
    %v580 = vld [vmem:[%s1 + $0x28] sm:$0xff]
    %v581 = vld [vmem:[%s1 + $0x30] sm:$0xff]
    %v582 = vld [vmem:[%s1 + $0x38] sm:$0xff]
    %v583 = vld [vmem:[%s1 + $0x40] sm:$0xff]
    %v584 = vld [vmem:[%s1 + $0x48] sm:$0xff]
    %v585 = vld [vmem:[%s1 + $0x50] sm:$0xff]
    %v586 = vld [vmem:[%s1 + $0x58] sm:$0xff]
    %v587 = vld [vmem:[%s1 + $0x60] sm:$0xff]
    %v588 = vld [vmem:[%s1 + $0x68] sm:$0xff]
    %v589 = vld [vmem:[%s1 + $0x70] sm:$0xff]
    %v590 = vld [vmem:[%s1 + $0x78] sm:$0xff]
    %v591 = vld [vmem:[%s3] sm:$0xf]
    %v592 = vld [vmem:[%s3 + $0x4] sm:$0xf]
    %v593 = vpack.c.bf16 %v576, %v575
    %v594 = vpack.c.bf16 %v578, %v577
    %v595 = vpack.c.bf16 %v580, %v579
    %v596 = vpack.c.bf16 %v582, %v581
    %v597 = vpack.c.bf16 %v584, %v583
    %v598 = vpack.c.bf16 %v586, %v585
    %v599 = vpack.c.bf16 %v588, %v587
    %v600 = vpack.c.bf16 %v590, %v589
    %v601 = vld [vmem:[%s5] sm:$0x1]
    %v603 = vperm.slane %v601, 0
    %v607 = vunpack.c.l.b16 %v591
    %v608 = vunpack.c.l.b16 %v592
    %v609 = vpack.c.b16 %v608, %v607
    %vm611 = vcmask 130048
    %v613 = vsel %vm611, %v593, 0
    %v616 = vsel %vm611, %v594, 0
    %v619 = vsel %vm611, %v595, 0
    %v622 = vsel %vm611, %v596, 0
    %v625 = vsel %vm611, %v597, 0
    %v628 = vsel %vm611, %v598, 0
    %v631 = vsel %vm611, %v599, 0
    %v634 = vsel %vm611, %v600, 0
    %636 = vmatpush.bf16.msra.mxu0 0
    %637 = vmatpush.bf16.msra.mxu0 0
    %638 = vmatpush.bf16.msra.mxu0 0
    %639 = vmatpush.bf16.msra.mxu0 0
    %640 = vmatpush.bf16.msra.mxu0 0
    %641 = vmatpush.bf16.msra.mxu0 0
    %642 = vmatpush.bf16.msra.mxu0 0
    %643 = vmatpush.bf16.msra.mxu0 %v609
    %644 = vmatmul.bf16.gmra.mxu0 %v613
    %v645 = vpop.f32.mrf.mxu0
    %v646 = vadd.f32 %v603, %v645
    %v647 = vpop.f32.mrf.mxu0
    %v648 = vadd.f32 %v603, %v647
    %649 = vmatmul.bf16.gmra.mxu0 %v616
    %v650 = vpop.f32.mrf.mxu0
    %v651 = vadd.f32 %v603, %v650
    %v652 = vpop.f32.mrf.mxu0
    %v653 = vadd.f32 %v603, %v652
    %654 = vmatmul.bf16.gmra.mxu0 %v619
    %v655 = vpop.f32.mrf.mxu0
    %v656 = vadd.f32 %v603, %v655
    %v657 = vpop.f32.mrf.mxu0
    %v658 = vadd.f32 %v603, %v657
    %659 = vmatmul.bf16.gmra.mxu0 %v622
    %v660 = vpop.f32.mrf.mxu0
    %v661 = vadd.f32 %v603, %v660
    %v662 = vpop.f32.mrf.mxu0
    %v663 = vadd.f32 %v603, %v662
    %664 = vmatmul.bf16.gmra.mxu0 %v625
    %v665 = vpop.f32.mrf.mxu0
    %v666 = vadd.f32 %v603, %v665
    %v667 = vpop.f32.mrf.mxu0
    %v668 = vadd.f32 %v603, %v667
    %669 = vmatmul.bf16.gmra.mxu0 %v628
    %v670 = vpop.f32.mrf.mxu0
    %v671 = vadd.f32 %v603, %v670
    %v672 = vpop.f32.mrf.mxu0
    %v673 = vadd.f32 %v603, %v672
    %674 = vmatmul.bf16.gmra.mxu0 %v631
    %v675 = vpop.f32.mrf.mxu0
    %v676 = vadd.f32 %v603, %v675
    %v677 = vpop.f32.mrf.mxu0
    %v678 = vadd.f32 %v603, %v677
    %679 = vmatmul.bf16.gmra.mxu0 %v634
    %v680 = vpop.f32.mrf.mxu0
    %v681 = vadd.f32 %v603, %v680
    %v682 = vpop.f32.mrf.mxu0
    %v683 = vadd.f32 %v603, %v682
    %684 = vdwg.mxu0
    %v685 = vld [vmem:[%s7] sm:$0x1]
    %v686 = vld [vmem:[%s9] sm:$0x1]
    %v687 = vsel %vm611, %v646, 0.0
    %688 = vadd.xlane.f32.xlu0 %v687
    %v689 = vpop.xlane.xlu0 %688
    %v690 = vsel %vm611, %v648, 0.0
    %691 = vadd.xlane.f32.xlu0 %v690
    %v692 = vpop.xlane.xlu0 %691
    %v693 = vsel %vm611, %v651, 0.0
    %694 = vadd.xlane.f32.xlu0 %v693
    %v695 = vpop.xlane.xlu0 %694
    %v696 = vsel %vm611, %v653, 0.0
    %697 = vadd.xlane.f32.xlu0 %v696
    %v698 = vpop.xlane.xlu0 %697
    %v699 = vsel %vm611, %v656, 0.0
    %700 = vadd.xlane.f32.xlu0 %v699
    %v701 = vpop.xlane.xlu0 %700
    %v702 = vsel %vm611, %v658, 0.0
    %703 = vadd.xlane.f32.xlu0 %v702
    %v704 = vpop.xlane.xlu0 %703
    %v705 = vsel %vm611, %v661, 0.0
    %706 = vadd.xlane.f32.xlu0 %v705
    %v707 = vpop.xlane.xlu0 %706
    %v708 = vsel %vm611, %v663, 0.0
    %709 = vadd.xlane.f32.xlu0 %v708
    %v710 = vpop.xlane.xlu0 %709
    %v711 = vsel %vm611, %v666, 0.0
    %712 = vadd.xlane.f32.xlu0 %v711
    %v713 = vpop.xlane.xlu0 %712
    %v714 = vsel %vm611, %v668, 0.0
    %715 = vadd.xlane.f32.xlu0 %v714
    %v716 = vpop.xlane.xlu0 %715
    %v717 = vsel %vm611, %v671, 0.0
    %718 = vadd.xlane.f32.xlu0 %v717
    %v719 = vpop.xlane.xlu0 %718
    %v720 = vsel %vm611, %v673, 0.0
    %721 = vadd.xlane.f32.xlu0 %v720
    %v722 = vpop.xlane.xlu0 %721
    %v723 = vsel %vm611, %v676, 0.0
    %724 = vadd.xlane.f32.xlu0 %v723
    %v725 = vpop.xlane.xlu0 %724
    %v726 = vsel %vm611, %v678, 0.0
    %727 = vadd.xlane.f32.xlu0 %v726
    %v728 = vpop.xlane.xlu0 %727
    %v729 = vsel %vm611, %v681, 0.0
    %730 = vadd.xlane.f32.xlu0 %v729
    %v731 = vpop.xlane.xlu0 %730
    %v732 = vsel %vm611, %v683, 0.0
    %733 = vadd.xlane.f32.xlu0 %v732
    %v734 = vpop.xlane.xlu0 %733
    %v735 = vrcp.pop 16.0
    %v736 = vmul.f32 16.0, %v735
    %v737 = vsub.f32 1.0, %v736
    %v738 = vmul.f32 %v735, %v737
    %v739 = vadd.f32 %v735, %v738
    %vm740 = vweird.f32 %v735
    %v741 = vsel %vm740, %v735, %v739
    %v742 = vmul.f32 %v689, %v741
    %v743 = vmul.f32 %v692, %v741
    %v744 = vmul.f32 %v695, %v741
    %v745 = vmul.f32 %v698, %v741
    %v746 = vmul.f32 %v701, %v741
    %v747 = vmul.f32 %v704, %v741
    %v748 = vmul.f32 %v707, %v741
    %v749 = vmul.f32 %v710, %v741
    %v750 = vmul.f32 %v713, %v741
    %v751 = vmul.f32 %v716, %v741
    %v752 = vmul.f32 %v719, %v741
    %v753 = vmul.f32 %v722, %v741
    %v754 = vmul.f32 %v725, %v741
    %v755 = vmul.f32 %v728, %v741
    %v756 = vmul.f32 %v731, %v741
    %v757 = vmul.f32 %v734, %v741
    %v758 = vsub.f32 %v646, %v742
    %v759 = vsub.f32 %v648, %v743
    %v760 = vsub.f32 %v651, %v744
    %v761 = vsub.f32 %v653, %v745
    %v762 = vsub.f32 %v656, %v746
    %v763 = vsub.f32 %v658, %v747
    %v764 = vsub.f32 %v661, %v748
    %v765 = vsub.f32 %v663, %v749
    %v766 = vsub.f32 %v666, %v750
    %v767 = vsub.f32 %v668, %v751
    %v768 = vsub.f32 %v671, %v752
    %v769 = vsub.f32 %v673, %v753
    %v770 = vsub.f32 %v676, %v754
    %v771 = vsub.f32 %v678, %v755
    %v772 = vsub.f32 %v681, %v756
    %v773 = vsub.f32 %v683, %v757
    %v774 = vmul.f32 %v758, %v758
    %v775 = vmul.f32 %v759, %v759
    %v776 = vmul.f32 %v760, %v760
    %v777 = vmul.f32 %v761, %v761
    %v778 = vmul.f32 %v762, %v762
    %v779 = vmul.f32 %v763, %v763
    %v780 = vmul.f32 %v764, %v764
    %v781 = vmul.f32 %v765, %v765
    %v782 = vmul.f32 %v766, %v766
    %v783 = vmul.f32 %v767, %v767
    %v784 = vmul.f32 %v768, %v768
    %v785 = vmul.f32 %v769, %v769
    %v786 = vmul.f32 %v770, %v770
    %v787 = vmul.f32 %v771, %v771
    %v788 = vmul.f32 %v772, %v772
    %v789 = vmul.f32 %v773, %v773
    %v790 = vsel %vm611, %v774, 0.0
    %791 = vadd.xlane.f32.xlu0 %v790
    %v792 = vpop.xlane.xlu0 %791
    %v793 = vsel %vm611, %v775, 0.0
    %794 = vadd.xlane.f32.xlu0 %v793
    %v795 = vpop.xlane.xlu0 %794
    %v796 = vsel %vm611, %v776, 0.0
    %797 = vadd.xlane.f32.xlu0 %v796
    %v798 = vpop.xlane.xlu0 %797
    %v799 = vsel %vm611, %v777, 0.0
    %800 = vadd.xlane.f32.xlu0 %v799
    %v801 = vpop.xlane.xlu0 %800
    %v802 = vsel %vm611, %v778, 0.0
    %803 = vadd.xlane.f32.xlu0 %v802
    %v804 = vpop.xlane.xlu0 %803
    %v805 = vsel %vm611, %v779, 0.0
    %806 = vadd.xlane.f32.xlu0 %v805
    %v807 = vpop.xlane.xlu0 %806
    %v808 = vsel %vm611, %v780, 0.0
    %809 = vadd.xlane.f32.xlu0 %v808
    %v810 = vpop.xlane.xlu0 %809
    %v811 = vsel %vm611, %v781, 0.0
    %812 = vadd.xlane.f32.xlu0 %v811
    %v813 = vpop.xlane.xlu0 %812
    %v814 = vsel %vm611, %v782, 0.0
    %815 = vadd.xlane.f32.xlu0 %v814
    %v816 = vpop.xlane.xlu0 %815
    %v817 = vsel %vm611, %v783, 0.0
    %818 = vadd.xlane.f32.xlu0 %v817
    %v819 = vpop.xlane.xlu0 %818
    %v820 = vsel %vm611, %v784, 0.0
    %821 = vadd.xlane.f32.xlu0 %v820
    %v822 = vpop.xlane.xlu0 %821
    %v823 = vsel %vm611, %v785, 0.0
    %824 = vadd.xlane.f32.xlu0 %v823
    %v825 = vpop.xlane.xlu0 %824
    %v826 = vsel %vm611, %v786, 0.0
    %827 = vadd.xlane.f32.xlu0 %v826
    %v828 = vpop.xlane.xlu0 %827
    %v829 = vsel %vm611, %v787, 0.0
    %830 = vadd.xlane.f32.xlu0 %v829
    %v831 = vpop.xlane.xlu0 %830
    %v832 = vsel %vm611, %v788, 0.0
    %833 = vadd.xlane.f32.xlu0 %v832
    %v834 = vpop.xlane.xlu0 %833
    %v835 = vsel %vm611, %v789, 0.0
    %836 = vadd.xlane.f32.xlu0 %v835
    %v837 = vpop.xlane.xlu0 %836
    %v838 = vmul.f32 %v792, %v741
    %v839 = vmul.f32 %v795, %v741
    %v840 = vmul.f32 %v798, %v741
    %v841 = vmul.f32 %v801, %v741
    %v842 = vmul.f32 %v804, %v741
    %v843 = vmul.f32 %v807, %v741
    %v844 = vmul.f32 %v810, %v741
    %v845 = vmul.f32 %v813, %v741
    %v846 = vmul.f32 %v816, %v741
    %v847 = vmul.f32 %v819, %v741
    %v848 = vmul.f32 %v822, %v741
    %v849 = vmul.f32 %v825, %v741
    %v850 = vmul.f32 %v828, %v741
    %v851 = vmul.f32 %v831, %v741
    %v852 = vmul.f32 %v834, %v741
    %v853 = vmul.f32 %v837, %v741
    %v854 = vadd.f32 %v838, 1e-05
    %v855 = vadd.f32 %v839, 1e-05
    %v856 = vadd.f32 %v840, 1e-05
    %v857 = vadd.f32 %v841, 1e-05
    %v858 = vadd.f32 %v842, 1e-05
    %v859 = vadd.f32 %v843, 1e-05
    %v860 = vadd.f32 %v844, 1e-05
    %v861 = vadd.f32 %v845, 1e-05
    %v862 = vadd.f32 %v846, 1e-05
    %v863 = vadd.f32 %v847, 1e-05
    %v864 = vadd.f32 %v848, 1e-05
    %v865 = vadd.f32 %v849, 1e-05
    %v866 = vadd.f32 %v850, 1e-05
    %v867 = vadd.f32 %v851, 1e-05
    %v868 = vadd.f32 %v852, 1e-05
    %v869 = vadd.f32 %v853, 1e-05
    %v870 = vrsqrt.pop %v854
    %v871 = vmul.f32 %v870, %v854
    %v872 = vmul.f32 %v871, %v870
    %v873 = vmul.f32 0.5, %v872
    %v874 = vsub.f32 1.5, %v873
    %v875 = vmul.f32 %v870, %v874
    %vm876 = vweird.f32 %v854
    %vm877 = vweird.f32 %v870
    %vm878 = vmor %vm876, %vm877
    %v879 = vsel %vm878, %v870, %v875
    %v880 = vrsqrt.pop %v855
    %v881 = vmul.f32 %v880, %v855
    %v882 = vmul.f32 %v881, %v880
    %v883 = vmul.f32 0.5, %v882
    %v884 = vsub.f32 1.5, %v883
    %v885 = vmul.f32 %v880, %v884
    %vm886 = vweird.f32 %v855
    %vm887 = vweird.f32 %v880
    %vm888 = vmor %vm886, %vm887
    %v889 = vsel %vm888, %v880, %v885
    %v890 = vrsqrt.pop %v856
    %v891 = vmul.f32 %v890, %v856
    %v892 = vmul.f32 %v891, %v890
    %v893 = vmul.f32 0.5, %v892
    %v894 = vsub.f32 1.5, %v893
    %v895 = vmul.f32 %v890, %v894
    %vm896 = vweird.f32 %v856
    %vm897 = vweird.f32 %v890
    %vm898 = vmor %vm896, %vm897
    %v899 = vsel %vm898, %v890, %v895
    %v900 = vrsqrt.pop %v857
    %v901 = vmul.f32 %v900, %v857
    %v902 = vmul.f32 %v901, %v900
    %v903 = vmul.f32 0.5, %v902
    %v904 = vsub.f32 1.5, %v903
    %v905 = vmul.f32 %v900, %v904
    %vm906 = vweird.f32 %v857
    %vm907 = vweird.f32 %v900
    %vm908 = vmor %vm906, %vm907
    %v909 = vsel %vm908, %v900, %v905
    %v910 = vrsqrt.pop %v858
    %v911 = vmul.f32 %v910, %v858
    %v912 = vmul.f32 %v911, %v910
    %v913 = vmul.f32 0.5, %v912
    %v914 = vsub.f32 1.5, %v913
    %v915 = vmul.f32 %v910, %v914
    %vm916 = vweird.f32 %v858
    %vm917 = vweird.f32 %v910
    %vm918 = vmor %vm916, %vm917
    %v919 = vsel %vm918, %v910, %v915
    %v920 = vrsqrt.pop %v859
    %v921 = vmul.f32 %v920, %v859
    %v922 = vmul.f32 %v921, %v920
    %v923 = vmul.f32 0.5, %v922
    %v924 = vsub.f32 1.5, %v923
    %v925 = vmul.f32 %v920, %v924
    %vm926 = vweird.f32 %v859
    %vm927 = vweird.f32 %v920
    %vm928 = vmor %vm926, %vm927
    %v929 = vsel %vm928, %v920, %v925
    %v930 = vrsqrt.pop %v860
    %v931 = vmul.f32 %v930, %v860
    %v932 = vmul.f32 %v931, %v930
    %v933 = vmul.f32 0.5, %v932
    %v934 = vsub.f32 1.5, %v933
    %v935 = vmul.f32 %v930, %v934
    %vm936 = vweird.f32 %v860
    %vm937 = vweird.f32 %v930
    %vm938 = vmor %vm936, %vm937
    %v939 = vsel %vm938, %v930, %v935
    %v940 = vrsqrt.pop %v861
    %v941 = vmul.f32 %v940, %v861
    %v942 = vmul.f32 %v941, %v940
    %v943 = vmul.f32 0.5, %v942
    %v944 = vsub.f32 1.5, %v943
    %v945 = vmul.f32 %v940, %v944
    %vm946 = vweird.f32 %v861
    %vm947 = vweird.f32 %v940
    %vm948 = vmor %vm946, %vm947
    %v949 = vsel %vm948, %v940, %v945
    %v950 = vrsqrt.pop %v862
    %v951 = vmul.f32 %v950, %v862
    %v952 = vmul.f32 %v951, %v950
    %v953 = vmul.f32 0.5, %v952
    %v954 = vsub.f32 1.5, %v953
    %v955 = vmul.f32 %v950, %v954
    %vm956 = vweird.f32 %v862
    %vm957 = vweird.f32 %v950
    %vm958 = vmor %vm956, %vm957
    %v959 = vsel %vm958, %v950, %v955
    %v960 = vrsqrt.pop %v863
    %v961 = vmul.f32 %v960, %v863
    %v962 = vmul.f32 %v961, %v960
    %v963 = vmul.f32 0.5, %v962
    %v964 = vsub.f32 1.5, %v963
    %v965 = vmul.f32 %v960, %v964
    %vm966 = vweird.f32 %v863
    %vm967 = vweird.f32 %v960
    %vm968 = vmor %vm966, %vm967
    %v969 = vsel %vm968, %v960, %v965
    %v970 = vrsqrt.pop %v864
    %v971 = vmul.f32 %v970, %v864
    %v972 = vmul.f32 %v971, %v970
    %v973 = vmul.f32 0.5, %v972
    %v974 = vsub.f32 1.5, %v973
    %v975 = vmul.f32 %v970, %v974
    %vm976 = vweird.f32 %v864
    %vm977 = vweird.f32 %v970
    %vm978 = vmor %vm976, %vm977
    %v979 = vsel %vm978, %v970, %v975
    %v980 = vrsqrt.pop %v865
    %v981 = vmul.f32 %v980, %v865
    %v982 = vmul.f32 %v981, %v980
    %v983 = vmul.f32 0.5, %v982
    %v984 = vsub.f32 1.5, %v983
    %v985 = vmul.f32 %v980, %v984
    %vm986 = vweird.f32 %v865
    %vm987 = vweird.f32 %v980
    %vm988 = vmor %vm986, %vm987
    %v989 = vsel %vm988, %v980, %v985
    %v990 = vrsqrt.pop %v866
    %v991 = vmul.f32 %v990, %v866
    %v992 = vmul.f32 %v991, %v990
    %v993 = vmul.f32 0.5, %v992
    %v994 = vsub.f32 1.5, %v993
    %v995 = vmul.f32 %v990, %v994
    %vm996 = vweird.f32 %v866
    %vm997 = vweird.f32 %v990
    %vm998 = vmor %vm996, %vm997
    %v999 = vsel %vm998, %v990, %v995
    %v1000 = vrsqrt.pop %v867
    %v1001 = vmul.f32 %v1000, %v867
    %v1002 = vmul.f32 %v1001, %v1000
    %v1003 = vmul.f32 0.5, %v1002
    %v1004 = vsub.f32 1.5, %v1003
    %v1005 = vmul.f32 %v1000, %v1004
    %vm1006 = vweird.f32 %v867
    %vm1007 = vweird.f32 %v1000
    %vm1008 = vmor %vm1006, %vm1007
    %v1009 = vsel %vm1008, %v1000, %v1005
    %v1010 = vrsqrt.pop %v868
    %v1011 = vmul.f32 %v1010, %v868
    %v1012 = vmul.f32 %v1011, %v1010
    %v1013 = vmul.f32 0.5, %v1012
    %v1014 = vsub.f32 1.5, %v1013
    %v1015 = vmul.f32 %v1010, %v1014
    %vm1016 = vweird.f32 %v868
    %vm1017 = vweird.f32 %v1010
    %vm1018 = vmor %vm1016, %vm1017
    %v1019 = vsel %vm1018, %v1010, %v1015
    %v1020 = vrsqrt.pop %v869
    %v1021 = vmul.f32 %v1020, %v869
    %v1022 = vmul.f32 %v1021, %v1020
    %v1023 = vmul.f32 0.5, %v1022
    %v1024 = vsub.f32 1.5, %v1023
    %v1025 = vmul.f32 %v1020, %v1024
    %vm1026 = vweird.f32 %v869
    %vm1027 = vweird.f32 %v1020
    %vm1028 = vmor %vm1026, %vm1027
    %v1029 = vsel %vm1028, %v1020, %v1025
    %v1030 = vmul.f32 %v758, %v879
    %v1031 = vmul.f32 %v759, %v889
    %v1032 = vmul.f32 %v760, %v899
    %v1033 = vmul.f32 %v761, %v909
    %v1034 = vmul.f32 %v762, %v919
    %v1035 = vmul.f32 %v763, %v929
    %v1036 = vmul.f32 %v764, %v939
    %v1037 = vmul.f32 %v765, %v949
    %v1038 = vmul.f32 %v766, %v959
    %v1039 = vmul.f32 %v767, %v969
    %v1040 = vmul.f32 %v768, %v979
    %v1041 = vmul.f32 %v769, %v989
    %v1042 = vmul.f32 %v770, %v999
    %v1043 = vmul.f32 %v771, %v1009
    %v1044 = vmul.f32 %v772, %v1019
    %v1045 = vmul.f32 %v773, %v1029
    %v1047 = vperm.slane %v685, 0
    %v1049 = vmul.f32 %v1030, %v1047
    %v1050 = vmul.f32 %v1031, %v1047
    %v1051 = vmul.f32 %v1032, %v1047
    %v1052 = vmul.f32 %v1033, %v1047
    %v1053 = vmul.f32 %v1034, %v1047
    %v1054 = vmul.f32 %v1035, %v1047
    %v1055 = vmul.f32 %v1036, %v1047
    %v1056 = vmul.f32 %v1037, %v1047
    %v1057 = vmul.f32 %v1038, %v1047
    %v1058 = vmul.f32 %v1039, %v1047
    %v1059 = vmul.f32 %v1040, %v1047
    %v1060 = vmul.f32 %v1041, %v1047
    %v1061 = vmul.f32 %v1042, %v1047
    %v1062 = vmul.f32 %v1043, %v1047
    %v1063 = vmul.f32 %v1044, %v1047
    %v1064 = vmul.f32 %v1045, %v1047
    %v1066 = vperm.slane %v686, 0
    %v1068 = vadd.f32 %v1049, %v1066
    %v1069 = vadd.f32 %v1050, %v1066
    %v1070 = vadd.f32 %v1051, %v1066
    %v1071 = vadd.f32 %v1052, %v1066
    %v1072 = vadd.f32 %v1053, %v1066
    %v1073 = vadd.f32 %v1054, %v1066
    %v1074 = vadd.f32 %v1055, %v1066
    %v1075 = vadd.f32 %v1056, %v1066
    %v1076 = vadd.f32 %v1057, %v1066
    %v1077 = vadd.f32 %v1058, %v1066
    %v1078 = vadd.f32 %v1059, %v1066
    %v1079 = vadd.f32 %v1060, %v1066
    %v1080 = vadd.f32 %v1061, %v1066
    %v1081 = vadd.f32 %v1062, %v1066
    %v1082 = vadd.f32 %v1063, %v1066
    %v1083 = vadd.f32 %v1064, %v1066
    %v1084 = vld [vmem:[%s11] sm:$0xf]
    %v1085 = vld [vmem:[%s11 + $0x4] sm:$0xf]
    %v1086 = vpack.c.bf16 %v1069, %v1068
    %v1087 = vpack.c.bf16 %v1071, %v1070
    %v1088 = vpack.c.bf16 %v1073, %v1072
    %v1089 = vpack.c.bf16 %v1075, %v1074
    %v1090 = vpack.c.bf16 %v1077, %v1076
    %v1091 = vpack.c.bf16 %v1079, %v1078
    %v1092 = vpack.c.bf16 %v1081, %v1080
    %v1093 = vpack.c.bf16 %v1083, %v1082
    %v1094 = vld [vmem:[%s13] sm:$0x1]
    %v1096 = vperm.slane %v1094, 0
    %v1100 = vunpack.c.l.b16 %v1084
    %v1101 = vunpack.c.l.b16 %v1085
    %v1102 = vpack.c.b16 %v1101, %v1100
    %v1105 = vsel %vm611, %v1086, 0
    %v1108 = vsel %vm611, %v1087, 0
    %v1111 = vsel %vm611, %v1088, 0
    %v1114 = vsel %vm611, %v1089, 0
    %v1117 = vsel %vm611, %v1090, 0
    %v1120 = vsel %vm611, %v1091, 0
    %v1123 = vsel %vm611, %v1092, 0
    %v1126 = vsel %vm611, %v1093, 0
    %1128 = vmatpush.bf16.msra.mxu0 0
    %1129 = vmatpush.bf16.msra.mxu0 0
    %1130 = vmatpush.bf16.msra.mxu0 0
    %1131 = vmatpush.bf16.msra.mxu0 0
    %1132 = vmatpush.bf16.msra.mxu0 0
    %1133 = vmatpush.bf16.msra.mxu0 0
    %1134 = vmatpush.bf16.msra.mxu0 0
    %1135 = vmatpush.bf16.msra.mxu0 %v1102
    %1136 = vmatmul.bf16.gmra.mxu0 %v1105
    %v1137 = vpop.f32.mrf.mxu0
    %v1138 = vadd.f32 %v1096, %v1137
    %v1139 = vpop.f32.mrf.mxu0
    %v1140 = vadd.f32 %v1096, %v1139
    %1141 = vmatmul.bf16.gmra.mxu0 %v1108
    %v1142 = vpop.f32.mrf.mxu0
    %v1143 = vadd.f32 %v1096, %v1142
    %v1144 = vpop.f32.mrf.mxu0
    %v1145 = vadd.f32 %v1096, %v1144
    %1146 = vmatmul.bf16.gmra.mxu0 %v1111
    %v1147 = vpop.f32.mrf.mxu0
    %v1148 = vadd.f32 %v1096, %v1147
    %v1149 = vpop.f32.mrf.mxu0
    %v1150 = vadd.f32 %v1096, %v1149
    %1151 = vmatmul.bf16.gmra.mxu0 %v1114
    %v1152 = vpop.f32.mrf.mxu0
    %v1153 = vadd.f32 %v1096, %v1152
    %v1154 = vpop.f32.mrf.mxu0
    %v1155 = vadd.f32 %v1096, %v1154
    %1156 = vmatmul.bf16.gmra.mxu0 %v1117
    %v1157 = vpop.f32.mrf.mxu0
    %v1158 = vadd.f32 %v1096, %v1157
    %v1159 = vpop.f32.mrf.mxu0
    %v1160 = vadd.f32 %v1096, %v1159
    %1161 = vmatmul.bf16.gmra.mxu0 %v1120
    %v1162 = vpop.f32.mrf.mxu0
    %v1163 = vadd.f32 %v1096, %v1162
    %v1164 = vpop.f32.mrf.mxu0
    %v1165 = vadd.f32 %v1096, %v1164
    %1166 = vmatmul.bf16.gmra.mxu0 %v1123
    %v1167 = vpop.f32.mrf.mxu0
    %v1168 = vadd.f32 %v1096, %v1167
    %v1169 = vpop.f32.mrf.mxu0
    %v1170 = vadd.f32 %v1096, %v1169
    %1171 = vmatmul.bf16.gmra.mxu0 %v1126
    %v1172 = vpop.f32.mrf.mxu0
    %v1173 = vadd.f32 %v1096, %v1172
    %v1174 = vpop.f32.mrf.mxu0
    %v1175 = vadd.f32 %v1096, %v1174
    %1176 = vdwg.mxu0
    %v1177 = vmul.f32 %v1138, 0.35355338
    %v1178 = vmul.f32 %v1140, 0.35355338
    %v1179 = vmul.f32 %v1143, 0.35355338
    %v1180 = vmul.f32 %v1145, 0.35355338
    %v1181 = vmul.f32 %v1148, 0.35355338
    %v1182 = vmul.f32 %v1150, 0.35355338
    %v1183 = vmul.f32 %v1153, 0.35355338
    %v1184 = vmul.f32 %v1155, 0.35355338
    %v1185 = vmul.f32 %v1158, 0.35355338
    %v1186 = vmul.f32 %v1160, 0.35355338
    %v1187 = vmul.f32 %v1163, 0.35355338
    %v1188 = vmul.f32 %v1165, 0.35355338
    %v1189 = vmul.f32 %v1168, 0.35355338
    %v1190 = vmul.f32 %v1170, 0.35355338
    %v1191 = vmul.f32 %v1173, 0.35355338
    %v1192 = vmul.f32 %v1175, 0.35355338
    %v1193 = vpack.c.bf16 %v1178, %v1177
    %v1194 = vpack.c.bf16 %v1180, %v1179
    %v1195 = vpack.c.bf16 %v1182, %v1181
    %v1196 = vpack.c.bf16 %v1184, %v1183
    %v1197 = vpack.c.bf16 %v1186, %v1185
    %v1198 = vpack.c.bf16 %v1188, %v1187
    %v1199 = vpack.c.bf16 %v1190, %v1189
    %v1200 = vpack.c.bf16 %v1192, %v1191
    %v1201 = vpack.c.bf16 %v1140, %v1138
    %v1202 = vpack.c.bf16 %v1145, %v1143
    %v1203 = vpack.c.bf16 %v1150, %v1148
    %v1204 = vpack.c.bf16 %v1155, %v1153
    %v1205 = vpack.c.bf16 %v1160, %v1158
    %v1206 = vpack.c.bf16 %v1165, %v1163
    %v1207 = vpack.c.bf16 %v1170, %v1168
    %v1208 = vpack.c.bf16 %v1175, %v1173
    %v1209 = vld [vmem:[%s19] sm:$0xf]
    %v1210 = vld [vmem:[%s19 + $0x4] sm:$0xf]
    %v1211 = vld [vmem:[%s19 + $0x8] sm:$0xf]
    %v1212 = vld [vmem:[%s19 + $0xc] sm:$0xf]
    %v1213 = vld [vmem:[%s19 + $0x10] sm:$0xf]
    %v1214 = vld [vmem:[%s19 + $0x14] sm:$0xf]
    %v1215 = vld [vmem:[%s19 + $0x18] sm:$0xf]
    %v1216 = vld [vmem:[%s19 + $0x1c] sm:$0xf]
    %v1217 = vld [vmem:[%s19 + $0x20] sm:$0xf]
    %v1218 = vld [vmem:[%s19 + $0x24] sm:$0xf]
    %v1219 = vld [vmem:[%s19 + $0x28] sm:$0xf]
    %v1220 = vld [vmem:[%s19 + $0x2c] sm:$0xf]
    %v1221 = vld [vmem:[%s19 + $0x30] sm:$0xf]
    %v1222 = vld [vmem:[%s19 + $0x34] sm:$0xf]
    %v1223 = vld [vmem:[%s19 + $0x38] sm:$0xf]
    %v1224 = vld [vmem:[%s19 + $0x3c] sm:$0xf]
    %v1225 = vunpack.c.l.bf16 %v1209
    %v1226 = vunpack.c.l.bf16 %v1210
    %v1227 = vunpack.c.l.bf16 %v1211
    %v1228 = vunpack.c.l.bf16 %v1212
    %v1229 = vunpack.c.l.bf16 %v1213
    %v1230 = vunpack.c.l.bf16 %v1214
    %v1231 = vunpack.c.l.bf16 %v1215
    %v1232 = vunpack.c.l.bf16 %v1216
    %v1233 = vunpack.c.l.bf16 %v1217
    %v1234 = vunpack.c.l.bf16 %v1218
    %v1235 = vunpack.c.l.bf16 %v1219
    %v1236 = vunpack.c.l.bf16 %v1220
    %v1237 = vunpack.c.l.bf16 %v1221
    %v1238 = vunpack.c.l.bf16 %v1222
    %v1239 = vunpack.c.l.bf16 %v1223
    %v1240 = vunpack.c.l.bf16 %v1224
    %1249 = vrot.lane.b32.xlu0 %v1201, 112
    %v1250 = vpop.permute.xlu0 %1249
    %1251 = vrot.lane.b32.xlu0 %v1202, 112
    %v1252 = vpop.permute.xlu0 %1251
    %1253 = vrot.lane.b32.xlu0 %v1203, 112
    %v1254 = vpop.permute.xlu0 %1253
    %1255 = vrot.lane.b32.xlu0 %v1204, 112
    %v1256 = vpop.permute.xlu0 %1255
    %1257 = vrot.lane.b32.xlu0 %v1205, 112
    %v1258 = vpop.permute.xlu0 %1257
    %1259 = vrot.lane.b32.xlu0 %v1206, 112
    %v1260 = vpop.permute.xlu0 %1259
    %1261 = vrot.lane.b32.xlu0 %v1207, 112
    %v1262 = vpop.permute.xlu0 %1261
    %1263 = vrot.lane.b32.xlu0 %v1208, 112
    %v1264 = vpop.permute.xlu0 %1263
    %vm1265 = vcmask 64512
    %v1267 = vsel %vm1265, %v1193, 0
    %v1270 = vsel %vm1265, %v1194, 0
    %v1273 = vsel %vm1265, %v1195, 0
    %v1276 = vsel %vm1265, %v1196, 0
    %v1279 = vsel %vm1265, %v1197, 0
    %v1282 = vsel %vm1265, %v1198, 0
    %v1285 = vsel %vm1265, %v1199, 0
    %v1288 = vsel %vm1265, %v1200, 0
    %v1291 = vsel %vm1265, %v1250, 0
    %v1294 = vsel %vm1265, %v1252, 0
    %v1297 = vsel %vm1265, %v1254, 0
    %v1300 = vsel %vm1265, %v1256, 0
    %v1303 = vsel %vm1265, %v1258, 0
    %v1306 = vsel %vm1265, %v1260, 0
    %v1309 = vsel %vm1265, %v1262, 0
    %v1312 = vsel %vm1265, %v1264, 0
    %1314 = vmatpush.bf16.xpose.msra.mxu0 %v1312
    %1315 = vmatpush.bf16.xpose.msra.mxu0 %v1309
    %1316 = vmatpush.bf16.xpose.msra.mxu0 %v1306
    %1317 = vmatpush.bf16.xpose.msra.mxu0 %v1303
    %1318 = vmatpush.bf16.xpose.msra.mxu0 %v1300
    %1319 = vmatpush.bf16.xpose.msra.mxu0 %v1297
    %1320 = vmatpush.bf16.xpose.msra.mxu0 %v1294
    %1321 = vmatpush.bf16.xpose.msra.mxu0 %v1291
    %1322 = vmatmul.bf16.gmra.mxu0 %v1267
    %v1323 = vpop.f32.mrf.mxu0
    %v1324 = vadd.f32 %v1225, %v1323
    %v1325 = vpop.f32.mrf.mxu0
    %v1326 = vadd.f32 %v1226, %v1325
    %1327 = vmatmul.bf16.gmra.mxu0 %v1270
    %v1328 = vpop.f32.mrf.mxu0
    %v1329 = vadd.f32 %v1227, %v1328
    %v1330 = vpop.f32.mrf.mxu0
    %v1331 = vadd.f32 %v1228, %v1330
    %1332 = vmatmul.bf16.gmra.mxu0 %v1273
    %v1333 = vpop.f32.mrf.mxu0
    %v1334 = vadd.f32 %v1229, %v1333
    %v1335 = vpop.f32.mrf.mxu0
    %v1336 = vadd.f32 %v1230, %v1335
    %1337 = vmatmul.bf16.gmra.mxu0 %v1276
    %v1338 = vpop.f32.mrf.mxu0
    %v1339 = vadd.f32 %v1231, %v1338
    %v1340 = vpop.f32.mrf.mxu0
    %v1341 = vadd.f32 %v1232, %v1340
    %1342 = vmatmul.bf16.gmra.mxu0 %v1279
    %v1343 = vpop.f32.mrf.mxu0
    %v1344 = vadd.f32 %v1233, %v1343
    %v1345 = vpop.f32.mrf.mxu0
    %v1346 = vadd.f32 %v1234, %v1345
    %1347 = vmatmul.bf16.gmra.mxu0 %v1282
    %v1348 = vpop.f32.mrf.mxu0
    %v1349 = vadd.f32 %v1235, %v1348
    %v1350 = vpop.f32.mrf.mxu0
    %v1351 = vadd.f32 %v1236, %v1350
    %1352 = vmatmul.bf16.gmra.mxu0 %v1285
    %v1353 = vpop.f32.mrf.mxu0
    %v1354 = vadd.f32 %v1237, %v1353
    %v1355 = vpop.f32.mrf.mxu0
    %v1356 = vadd.f32 %v1238, %v1355
    %1357 = vmatmul.bf16.gmra.mxu0 %v1288
    %v1358 = vpop.f32.mrf.mxu0
    %v1359 = vadd.f32 %v1239, %v1358
    %v1360 = vpop.f32.mrf.mxu0
    %v1361 = vadd.f32 %v1240, %v1360
    %1362 = vdwg.mxu0
    %1363 = vmax.xlane.f32.xlu0 %v1324
    %v1364 = vpop.xlane.xlu0 %1363
    %1365 = vmax.xlane.f32.xlu0 %v1326
    %v1366 = vpop.xlane.xlu0 %1365
    %1367 = vmax.xlane.f32.xlu0 %v1329
    %v1368 = vpop.xlane.xlu0 %1367
    %1369 = vmax.xlane.f32.xlu0 %v1331
    %v1370 = vpop.xlane.xlu0 %1369
    %1371 = vmax.xlane.f32.xlu0 %v1334
    %v1372 = vpop.xlane.xlu0 %1371
    %1373 = vmax.xlane.f32.xlu0 %v1336
    %v1374 = vpop.xlane.xlu0 %1373
    %1375 = vmax.xlane.f32.xlu0 %v1339
    %v1376 = vpop.xlane.xlu0 %1375
    %1377 = vmax.xlane.f32.xlu0 %v1341
    %v1378 = vpop.xlane.xlu0 %1377
    %1379 = vmax.xlane.f32.xlu0 %v1344
    %v1380 = vpop.xlane.xlu0 %1379
    %1381 = vmax.xlane.f32.xlu0 %v1346
    %v1382 = vpop.xlane.xlu0 %1381
    %1383 = vmax.xlane.f32.xlu0 %v1349
    %v1384 = vpop.xlane.xlu0 %1383
    %1385 = vmax.xlane.f32.xlu0 %v1351
    %v1386 = vpop.xlane.xlu0 %1385
    %1387 = vmax.xlane.f32.xlu0 %v1354
    %v1388 = vpop.xlane.xlu0 %1387
    %1389 = vmax.xlane.f32.xlu0 %v1356
    %v1390 = vpop.xlane.xlu0 %1389
    %1391 = vmax.xlane.f32.xlu0 %v1359
    %v1392 = vpop.xlane.xlu0 %1391
    %1393 = vmax.xlane.f32.xlu0 %v1361
    %v1394 = vpop.xlane.xlu0 %1393
    %v1395 = vsub.f32 %v1324, %v1364
    %v1396 = vsub.f32 %v1326, %v1366
    %v1397 = vsub.f32 %v1329, %v1368
    %v1398 = vsub.f32 %v1331, %v1370
    %v1399 = vsub.f32 %v1334, %v1372
    %v1400 = vsub.f32 %v1336, %v1374
    %v1401 = vsub.f32 %v1339, %v1376
    %v1402 = vsub.f32 %v1341, %v1378
    %v1403 = vsub.f32 %v1344, %v1380
    %v1404 = vsub.f32 %v1346, %v1382
    %v1405 = vsub.f32 %v1349, %v1384
    %v1406 = vsub.f32 %v1351, %v1386
    %v1407 = vsub.f32 %v1354, %v1388
    %v1408 = vsub.f32 %v1356, %v1390
    %v1409 = vsub.f32 %v1359, %v1392
    %v1410 = vsub.f32 %v1361, %v1394
    %v1411 = vmul.f32 %v1395, 1.442695
    %v1412 = vpow.pop %v1411
    %v1413 = vmul.f32 %v1396, 1.442695
    %v1414 = vpow.pop %v1413
    %v1415 = vmul.f32 %v1397, 1.442695
    %v1416 = vpow.pop %v1415
    %v1417 = vmul.f32 %v1398, 1.442695
    %v1418 = vpow.pop %v1417
    %v1419 = vmul.f32 %v1399, 1.442695
    %v1420 = vpow.pop %v1419
    %v1421 = vmul.f32 %v1400, 1.442695
    %v1422 = vpow.pop %v1421
    %v1423 = vmul.f32 %v1401, 1.442695
    %v1424 = vpow.pop %v1423
    %v1425 = vmul.f32 %v1402, 1.442695
    %v1426 = vpow.pop %v1425
    %v1427 = vmul.f32 %v1403, 1.442695
    %v1428 = vpow.pop %v1427
    %v1429 = vmul.f32 %v1404, 1.442695
    %v1430 = vpow.pop %v1429
    %v1431 = vmul.f32 %v1405, 1.442695
    %v1432 = vpow.pop %v1431
    %v1433 = vmul.f32 %v1406, 1.442695
    %v1434 = vpow.pop %v1433
    %v1435 = vmul.f32 %v1407, 1.442695
    %v1436 = vpow.pop %v1435
    %v1437 = vmul.f32 %v1408, 1.442695
    %v1438 = vpow.pop %v1437
    %v1439 = vmul.f32 %v1409, 1.442695
    %v1440 = vpow.pop %v1439
    %v1441 = vmul.f32 %v1410, 1.442695
    %v1442 = vpow.pop %v1441
    %1443 = vadd.xlane.f32.xlu0 %v1412
    %v1444 = vpop.xlane.xlu0 %1443
    %1445 = vadd.xlane.f32.xlu0 %v1414
    %v1446 = vpop.xlane.xlu0 %1445
    %1447 = vadd.xlane.f32.xlu0 %v1416
    %v1448 = vpop.xlane.xlu0 %1447
    %1449 = vadd.xlane.f32.xlu0 %v1418
    %v1450 = vpop.xlane.xlu0 %1449
    %1451 = vadd.xlane.f32.xlu0 %v1420
    %v1452 = vpop.xlane.xlu0 %1451
    %1453 = vadd.xlane.f32.xlu0 %v1422
    %v1454 = vpop.xlane.xlu0 %1453
    %1455 = vadd.xlane.f32.xlu0 %v1424
    %v1456 = vpop.xlane.xlu0 %1455
    %1457 = vadd.xlane.f32.xlu0 %v1426
    %v1458 = vpop.xlane.xlu0 %1457
    %1459 = vadd.xlane.f32.xlu0 %v1428
    %v1460 = vpop.xlane.xlu0 %1459
    %1461 = vadd.xlane.f32.xlu0 %v1430
    %v1462 = vpop.xlane.xlu0 %1461
    %1463 = vadd.xlane.f32.xlu0 %v1432
    %v1464 = vpop.xlane.xlu0 %1463
    %1465 = vadd.xlane.f32.xlu0 %v1434
    %v1466 = vpop.xlane.xlu0 %1465
    %1467 = vadd.xlane.f32.xlu0 %v1436
    %v1468 = vpop.xlane.xlu0 %1467
    %1469 = vadd.xlane.f32.xlu0 %v1438
    %v1470 = vpop.xlane.xlu0 %1469
    %1471 = vadd.xlane.f32.xlu0 %v1440
    %v1472 = vpop.xlane.xlu0 %1471
    %1473 = vadd.xlane.f32.xlu0 %v1442
    %v1474 = vpop.xlane.xlu0 %1473
    %v1475 = vrcp.pop %v1444
    %v1476 = vrcp.pop %v1446
    %v1477 = vrcp.pop %v1448
    %v1478 = vrcp.pop %v1450
    %v1479 = vrcp.pop %v1452
    %v1480 = vrcp.pop %v1454
    %v1481 = vrcp.pop %v1456
    %v1482 = vrcp.pop %v1458
    %v1483 = vrcp.pop %v1460
    %v1484 = vrcp.pop %v1462
    %v1485 = vrcp.pop %v1464
    %v1486 = vrcp.pop %v1466
    %v1487 = vrcp.pop %v1468
    %v1488 = vrcp.pop %v1470
    %v1489 = vrcp.pop %v1472
    %v1490 = vrcp.pop %v1474
    %v1491 = vmul.f32 %v1412, %v1475
    %v1492 = vmul.f32 %v1414, %v1476
    %v1493 = vmul.f32 %v1416, %v1477
    %v1494 = vmul.f32 %v1418, %v1478
    %v1495 = vmul.f32 %v1420, %v1479
    %v1496 = vmul.f32 %v1422, %v1480
    %v1497 = vmul.f32 %v1424, %v1481
    %v1498 = vmul.f32 %v1426, %v1482
    %v1499 = vmul.f32 %v1428, %v1483
    %v1500 = vmul.f32 %v1430, %v1484
    %v1501 = vmul.f32 %v1432, %v1485
    %v1502 = vmul.f32 %v1434, %v1486
    %v1503 = vmul.f32 %v1436, %v1487
    %v1504 = vmul.f32 %v1438, %v1488
    %v1505 = vmul.f32 %v1440, %v1489
    %v1506 = vmul.f32 %v1442, %v1490
    %v1507 = vpack.c.bf16 %v1492, %v1491
    %v1508 = vpack.c.bf16 %v1494, %v1493
    %v1509 = vpack.c.bf16 %v1496, %v1495
    %v1510 = vpack.c.bf16 %v1498, %v1497
    %v1511 = vpack.c.bf16 %v1500, %v1499
    %v1512 = vpack.c.bf16 %v1502, %v1501
    %v1513 = vpack.c.bf16 %v1504, %v1503
    %v1514 = vpack.c.bf16 %v1506, %v1505
    %1515 = vrot.lane.b32.xlu0 %v1201, 96
    %v1516 = vpop.permute.xlu0 %1515
    %1517 = vrot.lane.b32.xlu0 %v1202, 96
    %v1518 = vpop.permute.xlu0 %1517
    %1519 = vrot.lane.b32.xlu0 %v1203, 96
    %v1520 = vpop.permute.xlu0 %1519
    %1521 = vrot.lane.b32.xlu0 %v1204, 96
    %v1522 = vpop.permute.xlu0 %1521
    %1523 = vrot.lane.b32.xlu0 %v1205, 96
    %v1524 = vpop.permute.xlu0 %1523
    %1525 = vrot.lane.b32.xlu0 %v1206, 96
    %v1526 = vpop.permute.xlu0 %1525
    %1527 = vrot.lane.b32.xlu0 %v1207, 96
    %v1528 = vpop.permute.xlu0 %1527
    %1529 = vrot.lane.b32.xlu0 %v1208, 96
    %v1530 = vpop.permute.xlu0 %1529
    %1539 = vmatpush.bf16.msra.mxu0 %v1530
    %1540 = vmatpush.bf16.msra.mxu0 %v1528
    %1541 = vmatpush.bf16.msra.mxu0 %v1526
    %1542 = vmatpush.bf16.msra.mxu0 %v1524
    %1543 = vmatpush.bf16.msra.mxu0 %v1522
    %1544 = vmatpush.bf16.msra.mxu0 %v1520
    %1545 = vmatpush.bf16.msra.mxu0 %v1518
    %1546 = vmatpush.bf16.msra.mxu0 %v1516
    %1547 = vmatmul.bf16.gmra.mxu0 %v1507
    %v1548 = vpop.f32.mrf.mxu0
    %v1549 = vadd.f32 0.0, %v1548
    %v1550 = vpop.f32.mrf.mxu0
    %v1551 = vadd.f32 0.0, %v1550
    %1552 = vmatmul.bf16.gmra.mxu0 %v1508
    %v1553 = vpop.f32.mrf.mxu0
    %v1554 = vadd.f32 0.0, %v1553
    %v1555 = vpop.f32.mrf.mxu0
    %v1556 = vadd.f32 0.0, %v1555
    %1557 = vmatmul.bf16.gmra.mxu0 %v1509
    %v1558 = vpop.f32.mrf.mxu0
    %v1559 = vadd.f32 0.0, %v1558
    %v1560 = vpop.f32.mrf.mxu0
    %v1561 = vadd.f32 0.0, %v1560
    %1562 = vmatmul.bf16.gmra.mxu0 %v1510
    %v1563 = vpop.f32.mrf.mxu0
    %v1564 = vadd.f32 0.0, %v1563
    %v1565 = vpop.f32.mrf.mxu0
    %v1566 = vadd.f32 0.0, %v1565
    %1567 = vmatmul.bf16.gmra.mxu0 %v1511
    %v1568 = vpop.f32.mrf.mxu0
    %v1569 = vadd.f32 0.0, %v1568
    %v1570 = vpop.f32.mrf.mxu0
    %v1571 = vadd.f32 0.0, %v1570
    %1572 = vmatmul.bf16.gmra.mxu0 %v1512
    %v1573 = vpop.f32.mrf.mxu0
    %v1574 = vadd.f32 0.0, %v1573
    %v1575 = vpop.f32.mrf.mxu0
    %v1576 = vadd.f32 0.0, %v1575
    %1577 = vmatmul.bf16.gmra.mxu0 %v1513
    %v1578 = vpop.f32.mrf.mxu0
    %v1579 = vadd.f32 0.0, %v1578
    %v1580 = vpop.f32.mrf.mxu0
    %v1581 = vadd.f32 0.0, %v1580
    %1582 = vmatmul.bf16.gmra.mxu0 %v1514
    %v1583 = vpop.f32.mrf.mxu0
    %v1584 = vadd.f32 0.0, %v1583
    %v1585 = vpop.f32.mrf.mxu0
    %v1586 = vadd.f32 0.0, %v1585
    %1587 = vdwg.mxu0
    %v1588 = vld [vmem:[%s15] sm:$0xf]
    %v1589 = vpack.c.bf16 %v1551, %v1549
    %v1590 = vpack.c.bf16 %v1556, %v1554
    %v1591 = vpack.c.bf16 %v1561, %v1559
    %v1592 = vpack.c.bf16 %v1566, %v1564
    %v1593 = vpack.c.bf16 %v1571, %v1569
    %v1594 = vpack.c.bf16 %v1576, %v1574
    %v1595 = vpack.c.bf16 %v1581, %v1579
    %v1596 = vpack.c.bf16 %v1586, %v1584
    %s1597 = scalar_lea.vmem %s19, 64
    %v1598 = vld [vmem:[%s1597] sm:$0xf]
    %v1599 = vld [vmem:[%s1597 + $0x4] sm:$0xf]
    %v1600 = vld [vmem:[%s1597 + $0x8] sm:$0xf]
    %v1601 = vld [vmem:[%s1597 + $0xc] sm:$0xf]
    %v1602 = vld [vmem:[%s1597 + $0x10] sm:$0xf]
    %v1603 = vld [vmem:[%s1597 + $0x14] sm:$0xf]
    %v1604 = vld [vmem:[%s1597 + $0x18] sm:$0xf]
    %v1605 = vld [vmem:[%s1597 + $0x1c] sm:$0xf]
    %v1606 = vld [vmem:[%s1597 + $0x20] sm:$0xf]
    %v1607 = vld [vmem:[%s1597 + $0x24] sm:$0xf]
    %v1608 = vld [vmem:[%s1597 + $0x28] sm:$0xf]
    %v1609 = vld [vmem:[%s1597 + $0x2c] sm:$0xf]
    %v1610 = vld [vmem:[%s1597 + $0x30] sm:$0xf]
    %v1611 = vld [vmem:[%s1597 + $0x34] sm:$0xf]
    %v1612 = vld [vmem:[%s1597 + $0x38] sm:$0xf]
    %v1613 = vld [vmem:[%s1597 + $0x3c] sm:$0xf]
    %v1614 = vunpack.c.l.bf16 %v1598
    %v1615 = vunpack.c.l.bf16 %v1599
    %v1616 = vunpack.c.l.bf16 %v1600
    %v1617 = vunpack.c.l.bf16 %v1601
    %v1618 = vunpack.c.l.bf16 %v1602
    %v1619 = vunpack.c.l.bf16 %v1603
    %v1620 = vunpack.c.l.bf16 %v1604
    %v1621 = vunpack.c.l.bf16 %v1605
    %v1622 = vunpack.c.l.bf16 %v1606
    %v1623 = vunpack.c.l.bf16 %v1607
    %v1624 = vunpack.c.l.bf16 %v1608
    %v1625 = vunpack.c.l.bf16 %v1609
    %v1626 = vunpack.c.l.bf16 %v1610
    %v1627 = vunpack.c.l.bf16 %v1611
    %v1628 = vunpack.c.l.bf16 %v1612
    %v1629 = vunpack.c.l.bf16 %v1613
    %1638 = vrot.lane.b32.xlu0 %v1193, 120
    %v1639 = vpop.permute.xlu0 %1638
    %1640 = vrot.lane.b32.xlu0 %v1194, 120
    %v1641 = vpop.permute.xlu0 %1640
    %1642 = vrot.lane.b32.xlu0 %v1195, 120
    %v1643 = vpop.permute.xlu0 %1642
    %1644 = vrot.lane.b32.xlu0 %v1196, 120
    %v1645 = vpop.permute.xlu0 %1644
    %1646 = vrot.lane.b32.xlu0 %v1197, 120
    %v1647 = vpop.permute.xlu0 %1646
    %1648 = vrot.lane.b32.xlu0 %v1198, 120
    %v1649 = vpop.permute.xlu0 %1648
    %1650 = vrot.lane.b32.xlu0 %v1199, 120
    %v1651 = vpop.permute.xlu0 %1650
    %1652 = vrot.lane.b32.xlu0 %v1200, 120
    %v1653 = vpop.permute.xlu0 %1652
    %1654 = vrot.lane.b32.xlu0 %v1201, 104
    %v1655 = vpop.permute.xlu0 %1654
    %1656 = vrot.lane.b32.xlu0 %v1202, 104
    %v1657 = vpop.permute.xlu0 %1656
    %1658 = vrot.lane.b32.xlu0 %v1203, 104
    %v1659 = vpop.permute.xlu0 %1658
    %1660 = vrot.lane.b32.xlu0 %v1204, 104
    %v1661 = vpop.permute.xlu0 %1660
    %1662 = vrot.lane.b32.xlu0 %v1205, 104
    %v1663 = vpop.permute.xlu0 %1662
    %1664 = vrot.lane.b32.xlu0 %v1206, 104
    %v1665 = vpop.permute.xlu0 %1664
    %1666 = vrot.lane.b32.xlu0 %v1207, 104
    %v1667 = vpop.permute.xlu0 %1666
    %1668 = vrot.lane.b32.xlu0 %v1208, 104
    %v1669 = vpop.permute.xlu0 %1668
    %v1671 = vsel %vm1265, %v1639, 0
    %v1674 = vsel %vm1265, %v1641, 0
    %v1677 = vsel %vm1265, %v1643, 0
    %v1680 = vsel %vm1265, %v1645, 0
    %v1683 = vsel %vm1265, %v1647, 0
    %v1686 = vsel %vm1265, %v1649, 0
    %v1689 = vsel %vm1265, %v1651, 0
    %v1692 = vsel %vm1265, %v1653, 0
    %v1695 = vsel %vm1265, %v1655, 0
    %v1698 = vsel %vm1265, %v1657, 0
    %v1701 = vsel %vm1265, %v1659, 0
    %v1704 = vsel %vm1265, %v1661, 0
    %v1707 = vsel %vm1265, %v1663, 0
    %v1710 = vsel %vm1265, %v1665, 0
    %v1713 = vsel %vm1265, %v1667, 0
    %v1716 = vsel %vm1265, %v1669, 0
    %1718 = vmatpush.bf16.xpose.msra.mxu0 %v1716
    %1719 = vmatpush.bf16.xpose.msra.mxu0 %v1713
    %1720 = vmatpush.bf16.xpose.msra.mxu0 %v1710
    %1721 = vmatpush.bf16.xpose.msra.mxu0 %v1707
    %1722 = vmatpush.bf16.xpose.msra.mxu0 %v1704
    %1723 = vmatpush.bf16.xpose.msra.mxu0 %v1701
    %1724 = vmatpush.bf16.xpose.msra.mxu0 %v1698
    %1725 = vmatpush.bf16.xpose.msra.mxu0 %v1695
    %1726 = vmatmul.bf16.gmra.mxu0 %v1671
    %v1727 = vpop.f32.mrf.mxu0
    %v1728 = vadd.f32 %v1614, %v1727
    %v1729 = vpop.f32.mrf.mxu0
    %v1730 = vadd.f32 %v1615, %v1729
    %1731 = vmatmul.bf16.gmra.mxu0 %v1674
    %v1732 = vpop.f32.mrf.mxu0
    %v1733 = vadd.f32 %v1616, %v1732
    %v1734 = vpop.f32.mrf.mxu0
    %v1735 = vadd.f32 %v1617, %v1734
    %1736 = vmatmul.bf16.gmra.mxu0 %v1677
    %v1737 = vpop.f32.mrf.mxu0
    %v1738 = vadd.f32 %v1618, %v1737
    %v1739 = vpop.f32.mrf.mxu0
    %v1740 = vadd.f32 %v1619, %v1739
    %1741 = vmatmul.bf16.gmra.mxu0 %v1680
    %v1742 = vpop.f32.mrf.mxu0
    %v1743 = vadd.f32 %v1620, %v1742
    %v1744 = vpop.f32.mrf.mxu0
    %v1745 = vadd.f32 %v1621, %v1744
    %1746 = vmatmul.bf16.gmra.mxu0 %v1683
    %v1747 = vpop.f32.mrf.mxu0
    %v1748 = vadd.f32 %v1622, %v1747
    %v1749 = vpop.f32.mrf.mxu0
    %v1750 = vadd.f32 %v1623, %v1749
    %1751 = vmatmul.bf16.gmra.mxu0 %v1686
    %v1752 = vpop.f32.mrf.mxu0
    %v1753 = vadd.f32 %v1624, %v1752
    %v1754 = vpop.f32.mrf.mxu0
    %v1755 = vadd.f32 %v1625, %v1754
    %1756 = vmatmul.bf16.gmra.mxu0 %v1689
    %v1757 = vpop.f32.mrf.mxu0
    %v1758 = vadd.f32 %v1626, %v1757
    %v1759 = vpop.f32.mrf.mxu0
    %v1760 = vadd.f32 %v1627, %v1759
    %1761 = vmatmul.bf16.gmra.mxu0 %v1692
    %v1762 = vpop.f32.mrf.mxu0
    %v1763 = vadd.f32 %v1628, %v1762
    %v1764 = vpop.f32.mrf.mxu0
    %v1765 = vadd.f32 %v1629, %v1764
    %1766 = vdwg.mxu0
    %1767 = vmax.xlane.f32.xlu0 %v1728
    %v1768 = vpop.xlane.xlu0 %1767
    %1769 = vmax.xlane.f32.xlu0 %v1730
    %v1770 = vpop.xlane.xlu0 %1769
    %1771 = vmax.xlane.f32.xlu0 %v1733
    %v1772 = vpop.xlane.xlu0 %1771
    %1773 = vmax.xlane.f32.xlu0 %v1735
    %v1774 = vpop.xlane.xlu0 %1773
    %1775 = vmax.xlane.f32.xlu0 %v1738
    %v1776 = vpop.xlane.xlu0 %1775
    %1777 = vmax.xlane.f32.xlu0 %v1740
    %v1778 = vpop.xlane.xlu0 %1777
    %1779 = vmax.xlane.f32.xlu0 %v1743
    %v1780 = vpop.xlane.xlu0 %1779
    %1781 = vmax.xlane.f32.xlu0 %v1745
    %v1782 = vpop.xlane.xlu0 %1781
    %1783 = vmax.xlane.f32.xlu0 %v1748
    %v1784 = vpop.xlane.xlu0 %1783
    %1785 = vmax.xlane.f32.xlu0 %v1750
    %v1786 = vpop.xlane.xlu0 %1785
    %1787 = vmax.xlane.f32.xlu0 %v1753
    %v1788 = vpop.xlane.xlu0 %1787
    %1789 = vmax.xlane.f32.xlu0 %v1755
    %v1790 = vpop.xlane.xlu0 %1789
    %1791 = vmax.xlane.f32.xlu0 %v1758
    %v1792 = vpop.xlane.xlu0 %1791
    %1793 = vmax.xlane.f32.xlu0 %v1760
    %v1794 = vpop.xlane.xlu0 %1793
    %1795 = vmax.xlane.f32.xlu0 %v1763
    %v1796 = vpop.xlane.xlu0 %1795
    %1797 = vmax.xlane.f32.xlu0 %v1765
    %v1798 = vpop.xlane.xlu0 %1797
    %v1799 = vsub.f32 %v1728, %v1768
    %v1800 = vsub.f32 %v1730, %v1770
    %v1801 = vsub.f32 %v1733, %v1772
    %v1802 = vsub.f32 %v1735, %v1774
    %v1803 = vsub.f32 %v1738, %v1776
    %v1804 = vsub.f32 %v1740, %v1778
    %v1805 = vsub.f32 %v1743, %v1780
    %v1806 = vsub.f32 %v1745, %v1782
    %v1807 = vsub.f32 %v1748, %v1784
    %v1808 = vsub.f32 %v1750, %v1786
    %v1809 = vsub.f32 %v1753, %v1788
    %v1810 = vsub.f32 %v1755, %v1790
    %v1811 = vsub.f32 %v1758, %v1792
    %v1812 = vsub.f32 %v1760, %v1794
    %v1813 = vsub.f32 %v1763, %v1796
    %v1814 = vsub.f32 %v1765, %v1798
    %v1815 = vmul.f32 %v1799, 1.442695
    %v1816 = vpow.pop %v1815
    %v1817 = vmul.f32 %v1800, 1.442695
    %v1818 = vpow.pop %v1817
    %v1819 = vmul.f32 %v1801, 1.442695
    %v1820 = vpow.pop %v1819
    %v1821 = vmul.f32 %v1802, 1.442695
    %v1822 = vpow.pop %v1821
    %v1823 = vmul.f32 %v1803, 1.442695
    %v1824 = vpow.pop %v1823
    %v1825 = vmul.f32 %v1804, 1.442695
    %v1826 = vpow.pop %v1825
    %v1827 = vmul.f32 %v1805, 1.442695
    %v1828 = vpow.pop %v1827
    %v1829 = vmul.f32 %v1806, 1.442695
    %v1830 = vpow.pop %v1829
    %v1831 = vmul.f32 %v1807, 1.442695
    %v1832 = vpow.pop %v1831
    %v1833 = vmul.f32 %v1808, 1.442695
    %v1834 = vpow.pop %v1833
    %v1835 = vmul.f32 %v1809, 1.442695
    %v1836 = vpow.pop %v1835
    %v1837 = vmul.f32 %v1810, 1.442695
    %v1838 = vpow.pop %v1837
    %v1839 = vmul.f32 %v1811, 1.442695
    %v1840 = vpow.pop %v1839
    %v1841 = vmul.f32 %v1812, 1.442695
    %v1842 = vpow.pop %v1841
    %v1843 = vmul.f32 %v1813, 1.442695
    %v1844 = vpow.pop %v1843
    %v1845 = vmul.f32 %v1814, 1.442695
    %v1846 = vpow.pop %v1845
    %1847 = vadd.xlane.f32.xlu0 %v1816
    %v1848 = vpop.xlane.xlu0 %1847
    %1849 = vadd.xlane.f32.xlu0 %v1818
    %v1850 = vpop.xlane.xlu0 %1849
    %1851 = vadd.xlane.f32.xlu0 %v1820
    %v1852 = vpop.xlane.xlu0 %1851
    %1853 = vadd.xlane.f32.xlu0 %v1822
    %v1854 = vpop.xlane.xlu0 %1853
    %1855 = vadd.xlane.f32.xlu0 %v1824
    %v1856 = vpop.xlane.xlu0 %1855
    %1857 = vadd.xlane.f32.xlu0 %v1826
    %v1858 = vpop.xlane.xlu0 %1857
    %1859 = vadd.xlane.f32.xlu0 %v1828
    %v1860 = vpop.xlane.xlu0 %1859
    %1861 = vadd.xlane.f32.xlu0 %v1830
    %v1862 = vpop.xlane.xlu0 %1861
    %1863 = vadd.xlane.f32.xlu0 %v1832
    %v1864 = vpop.xlane.xlu0 %1863
    %1865 = vadd.xlane.f32.xlu0 %v1834
    %v1866 = vpop.xlane.xlu0 %1865
    %1867 = vadd.xlane.f32.xlu0 %v1836
    %v1868 = vpop.xlane.xlu0 %1867
    %1869 = vadd.xlane.f32.xlu0 %v1838
    %v1870 = vpop.xlane.xlu0 %1869
    %1871 = vadd.xlane.f32.xlu0 %v1840
    %v1872 = vpop.xlane.xlu0 %1871
    %1873 = vadd.xlane.f32.xlu0 %v1842
    %v1874 = vpop.xlane.xlu0 %1873
    %1875 = vadd.xlane.f32.xlu0 %v1844
    %v1876 = vpop.xlane.xlu0 %1875
    %1877 = vadd.xlane.f32.xlu0 %v1846
    %v1878 = vpop.xlane.xlu0 %1877
    %v1879 = vrcp.pop %v1848
    %v1880 = vrcp.pop %v1850
    %v1881 = vrcp.pop %v1852
    %v1882 = vrcp.pop %v1854
    %v1883 = vrcp.pop %v1856
    %v1884 = vrcp.pop %v1858
    %v1885 = vrcp.pop %v1860
    %v1886 = vrcp.pop %v1862
    %v1887 = vrcp.pop %v1864
    %v1888 = vrcp.pop %v1866
    %v1889 = vrcp.pop %v1868
    %v1890 = vrcp.pop %v1870
    %v1891 = vrcp.pop %v1872
    %v1892 = vrcp.pop %v1874
    %v1893 = vrcp.pop %v1876
    %v1894 = vrcp.pop %v1878
    %v1895 = vmul.f32 %v1816, %v1879
    %v1896 = vmul.f32 %v1818, %v1880
    %v1897 = vmul.f32 %v1820, %v1881
    %v1898 = vmul.f32 %v1822, %v1882
    %v1899 = vmul.f32 %v1824, %v1883
    %v1900 = vmul.f32 %v1826, %v1884
    %v1901 = vmul.f32 %v1828, %v1885
    %v1902 = vmul.f32 %v1830, %v1886
    %v1903 = vmul.f32 %v1832, %v1887
    %v1904 = vmul.f32 %v1834, %v1888
    %v1905 = vmul.f32 %v1836, %v1889
    %v1906 = vmul.f32 %v1838, %v1890
    %v1907 = vmul.f32 %v1840, %v1891
    %v1908 = vmul.f32 %v1842, %v1892
    %v1909 = vmul.f32 %v1844, %v1893
    %v1910 = vmul.f32 %v1846, %v1894
    %v1911 = vpack.c.bf16 %v1896, %v1895
    %v1912 = vpack.c.bf16 %v1898, %v1897
    %v1913 = vpack.c.bf16 %v1900, %v1899
    %v1914 = vpack.c.bf16 %v1902, %v1901
    %v1915 = vpack.c.bf16 %v1904, %v1903
    %v1916 = vpack.c.bf16 %v1906, %v1905
    %v1917 = vpack.c.bf16 %v1908, %v1907
    %v1918 = vpack.c.bf16 %v1910, %v1909
    %1919 = vrot.lane.b32.xlu0 %v1201, 88
    %v1920 = vpop.permute.xlu0 %1919
    %1921 = vrot.lane.b32.xlu0 %v1202, 88
    %v1922 = vpop.permute.xlu0 %1921
    %1923 = vrot.lane.b32.xlu0 %v1203, 88
    %v1924 = vpop.permute.xlu0 %1923
    %1925 = vrot.lane.b32.xlu0 %v1204, 88
    %v1926 = vpop.permute.xlu0 %1925
    %1927 = vrot.lane.b32.xlu0 %v1205, 88
    %v1928 = vpop.permute.xlu0 %1927
    %1929 = vrot.lane.b32.xlu0 %v1206, 88
    %v1930 = vpop.permute.xlu0 %1929
    %1931 = vrot.lane.b32.xlu0 %v1207, 88
    %v1932 = vpop.permute.xlu0 %1931
    %1933 = vrot.lane.b32.xlu0 %v1208, 88
    %v1934 = vpop.permute.xlu0 %1933
    %1943 = vmatpush.bf16.msra.mxu0 %v1934
    %1944 = vmatpush.bf16.msra.mxu0 %v1932
    %1945 = vmatpush.bf16.msra.mxu0 %v1930
    %1946 = vmatpush.bf16.msra.mxu0 %v1928
    %1947 = vmatpush.bf16.msra.mxu0 %v1926
    %1948 = vmatpush.bf16.msra.mxu0 %v1924
    %1949 = vmatpush.bf16.msra.mxu0 %v1922
    %1950 = vmatpush.bf16.msra.mxu0 %v1920
    %1951 = vmatmul.bf16.gmra.mxu0 %v1911
    %v1952 = vpop.f32.mrf.mxu0
    %v1953 = vadd.f32 0.0, %v1952
    %v1954 = vpop.f32.mrf.mxu0
    %v1955 = vadd.f32 0.0, %v1954
    %1956 = vmatmul.bf16.gmra.mxu0 %v1912
    %v1957 = vpop.f32.mrf.mxu0
    %v1958 = vadd.f32 0.0, %v1957
    %v1959 = vpop.f32.mrf.mxu0
    %v1960 = vadd.f32 0.0, %v1959
    %1961 = vmatmul.bf16.gmra.mxu0 %v1913
    %v1962 = vpop.f32.mrf.mxu0
    %v1963 = vadd.f32 0.0, %v1962
    %v1964 = vpop.f32.mrf.mxu0
    %v1965 = vadd.f32 0.0, %v1964
    %1966 = vmatmul.bf16.gmra.mxu0 %v1914
    %v1967 = vpop.f32.mrf.mxu0
    %v1968 = vadd.f32 0.0, %v1967
    %v1969 = vpop.f32.mrf.mxu0
    %v1970 = vadd.f32 0.0, %v1969
    %1971 = vmatmul.bf16.gmra.mxu0 %v1915
    %v1972 = vpop.f32.mrf.mxu0
    %v1973 = vadd.f32 0.0, %v1972
    %v1974 = vpop.f32.mrf.mxu0
    %v1975 = vadd.f32 0.0, %v1974
    %1976 = vmatmul.bf16.gmra.mxu0 %v1916
    %v1977 = vpop.f32.mrf.mxu0
    %v1978 = vadd.f32 0.0, %v1977
    %v1979 = vpop.f32.mrf.mxu0
    %v1980 = vadd.f32 0.0, %v1979
    %1981 = vmatmul.bf16.gmra.mxu0 %v1917
    %v1982 = vpop.f32.mrf.mxu0
    %v1983 = vadd.f32 0.0, %v1982
    %v1984 = vpop.f32.mrf.mxu0
    %v1985 = vadd.f32 0.0, %v1984
    %1986 = vmatmul.bf16.gmra.mxu0 %v1918
    %v1987 = vpop.f32.mrf.mxu0
    %v1988 = vadd.f32 0.0, %v1987
    %v1989 = vpop.f32.mrf.mxu0
    %v1990 = vadd.f32 0.0, %v1989
    %1991 = vdwg.mxu0
    %v1992 = vld [vmem:[%s15 + $0x4] sm:$0xf]
    %v1993 = vpack.c.bf16 %v1955, %v1953
    %v1994 = vpack.c.bf16 %v1960, %v1958
    %v1995 = vpack.c.bf16 %v1965, %v1963
    %v1996 = vpack.c.bf16 %v1970, %v1968
    %v1997 = vpack.c.bf16 %v1975, %v1973
    %v1998 = vpack.c.bf16 %v1980, %v1978
    %v1999 = vpack.c.bf16 %v1985, %v1983
    %v2000 = vpack.c.bf16 %v1990, %v1988
    %v2002 = vsel %vm1265, %v1993, 0
    %v2005 = vsel %vm1265, %v1994, 0
    %v2008 = vsel %vm1265, %v1995, 0
    %v2011 = vsel %vm1265, %v1996, 0
    %v2014 = vsel %vm1265, %v1997, 0
    %v2017 = vsel %vm1265, %v1998, 0
    %v2020 = vsel %vm1265, %v1999, 0
    %v2023 = vsel %vm1265, %v2000, 0
    %vm2025 = vcmask 1043456
    %v2027 = vsel %vm2025, %v1992, 0
    %2029 = vmatpush.bf16.msra.mxu0 0
    %2030 = vmatpush.bf16.msra.mxu0 0
    %2031 = vmatpush.bf16.msra.mxu0 0
    %2032 = vmatpush.bf16.msra.mxu0 0
    %2033 = vmatpush.bf16.msra.mxu0 0
    %2034 = vmatpush.bf16.msra.mxu0 0
    %2035 = vmatpush.bf16.msra.mxu0 0
    %2036 = vmatpush.bf16.msra.mxu0 %v2027
    %2037 = vmatmul.bf16.gmra.mxu0 %v2002
    %v2038 = vpop.f32.mrf.mxu0
    %v2039 = vadd.f32 0.0, %v2038
    %v2040 = vpop.f32.mrf.mxu0
    %v2041 = vadd.f32 0.0, %v2040
    %2042 = vmatmul.bf16.gmra.mxu0 %v2005
    %v2043 = vpop.f32.mrf.mxu0
    %v2044 = vadd.f32 0.0, %v2043
    %v2045 = vpop.f32.mrf.mxu0
    %v2046 = vadd.f32 0.0, %v2045
    %2047 = vmatmul.bf16.gmra.mxu0 %v2008
    %v2048 = vpop.f32.mrf.mxu0
    %v2049 = vadd.f32 0.0, %v2048
    %v2050 = vpop.f32.mrf.mxu0
    %v2051 = vadd.f32 0.0, %v2050
    %2052 = vmatmul.bf16.gmra.mxu0 %v2011
    %v2053 = vpop.f32.mrf.mxu0
    %v2054 = vadd.f32 0.0, %v2053
    %v2055 = vpop.f32.mrf.mxu0
    %v2056 = vadd.f32 0.0, %v2055
    %2057 = vmatmul.bf16.gmra.mxu0 %v2014
    %v2058 = vpop.f32.mrf.mxu0
    %v2059 = vadd.f32 0.0, %v2058
    %v2060 = vpop.f32.mrf.mxu0
    %v2061 = vadd.f32 0.0, %v2060
    %2062 = vmatmul.bf16.gmra.mxu0 %v2017
    %v2063 = vpop.f32.mrf.mxu0
    %v2064 = vadd.f32 0.0, %v2063
    %v2065 = vpop.f32.mrf.mxu0
    %v2066 = vadd.f32 0.0, %v2065
    %2067 = vmatmul.bf16.gmra.mxu0 %v2020
    %v2068 = vpop.f32.mrf.mxu0
    %v2069 = vadd.f32 0.0, %v2068
    %v2070 = vpop.f32.mrf.mxu0
    %v2071 = vadd.f32 0.0, %v2070
    %2072 = vmatmul.bf16.gmra.mxu0 %v2023
    %v2073 = vpop.f32.mrf.mxu0
    %v2074 = vadd.f32 0.0, %v2073
    %v2075 = vpop.f32.mrf.mxu0
    %v2076 = vadd.f32 0.0, %v2075
    %2077 = vdwg.mxu0
    %v2079 = vsel %vm1265, %v1589, 0
    %v2082 = vsel %vm1265, %v1590, 0
    %v2085 = vsel %vm1265, %v1591, 0
    %v2088 = vsel %vm1265, %v1592, 0
    %v2091 = vsel %vm1265, %v1593, 0
    %v2094 = vsel %vm1265, %v1594, 0
    %v2097 = vsel %vm1265, %v1595, 0
    %v2100 = vsel %vm1265, %v1596, 0
    %v2103 = vsel %vm2025, %v1588, 0
    %2105 = vmatpush.bf16.msra.mxu0 0
    %2106 = vmatpush.bf16.msra.mxu0 0
    %2107 = vmatpush.bf16.msra.mxu0 0
    %2108 = vmatpush.bf16.msra.mxu0 0
    %2109 = vmatpush.bf16.msra.mxu0 0
    %2110 = vmatpush.bf16.msra.mxu0 0
    %2111 = vmatpush.bf16.msra.mxu0 0
    %2112 = vmatpush.bf16.msra.mxu0 %v2103
    %2113 = vmatmul.bf16.gmra.mxu0 %v2079
    %v2114 = vpop.f32.mrf.mxu0
    %v2115 = vadd.f32 %v2039, %v2114
    %v2116 = vpop.f32.mrf.mxu0
    %v2117 = vadd.f32 %v2041, %v2116
    %2118 = vmatmul.bf16.gmra.mxu0 %v2082
    %v2119 = vpop.f32.mrf.mxu0
    %v2120 = vadd.f32 %v2044, %v2119
    %v2121 = vpop.f32.mrf.mxu0
    %v2122 = vadd.f32 %v2046, %v2121
    %2123 = vmatmul.bf16.gmra.mxu0 %v2085
    %v2124 = vpop.f32.mrf.mxu0
    %v2125 = vadd.f32 %v2049, %v2124
    %v2126 = vpop.f32.mrf.mxu0
    %v2127 = vadd.f32 %v2051, %v2126
    %2128 = vmatmul.bf16.gmra.mxu0 %v2088
    %v2129 = vpop.f32.mrf.mxu0
    %v2130 = vadd.f32 %v2054, %v2129
    %v2131 = vpop.f32.mrf.mxu0
    %v2132 = vadd.f32 %v2056, %v2131
    %2133 = vmatmul.bf16.gmra.mxu0 %v2091
    %v2134 = vpop.f32.mrf.mxu0
    %v2135 = vadd.f32 %v2059, %v2134
    %v2136 = vpop.f32.mrf.mxu0
    %v2137 = vadd.f32 %v2061, %v2136
    %2138 = vmatmul.bf16.gmra.mxu0 %v2094
    %v2139 = vpop.f32.mrf.mxu0
    %v2140 = vadd.f32 %v2064, %v2139
    %v2141 = vpop.f32.mrf.mxu0
    %v2142 = vadd.f32 %v2066, %v2141
    %2143 = vmatmul.bf16.gmra.mxu0 %v2097
    %v2144 = vpop.f32.mrf.mxu0
    %v2145 = vadd.f32 %v2069, %v2144
    %v2146 = vpop.f32.mrf.mxu0
    %v2147 = vadd.f32 %v2071, %v2146
    %2148 = vmatmul.bf16.gmra.mxu0 %v2100
    %v2149 = vpop.f32.mrf.mxu0
    %v2150 = vadd.f32 %v2074, %v2149
    %v2151 = vpop.f32.mrf.mxu0
    %v2152 = vadd.f32 %v2076, %v2151
    %2153 = vdwg.mxu0
    %v2154 = vadd.f32 %v646, %v2115
    %v2155 = vadd.f32 %v648, %v2117
    %v2156 = vadd.f32 %v651, %v2120
    %v2157 = vadd.f32 %v653, %v2122
    %v2158 = vadd.f32 %v656, %v2125
    %v2159 = vadd.f32 %v658, %v2127
    %v2160 = vadd.f32 %v661, %v2130
    %v2161 = vadd.f32 %v663, %v2132
    %v2162 = vadd.f32 %v666, %v2135
    %v2163 = vadd.f32 %v668, %v2137
    %v2164 = vadd.f32 %v671, %v2140
    %v2165 = vadd.f32 %v673, %v2142
    %v2166 = vadd.f32 %v676, %v2145
    %v2167 = vadd.f32 %v678, %v2147
    %v2168 = vadd.f32 %v681, %v2150
    %v2169 = vadd.f32 %v683, %v2152
    %v2170 = vld [vmem:[%s17] sm:$0x1]
    %v2172 = vperm.slane %v2170, 0
    %v2174 = vadd.f32 %v2154, %v2172
    %v2175 = vadd.f32 %v2155, %v2172
    %v2176 = vadd.f32 %v2156, %v2172
    %v2177 = vadd.f32 %v2157, %v2172
    %v2178 = vadd.f32 %v2158, %v2172
    %v2179 = vadd.f32 %v2159, %v2172
    %v2180 = vadd.f32 %v2160, %v2172
    %v2181 = vadd.f32 %v2161, %v2172
    %v2182 = vadd.f32 %v2162, %v2172
    %v2183 = vadd.f32 %v2163, %v2172
    %v2184 = vadd.f32 %v2164, %v2172
    %v2185 = vadd.f32 %v2165, %v2172
    %v2186 = vadd.f32 %v2166, %v2172
    %v2187 = vadd.f32 %v2167, %v2172
    %v2188 = vadd.f32 %v2168, %v2172
    %v2189 = vadd.f32 %v2169, %v2172
    %v2190 = vld [vmem:[%s21] sm:$0x1]
    %v2191 = vld [vmem:[%s23] sm:$0x1]
    %v2192 = vsel %vm611, %v2174, 0.0
    %2193 = vadd.xlane.f32.xlu0 %v2192
    %v2194 = vpop.xlane.xlu0 %2193
    %v2195 = vsel %vm611, %v2175, 0.0
    %2196 = vadd.xlane.f32.xlu0 %v2195
    %v2197 = vpop.xlane.xlu0 %2196
    %v2198 = vsel %vm611, %v2176, 0.0
    %2199 = vadd.xlane.f32.xlu0 %v2198
    %v2200 = vpop.xlane.xlu0 %2199
    %v2201 = vsel %vm611, %v2177, 0.0
    %2202 = vadd.xlane.f32.xlu0 %v2201
    %v2203 = vpop.xlane.xlu0 %2202
    %v2204 = vsel %vm611, %v2178, 0.0
    %2205 = vadd.xlane.f32.xlu0 %v2204
    %v2206 = vpop.xlane.xlu0 %2205
    %v2207 = vsel %vm611, %v2179, 0.0
    %2208 = vadd.xlane.f32.xlu0 %v2207
    %v2209 = vpop.xlane.xlu0 %2208
    %v2210 = vsel %vm611, %v2180, 0.0
    %2211 = vadd.xlane.f32.xlu0 %v2210
    %v2212 = vpop.xlane.xlu0 %2211
    %v2213 = vsel %vm611, %v2181, 0.0
    %2214 = vadd.xlane.f32.xlu0 %v2213
    %v2215 = vpop.xlane.xlu0 %2214
    %v2216 = vsel %vm611, %v2182, 0.0
    %2217 = vadd.xlane.f32.xlu0 %v2216
    %v2218 = vpop.xlane.xlu0 %2217
    %v2219 = vsel %vm611, %v2183, 0.0
    %2220 = vadd.xlane.f32.xlu0 %v2219
    %v2221 = vpop.xlane.xlu0 %2220
    %v2222 = vsel %vm611, %v2184, 0.0
    %2223 = vadd.xlane.f32.xlu0 %v2222
    %v2224 = vpop.xlane.xlu0 %2223
    %v2225 = vsel %vm611, %v2185, 0.0
    %2226 = vadd.xlane.f32.xlu0 %v2225
    %v2227 = vpop.xlane.xlu0 %2226
    %v2228 = vsel %vm611, %v2186, 0.0
    %2229 = vadd.xlane.f32.xlu0 %v2228
    %v2230 = vpop.xlane.xlu0 %2229
    %v2231 = vsel %vm611, %v2187, 0.0
    %2232 = vadd.xlane.f32.xlu0 %v2231
    %v2233 = vpop.xlane.xlu0 %2232
    %v2234 = vsel %vm611, %v2188, 0.0
    %2235 = vadd.xlane.f32.xlu0 %v2234
    %v2236 = vpop.xlane.xlu0 %2235
    %v2237 = vsel %vm611, %v2189, 0.0
    %2238 = vadd.xlane.f32.xlu0 %v2237
    %v2239 = vpop.xlane.xlu0 %2238
    %v2240 = vmul.f32 %v2194, %v741
    %v2241 = vmul.f32 %v2197, %v741
    %v2242 = vmul.f32 %v2200, %v741
    %v2243 = vmul.f32 %v2203, %v741
    %v2244 = vmul.f32 %v2206, %v741
    %v2245 = vmul.f32 %v2209, %v741
    %v2246 = vmul.f32 %v2212, %v741
    %v2247 = vmul.f32 %v2215, %v741
    %v2248 = vmul.f32 %v2218, %v741
    %v2249 = vmul.f32 %v2221, %v741
    %v2250 = vmul.f32 %v2224, %v741
    %v2251 = vmul.f32 %v2227, %v741
    %v2252 = vmul.f32 %v2230, %v741
    %v2253 = vmul.f32 %v2233, %v741
    %v2254 = vmul.f32 %v2236, %v741
    %v2255 = vmul.f32 %v2239, %v741
    %v2256 = vsub.f32 %v2174, %v2240
    %v2257 = vsub.f32 %v2175, %v2241
    %v2258 = vsub.f32 %v2176, %v2242
    %v2259 = vsub.f32 %v2177, %v2243
    %v2260 = vsub.f32 %v2178, %v2244
    %v2261 = vsub.f32 %v2179, %v2245
    %v2262 = vsub.f32 %v2180, %v2246
    %v2263 = vsub.f32 %v2181, %v2247
    %v2264 = vsub.f32 %v2182, %v2248
    %v2265 = vsub.f32 %v2183, %v2249
    %v2266 = vsub.f32 %v2184, %v2250
    %v2267 = vsub.f32 %v2185, %v2251
    %v2268 = vsub.f32 %v2186, %v2252
    %v2269 = vsub.f32 %v2187, %v2253
    %v2270 = vsub.f32 %v2188, %v2254
    %v2271 = vsub.f32 %v2189, %v2255
    %v2272 = vmul.f32 %v2256, %v2256
    %v2273 = vmul.f32 %v2257, %v2257
    %v2274 = vmul.f32 %v2258, %v2258
    %v2275 = vmul.f32 %v2259, %v2259
    %v2276 = vmul.f32 %v2260, %v2260
    %v2277 = vmul.f32 %v2261, %v2261
    %v2278 = vmul.f32 %v2262, %v2262
    %v2279 = vmul.f32 %v2263, %v2263
    %v2280 = vmul.f32 %v2264, %v2264
    %v2281 = vmul.f32 %v2265, %v2265
    %v2282 = vmul.f32 %v2266, %v2266
    %v2283 = vmul.f32 %v2267, %v2267
    %v2284 = vmul.f32 %v2268, %v2268
    %v2285 = vmul.f32 %v2269, %v2269
    %v2286 = vmul.f32 %v2270, %v2270
    %v2287 = vmul.f32 %v2271, %v2271
    %v2288 = vsel %vm611, %v2272, 0.0
    %2289 = vadd.xlane.f32.xlu0 %v2288
    %v2290 = vpop.xlane.xlu0 %2289
    %v2291 = vsel %vm611, %v2273, 0.0
    %2292 = vadd.xlane.f32.xlu0 %v2291
    %v2293 = vpop.xlane.xlu0 %2292
    %v2294 = vsel %vm611, %v2274, 0.0
    %2295 = vadd.xlane.f32.xlu0 %v2294
    %v2296 = vpop.xlane.xlu0 %2295
    %v2297 = vsel %vm611, %v2275, 0.0
    %2298 = vadd.xlane.f32.xlu0 %v2297
    %v2299 = vpop.xlane.xlu0 %2298
    %v2300 = vsel %vm611, %v2276, 0.0
    %2301 = vadd.xlane.f32.xlu0 %v2300
    %v2302 = vpop.xlane.xlu0 %2301
    %v2303 = vsel %vm611, %v2277, 0.0
    %2304 = vadd.xlane.f32.xlu0 %v2303
    %v2305 = vpop.xlane.xlu0 %2304
    %v2306 = vsel %vm611, %v2278, 0.0
    %2307 = vadd.xlane.f32.xlu0 %v2306
    %v2308 = vpop.xlane.xlu0 %2307
    %v2309 = vsel %vm611, %v2279, 0.0
    %2310 = vadd.xlane.f32.xlu0 %v2309
    %v2311 = vpop.xlane.xlu0 %2310
    %v2312 = vsel %vm611, %v2280, 0.0
    %2313 = vadd.xlane.f32.xlu0 %v2312
    %v2314 = vpop.xlane.xlu0 %2313
    %v2315 = vsel %vm611, %v2281, 0.0
    %2316 = vadd.xlane.f32.xlu0 %v2315
    %v2317 = vpop.xlane.xlu0 %2316
    %v2318 = vsel %vm611, %v2282, 0.0
    %2319 = vadd.xlane.f32.xlu0 %v2318
    %v2320 = vpop.xlane.xlu0 %2319
    %v2321 = vsel %vm611, %v2283, 0.0
    %2322 = vadd.xlane.f32.xlu0 %v2321
    %v2323 = vpop.xlane.xlu0 %2322
    %v2324 = vsel %vm611, %v2284, 0.0
    %2325 = vadd.xlane.f32.xlu0 %v2324
    %v2326 = vpop.xlane.xlu0 %2325
    %v2327 = vsel %vm611, %v2285, 0.0
    %2328 = vadd.xlane.f32.xlu0 %v2327
    %v2329 = vpop.xlane.xlu0 %2328
    %v2330 = vsel %vm611, %v2286, 0.0
    %2331 = vadd.xlane.f32.xlu0 %v2330
    %v2332 = vpop.xlane.xlu0 %2331
    %v2333 = vsel %vm611, %v2287, 0.0
    %2334 = vadd.xlane.f32.xlu0 %v2333
    %v2335 = vpop.xlane.xlu0 %2334
    %v2336 = vmul.f32 %v2290, %v741
    %v2337 = vmul.f32 %v2293, %v741
    %v2338 = vmul.f32 %v2296, %v741
    %v2339 = vmul.f32 %v2299, %v741
    %v2340 = vmul.f32 %v2302, %v741
    %v2341 = vmul.f32 %v2305, %v741
    %v2342 = vmul.f32 %v2308, %v741
    %v2343 = vmul.f32 %v2311, %v741
    %v2344 = vmul.f32 %v2314, %v741
    %v2345 = vmul.f32 %v2317, %v741
    %v2346 = vmul.f32 %v2320, %v741
    %v2347 = vmul.f32 %v2323, %v741
    %v2348 = vmul.f32 %v2326, %v741
    %v2349 = vmul.f32 %v2329, %v741
    %v2350 = vmul.f32 %v2332, %v741
    %v2351 = vmul.f32 %v2335, %v741
    %v2352 = vadd.f32 %v2336, 1e-05
    %v2353 = vadd.f32 %v2337, 1e-05
    %v2354 = vadd.f32 %v2338, 1e-05
    %v2355 = vadd.f32 %v2339, 1e-05
    %v2356 = vadd.f32 %v2340, 1e-05
    %v2357 = vadd.f32 %v2341, 1e-05
    %v2358 = vadd.f32 %v2342, 1e-05
    %v2359 = vadd.f32 %v2343, 1e-05
    %v2360 = vadd.f32 %v2344, 1e-05
    %v2361 = vadd.f32 %v2345, 1e-05
    %v2362 = vadd.f32 %v2346, 1e-05
    %v2363 = vadd.f32 %v2347, 1e-05
    %v2364 = vadd.f32 %v2348, 1e-05
    %v2365 = vadd.f32 %v2349, 1e-05
    %v2366 = vadd.f32 %v2350, 1e-05
    %v2367 = vadd.f32 %v2351, 1e-05
    %v2368 = vrsqrt.pop %v2352
    %v2369 = vmul.f32 %v2368, %v2352
    %v2370 = vmul.f32 %v2369, %v2368
    %v2371 = vmul.f32 0.5, %v2370
    %v2372 = vsub.f32 1.5, %v2371
    %v2373 = vmul.f32 %v2368, %v2372
    %vm2374 = vweird.f32 %v2352
    %vm2375 = vweird.f32 %v2368
    %vm2376 = vmor %vm2374, %vm2375
    %v2377 = vsel %vm2376, %v2368, %v2373
    %v2378 = vrsqrt.pop %v2353
    %v2379 = vmul.f32 %v2378, %v2353
    %v2380 = vmul.f32 %v2379, %v2378
    %v2381 = vmul.f32 0.5, %v2380
    %v2382 = vsub.f32 1.5, %v2381
    %v2383 = vmul.f32 %v2378, %v2382
    %vm2384 = vweird.f32 %v2353
    %vm2385 = vweird.f32 %v2378
    %vm2386 = vmor %vm2384, %vm2385
    %v2387 = vsel %vm2386, %v2378, %v2383
    %v2388 = vrsqrt.pop %v2354
    %v2389 = vmul.f32 %v2388, %v2354
    %v2390 = vmul.f32 %v2389, %v2388
    %v2391 = vmul.f32 0.5, %v2390
    %v2392 = vsub.f32 1.5, %v2391
    %v2393 = vmul.f32 %v2388, %v2392
    %vm2394 = vweird.f32 %v2354
    %vm2395 = vweird.f32 %v2388
    %vm2396 = vmor %vm2394, %vm2395
    %v2397 = vsel %vm2396, %v2388, %v2393
    %v2398 = vrsqrt.pop %v2355
    %v2399 = vmul.f32 %v2398, %v2355
    %v2400 = vmul.f32 %v2399, %v2398
    %v2401 = vmul.f32 0.5, %v2400
    %v2402 = vsub.f32 1.5, %v2401
    %v2403 = vmul.f32 %v2398, %v2402
    %vm2404 = vweird.f32 %v2355
    %vm2405 = vweird.f32 %v2398
    %vm2406 = vmor %vm2404, %vm2405
    %v2407 = vsel %vm2406, %v2398, %v2403
    %v2408 = vrsqrt.pop %v2356
    %v2409 = vmul.f32 %v2408, %v2356
    %v2410 = vmul.f32 %v2409, %v2408
    %v2411 = vmul.f32 0.5, %v2410
    %v2412 = vsub.f32 1.5, %v2411
    %v2413 = vmul.f32 %v2408, %v2412
    %vm2414 = vweird.f32 %v2356
    %vm2415 = vweird.f32 %v2408
    %vm2416 = vmor %vm2414, %vm2415
    %v2417 = vsel %vm2416, %v2408, %v2413
    %v2418 = vrsqrt.pop %v2357
    %v2419 = vmul.f32 %v2418, %v2357
    %v2420 = vmul.f32 %v2419, %v2418
    %v2421 = vmul.f32 0.5, %v2420
    %v2422 = vsub.f32 1.5, %v2421
    %v2423 = vmul.f32 %v2418, %v2422
    %vm2424 = vweird.f32 %v2357
    %vm2425 = vweird.f32 %v2418
    %vm2426 = vmor %vm2424, %vm2425
    %v2427 = vsel %vm2426, %v2418, %v2423
    %v2428 = vrsqrt.pop %v2358
    %v2429 = vmul.f32 %v2428, %v2358
    %v2430 = vmul.f32 %v2429, %v2428
    %v2431 = vmul.f32 0.5, %v2430
    %v2432 = vsub.f32 1.5, %v2431
    %v2433 = vmul.f32 %v2428, %v2432
    %vm2434 = vweird.f32 %v2358
    %vm2435 = vweird.f32 %v2428
    %vm2436 = vmor %vm2434, %vm2435
    %v2437 = vsel %vm2436, %v2428, %v2433
    %v2438 = vrsqrt.pop %v2359
    %v2439 = vmul.f32 %v2438, %v2359
    %v2440 = vmul.f32 %v2439, %v2438
    %v2441 = vmul.f32 0.5, %v2440
    %v2442 = vsub.f32 1.5, %v2441
    %v2443 = vmul.f32 %v2438, %v2442
    %vm2444 = vweird.f32 %v2359
    %vm2445 = vweird.f32 %v2438
    %vm2446 = vmor %vm2444, %vm2445
    %v2447 = vsel %vm2446, %v2438, %v2443
    %v2448 = vrsqrt.pop %v2360
    %v2449 = vmul.f32 %v2448, %v2360
    %v2450 = vmul.f32 %v2449, %v2448
    %v2451 = vmul.f32 0.5, %v2450
    %v2452 = vsub.f32 1.5, %v2451
    %v2453 = vmul.f32 %v2448, %v2452
    %vm2454 = vweird.f32 %v2360
    %vm2455 = vweird.f32 %v2448
    %vm2456 = vmor %vm2454, %vm2455
    %v2457 = vsel %vm2456, %v2448, %v2453
    %v2458 = vrsqrt.pop %v2361
    %v2459 = vmul.f32 %v2458, %v2361
    %v2460 = vmul.f32 %v2459, %v2458
    %v2461 = vmul.f32 0.5, %v2460
    %v2462 = vsub.f32 1.5, %v2461
    %v2463 = vmul.f32 %v2458, %v2462
    %vm2464 = vweird.f32 %v2361
    %vm2465 = vweird.f32 %v2458
    %vm2466 = vmor %vm2464, %vm2465
    %v2467 = vsel %vm2466, %v2458, %v2463
    %v2468 = vrsqrt.pop %v2362
    %v2469 = vmul.f32 %v2468, %v2362
    %v2470 = vmul.f32 %v2469, %v2468
    %v2471 = vmul.f32 0.5, %v2470
    %v2472 = vsub.f32 1.5, %v2471
    %v2473 = vmul.f32 %v2468, %v2472
    %vm2474 = vweird.f32 %v2362
    %vm2475 = vweird.f32 %v2468
    %vm2476 = vmor %vm2474, %vm2475
    %v2477 = vsel %vm2476, %v2468, %v2473
    %v2478 = vrsqrt.pop %v2363
    %v2479 = vmul.f32 %v2478, %v2363
    %v2480 = vmul.f32 %v2479, %v2478
    %v2481 = vmul.f32 0.5, %v2480
    %v2482 = vsub.f32 1.5, %v2481
    %v2483 = vmul.f32 %v2478, %v2482
    %vm2484 = vweird.f32 %v2363
    %vm2485 = vweird.f32 %v2478
    %vm2486 = vmor %vm2484, %vm2485
    %v2487 = vsel %vm2486, %v2478, %v2483
    %v2488 = vrsqrt.pop %v2364
    %v2489 = vmul.f32 %v2488, %v2364
    %v2490 = vmul.f32 %v2489, %v2488
    %v2491 = vmul.f32 0.5, %v2490
    %v2492 = vsub.f32 1.5, %v2491
    %v2493 = vmul.f32 %v2488, %v2492
    %vm2494 = vweird.f32 %v2364
    %vm2495 = vweird.f32 %v2488
    %vm2496 = vmor %vm2494, %vm2495
    %v2497 = vsel %vm2496, %v2488, %v2493
    %v2498 = vrsqrt.pop %v2365
    %v2499 = vmul.f32 %v2498, %v2365
    %v2500 = vmul.f32 %v2499, %v2498
    %v2501 = vmul.f32 0.5, %v2500
    %v2502 = vsub.f32 1.5, %v2501
    %v2503 = vmul.f32 %v2498, %v2502
    %vm2504 = vweird.f32 %v2365
    %vm2505 = vweird.f32 %v2498
    %vm2506 = vmor %vm2504, %vm2505
    %v2507 = vsel %vm2506, %v2498, %v2503
    %v2508 = vrsqrt.pop %v2366
    %v2509 = vmul.f32 %v2508, %v2366
    %v2510 = vmul.f32 %v2509, %v2508
    %v2511 = vmul.f32 0.5, %v2510
    %v2512 = vsub.f32 1.5, %v2511
    %v2513 = vmul.f32 %v2508, %v2512
    %vm2514 = vweird.f32 %v2366
    %vm2515 = vweird.f32 %v2508
    %vm2516 = vmor %vm2514, %vm2515
    %v2517 = vsel %vm2516, %v2508, %v2513
    %v2518 = vrsqrt.pop %v2367
    %v2519 = vmul.f32 %v2518, %v2367
    %v2520 = vmul.f32 %v2519, %v2518
    %v2521 = vmul.f32 0.5, %v2520
    %v2522 = vsub.f32 1.5, %v2521
    %v2523 = vmul.f32 %v2518, %v2522
    %vm2524 = vweird.f32 %v2367
    %vm2525 = vweird.f32 %v2518
    %vm2526 = vmor %vm2524, %vm2525
    %v2527 = vsel %vm2526, %v2518, %v2523
    %v2528 = vmul.f32 %v2256, %v2377
    %v2529 = vmul.f32 %v2257, %v2387
    %v2530 = vmul.f32 %v2258, %v2397
    %v2531 = vmul.f32 %v2259, %v2407
    %v2532 = vmul.f32 %v2260, %v2417
    %v2533 = vmul.f32 %v2261, %v2427
    %v2534 = vmul.f32 %v2262, %v2437
    %v2535 = vmul.f32 %v2263, %v2447
    %v2536 = vmul.f32 %v2264, %v2457
    %v2537 = vmul.f32 %v2265, %v2467
    %v2538 = vmul.f32 %v2266, %v2477
    %v2539 = vmul.f32 %v2267, %v2487
    %v2540 = vmul.f32 %v2268, %v2497
    %v2541 = vmul.f32 %v2269, %v2507
    %v2542 = vmul.f32 %v2270, %v2517
    %v2543 = vmul.f32 %v2271, %v2527
    %v2545 = vperm.slane %v2190, 0
    %v2547 = vmul.f32 %v2528, %v2545
    %v2548 = vmul.f32 %v2529, %v2545
    %v2549 = vmul.f32 %v2530, %v2545
    %v2550 = vmul.f32 %v2531, %v2545
    %v2551 = vmul.f32 %v2532, %v2545
    %v2552 = vmul.f32 %v2533, %v2545
    %v2553 = vmul.f32 %v2534, %v2545
    %v2554 = vmul.f32 %v2535, %v2545
    %v2555 = vmul.f32 %v2536, %v2545
    %v2556 = vmul.f32 %v2537, %v2545
    %v2557 = vmul.f32 %v2538, %v2545
    %v2558 = vmul.f32 %v2539, %v2545
    %v2559 = vmul.f32 %v2540, %v2545
    %v2560 = vmul.f32 %v2541, %v2545
    %v2561 = vmul.f32 %v2542, %v2545
    %v2562 = vmul.f32 %v2543, %v2545
    %v2564 = vperm.slane %v2191, 0
    %v2566 = vadd.f32 %v2547, %v2564
    %v2567 = vadd.f32 %v2548, %v2564
    %v2568 = vadd.f32 %v2549, %v2564
    %v2569 = vadd.f32 %v2550, %v2564
    %v2570 = vadd.f32 %v2551, %v2564
    %v2571 = vadd.f32 %v2552, %v2564
    %v2572 = vadd.f32 %v2553, %v2564
    %v2573 = vadd.f32 %v2554, %v2564
    %v2574 = vadd.f32 %v2555, %v2564
    %v2575 = vadd.f32 %v2556, %v2564
    %v2576 = vadd.f32 %v2557, %v2564
    %v2577 = vadd.f32 %v2558, %v2564
    %v2578 = vadd.f32 %v2559, %v2564
    %v2579 = vadd.f32 %v2560, %v2564
    %v2580 = vadd.f32 %v2561, %v2564
    %v2581 = vadd.f32 %v2562, %v2564
    %v2582 = vld [vmem:[%s25] sm:$0xf]
    %v2583 = vld [vmem:[%s25 + $0x4] sm:$0xf]
    %v2584 = vpack.c.bf16 %v2567, %v2566
    %v2585 = vpack.c.bf16 %v2569, %v2568
    %v2586 = vpack.c.bf16 %v2571, %v2570
    %v2587 = vpack.c.bf16 %v2573, %v2572
    %v2588 = vpack.c.bf16 %v2575, %v2574
    %v2589 = vpack.c.bf16 %v2577, %v2576
    %v2590 = vpack.c.bf16 %v2579, %v2578
    %v2591 = vpack.c.bf16 %v2581, %v2580
    %v2592 = vld [vmem:[%s27] sm:$0x1]
    %v2594 = vperm.slane %v2592, 0
    %v2598 = vunpack.c.l.b16 %v2582
    %v2599 = vunpack.c.l.b16 %v2583
    %v2600 = vpack.c.b16 %v2599, %v2598
    %v2603 = vsel %vm611, %v2584, 0
    %v2606 = vsel %vm611, %v2585, 0
    %v2609 = vsel %vm611, %v2586, 0
    %v2612 = vsel %vm611, %v2587, 0
    %v2615 = vsel %vm611, %v2588, 0
    %v2618 = vsel %vm611, %v2589, 0
    %v2621 = vsel %vm611, %v2590, 0
    %v2624 = vsel %vm611, %v2591, 0
    %2626 = vmatpush.bf16.msra.mxu0 0
    %2627 = vmatpush.bf16.msra.mxu0 0
    %2628 = vmatpush.bf16.msra.mxu0 0
    %2629 = vmatpush.bf16.msra.mxu0 0
    %2630 = vmatpush.bf16.msra.mxu0 0
    %2631 = vmatpush.bf16.msra.mxu0 0
    %2632 = vmatpush.bf16.msra.mxu0 0
    %2633 = vmatpush.bf16.msra.mxu0 %v2600
    %2634 = vmatmul.bf16.gmra.mxu0 %v2603
    %v2635 = vpop.f32.mrf.mxu0
    %v2636 = vadd.f32 %v2594, %v2635
    %v2637 = vpop.f32.mrf.mxu0
    %v2638 = vadd.f32 %v2594, %v2637
    %2639 = vmatmul.bf16.gmra.mxu0 %v2606
    %v2640 = vpop.f32.mrf.mxu0
    %v2641 = vadd.f32 %v2594, %v2640
    %v2642 = vpop.f32.mrf.mxu0
    %v2643 = vadd.f32 %v2594, %v2642
    %2644 = vmatmul.bf16.gmra.mxu0 %v2609
    %v2645 = vpop.f32.mrf.mxu0
    %v2646 = vadd.f32 %v2594, %v2645
    %v2647 = vpop.f32.mrf.mxu0
    %v2648 = vadd.f32 %v2594, %v2647
    %2649 = vmatmul.bf16.gmra.mxu0 %v2612
    %v2650 = vpop.f32.mrf.mxu0
    %v2651 = vadd.f32 %v2594, %v2650
    %v2652 = vpop.f32.mrf.mxu0
    %v2653 = vadd.f32 %v2594, %v2652
    %2654 = vmatmul.bf16.gmra.mxu0 %v2615
    %v2655 = vpop.f32.mrf.mxu0
    %v2656 = vadd.f32 %v2594, %v2655
    %v2657 = vpop.f32.mrf.mxu0
    %v2658 = vadd.f32 %v2594, %v2657
    %2659 = vmatmul.bf16.gmra.mxu0 %v2618
    %v2660 = vpop.f32.mrf.mxu0
    %v2661 = vadd.f32 %v2594, %v2660
    %v2662 = vpop.f32.mrf.mxu0
    %v2663 = vadd.f32 %v2594, %v2662
    %2664 = vmatmul.bf16.gmra.mxu0 %v2621
    %v2665 = vpop.f32.mrf.mxu0
    %v2666 = vadd.f32 %v2594, %v2665
    %v2667 = vpop.f32.mrf.mxu0
    %v2668 = vadd.f32 %v2594, %v2667
    %2669 = vmatmul.bf16.gmra.mxu0 %v2624
    %v2670 = vpop.f32.mrf.mxu0
    %v2671 = vadd.f32 %v2594, %v2670
    %v2672 = vpop.f32.mrf.mxu0
    %v2673 = vadd.f32 %v2594, %v2672
    %2674 = vdwg.mxu0
    %v2675 = vmul.f32 %v2636, 0.5
    %v2676 = vmul.f32 %v2638, 0.5
    %v2677 = vmul.f32 %v2641, 0.5
    %v2678 = vmul.f32 %v2643, 0.5
    %v2679 = vmul.f32 %v2646, 0.5
    %v2680 = vmul.f32 %v2648, 0.5
    %v2681 = vmul.f32 %v2651, 0.5
    %v2682 = vmul.f32 %v2653, 0.5
    %v2683 = vmul.f32 %v2656, 0.5
    %v2684 = vmul.f32 %v2658, 0.5
    %v2685 = vmul.f32 %v2661, 0.5
    %v2686 = vmul.f32 %v2663, 0.5
    %v2687 = vmul.f32 %v2666, 0.5
    %v2688 = vmul.f32 %v2668, 0.5
    %v2689 = vmul.f32 %v2671, 0.5
    %v2690 = vmul.f32 %v2673, 0.5
    %v2691 = vmul.f32 %v2636, 0.044715
    %v2692 = vmul.f32 %v2638, 0.044715
    %v2693 = vmul.f32 %v2641, 0.044715
    %v2694 = vmul.f32 %v2643, 0.044715
    %v2695 = vmul.f32 %v2646, 0.044715
    %v2696 = vmul.f32 %v2648, 0.044715
    %v2697 = vmul.f32 %v2651, 0.044715
    %v2698 = vmul.f32 %v2653, 0.044715
    %v2699 = vmul.f32 %v2656, 0.044715
    %v2700 = vmul.f32 %v2658, 0.044715
    %v2701 = vmul.f32 %v2661, 0.044715
    %v2702 = vmul.f32 %v2663, 0.044715
    %v2703 = vmul.f32 %v2666, 0.044715
    %v2704 = vmul.f32 %v2668, 0.044715
    %v2705 = vmul.f32 %v2671, 0.044715
    %v2706 = vmul.f32 %v2673, 0.044715
    %v2707 = vmul.f32 %v2691, %v2636
    %v2708 = vmul.f32 %v2692, %v2638
    %v2709 = vmul.f32 %v2693, %v2641
    %v2710 = vmul.f32 %v2694, %v2643
    %v2711 = vmul.f32 %v2695, %v2646
    %v2712 = vmul.f32 %v2696, %v2648
    %v2713 = vmul.f32 %v2697, %v2651
    %v2714 = vmul.f32 %v2698, %v2653
    %v2715 = vmul.f32 %v2699, %v2656
    %v2716 = vmul.f32 %v2700, %v2658
    %v2717 = vmul.f32 %v2701, %v2661
    %v2718 = vmul.f32 %v2702, %v2663
    %v2719 = vmul.f32 %v2703, %v2666
    %v2720 = vmul.f32 %v2704, %v2668
    %v2721 = vmul.f32 %v2705, %v2671
    %v2722 = vmul.f32 %v2706, %v2673
    %v2723 = vmul.f32 %v2707, %v2636
    %v2724 = vmul.f32 %v2708, %v2638
    %v2725 = vmul.f32 %v2709, %v2641
    %v2726 = vmul.f32 %v2710, %v2643
    %v2727 = vmul.f32 %v2711, %v2646
    %v2728 = vmul.f32 %v2712, %v2648
    %v2729 = vmul.f32 %v2713, %v2651
    %v2730 = vmul.f32 %v2714, %v2653
    %v2731 = vmul.f32 %v2715, %v2656
    %v2732 = vmul.f32 %v2716, %v2658
    %v2733 = vmul.f32 %v2717, %v2661
    %v2734 = vmul.f32 %v2718, %v2663
    %v2735 = vmul.f32 %v2719, %v2666
    %v2736 = vmul.f32 %v2720, %v2668
    %v2737 = vmul.f32 %v2721, %v2671
    %v2738 = vmul.f32 %v2722, %v2673
    %v2739 = vadd.f32 %v2636, %v2723
    %v2740 = vadd.f32 %v2638, %v2724
    %v2741 = vadd.f32 %v2641, %v2725
    %v2742 = vadd.f32 %v2643, %v2726
    %v2743 = vadd.f32 %v2646, %v2727
    %v2744 = vadd.f32 %v2648, %v2728
    %v2745 = vadd.f32 %v2651, %v2729
    %v2746 = vadd.f32 %v2653, %v2730
    %v2747 = vadd.f32 %v2656, %v2731
    %v2748 = vadd.f32 %v2658, %v2732
    %v2749 = vadd.f32 %v2661, %v2733
    %v2750 = vadd.f32 %v2663, %v2734
    %v2751 = vadd.f32 %v2666, %v2735
    %v2752 = vadd.f32 %v2668, %v2736
    %v2753 = vadd.f32 %v2671, %v2737
    %v2754 = vadd.f32 %v2673, %v2738
    %v2755 = vmul.f32 %v2739, 0.7978846
    %v2756 = vmul.f32 %v2740, 0.7978846
    %v2757 = vmul.f32 %v2741, 0.7978846
    %v2758 = vmul.f32 %v2742, 0.7978846
    %v2759 = vmul.f32 %v2743, 0.7978846
    %v2760 = vmul.f32 %v2744, 0.7978846
    %v2761 = vmul.f32 %v2745, 0.7978846
    %v2762 = vmul.f32 %v2746, 0.7978846
    %v2763 = vmul.f32 %v2747, 0.7978846
    %v2764 = vmul.f32 %v2748, 0.7978846
    %v2765 = vmul.f32 %v2749, 0.7978846
    %v2766 = vmul.f32 %v2750, 0.7978846
    %v2767 = vmul.f32 %v2751, 0.7978846
    %v2768 = vmul.f32 %v2752, 0.7978846
    %v2769 = vmul.f32 %v2753, 0.7978846
    %v2770 = vmul.f32 %v2754, 0.7978846
    %v2771 = vtanh.pop %v2755
    %v2772 = vtanh.pop %v2756
    %v2773 = vtanh.pop %v2757
    %v2774 = vtanh.pop %v2758
    %v2775 = vtanh.pop %v2759
    %v2776 = vtanh.pop %v2760
    %v2777 = vtanh.pop %v2761
    %v2778 = vtanh.pop %v2762
    %v2779 = vtanh.pop %v2763
    %v2780 = vtanh.pop %v2764
    %v2781 = vtanh.pop %v2765
    %v2782 = vtanh.pop %v2766
    %v2783 = vtanh.pop %v2767
    %v2784 = vtanh.pop %v2768
    %v2785 = vtanh.pop %v2769
    %v2786 = vtanh.pop %v2770
    %v2787 = vadd.f32 %v2771, 1.0
    %v2788 = vadd.f32 %v2772, 1.0
    %v2789 = vadd.f32 %v2773, 1.0
    %v2790 = vadd.f32 %v2774, 1.0
    %v2791 = vadd.f32 %v2775, 1.0
    %v2792 = vadd.f32 %v2776, 1.0
    %v2793 = vadd.f32 %v2777, 1.0
    %v2794 = vadd.f32 %v2778, 1.0
    %v2795 = vadd.f32 %v2779, 1.0
    %v2796 = vadd.f32 %v2780, 1.0
    %v2797 = vadd.f32 %v2781, 1.0
    %v2798 = vadd.f32 %v2782, 1.0
    %v2799 = vadd.f32 %v2783, 1.0
    %v2800 = vadd.f32 %v2784, 1.0
    %v2801 = vadd.f32 %v2785, 1.0
    %v2802 = vadd.f32 %v2786, 1.0
    %v2803 = vmul.f32 %v2675, %v2787
    %v2804 = vmul.f32 %v2676, %v2788
    %v2805 = vmul.f32 %v2677, %v2789
    %v2806 = vmul.f32 %v2678, %v2790
    %v2807 = vmul.f32 %v2679, %v2791
    %v2808 = vmul.f32 %v2680, %v2792
    %v2809 = vmul.f32 %v2681, %v2793
    %v2810 = vmul.f32 %v2682, %v2794
    %v2811 = vmul.f32 %v2683, %v2795
    %v2812 = vmul.f32 %v2684, %v2796
    %v2813 = vmul.f32 %v2685, %v2797
    %v2814 = vmul.f32 %v2686, %v2798
    %v2815 = vmul.f32 %v2687, %v2799
    %v2816 = vmul.f32 %v2688, %v2800
    %v2817 = vmul.f32 %v2689, %v2801
    %v2818 = vmul.f32 %v2690, %v2802
    %v2819 = vld [vmem:[%s29] sm:$0xf]
    %v2820 = vld [vmem:[%s29 + $0x4] sm:$0xf]
    %v2821 = vld [vmem:[%s29 + $0x8] sm:$0xf]
    %v2822 = vld [vmem:[%s29 + $0xc] sm:$0xf]
    %v2823 = vld [vmem:[%s29 + $0x10] sm:$0xf]
    %v2824 = vld [vmem:[%s29 + $0x14] sm:$0xf]
    %v2825 = vld [vmem:[%s29 + $0x18] sm:$0xf]
    %v2826 = vld [vmem:[%s29 + $0x1c] sm:$0xf]
    %v2827 = vpack.c.bf16 %v2804, %v2803
    %v2828 = vpack.c.bf16 %v2806, %v2805
    %v2829 = vpack.c.bf16 %v2808, %v2807
    %v2830 = vpack.c.bf16 %v2810, %v2809
    %v2831 = vpack.c.bf16 %v2812, %v2811
    %v2832 = vpack.c.bf16 %v2814, %v2813
    %v2833 = vpack.c.bf16 %v2816, %v2815
    %v2834 = vpack.c.bf16 %v2818, %v2817
    %v2835 = vld [vmem:[%s31] sm:$0x1]
    %v2837 = vperm.slane %v2835, 0
    %v2847 = vunpack.c.l.b16 %v2819
    %v2848 = vunpack.c.l.b16 %v2820
    %v2849 = vunpack.c.l.b16 %v2821
    %v2850 = vunpack.c.l.b16 %v2822
    %v2851 = vunpack.c.l.b16 %v2823
    %v2852 = vunpack.c.l.b16 %v2824
    %v2853 = vunpack.c.l.b16 %v2825
    %v2854 = vunpack.c.l.b16 %v2826
    %v2855 = vpack.c.b16 %v2848, %v2847
    %v2856 = vpack.c.b16 %v2850, %v2849
    %v2857 = vpack.c.b16 %v2852, %v2851
    %v2858 = vpack.c.b16 %v2854, %v2853
    %vm2863 = vcmask 523264
    %v2865 = vsel %vm2863, %v2827, 0
    %v2868 = vsel %vm2863, %v2828, 0
    %v2871 = vsel %vm2863, %v2829, 0
    %v2874 = vsel %vm2863, %v2830, 0
    %v2877 = vsel %vm2863, %v2831, 0
    %v2880 = vsel %vm2863, %v2832, 0
    %v2883 = vsel %vm2863, %v2833, 0
    %v2886 = vsel %vm2863, %v2834, 0
    %2888 = vmatpush.bf16.msra.mxu0 0
    %2889 = vmatpush.bf16.msra.mxu0 0
    %2890 = vmatpush.bf16.msra.mxu0 0
    %2891 = vmatpush.bf16.msra.mxu0 0
    %2892 = vmatpush.bf16.msra.mxu0 %v2858
    %2893 = vmatpush.bf16.msra.mxu0 %v2857
    %2894 = vmatpush.bf16.msra.mxu0 %v2856
    %2895 = vmatpush.bf16.msra.mxu0 %v2855
    %2896 = vmatmul.bf16.gmra.mxu0 %v2865
    %v2897 = vpop.f32.mrf.mxu0
    %v2898 = vadd.f32 %v2837, %v2897
    %v2899 = vpop.f32.mrf.mxu0
    %v2900 = vadd.f32 %v2837, %v2899
    %2901 = vmatmul.bf16.gmra.mxu0 %v2868
    %v2902 = vpop.f32.mrf.mxu0
    %v2903 = vadd.f32 %v2837, %v2902
    %v2904 = vpop.f32.mrf.mxu0
    %v2905 = vadd.f32 %v2837, %v2904
    %2906 = vmatmul.bf16.gmra.mxu0 %v2871
    %v2907 = vpop.f32.mrf.mxu0
    %v2908 = vadd.f32 %v2837, %v2907
    %v2909 = vpop.f32.mrf.mxu0
    %v2910 = vadd.f32 %v2837, %v2909
    %2911 = vmatmul.bf16.gmra.mxu0 %v2874
    %v2912 = vpop.f32.mrf.mxu0
    %v2913 = vadd.f32 %v2837, %v2912
    %v2914 = vpop.f32.mrf.mxu0
    %v2915 = vadd.f32 %v2837, %v2914
    %2916 = vmatmul.bf16.gmra.mxu0 %v2877
    %v2917 = vpop.f32.mrf.mxu0
    %v2918 = vadd.f32 %v2837, %v2917
    %v2919 = vpop.f32.mrf.mxu0
    %v2920 = vadd.f32 %v2837, %v2919
    %2921 = vmatmul.bf16.gmra.mxu0 %v2880
    %v2922 = vpop.f32.mrf.mxu0
    %v2923 = vadd.f32 %v2837, %v2922
    %v2924 = vpop.f32.mrf.mxu0
    %v2925 = vadd.f32 %v2837, %v2924
    %2926 = vmatmul.bf16.gmra.mxu0 %v2883
    %v2927 = vpop.f32.mrf.mxu0
    %v2928 = vadd.f32 %v2837, %v2927
    %v2929 = vpop.f32.mrf.mxu0
    %v2930 = vadd.f32 %v2837, %v2929
    %2931 = vmatmul.bf16.gmra.mxu0 %v2886
    %v2932 = vpop.f32.mrf.mxu0
    %v2933 = vadd.f32 %v2837, %v2932
    %v2934 = vpop.f32.mrf.mxu0
    %v2935 = vadd.f32 %v2837, %v2934
    %2936 = vdwg.mxu0
    %v2937 = vadd.f32 %v2174, %v2898
    %v2938 = vadd.f32 %v2175, %v2900
    %v2939 = vadd.f32 %v2176, %v2903
    %v2940 = vadd.f32 %v2177, %v2905
    %v2941 = vadd.f32 %v2178, %v2908
    %v2942 = vadd.f32 %v2179, %v2910
    %v2943 = vadd.f32 %v2180, %v2913
    %v2944 = vadd.f32 %v2181, %v2915
    %v2945 = vadd.f32 %v2182, %v2918
    %v2946 = vadd.f32 %v2183, %v2920
    %v2947 = vadd.f32 %v2184, %v2923
    %v2948 = vadd.f32 %v2185, %v2925
    %v2949 = vadd.f32 %v2186, %v2928
    %v2950 = vadd.f32 %v2187, %v2930
    %v2951 = vadd.f32 %v2188, %v2933
    %v2952 = vadd.f32 %v2189, %v2935
    %v2953 = vld [vmem:[%s33] sm:$0x1]
    %v2954 = vld [vmem:[%s35] sm:$0x1]
    %v2955 = vsel %vm611, %v2937, 0.0
    %2956 = vadd.xlane.f32.xlu0 %v2955
    %v2957 = vpop.xlane.xlu0 %2956
    %v2958 = vsel %vm611, %v2938, 0.0
    %2959 = vadd.xlane.f32.xlu0 %v2958
    %v2960 = vpop.xlane.xlu0 %2959
    %v2961 = vsel %vm611, %v2939, 0.0
    %2962 = vadd.xlane.f32.xlu0 %v2961
    %v2963 = vpop.xlane.xlu0 %2962
    %v2964 = vsel %vm611, %v2940, 0.0
    %2965 = vadd.xlane.f32.xlu0 %v2964
    %v2966 = vpop.xlane.xlu0 %2965
    %v2967 = vsel %vm611, %v2941, 0.0
    %2968 = vadd.xlane.f32.xlu0 %v2967
    %v2969 = vpop.xlane.xlu0 %2968
    %v2970 = vsel %vm611, %v2942, 0.0
    %2971 = vadd.xlane.f32.xlu0 %v2970
    %v2972 = vpop.xlane.xlu0 %2971
    %v2973 = vsel %vm611, %v2943, 0.0
    %2974 = vadd.xlane.f32.xlu0 %v2973
    %v2975 = vpop.xlane.xlu0 %2974
    %v2976 = vsel %vm611, %v2944, 0.0
    %2977 = vadd.xlane.f32.xlu0 %v2976
    %v2978 = vpop.xlane.xlu0 %2977
    %v2979 = vsel %vm611, %v2945, 0.0
    %2980 = vadd.xlane.f32.xlu0 %v2979
    %v2981 = vpop.xlane.xlu0 %2980
    %v2982 = vsel %vm611, %v2946, 0.0
    %2983 = vadd.xlane.f32.xlu0 %v2982
    %v2984 = vpop.xlane.xlu0 %2983
    %v2985 = vsel %vm611, %v2947, 0.0
    %2986 = vadd.xlane.f32.xlu0 %v2985
    %v2987 = vpop.xlane.xlu0 %2986
    %v2988 = vsel %vm611, %v2948, 0.0
    %2989 = vadd.xlane.f32.xlu0 %v2988
    %v2990 = vpop.xlane.xlu0 %2989
    %v2991 = vsel %vm611, %v2949, 0.0
    %2992 = vadd.xlane.f32.xlu0 %v2991
    %v2993 = vpop.xlane.xlu0 %2992
    %v2994 = vsel %vm611, %v2950, 0.0
    %2995 = vadd.xlane.f32.xlu0 %v2994
    %v2996 = vpop.xlane.xlu0 %2995
    %v2997 = vsel %vm611, %v2951, 0.0
    %2998 = vadd.xlane.f32.xlu0 %v2997
    %v2999 = vpop.xlane.xlu0 %2998
    %v3000 = vsel %vm611, %v2952, 0.0
    %3001 = vadd.xlane.f32.xlu0 %v3000
    %v3002 = vpop.xlane.xlu0 %3001
    %v3003 = vmul.f32 %v2957, %v741
    %v3004 = vmul.f32 %v2960, %v741
    %v3005 = vmul.f32 %v2963, %v741
    %v3006 = vmul.f32 %v2966, %v741
    %v3007 = vmul.f32 %v2969, %v741
    %v3008 = vmul.f32 %v2972, %v741
    %v3009 = vmul.f32 %v2975, %v741
    %v3010 = vmul.f32 %v2978, %v741
    %v3011 = vmul.f32 %v2981, %v741
    %v3012 = vmul.f32 %v2984, %v741
    %v3013 = vmul.f32 %v2987, %v741
    %v3014 = vmul.f32 %v2990, %v741
    %v3015 = vmul.f32 %v2993, %v741
    %v3016 = vmul.f32 %v2996, %v741
    %v3017 = vmul.f32 %v2999, %v741
    %v3018 = vmul.f32 %v3002, %v741
    %v3019 = vsub.f32 %v2937, %v3003
    %v3020 = vsub.f32 %v2938, %v3004
    %v3021 = vsub.f32 %v2939, %v3005
    %v3022 = vsub.f32 %v2940, %v3006
    %v3023 = vsub.f32 %v2941, %v3007
    %v3024 = vsub.f32 %v2942, %v3008
    %v3025 = vsub.f32 %v2943, %v3009
    %v3026 = vsub.f32 %v2944, %v3010
    %v3027 = vsub.f32 %v2945, %v3011
    %v3028 = vsub.f32 %v2946, %v3012
    %v3029 = vsub.f32 %v2947, %v3013
    %v3030 = vsub.f32 %v2948, %v3014
    %v3031 = vsub.f32 %v2949, %v3015
    %v3032 = vsub.f32 %v2950, %v3016
    %v3033 = vsub.f32 %v2951, %v3017
    %v3034 = vsub.f32 %v2952, %v3018
    %v3035 = vmul.f32 %v3019, %v3019
    %v3036 = vmul.f32 %v3020, %v3020
    %v3037 = vmul.f32 %v3021, %v3021
    %v3038 = vmul.f32 %v3022, %v3022
    %v3039 = vmul.f32 %v3023, %v3023
    %v3040 = vmul.f32 %v3024, %v3024
    %v3041 = vmul.f32 %v3025, %v3025
    %v3042 = vmul.f32 %v3026, %v3026
    %v3043 = vmul.f32 %v3027, %v3027
    %v3044 = vmul.f32 %v3028, %v3028
    %v3045 = vmul.f32 %v3029, %v3029
    %v3046 = vmul.f32 %v3030, %v3030
    %v3047 = vmul.f32 %v3031, %v3031
    %v3048 = vmul.f32 %v3032, %v3032
    %v3049 = vmul.f32 %v3033, %v3033
    %v3050 = vmul.f32 %v3034, %v3034
    %v3051 = vsel %vm611, %v3035, 0.0
    %3052 = vadd.xlane.f32.xlu0 %v3051
    %v3053 = vpop.xlane.xlu0 %3052
    %v3054 = vsel %vm611, %v3036, 0.0
    %3055 = vadd.xlane.f32.xlu0 %v3054
    %v3056 = vpop.xlane.xlu0 %3055
    %v3057 = vsel %vm611, %v3037, 0.0
    %3058 = vadd.xlane.f32.xlu0 %v3057
    %v3059 = vpop.xlane.xlu0 %3058
    %v3060 = vsel %vm611, %v3038, 0.0
    %3061 = vadd.xlane.f32.xlu0 %v3060
    %v3062 = vpop.xlane.xlu0 %3061
    %v3063 = vsel %vm611, %v3039, 0.0
    %3064 = vadd.xlane.f32.xlu0 %v3063
    %v3065 = vpop.xlane.xlu0 %3064
    %v3066 = vsel %vm611, %v3040, 0.0
    %3067 = vadd.xlane.f32.xlu0 %v3066
    %v3068 = vpop.xlane.xlu0 %3067
    %v3069 = vsel %vm611, %v3041, 0.0
    %3070 = vadd.xlane.f32.xlu0 %v3069
    %v3071 = vpop.xlane.xlu0 %3070
    %v3072 = vsel %vm611, %v3042, 0.0
    %3073 = vadd.xlane.f32.xlu0 %v3072
    %v3074 = vpop.xlane.xlu0 %3073
    %v3075 = vsel %vm611, %v3043, 0.0
    %3076 = vadd.xlane.f32.xlu0 %v3075
    %v3077 = vpop.xlane.xlu0 %3076
    %v3078 = vsel %vm611, %v3044, 0.0
    %3079 = vadd.xlane.f32.xlu0 %v3078
    %v3080 = vpop.xlane.xlu0 %3079
    %v3081 = vsel %vm611, %v3045, 0.0
    %3082 = vadd.xlane.f32.xlu0 %v3081
    %v3083 = vpop.xlane.xlu0 %3082
    %v3084 = vsel %vm611, %v3046, 0.0
    %3085 = vadd.xlane.f32.xlu0 %v3084
    %v3086 = vpop.xlane.xlu0 %3085
    %v3087 = vsel %vm611, %v3047, 0.0
    %3088 = vadd.xlane.f32.xlu0 %v3087
    %v3089 = vpop.xlane.xlu0 %3088
    %v3090 = vsel %vm611, %v3048, 0.0
    %3091 = vadd.xlane.f32.xlu0 %v3090
    %v3092 = vpop.xlane.xlu0 %3091
    %v3093 = vsel %vm611, %v3049, 0.0
    %3094 = vadd.xlane.f32.xlu0 %v3093
    %v3095 = vpop.xlane.xlu0 %3094
    %v3096 = vsel %vm611, %v3050, 0.0
    %3097 = vadd.xlane.f32.xlu0 %v3096
    %v3098 = vpop.xlane.xlu0 %3097
    %v3099 = vmul.f32 %v3053, %v741
    %v3100 = vmul.f32 %v3056, %v741
    %v3101 = vmul.f32 %v3059, %v741
    %v3102 = vmul.f32 %v3062, %v741
    %v3103 = vmul.f32 %v3065, %v741
    %v3104 = vmul.f32 %v3068, %v741
    %v3105 = vmul.f32 %v3071, %v741
    %v3106 = vmul.f32 %v3074, %v741
    %v3107 = vmul.f32 %v3077, %v741
    %v3108 = vmul.f32 %v3080, %v741
    %v3109 = vmul.f32 %v3083, %v741
    %v3110 = vmul.f32 %v3086, %v741
    %v3111 = vmul.f32 %v3089, %v741
    %v3112 = vmul.f32 %v3092, %v741
    %v3113 = vmul.f32 %v3095, %v741
    %v3114 = vmul.f32 %v3098, %v741
    %v3115 = vadd.f32 %v3099, 1e-05
    %v3116 = vadd.f32 %v3100, 1e-05
    %v3117 = vadd.f32 %v3101, 1e-05
    %v3118 = vadd.f32 %v3102, 1e-05
    %v3119 = vadd.f32 %v3103, 1e-05
    %v3120 = vadd.f32 %v3104, 1e-05
    %v3121 = vadd.f32 %v3105, 1e-05
    %v3122 = vadd.f32 %v3106, 1e-05
    %v3123 = vadd.f32 %v3107, 1e-05
    %v3124 = vadd.f32 %v3108, 1e-05
    %v3125 = vadd.f32 %v3109, 1e-05
    %v3126 = vadd.f32 %v3110, 1e-05
    %v3127 = vadd.f32 %v3111, 1e-05
    %v3128 = vadd.f32 %v3112, 1e-05
    %v3129 = vadd.f32 %v3113, 1e-05
    %v3130 = vadd.f32 %v3114, 1e-05
    %v3131 = vrsqrt.pop %v3115
    %v3132 = vmul.f32 %v3131, %v3115
    %v3133 = vmul.f32 %v3132, %v3131
    %v3134 = vmul.f32 0.5, %v3133
    %v3135 = vsub.f32 1.5, %v3134
    %v3136 = vmul.f32 %v3131, %v3135
    %vm3137 = vweird.f32 %v3115
    %vm3138 = vweird.f32 %v3131
    %vm3139 = vmor %vm3137, %vm3138
    %v3140 = vsel %vm3139, %v3131, %v3136
    %v3141 = vrsqrt.pop %v3116
    %v3142 = vmul.f32 %v3141, %v3116
    %v3143 = vmul.f32 %v3142, %v3141
    %v3144 = vmul.f32 0.5, %v3143
    %v3145 = vsub.f32 1.5, %v3144
    %v3146 = vmul.f32 %v3141, %v3145
    %vm3147 = vweird.f32 %v3116
    %vm3148 = vweird.f32 %v3141
    %vm3149 = vmor %vm3147, %vm3148
    %v3150 = vsel %vm3149, %v3141, %v3146
    %v3151 = vrsqrt.pop %v3117
    %v3152 = vmul.f32 %v3151, %v3117
    %v3153 = vmul.f32 %v3152, %v3151
    %v3154 = vmul.f32 0.5, %v3153
    %v3155 = vsub.f32 1.5, %v3154
    %v3156 = vmul.f32 %v3151, %v3155
    %vm3157 = vweird.f32 %v3117
    %vm3158 = vweird.f32 %v3151
    %vm3159 = vmor %vm3157, %vm3158
    %v3160 = vsel %vm3159, %v3151, %v3156
    %v3161 = vrsqrt.pop %v3118
    %v3162 = vmul.f32 %v3161, %v3118
    %v3163 = vmul.f32 %v3162, %v3161
    %v3164 = vmul.f32 0.5, %v3163
    %v3165 = vsub.f32 1.5, %v3164
    %v3166 = vmul.f32 %v3161, %v3165
    %vm3167 = vweird.f32 %v3118
    %vm3168 = vweird.f32 %v3161
    %vm3169 = vmor %vm3167, %vm3168
    %v3170 = vsel %vm3169, %v3161, %v3166
    %v3171 = vrsqrt.pop %v3119
    %v3172 = vmul.f32 %v3171, %v3119
    %v3173 = vmul.f32 %v3172, %v3171
    %v3174 = vmul.f32 0.5, %v3173
    %v3175 = vsub.f32 1.5, %v3174
    %v3176 = vmul.f32 %v3171, %v3175
    %vm3177 = vweird.f32 %v3119
    %vm3178 = vweird.f32 %v3171
    %vm3179 = vmor %vm3177, %vm3178
    %v3180 = vsel %vm3179, %v3171, %v3176
    %v3181 = vrsqrt.pop %v3120
    %v3182 = vmul.f32 %v3181, %v3120
    %v3183 = vmul.f32 %v3182, %v3181
    %v3184 = vmul.f32 0.5, %v3183
    %v3185 = vsub.f32 1.5, %v3184
    %v3186 = vmul.f32 %v3181, %v3185
    %vm3187 = vweird.f32 %v3120
    %vm3188 = vweird.f32 %v3181
    %vm3189 = vmor %vm3187, %vm3188
    %v3190 = vsel %vm3189, %v3181, %v3186
    %v3191 = vrsqrt.pop %v3121
    %v3192 = vmul.f32 %v3191, %v3121
    %v3193 = vmul.f32 %v3192, %v3191
    %v3194 = vmul.f32 0.5, %v3193
    %v3195 = vsub.f32 1.5, %v3194
    %v3196 = vmul.f32 %v3191, %v3195
    %vm3197 = vweird.f32 %v3121
    %vm3198 = vweird.f32 %v3191
    %vm3199 = vmor %vm3197, %vm3198
    %v3200 = vsel %vm3199, %v3191, %v3196
    %v3201 = vrsqrt.pop %v3122
    %v3202 = vmul.f32 %v3201, %v3122
    %v3203 = vmul.f32 %v3202, %v3201
    %v3204 = vmul.f32 0.5, %v3203
    %v3205 = vsub.f32 1.5, %v3204
    %v3206 = vmul.f32 %v3201, %v3205
    %vm3207 = vweird.f32 %v3122
    %vm3208 = vweird.f32 %v3201
    %vm3209 = vmor %vm3207, %vm3208
    %v3210 = vsel %vm3209, %v3201, %v3206
    %v3211 = vrsqrt.pop %v3123
    %v3212 = vmul.f32 %v3211, %v3123
    %v3213 = vmul.f32 %v3212, %v3211
    %v3214 = vmul.f32 0.5, %v3213
    %v3215 = vsub.f32 1.5, %v3214
    %v3216 = vmul.f32 %v3211, %v3215
    %vm3217 = vweird.f32 %v3123
    %vm3218 = vweird.f32 %v3211
    %vm3219 = vmor %vm3217, %vm3218
    %v3220 = vsel %vm3219, %v3211, %v3216
    %v3221 = vrsqrt.pop %v3124
    %v3222 = vmul.f32 %v3221, %v3124
    %v3223 = vmul.f32 %v3222, %v3221
    %v3224 = vmul.f32 0.5, %v3223
    %v3225 = vsub.f32 1.5, %v3224
    %v3226 = vmul.f32 %v3221, %v3225
    %vm3227 = vweird.f32 %v3124
    %vm3228 = vweird.f32 %v3221
    %vm3229 = vmor %vm3227, %vm3228
    %v3230 = vsel %vm3229, %v3221, %v3226
    %v3231 = vrsqrt.pop %v3125
    %v3232 = vmul.f32 %v3231, %v3125
    %v3233 = vmul.f32 %v3232, %v3231
    %v3234 = vmul.f32 0.5, %v3233
    %v3235 = vsub.f32 1.5, %v3234
    %v3236 = vmul.f32 %v3231, %v3235
    %vm3237 = vweird.f32 %v3125
    %vm3238 = vweird.f32 %v3231
    %vm3239 = vmor %vm3237, %vm3238
    %v3240 = vsel %vm3239, %v3231, %v3236
    %v3241 = vrsqrt.pop %v3126
    %v3242 = vmul.f32 %v3241, %v3126
    %v3243 = vmul.f32 %v3242, %v3241
    %v3244 = vmul.f32 0.5, %v3243
    %v3245 = vsub.f32 1.5, %v3244
    %v3246 = vmul.f32 %v3241, %v3245
    %vm3247 = vweird.f32 %v3126
    %vm3248 = vweird.f32 %v3241
    %vm3249 = vmor %vm3247, %vm3248
    %v3250 = vsel %vm3249, %v3241, %v3246
    %v3251 = vrsqrt.pop %v3127
    %v3252 = vmul.f32 %v3251, %v3127
    %v3253 = vmul.f32 %v3252, %v3251
    %v3254 = vmul.f32 0.5, %v3253
    %v3255 = vsub.f32 1.5, %v3254
    %v3256 = vmul.f32 %v3251, %v3255
    %vm3257 = vweird.f32 %v3127
    %vm3258 = vweird.f32 %v3251
    %vm3259 = vmor %vm3257, %vm3258
    %v3260 = vsel %vm3259, %v3251, %v3256
    %v3261 = vrsqrt.pop %v3128
    %v3262 = vmul.f32 %v3261, %v3128
    %v3263 = vmul.f32 %v3262, %v3261
    %v3264 = vmul.f32 0.5, %v3263
    %v3265 = vsub.f32 1.5, %v3264
    %v3266 = vmul.f32 %v3261, %v3265
    %vm3267 = vweird.f32 %v3128
    %vm3268 = vweird.f32 %v3261
    %vm3269 = vmor %vm3267, %vm3268
    %v3270 = vsel %vm3269, %v3261, %v3266
    %v3271 = vrsqrt.pop %v3129
    %v3272 = vmul.f32 %v3271, %v3129
    %v3273 = vmul.f32 %v3272, %v3271
    %v3274 = vmul.f32 0.5, %v3273
    %v3275 = vsub.f32 1.5, %v3274
    %v3276 = vmul.f32 %v3271, %v3275
    %vm3277 = vweird.f32 %v3129
    %vm3278 = vweird.f32 %v3271
    %vm3279 = vmor %vm3277, %vm3278
    %v3280 = vsel %vm3279, %v3271, %v3276
    %v3281 = vrsqrt.pop %v3130
    %v3282 = vmul.f32 %v3281, %v3130
    %v3283 = vmul.f32 %v3282, %v3281
    %v3284 = vmul.f32 0.5, %v3283
    %v3285 = vsub.f32 1.5, %v3284
    %v3286 = vmul.f32 %v3281, %v3285
    %vm3287 = vweird.f32 %v3130
    %vm3288 = vweird.f32 %v3281
    %vm3289 = vmor %vm3287, %vm3288
    %v3290 = vsel %vm3289, %v3281, %v3286
    %v3291 = vmul.f32 %v3019, %v3140
    %v3292 = vmul.f32 %v3020, %v3150
    %v3293 = vmul.f32 %v3021, %v3160
    %v3294 = vmul.f32 %v3022, %v3170
    %v3295 = vmul.f32 %v3023, %v3180
    %v3296 = vmul.f32 %v3024, %v3190
    %v3297 = vmul.f32 %v3025, %v3200
    %v3298 = vmul.f32 %v3026, %v3210
    %v3299 = vmul.f32 %v3027, %v3220
    %v3300 = vmul.f32 %v3028, %v3230
    %v3301 = vmul.f32 %v3029, %v3240
    %v3302 = vmul.f32 %v3030, %v3250
    %v3303 = vmul.f32 %v3031, %v3260
    %v3304 = vmul.f32 %v3032, %v3270
    %v3305 = vmul.f32 %v3033, %v3280
    %v3306 = vmul.f32 %v3034, %v3290
    %v3308 = vperm.slane %v2953, 0
    %v3310 = vmul.f32 %v3291, %v3308
    %v3311 = vmul.f32 %v3292, %v3308
    %v3312 = vmul.f32 %v3293, %v3308
    %v3313 = vmul.f32 %v3294, %v3308
    %v3314 = vmul.f32 %v3295, %v3308
    %v3315 = vmul.f32 %v3296, %v3308
    %v3316 = vmul.f32 %v3297, %v3308
    %v3317 = vmul.f32 %v3298, %v3308
    %v3318 = vmul.f32 %v3299, %v3308
    %v3319 = vmul.f32 %v3300, %v3308
    %v3320 = vmul.f32 %v3301, %v3308
    %v3321 = vmul.f32 %v3302, %v3308
    %v3322 = vmul.f32 %v3303, %v3308
    %v3323 = vmul.f32 %v3304, %v3308
    %v3324 = vmul.f32 %v3305, %v3308
    %v3325 = vmul.f32 %v3306, %v3308
    %v3327 = vperm.slane %v2954, 0
    %v3329 = vadd.f32 %v3310, %v3327
    %v3330 = vadd.f32 %v3311, %v3327
    %v3331 = vadd.f32 %v3312, %v3327
    %v3332 = vadd.f32 %v3313, %v3327
    %v3333 = vadd.f32 %v3314, %v3327
    %v3334 = vadd.f32 %v3315, %v3327
    %v3335 = vadd.f32 %v3316, %v3327
    %v3336 = vadd.f32 %v3317, %v3327
    %v3337 = vadd.f32 %v3318, %v3327
    %v3338 = vadd.f32 %v3319, %v3327
    %v3339 = vadd.f32 %v3320, %v3327
    %v3340 = vadd.f32 %v3321, %v3327
    %v3341 = vadd.f32 %v3322, %v3327
    %v3342 = vadd.f32 %v3323, %v3327
    %v3343 = vadd.f32 %v3324, %v3327
    %v3344 = vadd.f32 %v3325, %v3327
    %v3345 = vld [vmem:[%s37] sm:$0xf]
    %v3346 = vld [vmem:[%s37 + $0x4] sm:$0xf]
    %v3347 = vpack.c.bf16 %v3330, %v3329
    %v3348 = vpack.c.bf16 %v3332, %v3331
    %v3349 = vpack.c.bf16 %v3334, %v3333
    %v3350 = vpack.c.bf16 %v3336, %v3335
    %v3351 = vpack.c.bf16 %v3338, %v3337
    %v3352 = vpack.c.bf16 %v3340, %v3339
    %v3353 = vpack.c.bf16 %v3342, %v3341
    %v3354 = vpack.c.bf16 %v3344, %v3343
    %v3355 = vld [vmem:[%s39] sm:$0x1]
    %v3357 = vperm.slane %v3355, 0
    %v3361 = vunpack.c.l.b16 %v3345
    %v3362 = vunpack.c.l.b16 %v3346
    %v3363 = vpack.c.b16 %v3362, %v3361
    %v3366 = vsel %vm611, %v3347, 0
    %v3369 = vsel %vm611, %v3348, 0
    %v3372 = vsel %vm611, %v3349, 0
    %v3375 = vsel %vm611, %v3350, 0
    %v3378 = vsel %vm611, %v3351, 0
    %v3381 = vsel %vm611, %v3352, 0
    %v3384 = vsel %vm611, %v3353, 0
    %v3387 = vsel %vm611, %v3354, 0
    %3389 = vmatpush.bf16.msra.mxu0 0
    %3390 = vmatpush.bf16.msra.mxu0 0
    %3391 = vmatpush.bf16.msra.mxu0 0
    %3392 = vmatpush.bf16.msra.mxu0 0
    %3393 = vmatpush.bf16.msra.mxu0 0
    %3394 = vmatpush.bf16.msra.mxu0 0
    %3395 = vmatpush.bf16.msra.mxu0 0
    %3396 = vmatpush.bf16.msra.mxu0 %v3363
    %3397 = vmatmul.bf16.gmra.mxu0 %v3366
    %v3398 = vpop.f32.mrf.mxu0
    %v3399 = vadd.f32 %v3357, %v3398
    %v3400 = vpop.f32.mrf.mxu0
    %v3401 = vadd.f32 %v3357, %v3400
    %3402 = vmatmul.bf16.gmra.mxu0 %v3369
    %v3403 = vpop.f32.mrf.mxu0
    %v3404 = vadd.f32 %v3357, %v3403
    %v3405 = vpop.f32.mrf.mxu0
    %v3406 = vadd.f32 %v3357, %v3405
    %3407 = vmatmul.bf16.gmra.mxu0 %v3372
    %v3408 = vpop.f32.mrf.mxu0
    %v3409 = vadd.f32 %v3357, %v3408
    %v3410 = vpop.f32.mrf.mxu0
    %v3411 = vadd.f32 %v3357, %v3410
    %3412 = vmatmul.bf16.gmra.mxu0 %v3375
    %v3413 = vpop.f32.mrf.mxu0
    %v3414 = vadd.f32 %v3357, %v3413
    %v3415 = vpop.f32.mrf.mxu0
    %v3416 = vadd.f32 %v3357, %v3415
    %3417 = vmatmul.bf16.gmra.mxu0 %v3378
    %v3418 = vpop.f32.mrf.mxu0
    %v3419 = vadd.f32 %v3357, %v3418
    %v3420 = vpop.f32.mrf.mxu0
    %v3421 = vadd.f32 %v3357, %v3420
    %3422 = vmatmul.bf16.gmra.mxu0 %v3381
    %v3423 = vpop.f32.mrf.mxu0
    %v3424 = vadd.f32 %v3357, %v3423
    %v3425 = vpop.f32.mrf.mxu0
    %v3426 = vadd.f32 %v3357, %v3425
    %3427 = vmatmul.bf16.gmra.mxu0 %v3384
    %v3428 = vpop.f32.mrf.mxu0
    %v3429 = vadd.f32 %v3357, %v3428
    %v3430 = vpop.f32.mrf.mxu0
    %v3431 = vadd.f32 %v3357, %v3430
    %3432 = vmatmul.bf16.gmra.mxu0 %v3387
    %v3433 = vpop.f32.mrf.mxu0
    %v3434 = vadd.f32 %v3357, %v3433
    %v3435 = vpop.f32.mrf.mxu0
    %v3436 = vadd.f32 %v3357, %v3435
    %3437 = vdwg.mxu0
    %v3438 = vmul.f32 %v3399, 0.35355338
    %v3439 = vmul.f32 %v3401, 0.35355338
    %v3440 = vmul.f32 %v3404, 0.35355338
    %v3441 = vmul.f32 %v3406, 0.35355338
    %v3442 = vmul.f32 %v3409, 0.35355338
    %v3443 = vmul.f32 %v3411, 0.35355338
    %v3444 = vmul.f32 %v3414, 0.35355338
    %v3445 = vmul.f32 %v3416, 0.35355338
    %v3446 = vmul.f32 %v3419, 0.35355338
    %v3447 = vmul.f32 %v3421, 0.35355338
    %v3448 = vmul.f32 %v3424, 0.35355338
    %v3449 = vmul.f32 %v3426, 0.35355338
    %v3450 = vmul.f32 %v3429, 0.35355338
    %v3451 = vmul.f32 %v3431, 0.35355338
    %v3452 = vmul.f32 %v3434, 0.35355338
    %v3453 = vmul.f32 %v3436, 0.35355338
    %v3454 = vpack.c.bf16 %v3439, %v3438
    %v3455 = vpack.c.bf16 %v3441, %v3440
    %v3456 = vpack.c.bf16 %v3443, %v3442
    %v3457 = vpack.c.bf16 %v3445, %v3444
    %v3458 = vpack.c.bf16 %v3447, %v3446
    %v3459 = vpack.c.bf16 %v3449, %v3448
    %v3460 = vpack.c.bf16 %v3451, %v3450
    %v3461 = vpack.c.bf16 %v3453, %v3452
    %v3462 = vpack.c.bf16 %v3401, %v3399
    %v3463 = vpack.c.bf16 %v3406, %v3404
    %v3464 = vpack.c.bf16 %v3411, %v3409
    %v3465 = vpack.c.bf16 %v3416, %v3414
    %v3466 = vpack.c.bf16 %v3421, %v3419
    %v3467 = vpack.c.bf16 %v3426, %v3424
    %v3468 = vpack.c.bf16 %v3431, %v3429
    %v3469 = vpack.c.bf16 %v3436, %v3434
    %v3470 = vld [vmem:[%s45] sm:$0xf]
    %v3471 = vld [vmem:[%s45 + $0x4] sm:$0xf]
    %v3472 = vld [vmem:[%s45 + $0x8] sm:$0xf]
    %v3473 = vld [vmem:[%s45 + $0xc] sm:$0xf]
    %v3474 = vld [vmem:[%s45 + $0x10] sm:$0xf]
    %v3475 = vld [vmem:[%s45 + $0x14] sm:$0xf]
    %v3476 = vld [vmem:[%s45 + $0x18] sm:$0xf]
    %v3477 = vld [vmem:[%s45 + $0x1c] sm:$0xf]
    %v3478 = vld [vmem:[%s45 + $0x20] sm:$0xf]
    %v3479 = vld [vmem:[%s45 + $0x24] sm:$0xf]
    %v3480 = vld [vmem:[%s45 + $0x28] sm:$0xf]
    %v3481 = vld [vmem:[%s45 + $0x2c] sm:$0xf]
    %v3482 = vld [vmem:[%s45 + $0x30] sm:$0xf]
    %v3483 = vld [vmem:[%s45 + $0x34] sm:$0xf]
    %v3484 = vld [vmem:[%s45 + $0x38] sm:$0xf]
    %v3485 = vld [vmem:[%s45 + $0x3c] sm:$0xf]
    %v3486 = vunpack.c.l.bf16 %v3470
    %v3487 = vunpack.c.l.bf16 %v3471
    %v3488 = vunpack.c.l.bf16 %v3472
    %v3489 = vunpack.c.l.bf16 %v3473
    %v3490 = vunpack.c.l.bf16 %v3474
    %v3491 = vunpack.c.l.bf16 %v3475
    %v3492 = vunpack.c.l.bf16 %v3476
    %v3493 = vunpack.c.l.bf16 %v3477
    %v3494 = vunpack.c.l.bf16 %v3478
    %v3495 = vunpack.c.l.bf16 %v3479
    %v3496 = vunpack.c.l.bf16 %v3480
    %v3497 = vunpack.c.l.bf16 %v3481
    %v3498 = vunpack.c.l.bf16 %v3482
    %v3499 = vunpack.c.l.bf16 %v3483
    %v3500 = vunpack.c.l.bf16 %v3484
    %v3501 = vunpack.c.l.bf16 %v3485
    %3510 = vrot.lane.b32.xlu0 %v3462, 112
    %v3511 = vpop.permute.xlu0 %3510
    %3512 = vrot.lane.b32.xlu0 %v3463, 112
    %v3513 = vpop.permute.xlu0 %3512
    %3514 = vrot.lane.b32.xlu0 %v3464, 112
    %v3515 = vpop.permute.xlu0 %3514
    %3516 = vrot.lane.b32.xlu0 %v3465, 112
    %v3517 = vpop.permute.xlu0 %3516
    %3518 = vrot.lane.b32.xlu0 %v3466, 112
    %v3519 = vpop.permute.xlu0 %3518
    %3520 = vrot.lane.b32.xlu0 %v3467, 112
    %v3521 = vpop.permute.xlu0 %3520
    %3522 = vrot.lane.b32.xlu0 %v3468, 112
    %v3523 = vpop.permute.xlu0 %3522
    %3524 = vrot.lane.b32.xlu0 %v3469, 112
    %v3525 = vpop.permute.xlu0 %3524
    %v3527 = vsel %vm1265, %v3454, 0
    %v3530 = vsel %vm1265, %v3455, 0
    %v3533 = vsel %vm1265, %v3456, 0
    %v3536 = vsel %vm1265, %v3457, 0
    %v3539 = vsel %vm1265, %v3458, 0
    %v3542 = vsel %vm1265, %v3459, 0
    %v3545 = vsel %vm1265, %v3460, 0
    %v3548 = vsel %vm1265, %v3461, 0
    %v3551 = vsel %vm1265, %v3511, 0
    %v3554 = vsel %vm1265, %v3513, 0
    %v3557 = vsel %vm1265, %v3515, 0
    %v3560 = vsel %vm1265, %v3517, 0
    %v3563 = vsel %vm1265, %v3519, 0
    %v3566 = vsel %vm1265, %v3521, 0
    %v3569 = vsel %vm1265, %v3523, 0
    %v3572 = vsel %vm1265, %v3525, 0
    %3574 = vmatpush.bf16.xpose.msra.mxu0 %v3572
    %3575 = vmatpush.bf16.xpose.msra.mxu0 %v3569
    %3576 = vmatpush.bf16.xpose.msra.mxu0 %v3566
    %3577 = vmatpush.bf16.xpose.msra.mxu0 %v3563
    %3578 = vmatpush.bf16.xpose.msra.mxu0 %v3560
    %3579 = vmatpush.bf16.xpose.msra.mxu0 %v3557
    %3580 = vmatpush.bf16.xpose.msra.mxu0 %v3554
    %3581 = vmatpush.bf16.xpose.msra.mxu0 %v3551
    %3582 = vmatmul.bf16.gmra.mxu0 %v3527
    %v3583 = vpop.f32.mrf.mxu0
    %v3584 = vadd.f32 %v3486, %v3583
    %v3585 = vpop.f32.mrf.mxu0
    %v3586 = vadd.f32 %v3487, %v3585
    %3587 = vmatmul.bf16.gmra.mxu0 %v3530
    %v3588 = vpop.f32.mrf.mxu0
    %v3589 = vadd.f32 %v3488, %v3588
    %v3590 = vpop.f32.mrf.mxu0
    %v3591 = vadd.f32 %v3489, %v3590
    %3592 = vmatmul.bf16.gmra.mxu0 %v3533
    %v3593 = vpop.f32.mrf.mxu0
    %v3594 = vadd.f32 %v3490, %v3593
    %v3595 = vpop.f32.mrf.mxu0
    %v3596 = vadd.f32 %v3491, %v3595
    %3597 = vmatmul.bf16.gmra.mxu0 %v3536
    %v3598 = vpop.f32.mrf.mxu0
    %v3599 = vadd.f32 %v3492, %v3598
    %v3600 = vpop.f32.mrf.mxu0
    %v3601 = vadd.f32 %v3493, %v3600
    %3602 = vmatmul.bf16.gmra.mxu0 %v3539
    %v3603 = vpop.f32.mrf.mxu0
    %v3604 = vadd.f32 %v3494, %v3603
    %v3605 = vpop.f32.mrf.mxu0
    %v3606 = vadd.f32 %v3495, %v3605
    %3607 = vmatmul.bf16.gmra.mxu0 %v3542
    %v3608 = vpop.f32.mrf.mxu0
    %v3609 = vadd.f32 %v3496, %v3608
    %v3610 = vpop.f32.mrf.mxu0
    %v3611 = vadd.f32 %v3497, %v3610
    %3612 = vmatmul.bf16.gmra.mxu0 %v3545
    %v3613 = vpop.f32.mrf.mxu0
    %v3614 = vadd.f32 %v3498, %v3613
    %v3615 = vpop.f32.mrf.mxu0
    %v3616 = vadd.f32 %v3499, %v3615
    %3617 = vmatmul.bf16.gmra.mxu0 %v3548
    %v3618 = vpop.f32.mrf.mxu0
    %v3619 = vadd.f32 %v3500, %v3618
    %v3620 = vpop.f32.mrf.mxu0
    %v3621 = vadd.f32 %v3501, %v3620
    %3622 = vdwg.mxu0
    %3623 = vmax.xlane.f32.xlu0 %v3584
    %v3624 = vpop.xlane.xlu0 %3623
    %3625 = vmax.xlane.f32.xlu0 %v3586
    %v3626 = vpop.xlane.xlu0 %3625
    %3627 = vmax.xlane.f32.xlu0 %v3589
    %v3628 = vpop.xlane.xlu0 %3627
    %3629 = vmax.xlane.f32.xlu0 %v3591
    %v3630 = vpop.xlane.xlu0 %3629
    %3631 = vmax.xlane.f32.xlu0 %v3594
    %v3632 = vpop.xlane.xlu0 %3631
    %3633 = vmax.xlane.f32.xlu0 %v3596
    %v3634 = vpop.xlane.xlu0 %3633
    %3635 = vmax.xlane.f32.xlu0 %v3599
    %v3636 = vpop.xlane.xlu0 %3635
    %3637 = vmax.xlane.f32.xlu0 %v3601
    %v3638 = vpop.xlane.xlu0 %3637
    %3639 = vmax.xlane.f32.xlu0 %v3604
    %v3640 = vpop.xlane.xlu0 %3639
    %3641 = vmax.xlane.f32.xlu0 %v3606
    %v3642 = vpop.xlane.xlu0 %3641
    %3643 = vmax.xlane.f32.xlu0 %v3609
    %v3644 = vpop.xlane.xlu0 %3643
    %3645 = vmax.xlane.f32.xlu0 %v3611
    %v3646 = vpop.xlane.xlu0 %3645
    %3647 = vmax.xlane.f32.xlu0 %v3614
    %v3648 = vpop.xlane.xlu0 %3647
    %3649 = vmax.xlane.f32.xlu0 %v3616
    %v3650 = vpop.xlane.xlu0 %3649
    %3651 = vmax.xlane.f32.xlu0 %v3619
    %v3652 = vpop.xlane.xlu0 %3651
    %3653 = vmax.xlane.f32.xlu0 %v3621
    %v3654 = vpop.xlane.xlu0 %3653
    %v3655 = vsub.f32 %v3584, %v3624
    %v3656 = vsub.f32 %v3586, %v3626
    %v3657 = vsub.f32 %v3589, %v3628
    %v3658 = vsub.f32 %v3591, %v3630
    %v3659 = vsub.f32 %v3594, %v3632
    %v3660 = vsub.f32 %v3596, %v3634
    %v3661 = vsub.f32 %v3599, %v3636
    %v3662 = vsub.f32 %v3601, %v3638
    %v3663 = vsub.f32 %v3604, %v3640
    %v3664 = vsub.f32 %v3606, %v3642
    %v3665 = vsub.f32 %v3609, %v3644
    %v3666 = vsub.f32 %v3611, %v3646
    %v3667 = vsub.f32 %v3614, %v3648
    %v3668 = vsub.f32 %v3616, %v3650
    %v3669 = vsub.f32 %v3619, %v3652
    %v3670 = vsub.f32 %v3621, %v3654
    %v3671 = vmul.f32 %v3655, 1.442695
    %v3672 = vpow.pop %v3671
    %v3673 = vmul.f32 %v3656, 1.442695
    %v3674 = vpow.pop %v3673
    %v3675 = vmul.f32 %v3657, 1.442695
    %v3676 = vpow.pop %v3675
    %v3677 = vmul.f32 %v3658, 1.442695
    %v3678 = vpow.pop %v3677
    %v3679 = vmul.f32 %v3659, 1.442695
    %v3680 = vpow.pop %v3679
    %v3681 = vmul.f32 %v3660, 1.442695
    %v3682 = vpow.pop %v3681
    %v3683 = vmul.f32 %v3661, 1.442695
    %v3684 = vpow.pop %v3683
    %v3685 = vmul.f32 %v3662, 1.442695
    %v3686 = vpow.pop %v3685
    %v3687 = vmul.f32 %v3663, 1.442695
    %v3688 = vpow.pop %v3687
    %v3689 = vmul.f32 %v3664, 1.442695
    %v3690 = vpow.pop %v3689
    %v3691 = vmul.f32 %v3665, 1.442695
    %v3692 = vpow.pop %v3691
    %v3693 = vmul.f32 %v3666, 1.442695
    %v3694 = vpow.pop %v3693
    %v3695 = vmul.f32 %v3667, 1.442695
    %v3696 = vpow.pop %v3695
    %v3697 = vmul.f32 %v3668, 1.442695
    %v3698 = vpow.pop %v3697
    %v3699 = vmul.f32 %v3669, 1.442695
    %v3700 = vpow.pop %v3699
    %v3701 = vmul.f32 %v3670, 1.442695
    %v3702 = vpow.pop %v3701
    %3703 = vadd.xlane.f32.xlu0 %v3672
    %v3704 = vpop.xlane.xlu0 %3703
    %3705 = vadd.xlane.f32.xlu0 %v3674
    %v3706 = vpop.xlane.xlu0 %3705
    %3707 = vadd.xlane.f32.xlu0 %v3676
    %v3708 = vpop.xlane.xlu0 %3707
    %3709 = vadd.xlane.f32.xlu0 %v3678
    %v3710 = vpop.xlane.xlu0 %3709
    %3711 = vadd.xlane.f32.xlu0 %v3680
    %v3712 = vpop.xlane.xlu0 %3711
    %3713 = vadd.xlane.f32.xlu0 %v3682
    %v3714 = vpop.xlane.xlu0 %3713
    %3715 = vadd.xlane.f32.xlu0 %v3684
    %v3716 = vpop.xlane.xlu0 %3715
    %3717 = vadd.xlane.f32.xlu0 %v3686
    %v3718 = vpop.xlane.xlu0 %3717
    %3719 = vadd.xlane.f32.xlu0 %v3688
    %v3720 = vpop.xlane.xlu0 %3719
    %3721 = vadd.xlane.f32.xlu0 %v3690
    %v3722 = vpop.xlane.xlu0 %3721
    %3723 = vadd.xlane.f32.xlu0 %v3692
    %v3724 = vpop.xlane.xlu0 %3723
    %3725 = vadd.xlane.f32.xlu0 %v3694
    %v3726 = vpop.xlane.xlu0 %3725
    %3727 = vadd.xlane.f32.xlu0 %v3696
    %v3728 = vpop.xlane.xlu0 %3727
    %3729 = vadd.xlane.f32.xlu0 %v3698
    %v3730 = vpop.xlane.xlu0 %3729
    %3731 = vadd.xlane.f32.xlu0 %v3700
    %v3732 = vpop.xlane.xlu0 %3731
    %3733 = vadd.xlane.f32.xlu0 %v3702
    %v3734 = vpop.xlane.xlu0 %3733
    %v3735 = vrcp.pop %v3704
    %v3736 = vrcp.pop %v3706
    %v3737 = vrcp.pop %v3708
    %v3738 = vrcp.pop %v3710
    %v3739 = vrcp.pop %v3712
    %v3740 = vrcp.pop %v3714
    %v3741 = vrcp.pop %v3716
    %v3742 = vrcp.pop %v3718
    %v3743 = vrcp.pop %v3720
    %v3744 = vrcp.pop %v3722
    %v3745 = vrcp.pop %v3724
    %v3746 = vrcp.pop %v3726
    %v3747 = vrcp.pop %v3728
    %v3748 = vrcp.pop %v3730
    %v3749 = vrcp.pop %v3732
    %v3750 = vrcp.pop %v3734
    %v3751 = vmul.f32 %v3672, %v3735
    %v3752 = vmul.f32 %v3674, %v3736
    %v3753 = vmul.f32 %v3676, %v3737
    %v3754 = vmul.f32 %v3678, %v3738
    %v3755 = vmul.f32 %v3680, %v3739
    %v3756 = vmul.f32 %v3682, %v3740
    %v3757 = vmul.f32 %v3684, %v3741
    %v3758 = vmul.f32 %v3686, %v3742
    %v3759 = vmul.f32 %v3688, %v3743
    %v3760 = vmul.f32 %v3690, %v3744
    %v3761 = vmul.f32 %v3692, %v3745
    %v3762 = vmul.f32 %v3694, %v3746
    %v3763 = vmul.f32 %v3696, %v3747
    %v3764 = vmul.f32 %v3698, %v3748
    %v3765 = vmul.f32 %v3700, %v3749
    %v3766 = vmul.f32 %v3702, %v3750
    %v3767 = vpack.c.bf16 %v3752, %v3751
    %v3768 = vpack.c.bf16 %v3754, %v3753
    %v3769 = vpack.c.bf16 %v3756, %v3755
    %v3770 = vpack.c.bf16 %v3758, %v3757
    %v3771 = vpack.c.bf16 %v3760, %v3759
    %v3772 = vpack.c.bf16 %v3762, %v3761
    %v3773 = vpack.c.bf16 %v3764, %v3763
    %v3774 = vpack.c.bf16 %v3766, %v3765
    %3775 = vrot.lane.b32.xlu0 %v3462, 96
    %v3776 = vpop.permute.xlu0 %3775
    %3777 = vrot.lane.b32.xlu0 %v3463, 96
    %v3778 = vpop.permute.xlu0 %3777
    %3779 = vrot.lane.b32.xlu0 %v3464, 96
    %v3780 = vpop.permute.xlu0 %3779
    %3781 = vrot.lane.b32.xlu0 %v3465, 96
    %v3782 = vpop.permute.xlu0 %3781
    %3783 = vrot.lane.b32.xlu0 %v3466, 96
    %v3784 = vpop.permute.xlu0 %3783
    %3785 = vrot.lane.b32.xlu0 %v3467, 96
    %v3786 = vpop.permute.xlu0 %3785
    %3787 = vrot.lane.b32.xlu0 %v3468, 96
    %v3788 = vpop.permute.xlu0 %3787
    %3789 = vrot.lane.b32.xlu0 %v3469, 96
    %v3790 = vpop.permute.xlu0 %3789
    %3799 = vmatpush.bf16.msra.mxu0 %v3790
    %3800 = vmatpush.bf16.msra.mxu0 %v3788
    %3801 = vmatpush.bf16.msra.mxu0 %v3786
    %3802 = vmatpush.bf16.msra.mxu0 %v3784
    %3803 = vmatpush.bf16.msra.mxu0 %v3782
    %3804 = vmatpush.bf16.msra.mxu0 %v3780
    %3805 = vmatpush.bf16.msra.mxu0 %v3778
    %3806 = vmatpush.bf16.msra.mxu0 %v3776
    %3807 = vmatmul.bf16.gmra.mxu0 %v3767
    %v3808 = vpop.f32.mrf.mxu0
    %v3809 = vadd.f32 0.0, %v3808
    %v3810 = vpop.f32.mrf.mxu0
    %v3811 = vadd.f32 0.0, %v3810
    %3812 = vmatmul.bf16.gmra.mxu0 %v3768
    %v3813 = vpop.f32.mrf.mxu0
    %v3814 = vadd.f32 0.0, %v3813
    %v3815 = vpop.f32.mrf.mxu0
    %v3816 = vadd.f32 0.0, %v3815
    %3817 = vmatmul.bf16.gmra.mxu0 %v3769
    %v3818 = vpop.f32.mrf.mxu0
    %v3819 = vadd.f32 0.0, %v3818
    %v3820 = vpop.f32.mrf.mxu0
    %v3821 = vadd.f32 0.0, %v3820
    %3822 = vmatmul.bf16.gmra.mxu0 %v3770
    %v3823 = vpop.f32.mrf.mxu0
    %v3824 = vadd.f32 0.0, %v3823
    %v3825 = vpop.f32.mrf.mxu0
    %v3826 = vadd.f32 0.0, %v3825
    %3827 = vmatmul.bf16.gmra.mxu0 %v3771
    %v3828 = vpop.f32.mrf.mxu0
    %v3829 = vadd.f32 0.0, %v3828
    %v3830 = vpop.f32.mrf.mxu0
    %v3831 = vadd.f32 0.0, %v3830
    %3832 = vmatmul.bf16.gmra.mxu0 %v3772
    %v3833 = vpop.f32.mrf.mxu0
    %v3834 = vadd.f32 0.0, %v3833
    %v3835 = vpop.f32.mrf.mxu0
    %v3836 = vadd.f32 0.0, %v3835
    %3837 = vmatmul.bf16.gmra.mxu0 %v3773
    %v3838 = vpop.f32.mrf.mxu0
    %v3839 = vadd.f32 0.0, %v3838
    %v3840 = vpop.f32.mrf.mxu0
    %v3841 = vadd.f32 0.0, %v3840
    %3842 = vmatmul.bf16.gmra.mxu0 %v3774
    %v3843 = vpop.f32.mrf.mxu0
    %v3844 = vadd.f32 0.0, %v3843
    %v3845 = vpop.f32.mrf.mxu0
    %v3846 = vadd.f32 0.0, %v3845
    %3847 = vdwg.mxu0
    %v3848 = vld [vmem:[%s41] sm:$0xf]
    %v3849 = vpack.c.bf16 %v3811, %v3809
    %v3850 = vpack.c.bf16 %v3816, %v3814
    %v3851 = vpack.c.bf16 %v3821, %v3819
    %v3852 = vpack.c.bf16 %v3826, %v3824
    %v3853 = vpack.c.bf16 %v3831, %v3829
    %v3854 = vpack.c.bf16 %v3836, %v3834
    %v3855 = vpack.c.bf16 %v3841, %v3839
    %v3856 = vpack.c.bf16 %v3846, %v3844
    %s3857 = scalar_lea.vmem %s45, 64
    %v3858 = vld [vmem:[%s3857] sm:$0xf]
    %v3859 = vld [vmem:[%s3857 + $0x4] sm:$0xf]
    %v3860 = vld [vmem:[%s3857 + $0x8] sm:$0xf]
    %v3861 = vld [vmem:[%s3857 + $0xc] sm:$0xf]
    %v3862 = vld [vmem:[%s3857 + $0x10] sm:$0xf]
    %v3863 = vld [vmem:[%s3857 + $0x14] sm:$0xf]
    %v3864 = vld [vmem:[%s3857 + $0x18] sm:$0xf]
    %v3865 = vld [vmem:[%s3857 + $0x1c] sm:$0xf]
    %v3866 = vld [vmem:[%s3857 + $0x20] sm:$0xf]
    %v3867 = vld [vmem:[%s3857 + $0x24] sm:$0xf]
    %v3868 = vld [vmem:[%s3857 + $0x28] sm:$0xf]
    %v3869 = vld [vmem:[%s3857 + $0x2c] sm:$0xf]
    %v3870 = vld [vmem:[%s3857 + $0x30] sm:$0xf]
    %v3871 = vld [vmem:[%s3857 + $0x34] sm:$0xf]
    %v3872 = vld [vmem:[%s3857 + $0x38] sm:$0xf]
    %v3873 = vld [vmem:[%s3857 + $0x3c] sm:$0xf]
    %v3874 = vunpack.c.l.bf16 %v3858
    %v3875 = vunpack.c.l.bf16 %v3859
    %v3876 = vunpack.c.l.bf16 %v3860
    %v3877 = vunpack.c.l.bf16 %v3861
    %v3878 = vunpack.c.l.bf16 %v3862
    %v3879 = vunpack.c.l.bf16 %v3863
    %v3880 = vunpack.c.l.bf16 %v3864
    %v3881 = vunpack.c.l.bf16 %v3865
    %v3882 = vunpack.c.l.bf16 %v3866
    %v3883 = vunpack.c.l.bf16 %v3867
    %v3884 = vunpack.c.l.bf16 %v3868
    %v3885 = vunpack.c.l.bf16 %v3869
    %v3886 = vunpack.c.l.bf16 %v3870
    %v3887 = vunpack.c.l.bf16 %v3871
    %v3888 = vunpack.c.l.bf16 %v3872
    %v3889 = vunpack.c.l.bf16 %v3873
    %3898 = vrot.lane.b32.xlu0 %v3454, 120
    %v3899 = vpop.permute.xlu0 %3898
    %3900 = vrot.lane.b32.xlu0 %v3455, 120
    %v3901 = vpop.permute.xlu0 %3900
    %3902 = vrot.lane.b32.xlu0 %v3456, 120
    %v3903 = vpop.permute.xlu0 %3902
    %3904 = vrot.lane.b32.xlu0 %v3457, 120
    %v3905 = vpop.permute.xlu0 %3904
    %3906 = vrot.lane.b32.xlu0 %v3458, 120
    %v3907 = vpop.permute.xlu0 %3906
    %3908 = vrot.lane.b32.xlu0 %v3459, 120
    %v3909 = vpop.permute.xlu0 %3908
    %3910 = vrot.lane.b32.xlu0 %v3460, 120
    %v3911 = vpop.permute.xlu0 %3910
    %3912 = vrot.lane.b32.xlu0 %v3461, 120
    %v3913 = vpop.permute.xlu0 %3912
    %3914 = vrot.lane.b32.xlu0 %v3462, 104
    %v3915 = vpop.permute.xlu0 %3914
    %3916 = vrot.lane.b32.xlu0 %v3463, 104
    %v3917 = vpop.permute.xlu0 %3916
    %3918 = vrot.lane.b32.xlu0 %v3464, 104
    %v3919 = vpop.permute.xlu0 %3918
    %3920 = vrot.lane.b32.xlu0 %v3465, 104
    %v3921 = vpop.permute.xlu0 %3920
    %3922 = vrot.lane.b32.xlu0 %v3466, 104
    %v3923 = vpop.permute.xlu0 %3922
    %3924 = vrot.lane.b32.xlu0 %v3467, 104
    %v3925 = vpop.permute.xlu0 %3924
    %3926 = vrot.lane.b32.xlu0 %v3468, 104
    %v3927 = vpop.permute.xlu0 %3926
    %3928 = vrot.lane.b32.xlu0 %v3469, 104
    %v3929 = vpop.permute.xlu0 %3928
    %v3931 = vsel %vm1265, %v3899, 0
    %v3934 = vsel %vm1265, %v3901, 0
    %v3937 = vsel %vm1265, %v3903, 0
    %v3940 = vsel %vm1265, %v3905, 0
    %v3943 = vsel %vm1265, %v3907, 0
    %v3946 = vsel %vm1265, %v3909, 0
    %v3949 = vsel %vm1265, %v3911, 0
    %v3952 = vsel %vm1265, %v3913, 0
    %v3955 = vsel %vm1265, %v3915, 0
    %v3958 = vsel %vm1265, %v3917, 0
    %v3961 = vsel %vm1265, %v3919, 0
    %v3964 = vsel %vm1265, %v3921, 0
    %v3967 = vsel %vm1265, %v3923, 0
    %v3970 = vsel %vm1265, %v3925, 0
    %v3973 = vsel %vm1265, %v3927, 0
    %v3976 = vsel %vm1265, %v3929, 0
    %3978 = vmatpush.bf16.xpose.msra.mxu0 %v3976
    %3979 = vmatpush.bf16.xpose.msra.mxu0 %v3973
    %3980 = vmatpush.bf16.xpose.msra.mxu0 %v3970
    %3981 = vmatpush.bf16.xpose.msra.mxu0 %v3967
    %3982 = vmatpush.bf16.xpose.msra.mxu0 %v3964
    %3983 = vmatpush.bf16.xpose.msra.mxu0 %v3961
    %3984 = vmatpush.bf16.xpose.msra.mxu0 %v3958
    %3985 = vmatpush.bf16.xpose.msra.mxu0 %v3955
    %3986 = vmatmul.bf16.gmra.mxu0 %v3931
    %v3987 = vpop.f32.mrf.mxu0
    %v3988 = vadd.f32 %v3874, %v3987
    %v3989 = vpop.f32.mrf.mxu0
    %v3990 = vadd.f32 %v3875, %v3989
    %3991 = vmatmul.bf16.gmra.mxu0 %v3934
    %v3992 = vpop.f32.mrf.mxu0
    %v3993 = vadd.f32 %v3876, %v3992
    %v3994 = vpop.f32.mrf.mxu0
    %v3995 = vadd.f32 %v3877, %v3994
    %3996 = vmatmul.bf16.gmra.mxu0 %v3937
    %v3997 = vpop.f32.mrf.mxu0
    %v3998 = vadd.f32 %v3878, %v3997
    %v3999 = vpop.f32.mrf.mxu0
    %v4000 = vadd.f32 %v3879, %v3999
    %4001 = vmatmul.bf16.gmra.mxu0 %v3940
    %v4002 = vpop.f32.mrf.mxu0
    %v4003 = vadd.f32 %v3880, %v4002
    %v4004 = vpop.f32.mrf.mxu0
    %v4005 = vadd.f32 %v3881, %v4004
    %4006 = vmatmul.bf16.gmra.mxu0 %v3943
    %v4007 = vpop.f32.mrf.mxu0
    %v4008 = vadd.f32 %v3882, %v4007
    %v4009 = vpop.f32.mrf.mxu0
    %v4010 = vadd.f32 %v3883, %v4009
    %4011 = vmatmul.bf16.gmra.mxu0 %v3946
    %v4012 = vpop.f32.mrf.mxu0
    %v4013 = vadd.f32 %v3884, %v4012
    %v4014 = vpop.f32.mrf.mxu0
    %v4015 = vadd.f32 %v3885, %v4014
    %4016 = vmatmul.bf16.gmra.mxu0 %v3949
    %v4017 = vpop.f32.mrf.mxu0
    %v4018 = vadd.f32 %v3886, %v4017
    %v4019 = vpop.f32.mrf.mxu0
    %v4020 = vadd.f32 %v3887, %v4019
    %4021 = vmatmul.bf16.gmra.mxu0 %v3952
    %v4022 = vpop.f32.mrf.mxu0
    %v4023 = vadd.f32 %v3888, %v4022
    %v4024 = vpop.f32.mrf.mxu0
    %v4025 = vadd.f32 %v3889, %v4024
    %4026 = vdwg.mxu0
    %4027 = vmax.xlane.f32.xlu0 %v3988
    %v4028 = vpop.xlane.xlu0 %4027
    %4029 = vmax.xlane.f32.xlu0 %v3990
    %v4030 = vpop.xlane.xlu0 %4029
    %4031 = vmax.xlane.f32.xlu0 %v3993
    %v4032 = vpop.xlane.xlu0 %4031
    %4033 = vmax.xlane.f32.xlu0 %v3995
    %v4034 = vpop.xlane.xlu0 %4033
    %4035 = vmax.xlane.f32.xlu0 %v3998
    %v4036 = vpop.xlane.xlu0 %4035
    %4037 = vmax.xlane.f32.xlu0 %v4000
    %v4038 = vpop.xlane.xlu0 %4037
    %4039 = vmax.xlane.f32.xlu0 %v4003
    %v4040 = vpop.xlane.xlu0 %4039
    %4041 = vmax.xlane.f32.xlu0 %v4005
    %v4042 = vpop.xlane.xlu0 %4041
    %4043 = vmax.xlane.f32.xlu0 %v4008
    %v4044 = vpop.xlane.xlu0 %4043
    %4045 = vmax.xlane.f32.xlu0 %v4010
    %v4046 = vpop.xlane.xlu0 %4045
    %4047 = vmax.xlane.f32.xlu0 %v4013
    %v4048 = vpop.xlane.xlu0 %4047
    %4049 = vmax.xlane.f32.xlu0 %v4015
    %v4050 = vpop.xlane.xlu0 %4049
    %4051 = vmax.xlane.f32.xlu0 %v4018
    %v4052 = vpop.xlane.xlu0 %4051
    %4053 = vmax.xlane.f32.xlu0 %v4020
    %v4054 = vpop.xlane.xlu0 %4053
    %4055 = vmax.xlane.f32.xlu0 %v4023
    %v4056 = vpop.xlane.xlu0 %4055
    %4057 = vmax.xlane.f32.xlu0 %v4025
    %v4058 = vpop.xlane.xlu0 %4057
    %v4059 = vsub.f32 %v3988, %v4028
    %v4060 = vsub.f32 %v3990, %v4030
    %v4061 = vsub.f32 %v3993, %v4032
    %v4062 = vsub.f32 %v3995, %v4034
    %v4063 = vsub.f32 %v3998, %v4036
    %v4064 = vsub.f32 %v4000, %v4038
    %v4065 = vsub.f32 %v4003, %v4040
    %v4066 = vsub.f32 %v4005, %v4042
    %v4067 = vsub.f32 %v4008, %v4044
    %v4068 = vsub.f32 %v4010, %v4046
    %v4069 = vsub.f32 %v4013, %v4048
    %v4070 = vsub.f32 %v4015, %v4050
    %v4071 = vsub.f32 %v4018, %v4052
    %v4072 = vsub.f32 %v4020, %v4054
    %v4073 = vsub.f32 %v4023, %v4056
    %v4074 = vsub.f32 %v4025, %v4058
    %v4075 = vmul.f32 %v4059, 1.442695
    %v4076 = vpow.pop %v4075
    %v4077 = vmul.f32 %v4060, 1.442695
    %v4078 = vpow.pop %v4077
    %v4079 = vmul.f32 %v4061, 1.442695
    %v4080 = vpow.pop %v4079
    %v4081 = vmul.f32 %v4062, 1.442695
    %v4082 = vpow.pop %v4081
    %v4083 = vmul.f32 %v4063, 1.442695
    %v4084 = vpow.pop %v4083
    %v4085 = vmul.f32 %v4064, 1.442695
    %v4086 = vpow.pop %v4085
    %v4087 = vmul.f32 %v4065, 1.442695
    %v4088 = vpow.pop %v4087
    %v4089 = vmul.f32 %v4066, 1.442695
    %v4090 = vpow.pop %v4089
    %v4091 = vmul.f32 %v4067, 1.442695
    %v4092 = vpow.pop %v4091
    %v4093 = vmul.f32 %v4068, 1.442695
    %v4094 = vpow.pop %v4093
    %v4095 = vmul.f32 %v4069, 1.442695
    %v4096 = vpow.pop %v4095
    %v4097 = vmul.f32 %v4070, 1.442695
    %v4098 = vpow.pop %v4097
    %v4099 = vmul.f32 %v4071, 1.442695
    %v4100 = vpow.pop %v4099
    %v4101 = vmul.f32 %v4072, 1.442695
    %v4102 = vpow.pop %v4101
    %v4103 = vmul.f32 %v4073, 1.442695
    %v4104 = vpow.pop %v4103
    %v4105 = vmul.f32 %v4074, 1.442695
    %v4106 = vpow.pop %v4105
    %4107 = vadd.xlane.f32.xlu0 %v4076
    %v4108 = vpop.xlane.xlu0 %4107
    %4109 = vadd.xlane.f32.xlu0 %v4078
    %v4110 = vpop.xlane.xlu0 %4109
    %4111 = vadd.xlane.f32.xlu0 %v4080
    %v4112 = vpop.xlane.xlu0 %4111
    %4113 = vadd.xlane.f32.xlu0 %v4082
    %v4114 = vpop.xlane.xlu0 %4113
    %4115 = vadd.xlane.f32.xlu0 %v4084
    %v4116 = vpop.xlane.xlu0 %4115
    %4117 = vadd.xlane.f32.xlu0 %v4086
    %v4118 = vpop.xlane.xlu0 %4117
    %4119 = vadd.xlane.f32.xlu0 %v4088
    %v4120 = vpop.xlane.xlu0 %4119
    %4121 = vadd.xlane.f32.xlu0 %v4090
    %v4122 = vpop.xlane.xlu0 %4121
    %4123 = vadd.xlane.f32.xlu0 %v4092
    %v4124 = vpop.xlane.xlu0 %4123
    %4125 = vadd.xlane.f32.xlu0 %v4094
    %v4126 = vpop.xlane.xlu0 %4125
    %4127 = vadd.xlane.f32.xlu0 %v4096
    %v4128 = vpop.xlane.xlu0 %4127
    %4129 = vadd.xlane.f32.xlu0 %v4098
    %v4130 = vpop.xlane.xlu0 %4129
    %4131 = vadd.xlane.f32.xlu0 %v4100
    %v4132 = vpop.xlane.xlu0 %4131
    %4133 = vadd.xlane.f32.xlu0 %v4102
    %v4134 = vpop.xlane.xlu0 %4133
    %4135 = vadd.xlane.f32.xlu0 %v4104
    %v4136 = vpop.xlane.xlu0 %4135
    %4137 = vadd.xlane.f32.xlu0 %v4106
    %v4138 = vpop.xlane.xlu0 %4137
    %v4139 = vrcp.pop %v4108
    %v4140 = vrcp.pop %v4110
    %v4141 = vrcp.pop %v4112
    %v4142 = vrcp.pop %v4114
    %v4143 = vrcp.pop %v4116
    %v4144 = vrcp.pop %v4118
    %v4145 = vrcp.pop %v4120
    %v4146 = vrcp.pop %v4122
    %v4147 = vrcp.pop %v4124
    %v4148 = vrcp.pop %v4126
    %v4149 = vrcp.pop %v4128
    %v4150 = vrcp.pop %v4130
    %v4151 = vrcp.pop %v4132
    %v4152 = vrcp.pop %v4134
    %v4153 = vrcp.pop %v4136
    %v4154 = vrcp.pop %v4138
    %v4155 = vmul.f32 %v4076, %v4139
    %v4156 = vmul.f32 %v4078, %v4140
    %v4157 = vmul.f32 %v4080, %v4141
    %v4158 = vmul.f32 %v4082, %v4142
    %v4159 = vmul.f32 %v4084, %v4143
    %v4160 = vmul.f32 %v4086, %v4144
    %v4161 = vmul.f32 %v4088, %v4145
    %v4162 = vmul.f32 %v4090, %v4146
    %v4163 = vmul.f32 %v4092, %v4147
    %v4164 = vmul.f32 %v4094, %v4148
    %v4165 = vmul.f32 %v4096, %v4149
    %v4166 = vmul.f32 %v4098, %v4150
    %v4167 = vmul.f32 %v4100, %v4151
    %v4168 = vmul.f32 %v4102, %v4152
    %v4169 = vmul.f32 %v4104, %v4153
    %v4170 = vmul.f32 %v4106, %v4154
    %v4171 = vpack.c.bf16 %v4156, %v4155
    %v4172 = vpack.c.bf16 %v4158, %v4157
    %v4173 = vpack.c.bf16 %v4160, %v4159
    %v4174 = vpack.c.bf16 %v4162, %v4161
    %v4175 = vpack.c.bf16 %v4164, %v4163
    %v4176 = vpack.c.bf16 %v4166, %v4165
    %v4177 = vpack.c.bf16 %v4168, %v4167
    %v4178 = vpack.c.bf16 %v4170, %v4169
    %4179 = vrot.lane.b32.xlu0 %v3462, 88
    %v4180 = vpop.permute.xlu0 %4179
    %4181 = vrot.lane.b32.xlu0 %v3463, 88
    %v4182 = vpop.permute.xlu0 %4181
    %4183 = vrot.lane.b32.xlu0 %v3464, 88
    %v4184 = vpop.permute.xlu0 %4183
    %4185 = vrot.lane.b32.xlu0 %v3465, 88
    %v4186 = vpop.permute.xlu0 %4185
    %4187 = vrot.lane.b32.xlu0 %v3466, 88
    %v4188 = vpop.permute.xlu0 %4187
    %4189 = vrot.lane.b32.xlu0 %v3467, 88
    %v4190 = vpop.permute.xlu0 %4189
    %4191 = vrot.lane.b32.xlu0 %v3468, 88
    %v4192 = vpop.permute.xlu0 %4191
    %4193 = vrot.lane.b32.xlu0 %v3469, 88
    %v4194 = vpop.permute.xlu0 %4193
    %4203 = vmatpush.bf16.msra.mxu0 %v4194
    %4204 = vmatpush.bf16.msra.mxu0 %v4192
    %4205 = vmatpush.bf16.msra.mxu0 %v4190
    %4206 = vmatpush.bf16.msra.mxu0 %v4188
    %4207 = vmatpush.bf16.msra.mxu0 %v4186
    %4208 = vmatpush.bf16.msra.mxu0 %v4184
    %4209 = vmatpush.bf16.msra.mxu0 %v4182
    %4210 = vmatpush.bf16.msra.mxu0 %v4180
    %4211 = vmatmul.bf16.gmra.mxu0 %v4171
    %v4212 = vpop.f32.mrf.mxu0
    %v4213 = vadd.f32 0.0, %v4212
    %v4214 = vpop.f32.mrf.mxu0
    %v4215 = vadd.f32 0.0, %v4214
    %4216 = vmatmul.bf16.gmra.mxu0 %v4172
    %v4217 = vpop.f32.mrf.mxu0
    %v4218 = vadd.f32 0.0, %v4217
    %v4219 = vpop.f32.mrf.mxu0
    %v4220 = vadd.f32 0.0, %v4219
    %4221 = vmatmul.bf16.gmra.mxu0 %v4173
    %v4222 = vpop.f32.mrf.mxu0
    %v4223 = vadd.f32 0.0, %v4222
    %v4224 = vpop.f32.mrf.mxu0
    %v4225 = vadd.f32 0.0, %v4224
    %4226 = vmatmul.bf16.gmra.mxu0 %v4174
    %v4227 = vpop.f32.mrf.mxu0
    %v4228 = vadd.f32 0.0, %v4227
    %v4229 = vpop.f32.mrf.mxu0
    %v4230 = vadd.f32 0.0, %v4229
    %4231 = vmatmul.bf16.gmra.mxu0 %v4175
    %v4232 = vpop.f32.mrf.mxu0
    %v4233 = vadd.f32 0.0, %v4232
    %v4234 = vpop.f32.mrf.mxu0
    %v4235 = vadd.f32 0.0, %v4234
    %4236 = vmatmul.bf16.gmra.mxu0 %v4176
    %v4237 = vpop.f32.mrf.mxu0
    %v4238 = vadd.f32 0.0, %v4237
    %v4239 = vpop.f32.mrf.mxu0
    %v4240 = vadd.f32 0.0, %v4239
    %4241 = vmatmul.bf16.gmra.mxu0 %v4177
    %v4242 = vpop.f32.mrf.mxu0
    %v4243 = vadd.f32 0.0, %v4242
    %v4244 = vpop.f32.mrf.mxu0
    %v4245 = vadd.f32 0.0, %v4244
    %4246 = vmatmul.bf16.gmra.mxu0 %v4178
    %v4247 = vpop.f32.mrf.mxu0
    %v4248 = vadd.f32 0.0, %v4247
    %v4249 = vpop.f32.mrf.mxu0
    %v4250 = vadd.f32 0.0, %v4249
    %4251 = vdwg.mxu0
    %v4252 = vld [vmem:[%s41 + $0x4] sm:$0xf]
    %v4253 = vpack.c.bf16 %v4215, %v4213
    %v4254 = vpack.c.bf16 %v4220, %v4218
    %v4255 = vpack.c.bf16 %v4225, %v4223
    %v4256 = vpack.c.bf16 %v4230, %v4228
    %v4257 = vpack.c.bf16 %v4235, %v4233
    %v4258 = vpack.c.bf16 %v4240, %v4238
    %v4259 = vpack.c.bf16 %v4245, %v4243
    %v4260 = vpack.c.bf16 %v4250, %v4248
    %v4262 = vsel %vm1265, %v4253, 0
    %v4265 = vsel %vm1265, %v4254, 0
    %v4268 = vsel %vm1265, %v4255, 0
    %v4271 = vsel %vm1265, %v4256, 0
    %v4274 = vsel %vm1265, %v4257, 0
    %v4277 = vsel %vm1265, %v4258, 0
    %v4280 = vsel %vm1265, %v4259, 0
    %v4283 = vsel %vm1265, %v4260, 0
    %v4286 = vsel %vm2025, %v4252, 0
    %4288 = vmatpush.bf16.msra.mxu0 0
    %4289 = vmatpush.bf16.msra.mxu0 0
    %4290 = vmatpush.bf16.msra.mxu0 0
    %4291 = vmatpush.bf16.msra.mxu0 0
    %4292 = vmatpush.bf16.msra.mxu0 0
    %4293 = vmatpush.bf16.msra.mxu0 0
    %4294 = vmatpush.bf16.msra.mxu0 0
    %4295 = vmatpush.bf16.msra.mxu0 %v4286
    %4296 = vmatmul.bf16.gmra.mxu0 %v4262
    %v4297 = vpop.f32.mrf.mxu0
    %v4298 = vadd.f32 0.0, %v4297
    %v4299 = vpop.f32.mrf.mxu0
    %v4300 = vadd.f32 0.0, %v4299
    %4301 = vmatmul.bf16.gmra.mxu0 %v4265
    %v4302 = vpop.f32.mrf.mxu0
    %v4303 = vadd.f32 0.0, %v4302
    %v4304 = vpop.f32.mrf.mxu0
    %v4305 = vadd.f32 0.0, %v4304
    %4306 = vmatmul.bf16.gmra.mxu0 %v4268
    %v4307 = vpop.f32.mrf.mxu0
    %v4308 = vadd.f32 0.0, %v4307
    %v4309 = vpop.f32.mrf.mxu0
    %v4310 = vadd.f32 0.0, %v4309
    %4311 = vmatmul.bf16.gmra.mxu0 %v4271
    %v4312 = vpop.f32.mrf.mxu0
    %v4313 = vadd.f32 0.0, %v4312
    %v4314 = vpop.f32.mrf.mxu0
    %v4315 = vadd.f32 0.0, %v4314
    %4316 = vmatmul.bf16.gmra.mxu0 %v4274
    %v4317 = vpop.f32.mrf.mxu0
    %v4318 = vadd.f32 0.0, %v4317
    %v4319 = vpop.f32.mrf.mxu0
    %v4320 = vadd.f32 0.0, %v4319
    %4321 = vmatmul.bf16.gmra.mxu0 %v4277
    %v4322 = vpop.f32.mrf.mxu0
    %v4323 = vadd.f32 0.0, %v4322
    %v4324 = vpop.f32.mrf.mxu0
    %v4325 = vadd.f32 0.0, %v4324
    %4326 = vmatmul.bf16.gmra.mxu0 %v4280
    %v4327 = vpop.f32.mrf.mxu0
    %v4328 = vadd.f32 0.0, %v4327
    %v4329 = vpop.f32.mrf.mxu0
    %v4330 = vadd.f32 0.0, %v4329
    %4331 = vmatmul.bf16.gmra.mxu0 %v4283
    %v4332 = vpop.f32.mrf.mxu0
    %v4333 = vadd.f32 0.0, %v4332
    %v4334 = vpop.f32.mrf.mxu0
    %v4335 = vadd.f32 0.0, %v4334
    %4336 = vdwg.mxu0
    %v4338 = vsel %vm1265, %v3849, 0
    %v4341 = vsel %vm1265, %v3850, 0
    %v4344 = vsel %vm1265, %v3851, 0
    %v4347 = vsel %vm1265, %v3852, 0
    %v4350 = vsel %vm1265, %v3853, 0
    %v4353 = vsel %vm1265, %v3854, 0
    %v4356 = vsel %vm1265, %v3855, 0
    %v4359 = vsel %vm1265, %v3856, 0
    %v4362 = vsel %vm2025, %v3848, 0
    %4364 = vmatpush.bf16.msra.mxu0 0
    %4365 = vmatpush.bf16.msra.mxu0 0
    %4366 = vmatpush.bf16.msra.mxu0 0
    %4367 = vmatpush.bf16.msra.mxu0 0
    %4368 = vmatpush.bf16.msra.mxu0 0
    %4369 = vmatpush.bf16.msra.mxu0 0
    %4370 = vmatpush.bf16.msra.mxu0 0
    %4371 = vmatpush.bf16.msra.mxu0 %v4362
    %4372 = vmatmul.bf16.gmra.mxu0 %v4338
    %v4373 = vpop.f32.mrf.mxu0
    %v4374 = vadd.f32 %v4298, %v4373
    %v4375 = vpop.f32.mrf.mxu0
    %v4376 = vadd.f32 %v4300, %v4375
    %4377 = vmatmul.bf16.gmra.mxu0 %v4341
    %v4378 = vpop.f32.mrf.mxu0
    %v4379 = vadd.f32 %v4303, %v4378
    %v4380 = vpop.f32.mrf.mxu0
    %v4381 = vadd.f32 %v4305, %v4380
    %4382 = vmatmul.bf16.gmra.mxu0 %v4344
    %v4383 = vpop.f32.mrf.mxu0
    %v4384 = vadd.f32 %v4308, %v4383
    %v4385 = vpop.f32.mrf.mxu0
    %v4386 = vadd.f32 %v4310, %v4385
    %4387 = vmatmul.bf16.gmra.mxu0 %v4347
    %v4388 = vpop.f32.mrf.mxu0
    %v4389 = vadd.f32 %v4313, %v4388
    %v4390 = vpop.f32.mrf.mxu0
    %v4391 = vadd.f32 %v4315, %v4390
    %4392 = vmatmul.bf16.gmra.mxu0 %v4350
    %v4393 = vpop.f32.mrf.mxu0
    %v4394 = vadd.f32 %v4318, %v4393
    %v4395 = vpop.f32.mrf.mxu0
    %v4396 = vadd.f32 %v4320, %v4395
    %4397 = vmatmul.bf16.gmra.mxu0 %v4353
    %v4398 = vpop.f32.mrf.mxu0
    %v4399 = vadd.f32 %v4323, %v4398
    %v4400 = vpop.f32.mrf.mxu0
    %v4401 = vadd.f32 %v4325, %v4400
    %4402 = vmatmul.bf16.gmra.mxu0 %v4356
    %v4403 = vpop.f32.mrf.mxu0
    %v4404 = vadd.f32 %v4328, %v4403
    %v4405 = vpop.f32.mrf.mxu0
    %v4406 = vadd.f32 %v4330, %v4405
    %4407 = vmatmul.bf16.gmra.mxu0 %v4359
    %v4408 = vpop.f32.mrf.mxu0
    %v4409 = vadd.f32 %v4333, %v4408
    %v4410 = vpop.f32.mrf.mxu0
    %v4411 = vadd.f32 %v4335, %v4410
    %4412 = vdwg.mxu0
    %v4413 = vadd.f32 %v2937, %v4374
    %v4414 = vadd.f32 %v2938, %v4376
    %v4415 = vadd.f32 %v2939, %v4379
    %v4416 = vadd.f32 %v2940, %v4381
    %v4417 = vadd.f32 %v2941, %v4384
    %v4418 = vadd.f32 %v2942, %v4386
    %v4419 = vadd.f32 %v2943, %v4389
    %v4420 = vadd.f32 %v2944, %v4391
    %v4421 = vadd.f32 %v2945, %v4394
    %v4422 = vadd.f32 %v2946, %v4396
    %v4423 = vadd.f32 %v2947, %v4399
    %v4424 = vadd.f32 %v2948, %v4401
    %v4425 = vadd.f32 %v2949, %v4404
    %v4426 = vadd.f32 %v2950, %v4406
    %v4427 = vadd.f32 %v2951, %v4409
    %v4428 = vadd.f32 %v2952, %v4411
    %v4429 = vld [vmem:[%s43] sm:$0x1]
    %v4431 = vperm.slane %v4429, 0
    %v4433 = vadd.f32 %v4413, %v4431
    %v4434 = vadd.f32 %v4414, %v4431
    %v4435 = vadd.f32 %v4415, %v4431
    %v4436 = vadd.f32 %v4416, %v4431
    %v4437 = vadd.f32 %v4417, %v4431
    %v4438 = vadd.f32 %v4418, %v4431
    %v4439 = vadd.f32 %v4419, %v4431
    %v4440 = vadd.f32 %v4420, %v4431
    %v4441 = vadd.f32 %v4421, %v4431
    %v4442 = vadd.f32 %v4422, %v4431
    %v4443 = vadd.f32 %v4423, %v4431
    %v4444 = vadd.f32 %v4424, %v4431
    %v4445 = vadd.f32 %v4425, %v4431
    %v4446 = vadd.f32 %v4426, %v4431
    %v4447 = vadd.f32 %v4427, %v4431
    %v4448 = vadd.f32 %v4428, %v4431
    %v4449 = vld [vmem:[#allocation2] sm:$0x1]
    %v4450 = vld [vmem:[#allocation5] sm:$0x1]
    %v4451 = vsel %vm611, %v4433, 0.0
    %4452 = vadd.xlane.f32.xlu0 %v4451
    %v4453 = vpop.xlane.xlu0 %4452
    %v4454 = vsel %vm611, %v4434, 0.0
    %4455 = vadd.xlane.f32.xlu0 %v4454
    %v4456 = vpop.xlane.xlu0 %4455
    %v4457 = vsel %vm611, %v4435, 0.0
    %4458 = vadd.xlane.f32.xlu0 %v4457
    %v4459 = vpop.xlane.xlu0 %4458
    %v4460 = vsel %vm611, %v4436, 0.0
    %4461 = vadd.xlane.f32.xlu0 %v4460
    %v4462 = vpop.xlane.xlu0 %4461
    %v4463 = vsel %vm611, %v4437, 0.0
    %4464 = vadd.xlane.f32.xlu0 %v4463
    %v4465 = vpop.xlane.xlu0 %4464
    %v4466 = vsel %vm611, %v4438, 0.0
    %4467 = vadd.xlane.f32.xlu0 %v4466
    %v4468 = vpop.xlane.xlu0 %4467
    %v4469 = vsel %vm611, %v4439, 0.0
    %4470 = vadd.xlane.f32.xlu0 %v4469
    %v4471 = vpop.xlane.xlu0 %4470
    %v4472 = vsel %vm611, %v4440, 0.0
    %4473 = vadd.xlane.f32.xlu0 %v4472
    %v4474 = vpop.xlane.xlu0 %4473
    %v4475 = vsel %vm611, %v4441, 0.0
    %4476 = vadd.xlane.f32.xlu0 %v4475
    %v4477 = vpop.xlane.xlu0 %4476
    %v4478 = vsel %vm611, %v4442, 0.0
    %4479 = vadd.xlane.f32.xlu0 %v4478
    %v4480 = vpop.xlane.xlu0 %4479
    %v4481 = vsel %vm611, %v4443, 0.0
    %4482 = vadd.xlane.f32.xlu0 %v4481
    %v4483 = vpop.xlane.xlu0 %4482
    %v4484 = vsel %vm611, %v4444, 0.0
    %4485 = vadd.xlane.f32.xlu0 %v4484
    %v4486 = vpop.xlane.xlu0 %4485
    %v4487 = vsel %vm611, %v4445, 0.0
    %4488 = vadd.xlane.f32.xlu0 %v4487
    %v4489 = vpop.xlane.xlu0 %4488
    %v4490 = vsel %vm611, %v4446, 0.0
    %4491 = vadd.xlane.f32.xlu0 %v4490
    %v4492 = vpop.xlane.xlu0 %4491
    %v4493 = vsel %vm611, %v4447, 0.0
    %4494 = vadd.xlane.f32.xlu0 %v4493
    %v4495 = vpop.xlane.xlu0 %4494
    %v4496 = vsel %vm611, %v4448, 0.0
    %4497 = vadd.xlane.f32.xlu0 %v4496
    %v4498 = vpop.xlane.xlu0 %4497
    %v4499 = vmul.f32 %v4453, %v741
    %v4500 = vmul.f32 %v4456, %v741
    %v4501 = vmul.f32 %v4459, %v741
    %v4502 = vmul.f32 %v4462, %v741
    %v4503 = vmul.f32 %v4465, %v741
    %v4504 = vmul.f32 %v4468, %v741
    %v4505 = vmul.f32 %v4471, %v741
    %v4506 = vmul.f32 %v4474, %v741
    %v4507 = vmul.f32 %v4477, %v741
    %v4508 = vmul.f32 %v4480, %v741
    %v4509 = vmul.f32 %v4483, %v741
    %v4510 = vmul.f32 %v4486, %v741
    %v4511 = vmul.f32 %v4489, %v741
    %v4512 = vmul.f32 %v4492, %v741
    %v4513 = vmul.f32 %v4495, %v741
    %v4514 = vmul.f32 %v4498, %v741
    %v4515 = vsub.f32 %v4433, %v4499
    %v4516 = vsub.f32 %v4434, %v4500
    %v4517 = vsub.f32 %v4435, %v4501
    %v4518 = vsub.f32 %v4436, %v4502
    %v4519 = vsub.f32 %v4437, %v4503
    %v4520 = vsub.f32 %v4438, %v4504
    %v4521 = vsub.f32 %v4439, %v4505
    %v4522 = vsub.f32 %v4440, %v4506
    %v4523 = vsub.f32 %v4441, %v4507
    %v4524 = vsub.f32 %v4442, %v4508
    %v4525 = vsub.f32 %v4443, %v4509
    %v4526 = vsub.f32 %v4444, %v4510
    %v4527 = vsub.f32 %v4445, %v4511
    %v4528 = vsub.f32 %v4446, %v4512
    %v4529 = vsub.f32 %v4447, %v4513
    %v4530 = vsub.f32 %v4448, %v4514
    %v4531 = vmul.f32 %v4515, %v4515
    %v4532 = vmul.f32 %v4516, %v4516
    %v4533 = vmul.f32 %v4517, %v4517
    %v4534 = vmul.f32 %v4518, %v4518
    %v4535 = vmul.f32 %v4519, %v4519
    %v4536 = vmul.f32 %v4520, %v4520
    %v4537 = vmul.f32 %v4521, %v4521
    %v4538 = vmul.f32 %v4522, %v4522
    %v4539 = vmul.f32 %v4523, %v4523
    %v4540 = vmul.f32 %v4524, %v4524
    %v4541 = vmul.f32 %v4525, %v4525
    %v4542 = vmul.f32 %v4526, %v4526
    %v4543 = vmul.f32 %v4527, %v4527
    %v4544 = vmul.f32 %v4528, %v4528
    %v4545 = vmul.f32 %v4529, %v4529
    %v4546 = vmul.f32 %v4530, %v4530
    %v4547 = vsel %vm611, %v4531, 0.0
    %4548 = vadd.xlane.f32.xlu0 %v4547
    %v4549 = vpop.xlane.xlu0 %4548
    %v4550 = vsel %vm611, %v4532, 0.0
    %4551 = vadd.xlane.f32.xlu0 %v4550
    %v4552 = vpop.xlane.xlu0 %4551
    %v4553 = vsel %vm611, %v4533, 0.0
    %4554 = vadd.xlane.f32.xlu0 %v4553
    %v4555 = vpop.xlane.xlu0 %4554
    %v4556 = vsel %vm611, %v4534, 0.0
    %4557 = vadd.xlane.f32.xlu0 %v4556
    %v4558 = vpop.xlane.xlu0 %4557
    %v4559 = vsel %vm611, %v4535, 0.0
    %4560 = vadd.xlane.f32.xlu0 %v4559
    %v4561 = vpop.xlane.xlu0 %4560
    %v4562 = vsel %vm611, %v4536, 0.0
    %4563 = vadd.xlane.f32.xlu0 %v4562
    %v4564 = vpop.xlane.xlu0 %4563
    %v4565 = vsel %vm611, %v4537, 0.0
    %4566 = vadd.xlane.f32.xlu0 %v4565
    %v4567 = vpop.xlane.xlu0 %4566
    %v4568 = vsel %vm611, %v4538, 0.0
    %4569 = vadd.xlane.f32.xlu0 %v4568
    %v4570 = vpop.xlane.xlu0 %4569
    %v4571 = vsel %vm611, %v4539, 0.0
    %4572 = vadd.xlane.f32.xlu0 %v4571
    %v4573 = vpop.xlane.xlu0 %4572
    %v4574 = vsel %vm611, %v4540, 0.0
    %4575 = vadd.xlane.f32.xlu0 %v4574
    %v4576 = vpop.xlane.xlu0 %4575
    %v4577 = vsel %vm611, %v4541, 0.0
    %4578 = vadd.xlane.f32.xlu0 %v4577
    %v4579 = vpop.xlane.xlu0 %4578
    %v4580 = vsel %vm611, %v4542, 0.0
    %4581 = vadd.xlane.f32.xlu0 %v4580
    %v4582 = vpop.xlane.xlu0 %4581
    %v4583 = vsel %vm611, %v4543, 0.0
    %4584 = vadd.xlane.f32.xlu0 %v4583
    %v4585 = vpop.xlane.xlu0 %4584
    %v4586 = vsel %vm611, %v4544, 0.0
    %4587 = vadd.xlane.f32.xlu0 %v4586
    %v4588 = vpop.xlane.xlu0 %4587
    %v4589 = vsel %vm611, %v4545, 0.0
    %4590 = vadd.xlane.f32.xlu0 %v4589
    %v4591 = vpop.xlane.xlu0 %4590
    %v4592 = vsel %vm611, %v4546, 0.0
    %4593 = vadd.xlane.f32.xlu0 %v4592
    %v4594 = vpop.xlane.xlu0 %4593
    %v4595 = vmul.f32 %v4549, %v741
    %v4596 = vmul.f32 %v4552, %v741
    %v4597 = vmul.f32 %v4555, %v741
    %v4598 = vmul.f32 %v4558, %v741
    %v4599 = vmul.f32 %v4561, %v741
    %v4600 = vmul.f32 %v4564, %v741
    %v4601 = vmul.f32 %v4567, %v741
    %v4602 = vmul.f32 %v4570, %v741
    %v4603 = vmul.f32 %v4573, %v741
    %v4604 = vmul.f32 %v4576, %v741
    %v4605 = vmul.f32 %v4579, %v741
    %v4606 = vmul.f32 %v4582, %v741
    %v4607 = vmul.f32 %v4585, %v741
    %v4608 = vmul.f32 %v4588, %v741
    %v4609 = vmul.f32 %v4591, %v741
    %v4610 = vmul.f32 %v4594, %v741
    %v4611 = vadd.f32 %v4595, 1e-05
    %v4612 = vadd.f32 %v4596, 1e-05
    %v4613 = vadd.f32 %v4597, 1e-05
    %v4614 = vadd.f32 %v4598, 1e-05
    %v4615 = vadd.f32 %v4599, 1e-05
    %v4616 = vadd.f32 %v4600, 1e-05
    %v4617 = vadd.f32 %v4601, 1e-05
    %v4618 = vadd.f32 %v4602, 1e-05
    %v4619 = vadd.f32 %v4603, 1e-05
    %v4620 = vadd.f32 %v4604, 1e-05
    %v4621 = vadd.f32 %v4605, 1e-05
    %v4622 = vadd.f32 %v4606, 1e-05
    %v4623 = vadd.f32 %v4607, 1e-05
    %v4624 = vadd.f32 %v4608, 1e-05
    %v4625 = vadd.f32 %v4609, 1e-05
    %v4626 = vadd.f32 %v4610, 1e-05
    %v4627 = vrsqrt.pop %v4611
    %v4628 = vmul.f32 %v4627, %v4611
    %v4629 = vmul.f32 %v4628, %v4627
    %v4630 = vmul.f32 0.5, %v4629
    %v4631 = vsub.f32 1.5, %v4630
    %v4632 = vmul.f32 %v4627, %v4631
    %vm4633 = vweird.f32 %v4611
    %vm4634 = vweird.f32 %v4627
    %vm4635 = vmor %vm4633, %vm4634
    %v4636 = vsel %vm4635, %v4627, %v4632
    %v4637 = vrsqrt.pop %v4612
    %v4638 = vmul.f32 %v4637, %v4612
    %v4639 = vmul.f32 %v4638, %v4637
    %v4640 = vmul.f32 0.5, %v4639
    %v4641 = vsub.f32 1.5, %v4640
    %v4642 = vmul.f32 %v4637, %v4641
    %vm4643 = vweird.f32 %v4612
    %vm4644 = vweird.f32 %v4637
    %vm4645 = vmor %vm4643, %vm4644
    %v4646 = vsel %vm4645, %v4637, %v4642
    %v4647 = vrsqrt.pop %v4613
    %v4648 = vmul.f32 %v4647, %v4613
    %v4649 = vmul.f32 %v4648, %v4647
    %v4650 = vmul.f32 0.5, %v4649
    %v4651 = vsub.f32 1.5, %v4650
    %v4652 = vmul.f32 %v4647, %v4651
    %vm4653 = vweird.f32 %v4613
    %vm4654 = vweird.f32 %v4647
    %vm4655 = vmor %vm4653, %vm4654
    %v4656 = vsel %vm4655, %v4647, %v4652
    %v4657 = vrsqrt.pop %v4614
    %v4658 = vmul.f32 %v4657, %v4614
    %v4659 = vmul.f32 %v4658, %v4657
    %v4660 = vmul.f32 0.5, %v4659
    %v4661 = vsub.f32 1.5, %v4660
    %v4662 = vmul.f32 %v4657, %v4661
    %vm4663 = vweird.f32 %v4614
    %vm4664 = vweird.f32 %v4657
    %vm4665 = vmor %vm4663, %vm4664
    %v4666 = vsel %vm4665, %v4657, %v4662
    %v4667 = vrsqrt.pop %v4615
    %v4668 = vmul.f32 %v4667, %v4615
    %v4669 = vmul.f32 %v4668, %v4667
    %v4670 = vmul.f32 0.5, %v4669
    %v4671 = vsub.f32 1.5, %v4670
    %v4672 = vmul.f32 %v4667, %v4671
    %vm4673 = vweird.f32 %v4615
    %vm4674 = vweird.f32 %v4667
    %vm4675 = vmor %vm4673, %vm4674
    %v4676 = vsel %vm4675, %v4667, %v4672
    %v4677 = vrsqrt.pop %v4616
    %v4678 = vmul.f32 %v4677, %v4616
    %v4679 = vmul.f32 %v4678, %v4677
    %v4680 = vmul.f32 0.5, %v4679
    %v4681 = vsub.f32 1.5, %v4680
    %v4682 = vmul.f32 %v4677, %v4681
    %vm4683 = vweird.f32 %v4616
    %vm4684 = vweird.f32 %v4677
    %vm4685 = vmor %vm4683, %vm4684
    %v4686 = vsel %vm4685, %v4677, %v4682
    %v4687 = vrsqrt.pop %v4617
    %v4688 = vmul.f32 %v4687, %v4617
    %v4689 = vmul.f32 %v4688, %v4687
    %v4690 = vmul.f32 0.5, %v4689
    %v4691 = vsub.f32 1.5, %v4690
    %v4692 = vmul.f32 %v4687, %v4691
    %vm4693 = vweird.f32 %v4617
    %vm4694 = vweird.f32 %v4687
    %vm4695 = vmor %vm4693, %vm4694
    %v4696 = vsel %vm4695, %v4687, %v4692
    %v4697 = vrsqrt.pop %v4618
    %v4698 = vmul.f32 %v4697, %v4618
    %v4699 = vmul.f32 %v4698, %v4697
    %v4700 = vmul.f32 0.5, %v4699
    %v4701 = vsub.f32 1.5, %v4700
    %v4702 = vmul.f32 %v4697, %v4701
    %vm4703 = vweird.f32 %v4618
    %vm4704 = vweird.f32 %v4697
    %vm4705 = vmor %vm4703, %vm4704
    %v4706 = vsel %vm4705, %v4697, %v4702
    %v4707 = vrsqrt.pop %v4619
    %v4708 = vmul.f32 %v4707, %v4619
    %v4709 = vmul.f32 %v4708, %v4707
    %v4710 = vmul.f32 0.5, %v4709
    %v4711 = vsub.f32 1.5, %v4710
    %v4712 = vmul.f32 %v4707, %v4711
    %vm4713 = vweird.f32 %v4619
    %vm4714 = vweird.f32 %v4707
    %vm4715 = vmor %vm4713, %vm4714
    %v4716 = vsel %vm4715, %v4707, %v4712
    %v4717 = vrsqrt.pop %v4620
    %v4718 = vmul.f32 %v4717, %v4620
    %v4719 = vmul.f32 %v4718, %v4717
    %v4720 = vmul.f32 0.5, %v4719
    %v4721 = vsub.f32 1.5, %v4720
    %v4722 = vmul.f32 %v4717, %v4721
    %vm4723 = vweird.f32 %v4620
    %vm4724 = vweird.f32 %v4717
    %vm4725 = vmor %vm4723, %vm4724
    %v4726 = vsel %vm4725, %v4717, %v4722
    %v4727 = vrsqrt.pop %v4621
    %v4728 = vmul.f32 %v4727, %v4621
    %v4729 = vmul.f32 %v4728, %v4727
    %v4730 = vmul.f32 0.5, %v4729
    %v4731 = vsub.f32 1.5, %v4730
    %v4732 = vmul.f32 %v4727, %v4731
    %vm4733 = vweird.f32 %v4621
    %vm4734 = vweird.f32 %v4727
    %vm4735 = vmor %vm4733, %vm4734
    %v4736 = vsel %vm4735, %v4727, %v4732
    %v4737 = vrsqrt.pop %v4622
    %v4738 = vmul.f32 %v4737, %v4622
    %v4739 = vmul.f32 %v4738, %v4737
    %v4740 = vmul.f32 0.5, %v4739
    %v4741 = vsub.f32 1.5, %v4740
    %v4742 = vmul.f32 %v4737, %v4741
    %vm4743 = vweird.f32 %v4622
    %vm4744 = vweird.f32 %v4737
    %vm4745 = vmor %vm4743, %vm4744
    %v4746 = vsel %vm4745, %v4737, %v4742
    %v4747 = vrsqrt.pop %v4623
    %v4748 = vmul.f32 %v4747, %v4623
    %v4749 = vmul.f32 %v4748, %v4747
    %v4750 = vmul.f32 0.5, %v4749
    %v4751 = vsub.f32 1.5, %v4750
    %v4752 = vmul.f32 %v4747, %v4751
    %vm4753 = vweird.f32 %v4623
    %vm4754 = vweird.f32 %v4747
    %vm4755 = vmor %vm4753, %vm4754
    %v4756 = vsel %vm4755, %v4747, %v4752
    %v4757 = vrsqrt.pop %v4624
    %v4758 = vmul.f32 %v4757, %v4624
    %v4759 = vmul.f32 %v4758, %v4757
    %v4760 = vmul.f32 0.5, %v4759
    %v4761 = vsub.f32 1.5, %v4760
    %v4762 = vmul.f32 %v4757, %v4761
    %vm4763 = vweird.f32 %v4624
    %vm4764 = vweird.f32 %v4757
    %vm4765 = vmor %vm4763, %vm4764
    %v4766 = vsel %vm4765, %v4757, %v4762
    %v4767 = vrsqrt.pop %v4625
    %v4768 = vmul.f32 %v4767, %v4625
    %v4769 = vmul.f32 %v4768, %v4767
    %v4770 = vmul.f32 0.5, %v4769
    %v4771 = vsub.f32 1.5, %v4770
    %v4772 = vmul.f32 %v4767, %v4771
    %vm4773 = vweird.f32 %v4625
    %vm4774 = vweird.f32 %v4767
    %vm4775 = vmor %vm4773, %vm4774
    %v4776 = vsel %vm4775, %v4767, %v4772
    %v4777 = vrsqrt.pop %v4626
    %v4778 = vmul.f32 %v4777, %v4626
    %v4779 = vmul.f32 %v4778, %v4777
    %v4780 = vmul.f32 0.5, %v4779
    %v4781 = vsub.f32 1.5, %v4780
    %v4782 = vmul.f32 %v4777, %v4781
    %vm4783 = vweird.f32 %v4626
    %vm4784 = vweird.f32 %v4777
    %vm4785 = vmor %vm4783, %vm4784
    %v4786 = vsel %vm4785, %v4777, %v4782
    %v4787 = vmul.f32 %v4515, %v4636
    %v4788 = vmul.f32 %v4516, %v4646
    %v4789 = vmul.f32 %v4517, %v4656
    %v4790 = vmul.f32 %v4518, %v4666
    %v4791 = vmul.f32 %v4519, %v4676
    %v4792 = vmul.f32 %v4520, %v4686
    %v4793 = vmul.f32 %v4521, %v4696
    %v4794 = vmul.f32 %v4522, %v4706
    %v4795 = vmul.f32 %v4523, %v4716
    %v4796 = vmul.f32 %v4524, %v4726
    %v4797 = vmul.f32 %v4525, %v4736
    %v4798 = vmul.f32 %v4526, %v4746
    %v4799 = vmul.f32 %v4527, %v4756
    %v4800 = vmul.f32 %v4528, %v4766
    %v4801 = vmul.f32 %v4529, %v4776
    %v4802 = vmul.f32 %v4530, %v4786
    %v4804 = vperm.slane %v4449, 0
    %v4806 = vmul.f32 %v4787, %v4804
    %v4807 = vmul.f32 %v4788, %v4804
    %v4808 = vmul.f32 %v4789, %v4804
    %v4809 = vmul.f32 %v4790, %v4804
    %v4810 = vmul.f32 %v4791, %v4804
    %v4811 = vmul.f32 %v4792, %v4804
    %v4812 = vmul.f32 %v4793, %v4804
    %v4813 = vmul.f32 %v4794, %v4804
    %v4814 = vmul.f32 %v4795, %v4804
    %v4815 = vmul.f32 %v4796, %v4804
    %v4816 = vmul.f32 %v4797, %v4804
    %v4817 = vmul.f32 %v4798, %v4804
    %v4818 = vmul.f32 %v4799, %v4804
    %v4819 = vmul.f32 %v4800, %v4804
    %v4820 = vmul.f32 %v4801, %v4804
    %v4821 = vmul.f32 %v4802, %v4804
    %v4823 = vperm.slane %v4450, 0
    %v4825 = vadd.f32 %v4806, %v4823
    %v4826 = vadd.f32 %v4807, %v4823
    %v4827 = vadd.f32 %v4808, %v4823
    %v4828 = vadd.f32 %v4809, %v4823
    %v4829 = vadd.f32 %v4810, %v4823
    %v4830 = vadd.f32 %v4811, %v4823
    %v4831 = vadd.f32 %v4812, %v4823
    %v4832 = vadd.f32 %v4813, %v4823
    %v4833 = vadd.f32 %v4814, %v4823
    %v4834 = vadd.f32 %v4815, %v4823
    %v4835 = vadd.f32 %v4816, %v4823
    %v4836 = vadd.f32 %v4817, %v4823
    %v4837 = vadd.f32 %v4818, %v4823
    %v4838 = vadd.f32 %v4819, %v4823
    %v4839 = vadd.f32 %v4820, %v4823
    %v4840 = vadd.f32 %v4821, %v4823
    %v4841 = vld [vmem:[%s51] sm:$0xf]
    %v4842 = vld [vmem:[%s51 + $0x4] sm:$0xf]
    %v4843 = vpack.c.bf16 %v4826, %v4825
    %v4844 = vpack.c.bf16 %v4828, %v4827
    %v4845 = vpack.c.bf16 %v4830, %v4829
    %v4846 = vpack.c.bf16 %v4832, %v4831
    %v4847 = vpack.c.bf16 %v4834, %v4833
    %v4848 = vpack.c.bf16 %v4836, %v4835
    %v4849 = vpack.c.bf16 %v4838, %v4837
    %v4850 = vpack.c.bf16 %v4840, %v4839
    %v4851 = vld [vmem:[#allocation7] sm:$0x1]
    %v4853 = vperm.slane %v4851, 0
    %v4857 = vunpack.c.l.b16 %v4841
    %v4858 = vunpack.c.l.b16 %v4842
    %v4859 = vpack.c.b16 %v4858, %v4857
    %v4862 = vsel %vm611, %v4843, 0
    %v4865 = vsel %vm611, %v4844, 0
    %v4868 = vsel %vm611, %v4845, 0
    %v4871 = vsel %vm611, %v4846, 0
    %v4874 = vsel %vm611, %v4847, 0
    %v4877 = vsel %vm611, %v4848, 0
    %v4880 = vsel %vm611, %v4849, 0
    %v4883 = vsel %vm611, %v4850, 0
    %4885 = vmatpush.bf16.msra.mxu0 0
    %4886 = vmatpush.bf16.msra.mxu0 0
    %4887 = vmatpush.bf16.msra.mxu0 0
    %4888 = vmatpush.bf16.msra.mxu0 0
    %4889 = vmatpush.bf16.msra.mxu0 0
    %4890 = vmatpush.bf16.msra.mxu0 0
    %4891 = vmatpush.bf16.msra.mxu0 0
    %4892 = vmatpush.bf16.msra.mxu0 %v4859
    %4893 = vmatmul.bf16.gmra.mxu0 %v4862
    %v4894 = vpop.f32.mrf.mxu0
    %v4895 = vadd.f32 %v4853, %v4894
    %v4896 = vpop.f32.mrf.mxu0
    %v4897 = vadd.f32 %v4853, %v4896
    %4898 = vmatmul.bf16.gmra.mxu0 %v4865
    %v4899 = vpop.f32.mrf.mxu0
    %v4900 = vadd.f32 %v4853, %v4899
    %v4901 = vpop.f32.mrf.mxu0
    %v4902 = vadd.f32 %v4853, %v4901
    %4903 = vmatmul.bf16.gmra.mxu0 %v4868
    %v4904 = vpop.f32.mrf.mxu0
    %v4905 = vadd.f32 %v4853, %v4904
    %v4906 = vpop.f32.mrf.mxu0
    %v4907 = vadd.f32 %v4853, %v4906
    %4908 = vmatmul.bf16.gmra.mxu0 %v4871
    %v4909 = vpop.f32.mrf.mxu0
    %v4910 = vadd.f32 %v4853, %v4909
    %v4911 = vpop.f32.mrf.mxu0
    %v4912 = vadd.f32 %v4853, %v4911
    %4913 = vmatmul.bf16.gmra.mxu0 %v4874
    %v4914 = vpop.f32.mrf.mxu0
    %v4915 = vadd.f32 %v4853, %v4914
    %v4916 = vpop.f32.mrf.mxu0
    %v4917 = vadd.f32 %v4853, %v4916
    %4918 = vmatmul.bf16.gmra.mxu0 %v4877
    %v4919 = vpop.f32.mrf.mxu0
    %v4920 = vadd.f32 %v4853, %v4919
    %v4921 = vpop.f32.mrf.mxu0
    %v4922 = vadd.f32 %v4853, %v4921
    %4923 = vmatmul.bf16.gmra.mxu0 %v4880
    %v4924 = vpop.f32.mrf.mxu0
    %v4925 = vadd.f32 %v4853, %v4924
    %v4926 = vpop.f32.mrf.mxu0
    %v4927 = vadd.f32 %v4853, %v4926
    %4928 = vmatmul.bf16.gmra.mxu0 %v4883
    %v4929 = vpop.f32.mrf.mxu0
    %v4930 = vadd.f32 %v4853, %v4929
    %v4931 = vpop.f32.mrf.mxu0
    %v4932 = vadd.f32 %v4853, %v4931
    %4933 = vdwg.mxu0
    %v4934 = vmul.f32 %v4895, 0.5
    %v4935 = vmul.f32 %v4897, 0.5
    %v4936 = vmul.f32 %v4900, 0.5
    %v4937 = vmul.f32 %v4902, 0.5
    %v4938 = vmul.f32 %v4905, 0.5
    %v4939 = vmul.f32 %v4907, 0.5
    %v4940 = vmul.f32 %v4910, 0.5
    %v4941 = vmul.f32 %v4912, 0.5
    %v4942 = vmul.f32 %v4915, 0.5
    %v4943 = vmul.f32 %v4917, 0.5
    %v4944 = vmul.f32 %v4920, 0.5
    %v4945 = vmul.f32 %v4922, 0.5
    %v4946 = vmul.f32 %v4925, 0.5
    %v4947 = vmul.f32 %v4927, 0.5
    %v4948 = vmul.f32 %v4930, 0.5
    %v4949 = vmul.f32 %v4932, 0.5
    %v4950 = vmul.f32 %v4895, 0.044715
    %v4951 = vmul.f32 %v4897, 0.044715
    %v4952 = vmul.f32 %v4900, 0.044715
    %v4953 = vmul.f32 %v4902, 0.044715
    %v4954 = vmul.f32 %v4905, 0.044715
    %v4955 = vmul.f32 %v4907, 0.044715
    %v4956 = vmul.f32 %v4910, 0.044715
    %v4957 = vmul.f32 %v4912, 0.044715
    %v4958 = vmul.f32 %v4915, 0.044715
    %v4959 = vmul.f32 %v4917, 0.044715
    %v4960 = vmul.f32 %v4920, 0.044715
    %v4961 = vmul.f32 %v4922, 0.044715
    %v4962 = vmul.f32 %v4925, 0.044715
    %v4963 = vmul.f32 %v4927, 0.044715
    %v4964 = vmul.f32 %v4930, 0.044715
    %v4965 = vmul.f32 %v4932, 0.044715
    %v4966 = vmul.f32 %v4950, %v4895
    %v4967 = vmul.f32 %v4951, %v4897
    %v4968 = vmul.f32 %v4952, %v4900
    %v4969 = vmul.f32 %v4953, %v4902
    %v4970 = vmul.f32 %v4954, %v4905
    %v4971 = vmul.f32 %v4955, %v4907
    %v4972 = vmul.f32 %v4956, %v4910
    %v4973 = vmul.f32 %v4957, %v4912
    %v4974 = vmul.f32 %v4958, %v4915
    %v4975 = vmul.f32 %v4959, %v4917
    %v4976 = vmul.f32 %v4960, %v4920
    %v4977 = vmul.f32 %v4961, %v4922
    %v4978 = vmul.f32 %v4962, %v4925
    %v4979 = vmul.f32 %v4963, %v4927
    %v4980 = vmul.f32 %v4964, %v4930
    %v4981 = vmul.f32 %v4965, %v4932
    %v4982 = vmul.f32 %v4966, %v4895
    %v4983 = vmul.f32 %v4967, %v4897
    %v4984 = vmul.f32 %v4968, %v4900
    %v4985 = vmul.f32 %v4969, %v4902
    %v4986 = vmul.f32 %v4970, %v4905
    %v4987 = vmul.f32 %v4971, %v4907
    %v4988 = vmul.f32 %v4972, %v4910
    %v4989 = vmul.f32 %v4973, %v4912
    %v4990 = vmul.f32 %v4974, %v4915
    %v4991 = vmul.f32 %v4975, %v4917
    %v4992 = vmul.f32 %v4976, %v4920
    %v4993 = vmul.f32 %v4977, %v4922
    %v4994 = vmul.f32 %v4978, %v4925
    %v4995 = vmul.f32 %v4979, %v4927
    %v4996 = vmul.f32 %v4980, %v4930
    %v4997 = vmul.f32 %v4981, %v4932
    %v4998 = vadd.f32 %v4895, %v4982
    %v4999 = vadd.f32 %v4897, %v4983
    %v5000 = vadd.f32 %v4900, %v4984
    %v5001 = vadd.f32 %v4902, %v4985
    %v5002 = vadd.f32 %v4905, %v4986
    %v5003 = vadd.f32 %v4907, %v4987
    %v5004 = vadd.f32 %v4910, %v4988
    %v5005 = vadd.f32 %v4912, %v4989
    %v5006 = vadd.f32 %v4915, %v4990
    %v5007 = vadd.f32 %v4917, %v4991
    %v5008 = vadd.f32 %v4920, %v4992
    %v5009 = vadd.f32 %v4922, %v4993
    %v5010 = vadd.f32 %v4925, %v4994
    %v5011 = vadd.f32 %v4927, %v4995
    %v5012 = vadd.f32 %v4930, %v4996
    %v5013 = vadd.f32 %v4932, %v4997
    %v5014 = vmul.f32 %v4998, 0.7978846
    %v5015 = vmul.f32 %v4999, 0.7978846
    %v5016 = vmul.f32 %v5000, 0.7978846
    %v5017 = vmul.f32 %v5001, 0.7978846
    %v5018 = vmul.f32 %v5002, 0.7978846
    %v5019 = vmul.f32 %v5003, 0.7978846
    %v5020 = vmul.f32 %v5004, 0.7978846
    %v5021 = vmul.f32 %v5005, 0.7978846
    %v5022 = vmul.f32 %v5006, 0.7978846
    %v5023 = vmul.f32 %v5007, 0.7978846
    %v5024 = vmul.f32 %v5008, 0.7978846
    %v5025 = vmul.f32 %v5009, 0.7978846
    %v5026 = vmul.f32 %v5010, 0.7978846
    %v5027 = vmul.f32 %v5011, 0.7978846
    %v5028 = vmul.f32 %v5012, 0.7978846
    %v5029 = vmul.f32 %v5013, 0.7978846
    %v5030 = vtanh.pop %v5014
    %v5031 = vtanh.pop %v5015
    %v5032 = vtanh.pop %v5016
    %v5033 = vtanh.pop %v5017
    %v5034 = vtanh.pop %v5018
    %v5035 = vtanh.pop %v5019
    %v5036 = vtanh.pop %v5020
    %v5037 = vtanh.pop %v5021
    %v5038 = vtanh.pop %v5022
    %v5039 = vtanh.pop %v5023
    %v5040 = vtanh.pop %v5024
    %v5041 = vtanh.pop %v5025
    %v5042 = vtanh.pop %v5026
    %v5043 = vtanh.pop %v5027
    %v5044 = vtanh.pop %v5028
    %v5045 = vtanh.pop %v5029
    %v5046 = vadd.f32 %v5030, 1.0
    %v5047 = vadd.f32 %v5031, 1.0
    %v5048 = vadd.f32 %v5032, 1.0
    %v5049 = vadd.f32 %v5033, 1.0
    %v5050 = vadd.f32 %v5034, 1.0
    %v5051 = vadd.f32 %v5035, 1.0
    %v5052 = vadd.f32 %v5036, 1.0
    %v5053 = vadd.f32 %v5037, 1.0
    %v5054 = vadd.f32 %v5038, 1.0
    %v5055 = vadd.f32 %v5039, 1.0
    %v5056 = vadd.f32 %v5040, 1.0
    %v5057 = vadd.f32 %v5041, 1.0
    %v5058 = vadd.f32 %v5042, 1.0
    %v5059 = vadd.f32 %v5043, 1.0
    %v5060 = vadd.f32 %v5044, 1.0
    %v5061 = vadd.f32 %v5045, 1.0
    %v5062 = vmul.f32 %v4934, %v5046
    %v5063 = vmul.f32 %v4935, %v5047
    %v5064 = vmul.f32 %v4936, %v5048
    %v5065 = vmul.f32 %v4937, %v5049
    %v5066 = vmul.f32 %v4938, %v5050
    %v5067 = vmul.f32 %v4939, %v5051
    %v5068 = vmul.f32 %v4940, %v5052
    %v5069 = vmul.f32 %v4941, %v5053
    %v5070 = vmul.f32 %v4942, %v5054
    %v5071 = vmul.f32 %v4943, %v5055
    %v5072 = vmul.f32 %v4944, %v5056
    %v5073 = vmul.f32 %v4945, %v5057
    %v5074 = vmul.f32 %v4946, %v5058
    %v5075 = vmul.f32 %v4947, %v5059
    %v5076 = vmul.f32 %v4948, %v5060
    %v5077 = vmul.f32 %v4949, %v5061
    %v5078 = vld [vmem:[%s55] sm:$0xf]
    %v5079 = vld [vmem:[%s55 + $0x4] sm:$0xf]
    %v5080 = vld [vmem:[%s55 + $0x8] sm:$0xf]
    %v5081 = vld [vmem:[%s55 + $0xc] sm:$0xf]
    %v5082 = vld [vmem:[%s55 + $0x10] sm:$0xf]
    %v5083 = vld [vmem:[%s55 + $0x14] sm:$0xf]
    %v5084 = vld [vmem:[%s55 + $0x18] sm:$0xf]
    %v5085 = vld [vmem:[%s55 + $0x1c] sm:$0xf]
    %v5086 = vpack.c.bf16 %v5063, %v5062
    %v5087 = vpack.c.bf16 %v5065, %v5064
    %v5088 = vpack.c.bf16 %v5067, %v5066
    %v5089 = vpack.c.bf16 %v5069, %v5068
    %v5090 = vpack.c.bf16 %v5071, %v5070
    %v5091 = vpack.c.bf16 %v5073, %v5072
    %v5092 = vpack.c.bf16 %v5075, %v5074
    %v5093 = vpack.c.bf16 %v5077, %v5076
    %v5094 = vld [vmem:[#allocation8] sm:$0x1]
    %v5096 = vperm.slane %v5094, 0
    %v5106 = vunpack.c.l.b16 %v5078
    %v5107 = vunpack.c.l.b16 %v5079
    %v5108 = vunpack.c.l.b16 %v5080
    %v5109 = vunpack.c.l.b16 %v5081
    %v5110 = vunpack.c.l.b16 %v5082
    %v5111 = vunpack.c.l.b16 %v5083
    %v5112 = vunpack.c.l.b16 %v5084
    %v5113 = vunpack.c.l.b16 %v5085
    %v5114 = vpack.c.b16 %v5107, %v5106
    %v5115 = vpack.c.b16 %v5109, %v5108
    %v5116 = vpack.c.b16 %v5111, %v5110
    %v5117 = vpack.c.b16 %v5113, %v5112
    %v5123 = vsel %vm2863, %v5086, 0
    %v5126 = vsel %vm2863, %v5087, 0
    %v5129 = vsel %vm2863, %v5088, 0
    %v5132 = vsel %vm2863, %v5089, 0
    %v5135 = vsel %vm2863, %v5090, 0
    %v5138 = vsel %vm2863, %v5091, 0
    %v5141 = vsel %vm2863, %v5092, 0
    %v5144 = vsel %vm2863, %v5093, 0
    %5146 = vmatpush.bf16.msra.mxu0 0
    %5147 = vmatpush.bf16.msra.mxu0 0
    %5148 = vmatpush.bf16.msra.mxu0 0
    %5149 = vmatpush.bf16.msra.mxu0 0
    %5150 = vmatpush.bf16.msra.mxu0 %v5117
    %5151 = vmatpush.bf16.msra.mxu0 %v5116
    %5152 = vmatpush.bf16.msra.mxu0 %v5115
    %5153 = vmatpush.bf16.msra.mxu0 %v5114
    %5154 = vmatmul.bf16.gmra.mxu0 %v5123
    %v5155 = vpop.f32.mrf.mxu0
    %v5156 = vadd.f32 %v5096, %v5155
    %v5157 = vpop.f32.mrf.mxu0
    %v5158 = vadd.f32 %v5096, %v5157
    %5159 = vmatmul.bf16.gmra.mxu0 %v5126
    %v5160 = vpop.f32.mrf.mxu0
    %v5161 = vadd.f32 %v5096, %v5160
    %v5162 = vpop.f32.mrf.mxu0
    %v5163 = vadd.f32 %v5096, %v5162
    %5164 = vmatmul.bf16.gmra.mxu0 %v5129
    %v5165 = vpop.f32.mrf.mxu0
    %v5166 = vadd.f32 %v5096, %v5165
    %v5167 = vpop.f32.mrf.mxu0
    %v5168 = vadd.f32 %v5096, %v5167
    %5169 = vmatmul.bf16.gmra.mxu0 %v5132
    %v5170 = vpop.f32.mrf.mxu0
    %v5171 = vadd.f32 %v5096, %v5170
    %v5172 = vpop.f32.mrf.mxu0
    %v5173 = vadd.f32 %v5096, %v5172
    %5174 = vmatmul.bf16.gmra.mxu0 %v5135
    %v5175 = vpop.f32.mrf.mxu0
    %v5176 = vadd.f32 %v5096, %v5175
    %v5177 = vpop.f32.mrf.mxu0
    %v5178 = vadd.f32 %v5096, %v5177
    %5179 = vmatmul.bf16.gmra.mxu0 %v5138
    %v5180 = vpop.f32.mrf.mxu0
    %v5181 = vadd.f32 %v5096, %v5180
    %v5182 = vpop.f32.mrf.mxu0
    %v5183 = vadd.f32 %v5096, %v5182
    %5184 = vmatmul.bf16.gmra.mxu0 %v5141
    %v5185 = vpop.f32.mrf.mxu0
    %v5186 = vadd.f32 %v5096, %v5185
    %v5187 = vpop.f32.mrf.mxu0
    %v5188 = vadd.f32 %v5096, %v5187
    %5189 = vmatmul.bf16.gmra.mxu0 %v5144
    %v5190 = vpop.f32.mrf.mxu0
    %v5191 = vadd.f32 %v5096, %v5190
    %v5192 = vpop.f32.mrf.mxu0
    %v5193 = vadd.f32 %v5096, %v5192
    %5194 = vdwg.mxu0
    %v5195 = vadd.f32 %v4433, %v5156
    %v5196 = vadd.f32 %v4434, %v5158
    %v5197 = vadd.f32 %v4435, %v5161
    %v5198 = vadd.f32 %v4436, %v5163
    %v5199 = vadd.f32 %v4437, %v5166
    %v5200 = vadd.f32 %v4438, %v5168
    %v5201 = vadd.f32 %v4439, %v5171
    %v5202 = vadd.f32 %v4440, %v5173
    %v5203 = vadd.f32 %v4441, %v5176
    %v5204 = vadd.f32 %v4442, %v5178
    %v5205 = vadd.f32 %v4443, %v5181
    %v5206 = vadd.f32 %v4444, %v5183
    %v5207 = vadd.f32 %v4445, %v5186
    %v5208 = vadd.f32 %v4446, %v5188
    %v5209 = vadd.f32 %v4447, %v5191
    %v5210 = vadd.f32 %v4448, %v5193
    %v5211 = vld [vmem:[%s59] sm:$0xff]
    %v5212 = vld [vmem:[%s59 + $0x8] sm:$0xff]
    %v5213 = vld [vmem:[%s59 + $0x10] sm:$0xff]
    %v5214 = vld [vmem:[%s59 + $0x18] sm:$0xff]
    %5215 = vmatpush.msra.mxu0 %v5210
    %5216 = vmatpush.msra.mxu0 %v5209
    %5217 = vmatpush.msra.mxu0 %v5208
    %5218 = vmatpush.msra.mxu0 %v5207
    %5219 = vmatpush.msra.mxu0 %v5206
    %5220 = vmatpush.msra.mxu0 %v5205
    %5221 = vmatpush.msra.mxu0 %v5204
    %5222 = vmatpush.msra.mxu0 %v5203
    %5223 = vmatpush.msra.mxu0 %v5202
    %5224 = vmatpush.msra.mxu0 %v5201
    %5225 = vmatpush.msra.mxu0 %v5200
    %5226 = vmatpush.msra.mxu0 %v5199
    %5227 = vmatpush.msra.mxu0 %v5198
    %5228 = vmatpush.msra.mxu0 %v5197
    %5229 = vmatpush.msra.mxu0 %v5196
    %5230 = vmatpush.msra.mxu0 %v5195
    %5231 = vmatmul.f32.gmra.mxu0 %v5211
    %v5232 = vpop.f32.mrf.mxu0
    %v5233 = vadd.f32 0.0, %v5232
    %5234 = vmatmul.f32.gmra.mxu0 %v5212
    %v5235 = vpop.f32.mrf.mxu0
    %v5236 = vadd.f32 0.0, %v5235
    %5237 = vmatmul.f32.gmra.mxu0 %v5213
    %v5238 = vpop.f32.mrf.mxu0
    %v5239 = vadd.f32 0.0, %v5238
    %5240 = vmatmul.f32.gmra.mxu0 %v5214
    %v5241 = vpop.f32.mrf.mxu0
    %v5242 = vadd.f32 0.0, %v5241
    %5243 = vdwg.mxu0
    %s5244 = scalar_lea.vmem %s59, 32
    %v5245 = vld [vmem:[%s5244] sm:$0xff]
    %v5246 = vld [vmem:[%s5244 + $0x8] sm:$0xff]
    %v5247 = vld [vmem:[%s5244 + $0x10] sm:$0xff]
    %v5248 = vld [vmem:[%s5244 + $0x18] sm:$0xff]
    %5249 = vmatpush.msra.mxu0 %v5210
    %5250 = vmatpush.msra.mxu0 %v5209
    %5251 = vmatpush.msra.mxu0 %v5208
    %5252 = vmatpush.msra.mxu0 %v5207
    %5253 = vmatpush.msra.mxu0 %v5206
    %5254 = vmatpush.msra.mxu0 %v5205
    %5255 = vmatpush.msra.mxu0 %v5204
    %5256 = vmatpush.msra.mxu0 %v5203
    %5257 = vmatpush.msra.mxu0 %v5202
    %5258 = vmatpush.msra.mxu0 %v5201
    %5259 = vmatpush.msra.mxu0 %v5200
    %5260 = vmatpush.msra.mxu0 %v5199
    %5261 = vmatpush.msra.mxu0 %v5198
    %5262 = vmatpush.msra.mxu0 %v5197
    %5263 = vmatpush.msra.mxu0 %v5196
    %5264 = vmatpush.msra.mxu0 %v5195
    %5265 = vmatmul.f32.gmra.mxu0 %v5245
    %v5266 = vpop.f32.mrf.mxu0
    %v5267 = vadd.f32 0.0, %v5266
    %5268 = vmatmul.f32.gmra.mxu0 %v5246
    %v5269 = vpop.f32.mrf.mxu0
    %v5270 = vadd.f32 0.0, %v5269
    %5271 = vmatmul.f32.gmra.mxu0 %v5247
    %v5272 = vpop.f32.mrf.mxu0
    %v5273 = vadd.f32 0.0, %v5272
    %5274 = vmatmul.f32.gmra.mxu0 %v5248
    %v5275 = vpop.f32.mrf.mxu0
    %v5276 = vadd.f32 0.0, %v5275
    %5277 = vdwg.mxu0
    %s5278 = scalar_lea.vmem %s59, 64
    %v5279 = vld [vmem:[%s5278] sm:$0xff]
    %v5280 = vld [vmem:[%s5278 + $0x8] sm:$0xff]
    %v5281 = vld [vmem:[%s5278 + $0x10] sm:$0xff]
    %v5282 = vld [vmem:[%s5278 + $0x18] sm:$0xff]
    %5283 = vmatpush.msra.mxu0 %v5210
    %5284 = vmatpush.msra.mxu0 %v5209
    %5285 = vmatpush.msra.mxu0 %v5208
    %5286 = vmatpush.msra.mxu0 %v5207
    %5287 = vmatpush.msra.mxu0 %v5206
    %5288 = vmatpush.msra.mxu0 %v5205
    %5289 = vmatpush.msra.mxu0 %v5204
    %5290 = vmatpush.msra.mxu0 %v5203
    %5291 = vmatpush.msra.mxu0 %v5202
    %5292 = vmatpush.msra.mxu0 %v5201
    %5293 = vmatpush.msra.mxu0 %v5200
    %5294 = vmatpush.msra.mxu0 %v5199
    %5295 = vmatpush.msra.mxu0 %v5198
    %5296 = vmatpush.msra.mxu0 %v5197
    %5297 = vmatpush.msra.mxu0 %v5196
    %5298 = vmatpush.msra.mxu0 %v5195
    %5299 = vmatmul.f32.gmra.mxu0 %v5279
    %v5300 = vpop.f32.mrf.mxu0
    %v5301 = vadd.f32 0.0, %v5300
    %5302 = vmatmul.f32.gmra.mxu0 %v5280
    %v5303 = vpop.f32.mrf.mxu0
    %v5304 = vadd.f32 0.0, %v5303
    %5305 = vmatmul.f32.gmra.mxu0 %v5281
    %v5306 = vpop.f32.mrf.mxu0
    %v5307 = vadd.f32 0.0, %v5306
    %5308 = vmatmul.f32.gmra.mxu0 %v5282
    %v5309 = vpop.f32.mrf.mxu0
    %v5310 = vadd.f32 0.0, %v5309
    %5311 = vdwg.mxu0
    %s5312 = scalar_lea.vmem %s59, 96
    %v5313 = vld [vmem:[%s5312] sm:$0xff]
    %v5314 = vld [vmem:[%s5312 + $0x8] sm:$0xff]
    %v5315 = vld [vmem:[%s5312 + $0x10] sm:$0xff]
    %v5316 = vld [vmem:[%s5312 + $0x18] sm:$0xff]
    %5317 = vmatpush.msra.mxu0 %v5210
    %5318 = vmatpush.msra.mxu0 %v5209
    %5319 = vmatpush.msra.mxu0 %v5208
    %5320 = vmatpush.msra.mxu0 %v5207
    %5321 = vmatpush.msra.mxu0 %v5206
    %5322 = vmatpush.msra.mxu0 %v5205
    %5323 = vmatpush.msra.mxu0 %v5204
    %5324 = vmatpush.msra.mxu0 %v5203
    %5325 = vmatpush.msra.mxu0 %v5202
    %5326 = vmatpush.msra.mxu0 %v5201
    %5327 = vmatpush.msra.mxu0 %v5200
    %5328 = vmatpush.msra.mxu0 %v5199
    %5329 = vmatpush.msra.mxu0 %v5198
    %5330 = vmatpush.msra.mxu0 %v5197
    %5331 = vmatpush.msra.mxu0 %v5196
    %5332 = vmatpush.msra.mxu0 %v5195
    %5333 = vmatmul.f32.gmra.mxu0 %v5313
    %v5334 = vpop.f32.mrf.mxu0
    %v5335 = vadd.f32 0.0, %v5334
    %5336 = vmatmul.f32.gmra.mxu0 %v5314
    %v5337 = vpop.f32.mrf.mxu0
    %v5338 = vadd.f32 0.0, %v5337
    %5339 = vmatmul.f32.gmra.mxu0 %v5315
    %v5340 = vpop.f32.mrf.mxu0
    %v5341 = vadd.f32 0.0, %v5340
    %5342 = vmatmul.f32.gmra.mxu0 %v5316
    %v5343 = vpop.f32.mrf.mxu0
    %v5344 = vadd.f32 0.0, %v5343
    %5345 = vdwg.mxu0
    %v5346 = vsel %vm611, %v5233, 0.0
    %5347 = vadd.xlane.f32.xlu0 %v5346
    %v5348 = vpop.xlane.xlu0 %5347
    %v5349 = vsel %vm611, %v5236, 0.0
    %5350 = vadd.xlane.f32.xlu0 %v5349
    %v5351 = vpop.xlane.xlu0 %5350
    %v5352 = vsel %vm611, %v5239, 0.0
    %5353 = vadd.xlane.f32.xlu0 %v5352
    %v5354 = vpop.xlane.xlu0 %5353
    %v5355 = vsel %vm611, %v5242, 0.0
    %5356 = vadd.xlane.f32.xlu0 %v5355
    %v5357 = vpop.xlane.xlu0 %5356
    %v5358 = vadd.f32 %v5348, 0.0
    %v5359 = vadd.f32 %v5351, 0.0
    %v5360 = vadd.f32 %v5354, 0.0
    %v5361 = vadd.f32 %v5357, 0.0
    %v5362 = vsel %vm611, %v5267, 0.0
    %5363 = vadd.xlane.f32.xlu0 %v5362
    %v5364 = vpop.xlane.xlu0 %5363
    %v5365 = vsel %vm611, %v5270, 0.0
    %5366 = vadd.xlane.f32.xlu0 %v5365
    %v5367 = vpop.xlane.xlu0 %5366
    %v5368 = vsel %vm611, %v5273, 0.0
    %5369 = vadd.xlane.f32.xlu0 %v5368
    %v5370 = vpop.xlane.xlu0 %5369
    %v5371 = vsel %vm611, %v5276, 0.0
    %5372 = vadd.xlane.f32.xlu0 %v5371
    %v5373 = vpop.xlane.xlu0 %5372
    %v5374 = vadd.f32 %v5358, %v5364
    %v5375 = vadd.f32 %v5359, %v5367
    %v5376 = vadd.f32 %v5360, %v5370
    %v5377 = vadd.f32 %v5361, %v5373
    %v5378 = vsel %vm611, %v5301, 0.0
    %5379 = vadd.xlane.f32.xlu0 %v5378
    %v5380 = vpop.xlane.xlu0 %5379
    %v5381 = vsel %vm611, %v5304, 0.0
    %5382 = vadd.xlane.f32.xlu0 %v5381
    %v5383 = vpop.xlane.xlu0 %5382
    %v5384 = vsel %vm611, %v5307, 0.0
    %5385 = vadd.xlane.f32.xlu0 %v5384
    %v5386 = vpop.xlane.xlu0 %5385
    %v5387 = vsel %vm611, %v5310, 0.0
    %5388 = vadd.xlane.f32.xlu0 %v5387
    %v5389 = vpop.xlane.xlu0 %5388
    %v5390 = vadd.f32 %v5374, %v5380
    %v5391 = vadd.f32 %v5375, %v5383
    %v5392 = vadd.f32 %v5376, %v5386
    %v5393 = vadd.f32 %v5377, %v5389
    %v5394 = vsel %vm611, %v5335, 0.0
    %5395 = vadd.xlane.f32.xlu0 %v5394
    %v5396 = vpop.xlane.xlu0 %5395
    %v5397 = vsel %vm611, %v5338, 0.0
    %5398 = vadd.xlane.f32.xlu0 %v5397
    %v5399 = vpop.xlane.xlu0 %5398
    %v5400 = vsel %vm611, %v5341, 0.0
    %5401 = vadd.xlane.f32.xlu0 %v5400
    %v5402 = vpop.xlane.xlu0 %5401
    %v5403 = vsel %vm611, %v5344, 0.0
    %5404 = vadd.xlane.f32.xlu0 %v5403
    %v5405 = vpop.xlane.xlu0 %5404
    %v5406 = vadd.f32 %v5390, %v5396
    %v5407 = vadd.f32 %v5391, %v5399
    %v5408 = vadd.f32 %v5392, %v5402
    %v5409 = vadd.f32 %v5393, %v5405
    %v5410 = vrcp.pop 64.0
    %v5411 = vmul.f32 64.0, %v5410
    %v5412 = vsub.f32 1.0, %v5411
    %v5413 = vmul.f32 %v5410, %v5412
    %v5414 = vadd.f32 %v5410, %v5413
    %vm5415 = vweird.f32 %v5410
    %v5416 = vsel %vm5415, %v5410, %v5414
    %v5417 = vmul.f32 %v5406, %v5416
    %v5418 = vmul.f32 %v5407, %v5416
    %v5419 = vmul.f32 %v5408, %v5416
    %v5420 = vmul.f32 %v5409, %v5416
    %v5421 = vsub.f32 %v5233, %v5417
    %v5422 = vsub.f32 %v5236, %v5418
    %v5423 = vsub.f32 %v5239, %v5419
    %v5424 = vsub.f32 %v5242, %v5420
    %v5425 = vmul.f32 %v5421, %v5421
    %v5426 = vmul.f32 %v5422, %v5422
    %v5427 = vmul.f32 %v5423, %v5423
    %v5428 = vmul.f32 %v5424, %v5424
    %v5429 = vsel %vm611, %v5425, 0.0
    %5430 = vadd.xlane.f32.xlu0 %v5429
    %v5431 = vpop.xlane.xlu0 %5430
    %v5432 = vsel %vm611, %v5426, 0.0
    %5433 = vadd.xlane.f32.xlu0 %v5432
    %v5434 = vpop.xlane.xlu0 %5433
    %v5435 = vsel %vm611, %v5427, 0.0
    %5436 = vadd.xlane.f32.xlu0 %v5435
    %v5437 = vpop.xlane.xlu0 %5436
    %v5438 = vsel %vm611, %v5428, 0.0
    %5439 = vadd.xlane.f32.xlu0 %v5438
    %v5440 = vpop.xlane.xlu0 %5439
    %v5441 = vadd.f32 %v5431, 0.0
    %v5442 = vadd.f32 %v5434, 0.0
    %v5443 = vadd.f32 %v5437, 0.0
    %v5444 = vadd.f32 %v5440, 0.0
    %v5445 = vsub.f32 %v5267, %v5417
    %v5446 = vsub.f32 %v5270, %v5418
    %v5447 = vsub.f32 %v5273, %v5419
    %v5448 = vsub.f32 %v5276, %v5420
    %v5449 = vmul.f32 %v5445, %v5445
    %v5450 = vmul.f32 %v5446, %v5446
    %v5451 = vmul.f32 %v5447, %v5447
    %v5452 = vmul.f32 %v5448, %v5448
    %v5453 = vsel %vm611, %v5449, 0.0
    %5454 = vadd.xlane.f32.xlu0 %v5453
    %v5455 = vpop.xlane.xlu0 %5454
    %v5456 = vsel %vm611, %v5450, 0.0
    %5457 = vadd.xlane.f32.xlu0 %v5456
    %v5458 = vpop.xlane.xlu0 %5457
    %v5459 = vsel %vm611, %v5451, 0.0
    %5460 = vadd.xlane.f32.xlu0 %v5459
    %v5461 = vpop.xlane.xlu0 %5460
    %v5462 = vsel %vm611, %v5452, 0.0
    %5463 = vadd.xlane.f32.xlu0 %v5462
    %v5464 = vpop.xlane.xlu0 %5463
    %v5465 = vadd.f32 %v5441, %v5455
    %v5466 = vadd.f32 %v5442, %v5458
    %v5467 = vadd.f32 %v5443, %v5461
    %v5468 = vadd.f32 %v5444, %v5464
    %v5469 = vsub.f32 %v5301, %v5417
    %v5470 = vsub.f32 %v5304, %v5418
    %v5471 = vsub.f32 %v5307, %v5419
    %v5472 = vsub.f32 %v5310, %v5420
    %v5473 = vmul.f32 %v5469, %v5469
    %v5474 = vmul.f32 %v5470, %v5470
    %v5475 = vmul.f32 %v5471, %v5471
    %v5476 = vmul.f32 %v5472, %v5472
    %v5477 = vsel %vm611, %v5473, 0.0
    %5478 = vadd.xlane.f32.xlu0 %v5477
    %v5479 = vpop.xlane.xlu0 %5478
    %v5480 = vsel %vm611, %v5474, 0.0
    %5481 = vadd.xlane.f32.xlu0 %v5480
    %v5482 = vpop.xlane.xlu0 %5481
    %v5483 = vsel %vm611, %v5475, 0.0
    %5484 = vadd.xlane.f32.xlu0 %v5483
    %v5485 = vpop.xlane.xlu0 %5484
    %v5486 = vsel %vm611, %v5476, 0.0
    %5487 = vadd.xlane.f32.xlu0 %v5486
    %v5488 = vpop.xlane.xlu0 %5487
    %v5489 = vadd.f32 %v5465, %v5479
    %v5490 = vadd.f32 %v5466, %v5482
    %v5491 = vadd.f32 %v5467, %v5485
    %v5492 = vadd.f32 %v5468, %v5488
    %v5493 = vsub.f32 %v5335, %v5417
    %v5494 = vsub.f32 %v5338, %v5418
    %v5495 = vsub.f32 %v5341, %v5419
    %v5496 = vsub.f32 %v5344, %v5420
    %v5497 = vmul.f32 %v5493, %v5493
    %v5498 = vmul.f32 %v5494, %v5494
    %v5499 = vmul.f32 %v5495, %v5495
    %v5500 = vmul.f32 %v5496, %v5496
    %v5501 = vsel %vm611, %v5497, 0.0
    %5502 = vadd.xlane.f32.xlu0 %v5501
    %v5503 = vpop.xlane.xlu0 %5502
    %v5504 = vsel %vm611, %v5498, 0.0
    %5505 = vadd.xlane.f32.xlu0 %v5504
    %v5506 = vpop.xlane.xlu0 %5505
    %v5507 = vsel %vm611, %v5499, 0.0
    %5508 = vadd.xlane.f32.xlu0 %v5507
    %v5509 = vpop.xlane.xlu0 %5508
    %v5510 = vsel %vm611, %v5500, 0.0
    %5511 = vadd.xlane.f32.xlu0 %v5510
    %v5512 = vpop.xlane.xlu0 %5511
    %v5513 = vadd.f32 %v5489, %v5503
    %v5514 = vadd.f32 %v5490, %v5506
    %v5515 = vadd.f32 %v5491, %v5509
    %v5516 = vadd.f32 %v5492, %v5512
    %v5517 = vmul.f32 %v5513, %v5416
    %v5518 = vmul.f32 %v5514, %v5416
    %v5519 = vmul.f32 %v5515, %v5416
    %v5520 = vmul.f32 %v5516, %v5416
    %v5521 = vadd.f32 %v5517, 1e-05
    %v5522 = vadd.f32 %v5518, 1e-05
    %v5523 = vadd.f32 %v5519, 1e-05
    %v5524 = vadd.f32 %v5520, 1e-05
    %v5525 = vrsqrt.pop %v5521
    %v5526 = vmul.f32 %v5525, %v5521
    %v5527 = vmul.f32 %v5526, %v5525
    %v5528 = vmul.f32 0.5, %v5527
    %v5529 = vsub.f32 1.5, %v5528
    %v5530 = vmul.f32 %v5525, %v5529
    %vm5531 = vweird.f32 %v5521
    %vm5532 = vweird.f32 %v5525
    %vm5533 = vmor %vm5531, %vm5532
    %v5534 = vsel %vm5533, %v5525, %v5530
    %v5535 = vrsqrt.pop %v5522
    %v5536 = vmul.f32 %v5535, %v5522
    %v5537 = vmul.f32 %v5536, %v5535
    %v5538 = vmul.f32 0.5, %v5537
    %v5539 = vsub.f32 1.5, %v5538
    %v5540 = vmul.f32 %v5535, %v5539
    %vm5541 = vweird.f32 %v5522
    %vm5542 = vweird.f32 %v5535
    %vm5543 = vmor %vm5541, %vm5542
    %v5544 = vsel %vm5543, %v5535, %v5540
    %v5545 = vrsqrt.pop %v5523
    %v5546 = vmul.f32 %v5545, %v5523
    %v5547 = vmul.f32 %v5546, %v5545
    %v5548 = vmul.f32 0.5, %v5547
    %v5549 = vsub.f32 1.5, %v5548
    %v5550 = vmul.f32 %v5545, %v5549
    %vm5551 = vweird.f32 %v5523
    %vm5552 = vweird.f32 %v5545
    %vm5553 = vmor %vm5551, %vm5552
    %v5554 = vsel %vm5553, %v5545, %v5550
    %v5555 = vrsqrt.pop %v5524
    %v5556 = vmul.f32 %v5555, %v5524
    %v5557 = vmul.f32 %v5556, %v5555
    %v5558 = vmul.f32 0.5, %v5557
    %v5559 = vsub.f32 1.5, %v5558
    %v5560 = vmul.f32 %v5555, %v5559
    %vm5561 = vweird.f32 %v5524
    %vm5562 = vweird.f32 %v5555
    %vm5563 = vmor %vm5561, %vm5562
    %v5564 = vsel %vm5563, %v5555, %v5560
    %v5565 = vmul.f32 %v5421, %v5534
    %v5566 = vmul.f32 %v5422, %v5544
    %v5567 = vmul.f32 %v5423, %v5554
    %v5568 = vmul.f32 %v5424, %v5564
    %v5569 = vld [vmem:[%s61] sm:$0x1]
    %v5571 = vperm.slane %v5569, 0
    %v5573 = vmul.f32 %v5565, %v5571
    %v5574 = vmul.f32 %v5566, %v5571
    %v5575 = vmul.f32 %v5567, %v5571
    %v5576 = vmul.f32 %v5568, %v5571
    %v5577 = vld [vmem:[%s63] sm:$0x1]
    %v5579 = vperm.slane %v5577, 0
    %v5581 = vadd.f32 %v5573, %v5579
    %v5582 = vadd.f32 %v5574, %v5579
    %v5583 = vadd.f32 %v5575, %v5579
    %v5584 = vadd.f32 %v5576, %v5579
    %v5585 = vld [vmem:[%s65] sm:$0xf]
    %v5586 = vld [vmem:[%s65 + $0x4] sm:$0xf]
    %v5587 = vpack.c.bf16 %v5582, %v5581
    %v5588 = vpack.c.bf16 %v5584, %v5583
    %v5589 = vmul.f32 %v5445, %v5534
    %v5590 = vmul.f32 %v5446, %v5544
    %v5591 = vmul.f32 %v5447, %v5554
    %v5592 = vmul.f32 %v5448, %v5564
    %s5593 = scalar_lea.vmem %s61, 1
    %v5594 = vld [vmem:[%s5593] sm:$0x1]
    %v5596 = vperm.slane %v5594, 0
    %v5598 = vmul.f32 %v5589, %v5596
    %v5599 = vmul.f32 %v5590, %v5596
    %v5600 = vmul.f32 %v5591, %v5596
    %v5601 = vmul.f32 %v5592, %v5596
    %s5602 = scalar_lea.vmem %s63, 1
    %v5603 = vld [vmem:[%s5602] sm:$0x1]
    %v5605 = vperm.slane %v5603, 0
    %v5607 = vadd.f32 %v5598, %v5605
    %v5608 = vadd.f32 %v5599, %v5605
    %v5609 = vadd.f32 %v5600, %v5605
    %v5610 = vadd.f32 %v5601, %v5605
    %s5611 = scalar_lea.vmem %s65, 8
    %v5612 = vld [vmem:[%s5611] sm:$0xf]
    %v5613 = vld [vmem:[%s5611 + $0x4] sm:$0xf]
    %v5614 = vpack.c.bf16 %v5608, %v5607
    %v5615 = vpack.c.bf16 %v5610, %v5609
    %v5618 = vunpack.c.l.b16 %v5612
    %v5619 = vunpack.c.l.b16 %v5613
    %v5620 = vpack.c.b16 %v5619, %v5618
    %v5623 = vsel %vm611, %v5614, 0
    %v5626 = vsel %vm611, %v5615, 0
    %5628 = vmatpush.bf16.msra.mxu0 0
    %5629 = vmatpush.bf16.msra.mxu0 0
    %5630 = vmatpush.bf16.msra.mxu0 0
    %5631 = vmatpush.bf16.msra.mxu0 0
    %5632 = vmatpush.bf16.msra.mxu0 0
    %5633 = vmatpush.bf16.msra.mxu0 0
    %5634 = vmatpush.bf16.msra.mxu0 0
    %5635 = vmatpush.bf16.msra.mxu0 %v5620
    %5636 = vmatmul.bf16.gmra.mxu0 %v5623
    %v5637 = vpop.f32.mrf.mxu0
    %v5638 = vadd.f32 0.0, %v5637
    %v5639 = vpop.f32.mrf.mxu0
    %v5640 = vadd.f32 0.0, %v5639
    %5641 = vmatmul.bf16.gmra.mxu0 %v5626
    %v5642 = vpop.f32.mrf.mxu0
    %v5643 = vadd.f32 0.0, %v5642
    %v5644 = vpop.f32.mrf.mxu0
    %v5645 = vadd.f32 0.0, %v5644
    %5646 = vdwg.mxu0
    %v5649 = vunpack.c.l.b16 %v5585
    %v5650 = vunpack.c.l.b16 %v5586
    %v5651 = vpack.c.b16 %v5650, %v5649
    %v5654 = vsel %vm611, %v5587, 0
    %v5657 = vsel %vm611, %v5588, 0
    %5659 = vmatpush.bf16.msra.mxu0 0
    %5660 = vmatpush.bf16.msra.mxu0 0
    %5661 = vmatpush.bf16.msra.mxu0 0
    %5662 = vmatpush.bf16.msra.mxu0 0
    %5663 = vmatpush.bf16.msra.mxu0 0
    %5664 = vmatpush.bf16.msra.mxu0 0
    %5665 = vmatpush.bf16.msra.mxu0 0
    %5666 = vmatpush.bf16.msra.mxu0 %v5651
    %5667 = vmatmul.bf16.gmra.mxu0 %v5654
    %v5668 = vpop.f32.mrf.mxu0
    %v5669 = vadd.f32 %v5638, %v5668
    %v5670 = vpop.f32.mrf.mxu0
    %v5671 = vadd.f32 %v5640, %v5670
    %5672 = vmatmul.bf16.gmra.mxu0 %v5657
    %v5673 = vpop.f32.mrf.mxu0
    %v5674 = vadd.f32 %v5643, %v5673
    %v5675 = vpop.f32.mrf.mxu0
    %v5676 = vadd.f32 %v5645, %v5675
    %5677 = vdwg.mxu0
    %v5678 = vmul.f32 %v5469, %v5534
    %v5679 = vmul.f32 %v5470, %v5544
    %v5680 = vmul.f32 %v5471, %v5554
    %v5681 = vmul.f32 %v5472, %v5564
    %s5682 = scalar_lea.vmem %s61, 2
    %v5683 = vld [vmem:[%s5682] sm:$0x1]
    %v5685 = vperm.slane %v5683, 0
    %v5687 = vmul.f32 %v5678, %v5685
    %v5688 = vmul.f32 %v5679, %v5685
    %v5689 = vmul.f32 %v5680, %v5685
    %v5690 = vmul.f32 %v5681, %v5685
    %s5691 = scalar_lea.vmem %s63, 2
    %v5692 = vld [vmem:[%s5691] sm:$0x1]
    %v5694 = vperm.slane %v5692, 0
    %v5696 = vadd.f32 %v5687, %v5694
    %v5697 = vadd.f32 %v5688, %v5694
    %v5698 = vadd.f32 %v5689, %v5694
    %v5699 = vadd.f32 %v5690, %v5694
    %s5700 = scalar_lea.vmem %s65, 16
    %v5701 = vld [vmem:[%s5700] sm:$0xf]
    %v5702 = vld [vmem:[%s5700 + $0x4] sm:$0xf]
    %v5703 = vpack.c.bf16 %v5697, %v5696
    %v5704 = vpack.c.bf16 %v5699, %v5698
    %v5707 = vunpack.c.l.b16 %v5701
    %v5708 = vunpack.c.l.b16 %v5702
    %v5709 = vpack.c.b16 %v5708, %v5707
    %v5712 = vsel %vm611, %v5703, 0
    %v5715 = vsel %vm611, %v5704, 0
    %5717 = vmatpush.bf16.msra.mxu0 0
    %5718 = vmatpush.bf16.msra.mxu0 0
    %5719 = vmatpush.bf16.msra.mxu0 0
    %5720 = vmatpush.bf16.msra.mxu0 0
    %5721 = vmatpush.bf16.msra.mxu0 0
    %5722 = vmatpush.bf16.msra.mxu0 0
    %5723 = vmatpush.bf16.msra.mxu0 0
    %5724 = vmatpush.bf16.msra.mxu0 %v5709
    %5725 = vmatmul.bf16.gmra.mxu0 %v5712
    %v5726 = vpop.f32.mrf.mxu0
    %v5727 = vadd.f32 0.0, %v5726
    %v5728 = vpop.f32.mrf.mxu0
    %v5729 = vadd.f32 0.0, %v5728
    %5730 = vmatmul.bf16.gmra.mxu0 %v5715
    %v5731 = vpop.f32.mrf.mxu0
    %v5732 = vadd.f32 0.0, %v5731
    %v5733 = vpop.f32.mrf.mxu0
    %v5734 = vadd.f32 0.0, %v5733
    %5735 = vdwg.mxu0
    %v5736 = vadd.f32 %v5669, %v5727
    %v5737 = vadd.f32 %v5671, %v5729
    %v5738 = vadd.f32 %v5674, %v5732
    %v5739 = vadd.f32 %v5676, %v5734
    %v5740 = vmul.f32 %v5493, %v5534
    %v5741 = vmul.f32 %v5494, %v5544
    %v5742 = vmul.f32 %v5495, %v5554
    %v5743 = vmul.f32 %v5496, %v5564
    %s5744 = scalar_lea.vmem %s61, 3
    %v5745 = vld [vmem:[%s5744] sm:$0x1]
    %v5747 = vperm.slane %v5745, 0
    %v5749 = vmul.f32 %v5740, %v5747
    %v5750 = vmul.f32 %v5741, %v5747
    %v5751 = vmul.f32 %v5742, %v5747
    %v5752 = vmul.f32 %v5743, %v5747
    %s5753 = scalar_lea.vmem %s63, 3
    %v5754 = vld [vmem:[%s5753] sm:$0x1]
    %v5756 = vperm.slane %v5754, 0
    %v5758 = vadd.f32 %v5749, %v5756
    %v5759 = vadd.f32 %v5750, %v5756
    %v5760 = vadd.f32 %v5751, %v5756
    %v5761 = vadd.f32 %v5752, %v5756
    %s5762 = scalar_lea.vmem %s65, 24
    %v5763 = vld [vmem:[%s5762] sm:$0xf]
    %v5764 = vld [vmem:[%s5762 + $0x4] sm:$0xf]
    %v5765 = vpack.c.bf16 %v5759, %v5758
    %v5766 = vpack.c.bf16 %v5761, %v5760
    %v5769 = vunpack.c.l.b16 %v5763
    %v5770 = vunpack.c.l.b16 %v5764
    %v5771 = vpack.c.b16 %v5770, %v5769
    %v5774 = vsel %vm611, %v5765, 0
    %v5777 = vsel %vm611, %v5766, 0
    %5779 = vmatpush.bf16.msra.mxu0 0
    %5780 = vmatpush.bf16.msra.mxu0 0
    %5781 = vmatpush.bf16.msra.mxu0 0
    %5782 = vmatpush.bf16.msra.mxu0 0
    %5783 = vmatpush.bf16.msra.mxu0 0
    %5784 = vmatpush.bf16.msra.mxu0 0
    %5785 = vmatpush.bf16.msra.mxu0 0
    %5786 = vmatpush.bf16.msra.mxu0 %v5771
    %5787 = vmatmul.bf16.gmra.mxu0 %v5774
    %v5788 = vpop.f32.mrf.mxu0
    %v5789 = vadd.f32 0.0, %v5788
    %v5790 = vpop.f32.mrf.mxu0
    %v5791 = vadd.f32 0.0, %v5790
    %5792 = vmatmul.bf16.gmra.mxu0 %v5777
    %v5793 = vpop.f32.mrf.mxu0
    %v5794 = vadd.f32 0.0, %v5793
    %v5795 = vpop.f32.mrf.mxu0
    %v5796 = vadd.f32 0.0, %v5795
    %5797 = vdwg.mxu0
    %v5798 = vadd.f32 %v5736, %v5789
    %v5799 = vadd.f32 %v5737, %v5791
    %v5800 = vadd.f32 %v5738, %v5794
    %v5801 = vadd.f32 %v5739, %v5796
    %v5802 = vld [vmem:[#allocation10] sm:$0x1]
    %v5803 = vld [vmem:[#allocation11] sm:$0x1]
    %vm5804 = vcmask 261120
    %v5805 = vsel %vm5804, %v5798, 0.0
    %5806 = vadd.xlane.f32.xlu0 %v5805
    %v5807 = vpop.xlane.xlu0 %5806
    %v5808 = vsel %vm5804, %v5799, 0.0
    %5809 = vadd.xlane.f32.xlu0 %v5808
    %v5810 = vpop.xlane.xlu0 %5809
    %v5811 = vsel %vm5804, %v5800, 0.0
    %5812 = vadd.xlane.f32.xlu0 %v5811
    %v5813 = vpop.xlane.xlu0 %5812
    %v5814 = vsel %vm5804, %v5801, 0.0
    %5815 = vadd.xlane.f32.xlu0 %v5814
    %v5816 = vpop.xlane.xlu0 %5815
    %v5817 = vrcp.pop 32.0
    %v5818 = vmul.f32 32.0, %v5817
    %v5819 = vsub.f32 1.0, %v5818
    %v5820 = vmul.f32 %v5817, %v5819
    %v5821 = vadd.f32 %v5817, %v5820
    %vm5822 = vweird.f32 %v5817
    %v5823 = vsel %vm5822, %v5817, %v5821
    %v5824 = vmul.f32 %v5807, %v5823
    %v5825 = vmul.f32 %v5810, %v5823
    %v5826 = vmul.f32 %v5813, %v5823
    %v5827 = vmul.f32 %v5816, %v5823
    %v5828 = vsub.f32 %v5798, %v5824
    %v5829 = vsub.f32 %v5799, %v5825
    %v5830 = vsub.f32 %v5800, %v5826
    %v5831 = vsub.f32 %v5801, %v5827
    %v5832 = vmul.f32 %v5828, %v5828
    %v5833 = vmul.f32 %v5829, %v5829
    %v5834 = vmul.f32 %v5830, %v5830
    %v5835 = vmul.f32 %v5831, %v5831
    %v5836 = vsel %vm5804, %v5832, 0.0
    %5837 = vadd.xlane.f32.xlu0 %v5836
    %v5838 = vpop.xlane.xlu0 %5837
    %v5839 = vsel %vm5804, %v5833, 0.0
    %5840 = vadd.xlane.f32.xlu0 %v5839
    %v5841 = vpop.xlane.xlu0 %5840
    %v5842 = vsel %vm5804, %v5834, 0.0
    %5843 = vadd.xlane.f32.xlu0 %v5842
    %v5844 = vpop.xlane.xlu0 %5843
    %v5845 = vsel %vm5804, %v5835, 0.0
    %5846 = vadd.xlane.f32.xlu0 %v5845
    %v5847 = vpop.xlane.xlu0 %5846
    %v5848 = vmul.f32 %v5838, %v5823
    %v5849 = vmul.f32 %v5841, %v5823
    %v5850 = vmul.f32 %v5844, %v5823
    %v5851 = vmul.f32 %v5847, %v5823
    %v5852 = vadd.f32 %v5848, 1e-05
    %v5853 = vadd.f32 %v5849, 1e-05
    %v5854 = vadd.f32 %v5850, 1e-05
    %v5855 = vadd.f32 %v5851, 1e-05
    %v5856 = vrsqrt.pop %v5852
    %v5857 = vmul.f32 %v5856, %v5852
    %v5858 = vmul.f32 %v5857, %v5856
    %v5859 = vmul.f32 0.5, %v5858
    %v5860 = vsub.f32 1.5, %v5859
    %v5861 = vmul.f32 %v5856, %v5860
    %vm5862 = vweird.f32 %v5852
    %vm5863 = vweird.f32 %v5856
    %vm5864 = vmor %vm5862, %vm5863
    %v5865 = vsel %vm5864, %v5856, %v5861
    %v5866 = vrsqrt.pop %v5853
    %v5867 = vmul.f32 %v5866, %v5853
    %v5868 = vmul.f32 %v5867, %v5866
    %v5869 = vmul.f32 0.5, %v5868
    %v5870 = vsub.f32 1.5, %v5869
    %v5871 = vmul.f32 %v5866, %v5870
    %vm5872 = vweird.f32 %v5853
    %vm5873 = vweird.f32 %v5866
    %vm5874 = vmor %vm5872, %vm5873
    %v5875 = vsel %vm5874, %v5866, %v5871
    %v5876 = vrsqrt.pop %v5854
    %v5877 = vmul.f32 %v5876, %v5854
    %v5878 = vmul.f32 %v5877, %v5876
    %v5879 = vmul.f32 0.5, %v5878
    %v5880 = vsub.f32 1.5, %v5879
    %v5881 = vmul.f32 %v5876, %v5880
    %vm5882 = vweird.f32 %v5854
    %vm5883 = vweird.f32 %v5876
    %vm5884 = vmor %vm5882, %vm5883
    %v5885 = vsel %vm5884, %v5876, %v5881
    %v5886 = vrsqrt.pop %v5855
    %v5887 = vmul.f32 %v5886, %v5855
    %v5888 = vmul.f32 %v5887, %v5886
    %v5889 = vmul.f32 0.5, %v5888
    %v5890 = vsub.f32 1.5, %v5889
    %v5891 = vmul.f32 %v5886, %v5890
    %vm5892 = vweird.f32 %v5855
    %vm5893 = vweird.f32 %v5886
    %vm5894 = vmor %vm5892, %vm5893
    %v5895 = vsel %vm5894, %v5886, %v5891
    %v5896 = vmul.f32 %v5828, %v5865
    %v5897 = vmul.f32 %v5829, %v5875
    %v5898 = vmul.f32 %v5830, %v5885
    %v5899 = vmul.f32 %v5831, %v5895
    %v5901 = vperm.slane %v5802, 0
    %v5903 = vmul.f32 %v5896, %v5901
    %v5904 = vmul.f32 %v5897, %v5901
    %v5905 = vmul.f32 %v5898, %v5901
    %v5906 = vmul.f32 %v5899, %v5901
    %v5908 = vperm.slane %v5803, 0
    %v5910 = vadd.f32 %v5903, %v5908
    %v5911 = vadd.f32 %v5904, %v5908
    %v5912 = vadd.f32 %v5905, %v5908
    %v5913 = vadd.f32 %v5906, %v5908
    %v5914 = vld [vmem:[%s71] sm:$0xf]
    %v5915 = vld [vmem:[%s71 + $0x4] sm:$0xf]
    %v5916 = vld [vmem:[%s71 + $0x8] sm:$0xf]
    %v5917 = vld [vmem:[%s71 + $0xc] sm:$0xf]
    %v5918 = vpack.c.bf16 %v5911, %v5910
    %v5919 = vpack.c.bf16 %v5913, %v5912
    %v5920 = vld [vmem:[#allocation13] sm:$0x1]
    %v5922 = vperm.slane %v5920, 0
    %v5928 = vunpack.c.l.b16 %v5914
    %v5929 = vunpack.c.l.b16 %v5915
    %v5930 = vunpack.c.l.b16 %v5916
    %v5931 = vunpack.c.l.b16 %v5917
    %v5932 = vpack.c.b16 %v5929, %v5928
    %v5933 = vpack.c.b16 %v5931, %v5930
    %v5937 = vsel %vm5804, %v5918, 0
    %v5940 = vsel %vm5804, %v5919, 0
    %5942 = vmatpush.bf16.msra.mxu0 0
    %5943 = vmatpush.bf16.msra.mxu0 0
    %5944 = vmatpush.bf16.msra.mxu0 0
    %5945 = vmatpush.bf16.msra.mxu0 0
    %5946 = vmatpush.bf16.msra.mxu0 0
    %5947 = vmatpush.bf16.msra.mxu0 0
    %5948 = vmatpush.bf16.msra.mxu0 %v5933
    %5949 = vmatpush.bf16.msra.mxu0 %v5932
    %5950 = vmatmul.bf16.gmra.mxu0 %v5937
    %v5951 = vpop.f32.mrf.mxu0
    %v5952 = vadd.f32 %v5922, %v5951
    %v5953 = vpop.f32.mrf.mxu0
    %v5954 = vadd.f32 %v5922, %v5953
    %5955 = vmatmul.bf16.gmra.mxu0 %v5940
    %v5956 = vpop.f32.mrf.mxu0
    %v5957 = vadd.f32 %v5922, %v5956
    %v5958 = vpop.f32.mrf.mxu0
    %v5959 = vadd.f32 %v5922, %v5958
    %5960 = vdwg.mxu0
    %v5961 = vmul.f32 %v5952, 0.35355338
    %v5962 = vmul.f32 %v5954, 0.35355338
    %v5963 = vmul.f32 %v5957, 0.35355338
    %v5964 = vmul.f32 %v5959, 0.35355338
    %v5965 = vpack.c.bf16 %v5962, %v5961
    %v5966 = vpack.c.bf16 %v5964, %v5963
    %v5967 = vpack.c.bf16 %v5954, %v5952
    %v5968 = vpack.c.bf16 %v5959, %v5957
    %v5969 = vld [vmem:[%s79] sm:$0xf]
    %v5970 = vld [vmem:[%s79 + $0x4] sm:$0xf]
    %v5971 = vld [vmem:[%s79 + $0x8] sm:$0xf]
    %v5972 = vld [vmem:[%s79 + $0xc] sm:$0xf]
    %v5973 = vunpack.c.l.bf16 %v5969
    %v5974 = vunpack.c.l.bf16 %v5970
    %v5975 = vunpack.c.l.bf16 %v5971
    %v5976 = vunpack.c.l.bf16 %v5972
    %5979 = vrot.lane.b32.xlu0 %v5967, 96
    %v5980 = vpop.permute.xlu0 %5979
    %5981 = vrot.lane.b32.xlu0 %v5968, 96
    %v5982 = vpop.permute.xlu0 %5981
    %v5984 = vsel %vm1265, %v5965, 0
    %v5987 = vsel %vm1265, %v5966, 0
    %v5990 = vsel %vm1265, %v5980, 0
    %v5993 = vsel %vm1265, %v5982, 0
    %5995 = vmatpush.bf16.xpose.msra.mxu0 0
    %5996 = vmatpush.bf16.xpose.msra.mxu0 0
    %5997 = vmatpush.bf16.xpose.msra.mxu0 0
    %5998 = vmatpush.bf16.xpose.msra.mxu0 0
    %5999 = vmatpush.bf16.xpose.msra.mxu0 0
    %6000 = vmatpush.bf16.xpose.msra.mxu0 0
    %6001 = vmatpush.bf16.xpose.msra.mxu0 %v5993
    %6002 = vmatpush.bf16.xpose.msra.mxu0 %v5990
    %6003 = vmatmul.bf16.gmra.mxu0 %v5984
    %v6004 = vpop.f32.mrf.mxu0
    %v6005 = vadd.f32 %v5973, %v6004
    %v6006 = vpop.f32.mrf.mxu0
    %v6007 = vadd.f32 %v5974, %v6006
    %6008 = vmatmul.bf16.gmra.mxu0 %v5987
    %v6009 = vpop.f32.mrf.mxu0
    %v6010 = vadd.f32 %v5975, %v6009
    %v6011 = vpop.f32.mrf.mxu0
    %v6012 = vadd.f32 %v5976, %v6011
    %6013 = vdwg.mxu0
    %v6014 = vsel %vm5804, %v6005, -inf
    %6015 = vmax.xlane.f32.xlu0 %v6014
    %v6016 = vpop.xlane.xlu0 %6015
    %v6017 = vsel %vm5804, %v6007, -inf
    %6018 = vmax.xlane.f32.xlu0 %v6017
    %v6019 = vpop.xlane.xlu0 %6018
    %v6020 = vsel %vm5804, %v6010, -inf
    %6021 = vmax.xlane.f32.xlu0 %v6020
    %v6022 = vpop.xlane.xlu0 %6021
    %v6023 = vsel %vm5804, %v6012, -inf
    %6024 = vmax.xlane.f32.xlu0 %v6023
    %v6025 = vpop.xlane.xlu0 %6024
    %v6026 = vsub.f32 %v6005, %v6016
    %v6027 = vsub.f32 %v6007, %v6019
    %v6028 = vsub.f32 %v6010, %v6022
    %v6029 = vsub.f32 %v6012, %v6025
    %v6030 = vmul.f32 %v6026, 1.442695
    %v6031 = vpow.pop %v6030
    %v6032 = vmul.f32 %v6027, 1.442695
    %v6033 = vpow.pop %v6032
    %v6034 = vmul.f32 %v6028, 1.442695
    %v6035 = vpow.pop %v6034
    %v6036 = vmul.f32 %v6029, 1.442695
    %v6037 = vpow.pop %v6036
    %v6038 = vsel %vm5804, %v6031, 0.0
    %6039 = vadd.xlane.f32.xlu0 %v6038
    %v6040 = vpop.xlane.xlu0 %6039
    %v6041 = vsel %vm5804, %v6033, 0.0
    %6042 = vadd.xlane.f32.xlu0 %v6041
    %v6043 = vpop.xlane.xlu0 %6042
    %v6044 = vsel %vm5804, %v6035, 0.0
    %6045 = vadd.xlane.f32.xlu0 %v6044
    %v6046 = vpop.xlane.xlu0 %6045
    %v6047 = vsel %vm5804, %v6037, 0.0
    %6048 = vadd.xlane.f32.xlu0 %v6047
    %v6049 = vpop.xlane.xlu0 %6048
    %v6050 = vrcp.pop %v6040
    %v6051 = vrcp.pop %v6043
    %v6052 = vrcp.pop %v6046
    %v6053 = vrcp.pop %v6049
    %v6054 = vmul.f32 %v6031, %v6050
    %v6055 = vmul.f32 %v6033, %v6051
    %v6056 = vmul.f32 %v6035, %v6052
    %v6057 = vmul.f32 %v6037, %v6053
    %v6058 = vpack.c.bf16 %v6055, %v6054
    %v6059 = vpack.c.bf16 %v6057, %v6056
    %6060 = vrot.lane.b32.xlu0 %v5967, 64
    %v6061 = vpop.permute.xlu0 %6060
    %6062 = vrot.lane.b32.xlu0 %v5968, 64
    %v6063 = vpop.permute.xlu0 %6062
    %v6067 = vsel %vm5804, %v6058, 0
    %v6070 = vsel %vm5804, %v6059, 0
    %6072 = vmatpush.bf16.msra.mxu0 0
    %6073 = vmatpush.bf16.msra.mxu0 0
    %6074 = vmatpush.bf16.msra.mxu0 0
    %6075 = vmatpush.bf16.msra.mxu0 0
    %6076 = vmatpush.bf16.msra.mxu0 0
    %6077 = vmatpush.bf16.msra.mxu0 0
    %6078 = vmatpush.bf16.msra.mxu0 %v6063
    %6079 = vmatpush.bf16.msra.mxu0 %v6061
    %6080 = vmatmul.bf16.gmra.mxu0 %v6067
    %v6081 = vpop.f32.mrf.mxu0
    %v6082 = vadd.f32 0.0, %v6081
    %v6083 = vpop.f32.mrf.mxu0
    %v6084 = vadd.f32 0.0, %v6083
    %6085 = vmatmul.bf16.gmra.mxu0 %v6070
    %v6086 = vpop.f32.mrf.mxu0
    %v6087 = vadd.f32 0.0, %v6086
    %v6088 = vpop.f32.mrf.mxu0
    %v6089 = vadd.f32 0.0, %v6088
    %6090 = vdwg.mxu0
    %v6091 = vld [vmem:[%s75] sm:$0xf]
    %v6092 = vpack.c.bf16 %v6084, %v6082
    %v6093 = vpack.c.bf16 %v6089, %v6087
    %s6094 = scalar_lea.vmem %s79, 16
    %v6095 = vld [vmem:[%s6094] sm:$0xf]
    %v6096 = vld [vmem:[%s6094 + $0x4] sm:$0xf]
    %v6097 = vld [vmem:[%s6094 + $0x8] sm:$0xf]
    %v6098 = vld [vmem:[%s6094 + $0xc] sm:$0xf]
    %v6099 = vunpack.c.l.bf16 %v6095
    %v6100 = vunpack.c.l.bf16 %v6096
    %v6101 = vunpack.c.l.bf16 %v6097
    %v6102 = vunpack.c.l.bf16 %v6098
    %6105 = vrot.lane.b32.xlu0 %v5965, 120
    %v6106 = vpop.permute.xlu0 %6105
    %6107 = vrot.lane.b32.xlu0 %v5966, 120
    %v6108 = vpop.permute.xlu0 %6107
    %6109 = vrot.lane.b32.xlu0 %v5967, 88
    %v6110 = vpop.permute.xlu0 %6109
    %6111 = vrot.lane.b32.xlu0 %v5968, 88
    %v6112 = vpop.permute.xlu0 %6111
    %v6114 = vsel %vm1265, %v6106, 0
    %v6117 = vsel %vm1265, %v6108, 0
    %v6120 = vsel %vm1265, %v6110, 0
    %v6123 = vsel %vm1265, %v6112, 0
    %6125 = vmatpush.bf16.xpose.msra.mxu0 0
    %6126 = vmatpush.bf16.xpose.msra.mxu0 0
    %6127 = vmatpush.bf16.xpose.msra.mxu0 0
    %6128 = vmatpush.bf16.xpose.msra.mxu0 0
    %6129 = vmatpush.bf16.xpose.msra.mxu0 0
    %6130 = vmatpush.bf16.xpose.msra.mxu0 0
    %6131 = vmatpush.bf16.xpose.msra.mxu0 %v6123
    %6132 = vmatpush.bf16.xpose.msra.mxu0 %v6120
    %6133 = vmatmul.bf16.gmra.mxu0 %v6114
    %v6134 = vpop.f32.mrf.mxu0
    %v6135 = vadd.f32 %v6099, %v6134
    %v6136 = vpop.f32.mrf.mxu0
    %v6137 = vadd.f32 %v6100, %v6136
    %6138 = vmatmul.bf16.gmra.mxu0 %v6117
    %v6139 = vpop.f32.mrf.mxu0
    %v6140 = vadd.f32 %v6101, %v6139
    %v6141 = vpop.f32.mrf.mxu0
    %v6142 = vadd.f32 %v6102, %v6141
    %6143 = vdwg.mxu0
    %v6144 = vsel %vm5804, %v6135, -inf
    %6145 = vmax.xlane.f32.xlu0 %v6144
    %v6146 = vpop.xlane.xlu0 %6145
    %v6147 = vsel %vm5804, %v6137, -inf
    %6148 = vmax.xlane.f32.xlu0 %v6147
    %v6149 = vpop.xlane.xlu0 %6148
    %v6150 = vsel %vm5804, %v6140, -inf
    %6151 = vmax.xlane.f32.xlu0 %v6150
    %v6152 = vpop.xlane.xlu0 %6151
    %v6153 = vsel %vm5804, %v6142, -inf
    %6154 = vmax.xlane.f32.xlu0 %v6153
    %v6155 = vpop.xlane.xlu0 %6154
    %v6156 = vsub.f32 %v6135, %v6146
    %v6157 = vsub.f32 %v6137, %v6149
    %v6158 = vsub.f32 %v6140, %v6152
    %v6159 = vsub.f32 %v6142, %v6155
    %v6160 = vmul.f32 %v6156, 1.442695
    %v6161 = vpow.pop %v6160
    %v6162 = vmul.f32 %v6157, 1.442695
    %v6163 = vpow.pop %v6162
    %v6164 = vmul.f32 %v6158, 1.442695
    %v6165 = vpow.pop %v6164
    %v6166 = vmul.f32 %v6159, 1.442695
    %v6167 = vpow.pop %v6166
    %v6168 = vsel %vm5804, %v6161, 0.0
    %6169 = vadd.xlane.f32.xlu0 %v6168
    %v6170 = vpop.xlane.xlu0 %6169
    %v6171 = vsel %vm5804, %v6163, 0.0
    %6172 = vadd.xlane.f32.xlu0 %v6171
    %v6173 = vpop.xlane.xlu0 %6172
    %v6174 = vsel %vm5804, %v6165, 0.0
    %6175 = vadd.xlane.f32.xlu0 %v6174
    %v6176 = vpop.xlane.xlu0 %6175
    %v6177 = vsel %vm5804, %v6167, 0.0
    %6178 = vadd.xlane.f32.xlu0 %v6177
    %v6179 = vpop.xlane.xlu0 %6178
    %v6180 = vrcp.pop %v6170
    %v6181 = vrcp.pop %v6173
    %v6182 = vrcp.pop %v6176
    %v6183 = vrcp.pop %v6179
    %v6184 = vmul.f32 %v6161, %v6180
    %v6185 = vmul.f32 %v6163, %v6181
    %v6186 = vmul.f32 %v6165, %v6182
    %v6187 = vmul.f32 %v6167, %v6183
    %v6188 = vpack.c.bf16 %v6185, %v6184
    %v6189 = vpack.c.bf16 %v6187, %v6186
    %6190 = vrot.lane.b32.xlu0 %v5967, 56
    %v6191 = vpop.permute.xlu0 %6190
    %6192 = vrot.lane.b32.xlu0 %v5968, 56
    %v6193 = vpop.permute.xlu0 %6192
    %v6197 = vsel %vm5804, %v6188, 0
    %v6200 = vsel %vm5804, %v6189, 0
    %6202 = vmatpush.bf16.msra.mxu0 0
    %6203 = vmatpush.bf16.msra.mxu0 0
    %6204 = vmatpush.bf16.msra.mxu0 0
    %6205 = vmatpush.bf16.msra.mxu0 0
    %6206 = vmatpush.bf16.msra.mxu0 0
    %6207 = vmatpush.bf16.msra.mxu0 0
    %6208 = vmatpush.bf16.msra.mxu0 %v6193
    %6209 = vmatpush.bf16.msra.mxu0 %v6191
    %6210 = vmatmul.bf16.gmra.mxu0 %v6197
    %v6211 = vpop.f32.mrf.mxu0
    %v6212 = vadd.f32 0.0, %v6211
    %v6213 = vpop.f32.mrf.mxu0
    %v6214 = vadd.f32 0.0, %v6213
    %6215 = vmatmul.bf16.gmra.mxu0 %v6200
    %v6216 = vpop.f32.mrf.mxu0
    %v6217 = vadd.f32 0.0, %v6216
    %v6218 = vpop.f32.mrf.mxu0
    %v6219 = vadd.f32 0.0, %v6218
    %6220 = vdwg.mxu0
    %v6221 = vld [vmem:[%s75 + $0x4] sm:$0xf]
    %v6222 = vpack.c.bf16 %v6214, %v6212
    %v6223 = vpack.c.bf16 %v6219, %v6217
    %v6225 = vsel %vm1265, %v6222, 0
    %v6228 = vsel %vm1265, %v6223, 0
    %v6231 = vsel %vm2025, %v6221, 0
    %6233 = vmatpush.bf16.msra.mxu0 0
    %6234 = vmatpush.bf16.msra.mxu0 0
    %6235 = vmatpush.bf16.msra.mxu0 0
    %6236 = vmatpush.bf16.msra.mxu0 0
    %6237 = vmatpush.bf16.msra.mxu0 0
    %6238 = vmatpush.bf16.msra.mxu0 0
    %6239 = vmatpush.bf16.msra.mxu0 0
    %6240 = vmatpush.bf16.msra.mxu0 %v6231
    %6241 = vmatmul.bf16.gmra.mxu0 %v6225
    %v6242 = vpop.f32.mrf.mxu0
    %v6243 = vadd.f32 0.0, %v6242
    %v6244 = vpop.f32.mrf.mxu0
    %v6245 = vadd.f32 0.0, %v6244
    %6246 = vmatmul.bf16.gmra.mxu0 %v6228
    %v6247 = vpop.f32.mrf.mxu0
    %v6248 = vadd.f32 0.0, %v6247
    %v6249 = vpop.f32.mrf.mxu0
    %v6250 = vadd.f32 0.0, %v6249
    %6251 = vdwg.mxu0
    %v6253 = vsel %vm1265, %v6092, 0
    %v6256 = vsel %vm1265, %v6093, 0
    %v6259 = vsel %vm2025, %v6091, 0
    %6261 = vmatpush.bf16.msra.mxu0 0
    %6262 = vmatpush.bf16.msra.mxu0 0
    %6263 = vmatpush.bf16.msra.mxu0 0
    %6264 = vmatpush.bf16.msra.mxu0 0
    %6265 = vmatpush.bf16.msra.mxu0 0
    %6266 = vmatpush.bf16.msra.mxu0 0
    %6267 = vmatpush.bf16.msra.mxu0 0
    %6268 = vmatpush.bf16.msra.mxu0 %v6259
    %6269 = vmatmul.bf16.gmra.mxu0 %v6253
    %v6270 = vpop.f32.mrf.mxu0
    %v6271 = vadd.f32 %v6243, %v6270
    %v6272 = vpop.f32.mrf.mxu0
    %v6273 = vadd.f32 %v6245, %v6272
    %6274 = vmatmul.bf16.gmra.mxu0 %v6256
    %v6275 = vpop.f32.mrf.mxu0
    %v6276 = vadd.f32 %v6248, %v6275
    %v6277 = vpop.f32.mrf.mxu0
    %v6278 = vadd.f32 %v6250, %v6277
    %6279 = vdwg.mxu0
    %s6280 = scalar_lea.vmem %s79, 32
    %v6281 = vld [vmem:[%s6280] sm:$0xf]
    %v6282 = vld [vmem:[%s6280 + $0x4] sm:$0xf]
    %v6283 = vld [vmem:[%s6280 + $0x8] sm:$0xf]
    %v6284 = vld [vmem:[%s6280 + $0xc] sm:$0xf]
    %v6285 = vunpack.c.l.bf16 %v6281
    %v6286 = vunpack.c.l.bf16 %v6282
    %v6287 = vunpack.c.l.bf16 %v6283
    %v6288 = vunpack.c.l.bf16 %v6284
    %6289 = vrot.lane.b32.xlu0 %v5965, 112
    %v6290 = vpop.permute.xlu0 %6289
    %6291 = vrot.lane.b32.xlu0 %v5966, 112
    %v6292 = vpop.permute.xlu0 %6291
    %6293 = vrot.lane.b32.xlu0 %v5967, 80
    %v6294 = vpop.permute.xlu0 %6293
    %6295 = vrot.lane.b32.xlu0 %v5968, 80
    %v6296 = vpop.permute.xlu0 %6295
    %v6298 = vsel %vm1265, %v6290, 0
    %v6301 = vsel %vm1265, %v6292, 0
    %v6304 = vsel %vm1265, %v6294, 0
    %v6307 = vsel %vm1265, %v6296, 0
    %6309 = vmatpush.bf16.xpose.msra.mxu0 0
    %6310 = vmatpush.bf16.xpose.msra.mxu0 0
    %6311 = vmatpush.bf16.xpose.msra.mxu0 0
    %6312 = vmatpush.bf16.xpose.msra.mxu0 0
    %6313 = vmatpush.bf16.xpose.msra.mxu0 0
    %6314 = vmatpush.bf16.xpose.msra.mxu0 0
    %6315 = vmatpush.bf16.xpose.msra.mxu0 %v6307
    %6316 = vmatpush.bf16.xpose.msra.mxu0 %v6304
    %6317 = vmatmul.bf16.gmra.mxu0 %v6298
    %v6318 = vpop.f32.mrf.mxu0
    %v6319 = vadd.f32 %v6285, %v6318
    %v6320 = vpop.f32.mrf.mxu0
    %v6321 = vadd.f32 %v6286, %v6320
    %6322 = vmatmul.bf16.gmra.mxu0 %v6301
    %v6323 = vpop.f32.mrf.mxu0
    %v6324 = vadd.f32 %v6287, %v6323
    %v6325 = vpop.f32.mrf.mxu0
    %v6326 = vadd.f32 %v6288, %v6325
    %6327 = vdwg.mxu0
    %v6328 = vsel %vm5804, %v6319, -inf
    %6329 = vmax.xlane.f32.xlu0 %v6328
    %v6330 = vpop.xlane.xlu0 %6329
    %v6331 = vsel %vm5804, %v6321, -inf
    %6332 = vmax.xlane.f32.xlu0 %v6331
    %v6333 = vpop.xlane.xlu0 %6332
    %v6334 = vsel %vm5804, %v6324, -inf
    %6335 = vmax.xlane.f32.xlu0 %v6334
    %v6336 = vpop.xlane.xlu0 %6335
    %v6337 = vsel %vm5804, %v6326, -inf
    %6338 = vmax.xlane.f32.xlu0 %v6337
    %v6339 = vpop.xlane.xlu0 %6338
    %v6340 = vsub.f32 %v6319, %v6330
    %v6341 = vsub.f32 %v6321, %v6333
    %v6342 = vsub.f32 %v6324, %v6336
    %v6343 = vsub.f32 %v6326, %v6339
    %v6344 = vmul.f32 %v6340, 1.442695
    %v6345 = vpow.pop %v6344
    %v6346 = vmul.f32 %v6341, 1.442695
    %v6347 = vpow.pop %v6346
    %v6348 = vmul.f32 %v6342, 1.442695
    %v6349 = vpow.pop %v6348
    %v6350 = vmul.f32 %v6343, 1.442695
    %v6351 = vpow.pop %v6350
    %v6352 = vsel %vm5804, %v6345, 0.0
    %6353 = vadd.xlane.f32.xlu0 %v6352
    %v6354 = vpop.xlane.xlu0 %6353
    %v6355 = vsel %vm5804, %v6347, 0.0
    %6356 = vadd.xlane.f32.xlu0 %v6355
    %v6357 = vpop.xlane.xlu0 %6356
    %v6358 = vsel %vm5804, %v6349, 0.0
    %6359 = vadd.xlane.f32.xlu0 %v6358
    %v6360 = vpop.xlane.xlu0 %6359
    %v6361 = vsel %vm5804, %v6351, 0.0
    %6362 = vadd.xlane.f32.xlu0 %v6361
    %v6363 = vpop.xlane.xlu0 %6362
    %v6364 = vrcp.pop %v6354
    %v6365 = vrcp.pop %v6357
    %v6366 = vrcp.pop %v6360
    %v6367 = vrcp.pop %v6363
    %v6368 = vmul.f32 %v6345, %v6364
    %v6369 = vmul.f32 %v6347, %v6365
    %v6370 = vmul.f32 %v6349, %v6366
    %v6371 = vmul.f32 %v6351, %v6367
    %v6372 = vpack.c.bf16 %v6369, %v6368
    %v6373 = vpack.c.bf16 %v6371, %v6370
    %6374 = vrot.lane.b32.xlu0 %v5967, 48
    %v6375 = vpop.permute.xlu0 %6374
    %6376 = vrot.lane.b32.xlu0 %v5968, 48
    %v6377 = vpop.permute.xlu0 %6376
    %v6381 = vsel %vm5804, %v6372, 0
    %v6384 = vsel %vm5804, %v6373, 0
    %6386 = vmatpush.bf16.msra.mxu0 0
    %6387 = vmatpush.bf16.msra.mxu0 0
    %6388 = vmatpush.bf16.msra.mxu0 0
    %6389 = vmatpush.bf16.msra.mxu0 0
    %6390 = vmatpush.bf16.msra.mxu0 0
    %6391 = vmatpush.bf16.msra.mxu0 0
    %6392 = vmatpush.bf16.msra.mxu0 %v6377
    %6393 = vmatpush.bf16.msra.mxu0 %v6375
    %6394 = vmatmul.bf16.gmra.mxu0 %v6381
    %v6395 = vpop.f32.mrf.mxu0
    %v6396 = vadd.f32 0.0, %v6395
    %v6397 = vpop.f32.mrf.mxu0
    %v6398 = vadd.f32 0.0, %v6397
    %6399 = vmatmul.bf16.gmra.mxu0 %v6384
    %v6400 = vpop.f32.mrf.mxu0
    %v6401 = vadd.f32 0.0, %v6400
    %v6402 = vpop.f32.mrf.mxu0
    %v6403 = vadd.f32 0.0, %v6402
    %6404 = vdwg.mxu0
    %v6405 = vld [vmem:[%s75 + $0x8] sm:$0xf]
    %v6406 = vpack.c.bf16 %v6398, %v6396
    %v6407 = vpack.c.bf16 %v6403, %v6401
    %v6409 = vsel %vm1265, %v6406, 0
    %v6412 = vsel %vm1265, %v6407, 0
    %v6415 = vsel %vm2025, %v6405, 0
    %6417 = vmatpush.bf16.msra.mxu0 0
    %6418 = vmatpush.bf16.msra.mxu0 0
    %6419 = vmatpush.bf16.msra.mxu0 0
    %6420 = vmatpush.bf16.msra.mxu0 0
    %6421 = vmatpush.bf16.msra.mxu0 0
    %6422 = vmatpush.bf16.msra.mxu0 0
    %6423 = vmatpush.bf16.msra.mxu0 0
    %6424 = vmatpush.bf16.msra.mxu0 %v6415
    %6425 = vmatmul.bf16.gmra.mxu0 %v6409
    %v6426 = vpop.f32.mrf.mxu0
    %v6427 = vadd.f32 0.0, %v6426
    %v6428 = vpop.f32.mrf.mxu0
    %v6429 = vadd.f32 0.0, %v6428
    %6430 = vmatmul.bf16.gmra.mxu0 %v6412
    %v6431 = vpop.f32.mrf.mxu0
    %v6432 = vadd.f32 0.0, %v6431
    %v6433 = vpop.f32.mrf.mxu0
    %v6434 = vadd.f32 0.0, %v6433
    %6435 = vdwg.mxu0
    %v6436 = vadd.f32 %v6271, %v6427
    %v6437 = vadd.f32 %v6273, %v6429
    %v6438 = vadd.f32 %v6276, %v6432
    %v6439 = vadd.f32 %v6278, %v6434
    %s6440 = scalar_lea.vmem %s79, 48
    %v6441 = vld [vmem:[%s6440] sm:$0xf]
    %v6442 = vld [vmem:[%s6440 + $0x4] sm:$0xf]
    %v6443 = vld [vmem:[%s6440 + $0x8] sm:$0xf]
    %v6444 = vld [vmem:[%s6440 + $0xc] sm:$0xf]
    %v6445 = vunpack.c.l.bf16 %v6441
    %v6446 = vunpack.c.l.bf16 %v6442
    %v6447 = vunpack.c.l.bf16 %v6443
    %v6448 = vunpack.c.l.bf16 %v6444
    %6449 = vrot.lane.b32.xlu0 %v5965, 104
    %v6450 = vpop.permute.xlu0 %6449
    %6451 = vrot.lane.b32.xlu0 %v5966, 104
    %v6452 = vpop.permute.xlu0 %6451
    %6453 = vrot.lane.b32.xlu0 %v5967, 72
    %v6454 = vpop.permute.xlu0 %6453
    %6455 = vrot.lane.b32.xlu0 %v5968, 72
    %v6456 = vpop.permute.xlu0 %6455
    %v6458 = vsel %vm1265, %v6450, 0
    %v6461 = vsel %vm1265, %v6452, 0
    %v6464 = vsel %vm1265, %v6454, 0
    %v6467 = vsel %vm1265, %v6456, 0
    %6469 = vmatpush.bf16.xpose.msra.mxu0 0
    %6470 = vmatpush.bf16.xpose.msra.mxu0 0
    %6471 = vmatpush.bf16.xpose.msra.mxu0 0
    %6472 = vmatpush.bf16.xpose.msra.mxu0 0
    %6473 = vmatpush.bf16.xpose.msra.mxu0 0
    %6474 = vmatpush.bf16.xpose.msra.mxu0 0
    %6475 = vmatpush.bf16.xpose.msra.mxu0 %v6467
    %6476 = vmatpush.bf16.xpose.msra.mxu0 %v6464
    %6477 = vmatmul.bf16.gmra.mxu0 %v6458
    %v6478 = vpop.f32.mrf.mxu0
    %v6479 = vadd.f32 %v6445, %v6478
    %v6480 = vpop.f32.mrf.mxu0
    %v6481 = vadd.f32 %v6446, %v6480
    %6482 = vmatmul.bf16.gmra.mxu0 %v6461
    %v6483 = vpop.f32.mrf.mxu0
    %v6484 = vadd.f32 %v6447, %v6483
    %v6485 = vpop.f32.mrf.mxu0
    %v6486 = vadd.f32 %v6448, %v6485
    %6487 = vdwg.mxu0
    %v6488 = vsel %vm5804, %v6479, -inf
    %6489 = vmax.xlane.f32.xlu0 %v6488
    %v6490 = vpop.xlane.xlu0 %6489
    %v6491 = vsel %vm5804, %v6481, -inf
    %6492 = vmax.xlane.f32.xlu0 %v6491
    %v6493 = vpop.xlane.xlu0 %6492
    %v6494 = vsel %vm5804, %v6484, -inf
    %6495 = vmax.xlane.f32.xlu0 %v6494
    %v6496 = vpop.xlane.xlu0 %6495
    %v6497 = vsel %vm5804, %v6486, -inf
    %6498 = vmax.xlane.f32.xlu0 %v6497
    %v6499 = vpop.xlane.xlu0 %6498
    %v6500 = vsub.f32 %v6479, %v6490
    %v6501 = vsub.f32 %v6481, %v6493
    %v6502 = vsub.f32 %v6484, %v6496
    %v6503 = vsub.f32 %v6486, %v6499
    %v6504 = vmul.f32 %v6500, 1.442695
    %v6505 = vpow.pop %v6504
    %v6506 = vmul.f32 %v6501, 1.442695
    %v6507 = vpow.pop %v6506
    %v6508 = vmul.f32 %v6502, 1.442695
    %v6509 = vpow.pop %v6508
    %v6510 = vmul.f32 %v6503, 1.442695
    %v6511 = vpow.pop %v6510
    %v6512 = vsel %vm5804, %v6505, 0.0
    %6513 = vadd.xlane.f32.xlu0 %v6512
    %v6514 = vpop.xlane.xlu0 %6513
    %v6515 = vsel %vm5804, %v6507, 0.0
    %6516 = vadd.xlane.f32.xlu0 %v6515
    %v6517 = vpop.xlane.xlu0 %6516
    %v6518 = vsel %vm5804, %v6509, 0.0
    %6519 = vadd.xlane.f32.xlu0 %v6518
    %v6520 = vpop.xlane.xlu0 %6519
    %v6521 = vsel %vm5804, %v6511, 0.0
    %6522 = vadd.xlane.f32.xlu0 %v6521
    %v6523 = vpop.xlane.xlu0 %6522
    %v6524 = vrcp.pop %v6514
    %v6525 = vrcp.pop %v6517
    %v6526 = vrcp.pop %v6520
    %v6527 = vrcp.pop %v6523
    %v6528 = vmul.f32 %v6505, %v6524
    %v6529 = vmul.f32 %v6507, %v6525
    %v6530 = vmul.f32 %v6509, %v6526
    %v6531 = vmul.f32 %v6511, %v6527
    %v6532 = vpack.c.bf16 %v6529, %v6528
    %v6533 = vpack.c.bf16 %v6531, %v6530
    %6534 = vrot.lane.b32.xlu0 %v5967, 40
    %v6535 = vpop.permute.xlu0 %6534
    %6536 = vrot.lane.b32.xlu0 %v5968, 40
    %v6537 = vpop.permute.xlu0 %6536
    %v6541 = vsel %vm5804, %v6532, 0
    %v6544 = vsel %vm5804, %v6533, 0
    %6546 = vmatpush.bf16.msra.mxu0 0
    %6547 = vmatpush.bf16.msra.mxu0 0
    %6548 = vmatpush.bf16.msra.mxu0 0
    %6549 = vmatpush.bf16.msra.mxu0 0
    %6550 = vmatpush.bf16.msra.mxu0 0
    %6551 = vmatpush.bf16.msra.mxu0 0
    %6552 = vmatpush.bf16.msra.mxu0 %v6537
    %6553 = vmatpush.bf16.msra.mxu0 %v6535
    %6554 = vmatmul.bf16.gmra.mxu0 %v6541
    %v6555 = vpop.f32.mrf.mxu0
    %v6556 = vadd.f32 0.0, %v6555
    %v6557 = vpop.f32.mrf.mxu0
    %v6558 = vadd.f32 0.0, %v6557
    %6559 = vmatmul.bf16.gmra.mxu0 %v6544
    %v6560 = vpop.f32.mrf.mxu0
    %v6561 = vadd.f32 0.0, %v6560
    %v6562 = vpop.f32.mrf.mxu0
    %v6563 = vadd.f32 0.0, %v6562
    %6564 = vdwg.mxu0
    %v6565 = vld [vmem:[%s75 + $0xc] sm:$0xf]
    %v6566 = vpack.c.bf16 %v6558, %v6556
    %v6567 = vpack.c.bf16 %v6563, %v6561
    %v6569 = vsel %vm1265, %v6566, 0
    %v6572 = vsel %vm1265, %v6567, 0
    %v6575 = vsel %vm2025, %v6565, 0
    %6577 = vmatpush.bf16.msra.mxu0 0
    %6578 = vmatpush.bf16.msra.mxu0 0
    %6579 = vmatpush.bf16.msra.mxu0 0
    %6580 = vmatpush.bf16.msra.mxu0 0
    %6581 = vmatpush.bf16.msra.mxu0 0
    %6582 = vmatpush.bf16.msra.mxu0 0
    %6583 = vmatpush.bf16.msra.mxu0 0
    %6584 = vmatpush.bf16.msra.mxu0 %v6575
    %6585 = vmatmul.bf16.gmra.mxu0 %v6569
    %v6586 = vpop.f32.mrf.mxu0
    %v6587 = vadd.f32 0.0, %v6586
    %v6588 = vpop.f32.mrf.mxu0
    %v6589 = vadd.f32 0.0, %v6588
    %6590 = vmatmul.bf16.gmra.mxu0 %v6572
    %v6591 = vpop.f32.mrf.mxu0
    %v6592 = vadd.f32 0.0, %v6591
    %v6593 = vpop.f32.mrf.mxu0
    %v6594 = vadd.f32 0.0, %v6593
    %6595 = vdwg.mxu0
    %v6596 = vadd.f32 %v6436, %v6587
    %v6597 = vadd.f32 %v6437, %v6589
    %v6598 = vadd.f32 %v6438, %v6592
    %v6599 = vadd.f32 %v6439, %v6594
    %v6600 = vadd.f32 %v5798, %v6596
    %v6601 = vadd.f32 %v5799, %v6597
    %v6602 = vadd.f32 %v5800, %v6598
    %v6603 = vadd.f32 %v5801, %v6599
    %v6604 = vld [vmem:[#allocation14] sm:$0x1]
    %v6606 = vperm.slane %v6604, 0
    %v6608 = vadd.f32 %v6600, %v6606
    %v6609 = vadd.f32 %v6601, %v6606
    %v6610 = vadd.f32 %v6602, %v6606
    %v6611 = vadd.f32 %v6603, %v6606
    %v6612 = vld [vmem:[#allocation16] sm:$0x1]
    %v6613 = vld [vmem:[#allocation17] sm:$0x1]
    %v6614 = vsel %vm5804, %v6608, 0.0
    %6615 = vadd.xlane.f32.xlu0 %v6614
    %v6616 = vpop.xlane.xlu0 %6615
    %v6617 = vsel %vm5804, %v6609, 0.0
    %6618 = vadd.xlane.f32.xlu0 %v6617
    %v6619 = vpop.xlane.xlu0 %6618
    %v6620 = vsel %vm5804, %v6610, 0.0
    %6621 = vadd.xlane.f32.xlu0 %v6620
    %v6622 = vpop.xlane.xlu0 %6621
    %v6623 = vsel %vm5804, %v6611, 0.0
    %6624 = vadd.xlane.f32.xlu0 %v6623
    %v6625 = vpop.xlane.xlu0 %6624
    %v6626 = vmul.f32 %v6616, %v5823
    %v6627 = vmul.f32 %v6619, %v5823
    %v6628 = vmul.f32 %v6622, %v5823
    %v6629 = vmul.f32 %v6625, %v5823
    %v6630 = vsub.f32 %v6608, %v6626
    %v6631 = vsub.f32 %v6609, %v6627
    %v6632 = vsub.f32 %v6610, %v6628
    %v6633 = vsub.f32 %v6611, %v6629
    %v6634 = vmul.f32 %v6630, %v6630
    %v6635 = vmul.f32 %v6631, %v6631
    %v6636 = vmul.f32 %v6632, %v6632
    %v6637 = vmul.f32 %v6633, %v6633
    %v6638 = vsel %vm5804, %v6634, 0.0
    %6639 = vadd.xlane.f32.xlu0 %v6638
    %v6640 = vpop.xlane.xlu0 %6639
    %v6641 = vsel %vm5804, %v6635, 0.0
    %6642 = vadd.xlane.f32.xlu0 %v6641
    %v6643 = vpop.xlane.xlu0 %6642
    %v6644 = vsel %vm5804, %v6636, 0.0
    %6645 = vadd.xlane.f32.xlu0 %v6644
    %v6646 = vpop.xlane.xlu0 %6645
    %v6647 = vsel %vm5804, %v6637, 0.0
    %6648 = vadd.xlane.f32.xlu0 %v6647
    %v6649 = vpop.xlane.xlu0 %6648
    %v6650 = vmul.f32 %v6640, %v5823
    %v6651 = vmul.f32 %v6643, %v5823
    %v6652 = vmul.f32 %v6646, %v5823
    %v6653 = vmul.f32 %v6649, %v5823
    %v6654 = vadd.f32 %v6650, 1e-05
    %v6655 = vadd.f32 %v6651, 1e-05
    %v6656 = vadd.f32 %v6652, 1e-05
    %v6657 = vadd.f32 %v6653, 1e-05
    %v6658 = vrsqrt.pop %v6654
    %v6659 = vmul.f32 %v6658, %v6654
    %v6660 = vmul.f32 %v6659, %v6658
    %v6661 = vmul.f32 0.5, %v6660
    %v6662 = vsub.f32 1.5, %v6661
    %v6663 = vmul.f32 %v6658, %v6662
    %vm6664 = vweird.f32 %v6654
    %vm6665 = vweird.f32 %v6658
    %vm6666 = vmor %vm6664, %vm6665
    %v6667 = vsel %vm6666, %v6658, %v6663
    %v6668 = vrsqrt.pop %v6655
    %v6669 = vmul.f32 %v6668, %v6655
    %v6670 = vmul.f32 %v6669, %v6668
    %v6671 = vmul.f32 0.5, %v6670
    %v6672 = vsub.f32 1.5, %v6671
    %v6673 = vmul.f32 %v6668, %v6672
    %vm6674 = vweird.f32 %v6655
    %vm6675 = vweird.f32 %v6668
    %vm6676 = vmor %vm6674, %vm6675
    %v6677 = vsel %vm6676, %v6668, %v6673
    %v6678 = vrsqrt.pop %v6656
    %v6679 = vmul.f32 %v6678, %v6656
    %v6680 = vmul.f32 %v6679, %v6678
    %v6681 = vmul.f32 0.5, %v6680
    %v6682 = vsub.f32 1.5, %v6681
    %v6683 = vmul.f32 %v6678, %v6682
    %vm6684 = vweird.f32 %v6656
    %vm6685 = vweird.f32 %v6678
    %vm6686 = vmor %vm6684, %vm6685
    %v6687 = vsel %vm6686, %v6678, %v6683
    %v6688 = vrsqrt.pop %v6657
    %v6689 = vmul.f32 %v6688, %v6657
    %v6690 = vmul.f32 %v6689, %v6688
    %v6691 = vmul.f32 0.5, %v6690
    %v6692 = vsub.f32 1.5, %v6691
    %v6693 = vmul.f32 %v6688, %v6692
    %vm6694 = vweird.f32 %v6657
    %vm6695 = vweird.f32 %v6688
    %vm6696 = vmor %vm6694, %vm6695
    %v6697 = vsel %vm6696, %v6688, %v6693
    %v6698 = vmul.f32 %v6630, %v6667
    %v6699 = vmul.f32 %v6631, %v6677
    %v6700 = vmul.f32 %v6632, %v6687
    %v6701 = vmul.f32 %v6633, %v6697
    %v6703 = vperm.slane %v6612, 0
    %v6705 = vmul.f32 %v6698, %v6703
    %v6706 = vmul.f32 %v6699, %v6703
    %v6707 = vmul.f32 %v6700, %v6703
    %v6708 = vmul.f32 %v6701, %v6703
    %v6710 = vperm.slane %v6613, 0
    %v6712 = vadd.f32 %v6705, %v6710
    %v6713 = vadd.f32 %v6706, %v6710
    %v6714 = vadd.f32 %v6707, %v6710
    %v6715 = vadd.f32 %v6708, %v6710
    %v6716 = vld [vmem:[%s85] sm:$0xf]
    %v6717 = vld [vmem:[%s85 + $0x4] sm:$0xf]
    %v6718 = vld [vmem:[%s85 + $0x8] sm:$0xf]
    %v6719 = vld [vmem:[%s85 + $0xc] sm:$0xf]
    %v6720 = vpack.c.bf16 %v6713, %v6712
    %v6721 = vpack.c.bf16 %v6715, %v6714
    %v6722 = vld [vmem:[#allocation19] sm:$0x1]
    %v6724 = vperm.slane %v6722, 0
    %v6730 = vunpack.c.l.b16 %v6716
    %v6731 = vunpack.c.l.b16 %v6717
    %v6732 = vunpack.c.l.b16 %v6718
    %v6733 = vunpack.c.l.b16 %v6719
    %v6734 = vpack.c.b16 %v6731, %v6730
    %v6735 = vpack.c.b16 %v6733, %v6732
    %v6739 = vsel %vm5804, %v6720, 0
    %v6742 = vsel %vm5804, %v6721, 0
    %6744 = vmatpush.bf16.msra.mxu0 0
    %6745 = vmatpush.bf16.msra.mxu0 0
    %6746 = vmatpush.bf16.msra.mxu0 0
    %6747 = vmatpush.bf16.msra.mxu0 0
    %6748 = vmatpush.bf16.msra.mxu0 0
    %6749 = vmatpush.bf16.msra.mxu0 0
    %6750 = vmatpush.bf16.msra.mxu0 %v6735
    %6751 = vmatpush.bf16.msra.mxu0 %v6734
    %6752 = vmatmul.bf16.gmra.mxu0 %v6739
    %v6753 = vpop.f32.mrf.mxu0
    %v6754 = vadd.f32 %v6724, %v6753
    %v6755 = vpop.f32.mrf.mxu0
    %v6756 = vadd.f32 %v6724, %v6755
    %6757 = vmatmul.bf16.gmra.mxu0 %v6742
    %v6758 = vpop.f32.mrf.mxu0
    %v6759 = vadd.f32 %v6724, %v6758
    %v6760 = vpop.f32.mrf.mxu0
    %v6761 = vadd.f32 %v6724, %v6760
    %6762 = vdwg.mxu0
    %v6763 = vmul.f32 %v6754, 0.5
    %v6764 = vmul.f32 %v6756, 0.5
    %v6765 = vmul.f32 %v6759, 0.5
    %v6766 = vmul.f32 %v6761, 0.5
    %v6767 = vmul.f32 %v6754, 0.044715
    %v6768 = vmul.f32 %v6756, 0.044715
    %v6769 = vmul.f32 %v6759, 0.044715
    %v6770 = vmul.f32 %v6761, 0.044715
    %v6771 = vmul.f32 %v6767, %v6754
    %v6772 = vmul.f32 %v6768, %v6756
    %v6773 = vmul.f32 %v6769, %v6759
    %v6774 = vmul.f32 %v6770, %v6761
    %v6775 = vmul.f32 %v6771, %v6754
    %v6776 = vmul.f32 %v6772, %v6756
    %v6777 = vmul.f32 %v6773, %v6759
    %v6778 = vmul.f32 %v6774, %v6761
    %v6779 = vadd.f32 %v6754, %v6775
    %v6780 = vadd.f32 %v6756, %v6776
    %v6781 = vadd.f32 %v6759, %v6777
    %v6782 = vadd.f32 %v6761, %v6778
    %v6783 = vmul.f32 %v6779, 0.7978846
    %v6784 = vmul.f32 %v6780, 0.7978846
    %v6785 = vmul.f32 %v6781, 0.7978846
    %v6786 = vmul.f32 %v6782, 0.7978846
    %v6787 = vtanh.pop %v6783
    %v6788 = vtanh.pop %v6784
    %v6789 = vtanh.pop %v6785
    %v6790 = vtanh.pop %v6786
    %v6791 = vadd.f32 %v6787, 1.0
    %v6792 = vadd.f32 %v6788, 1.0
    %v6793 = vadd.f32 %v6789, 1.0
    %v6794 = vadd.f32 %v6790, 1.0
    %v6795 = vmul.f32 %v6763, %v6791
    %v6796 = vmul.f32 %v6764, %v6792
    %v6797 = vmul.f32 %v6765, %v6793
    %v6798 = vmul.f32 %v6766, %v6794
    %v6799 = vld [vmem:[%s89] sm:$0xf]
    %v6800 = vld [vmem:[%s89 + $0x4] sm:$0xf]
    %v6801 = vld [vmem:[%s89 + $0x8] sm:$0xf]
    %v6802 = vld [vmem:[%s89 + $0xc] sm:$0xf]
    %v6803 = vld [vmem:[%s89 + $0x10] sm:$0xf]
    %v6804 = vld [vmem:[%s89 + $0x14] sm:$0xf]
    %v6805 = vld [vmem:[%s89 + $0x18] sm:$0xf]
    %v6806 = vld [vmem:[%s89 + $0x1c] sm:$0xf]
    %v6807 = vld [vmem:[%s89 + $0x20] sm:$0xf]
    %v6808 = vld [vmem:[%s89 + $0x24] sm:$0xf]
    %v6809 = vld [vmem:[%s89 + $0x28] sm:$0xf]
    %v6810 = vld [vmem:[%s89 + $0x2c] sm:$0xf]
    %v6811 = vld [vmem:[%s89 + $0x30] sm:$0xf]
    %v6812 = vld [vmem:[%s89 + $0x34] sm:$0xf]
    %v6813 = vld [vmem:[%s89 + $0x38] sm:$0xf]
    %v6814 = vld [vmem:[%s89 + $0x3c] sm:$0xf]
    %v6815 = vpack.c.bf16 %v6796, %v6795
    %v6816 = vpack.c.bf16 %v6798, %v6797
    %v6817 = vld [vmem:[#allocation20] sm:$0x1]
    %v6819 = vperm.slane %v6817, 0
    %v6837 = vunpack.c.l.b16 %v6799
    %v6838 = vunpack.c.l.b16 %v6800
    %v6839 = vunpack.c.l.b16 %v6801
    %v6840 = vunpack.c.l.b16 %v6802
    %v6841 = vunpack.c.l.b16 %v6803
    %v6842 = vunpack.c.l.b16 %v6804
    %v6843 = vunpack.c.l.b16 %v6805
    %v6844 = vunpack.c.l.b16 %v6806
    %v6845 = vunpack.c.l.b16 %v6807
    %v6846 = vunpack.c.l.b16 %v6808
    %v6847 = vunpack.c.l.b16 %v6809
    %v6848 = vunpack.c.l.b16 %v6810
    %v6849 = vunpack.c.l.b16 %v6811
    %v6850 = vunpack.c.l.b16 %v6812
    %v6851 = vunpack.c.l.b16 %v6813
    %v6852 = vunpack.c.l.b16 %v6814
    %v6853 = vpack.c.b16 %v6838, %v6837
    %v6854 = vpack.c.b16 %v6840, %v6839
    %v6855 = vpack.c.b16 %v6842, %v6841
    %v6856 = vpack.c.b16 %v6844, %v6843
    %v6857 = vpack.c.b16 %v6846, %v6845
    %v6858 = vpack.c.b16 %v6848, %v6847
    %v6859 = vpack.c.b16 %v6850, %v6849
    %v6860 = vpack.c.b16 %v6852, %v6851
    %6869 = vmatpush.bf16.msra.mxu0 %v6860
    %6870 = vmatpush.bf16.msra.mxu0 %v6859
    %6871 = vmatpush.bf16.msra.mxu0 %v6858
    %6872 = vmatpush.bf16.msra.mxu0 %v6857
    %6873 = vmatpush.bf16.msra.mxu0 %v6856
    %6874 = vmatpush.bf16.msra.mxu0 %v6855
    %6875 = vmatpush.bf16.msra.mxu0 %v6854
    %6876 = vmatpush.bf16.msra.mxu0 %v6853
    %6877 = vmatmul.bf16.gmra.mxu0 %v6815
    %v6878 = vpop.f32.mrf.mxu0
    %v6879 = vadd.f32 %v6819, %v6878
    %v6880 = vpop.f32.mrf.mxu0
    %v6881 = vadd.f32 %v6819, %v6880
    %6882 = vmatmul.bf16.gmra.mxu0 %v6816
    %v6883 = vpop.f32.mrf.mxu0
    %v6884 = vadd.f32 %v6819, %v6883
    %v6885 = vpop.f32.mrf.mxu0
    %v6886 = vadd.f32 %v6819, %v6885
    %6887 = vdwg.mxu0
    %v6888 = vadd.f32 %v6608, %v6879
    %v6889 = vadd.f32 %v6609, %v6881
    %v6890 = vadd.f32 %v6610, %v6884
    %v6891 = vadd.f32 %v6611, %v6886
    %v6892 = vld [vmem:[#allocation22] sm:$0x1]
    %v6893 = vld [vmem:[#allocation23] sm:$0x1]
    %v6894 = vsel %vm5804, %v6888, 0.0
    %6895 = vadd.xlane.f32.xlu0 %v6894
    %v6896 = vpop.xlane.xlu0 %6895
    %v6897 = vsel %vm5804, %v6889, 0.0
    %6898 = vadd.xlane.f32.xlu0 %v6897
    %v6899 = vpop.xlane.xlu0 %6898
    %v6900 = vsel %vm5804, %v6890, 0.0
    %6901 = vadd.xlane.f32.xlu0 %v6900
    %v6902 = vpop.xlane.xlu0 %6901
    %v6903 = vsel %vm5804, %v6891, 0.0
    %6904 = vadd.xlane.f32.xlu0 %v6903
    %v6905 = vpop.xlane.xlu0 %6904
    %v6906 = vmul.f32 %v6896, %v5823
    %v6907 = vmul.f32 %v6899, %v5823
    %v6908 = vmul.f32 %v6902, %v5823
    %v6909 = vmul.f32 %v6905, %v5823
    %v6910 = vsub.f32 %v6888, %v6906
    %v6911 = vsub.f32 %v6889, %v6907
    %v6912 = vsub.f32 %v6890, %v6908
    %v6913 = vsub.f32 %v6891, %v6909
    %v6914 = vmul.f32 %v6910, %v6910
    %v6915 = vmul.f32 %v6911, %v6911
    %v6916 = vmul.f32 %v6912, %v6912
    %v6917 = vmul.f32 %v6913, %v6913
    %v6918 = vsel %vm5804, %v6914, 0.0
    %6919 = vadd.xlane.f32.xlu0 %v6918
    %v6920 = vpop.xlane.xlu0 %6919
    %v6921 = vsel %vm5804, %v6915, 0.0
    %6922 = vadd.xlane.f32.xlu0 %v6921
    %v6923 = vpop.xlane.xlu0 %6922
    %v6924 = vsel %vm5804, %v6916, 0.0
    %6925 = vadd.xlane.f32.xlu0 %v6924
    %v6926 = vpop.xlane.xlu0 %6925
    %v6927 = vsel %vm5804, %v6917, 0.0
    %6928 = vadd.xlane.f32.xlu0 %v6927
    %v6929 = vpop.xlane.xlu0 %6928
    %v6930 = vmul.f32 %v6920, %v5823
    %v6931 = vmul.f32 %v6923, %v5823
    %v6932 = vmul.f32 %v6926, %v5823
    %v6933 = vmul.f32 %v6929, %v5823
    %v6934 = vadd.f32 %v6930, 1e-05
    %v6935 = vadd.f32 %v6931, 1e-05
    %v6936 = vadd.f32 %v6932, 1e-05
    %v6937 = vadd.f32 %v6933, 1e-05
    %v6938 = vrsqrt.pop %v6934
    %v6939 = vmul.f32 %v6938, %v6934
    %v6940 = vmul.f32 %v6939, %v6938
    %v6941 = vmul.f32 0.5, %v6940
    %v6942 = vsub.f32 1.5, %v6941
    %v6943 = vmul.f32 %v6938, %v6942
    %vm6944 = vweird.f32 %v6934
    %vm6945 = vweird.f32 %v6938
    %vm6946 = vmor %vm6944, %vm6945
    %v6947 = vsel %vm6946, %v6938, %v6943
    %v6948 = vrsqrt.pop %v6935
    %v6949 = vmul.f32 %v6948, %v6935
    %v6950 = vmul.f32 %v6949, %v6948
    %v6951 = vmul.f32 0.5, %v6950
    %v6952 = vsub.f32 1.5, %v6951
    %v6953 = vmul.f32 %v6948, %v6952
    %vm6954 = vweird.f32 %v6935
    %vm6955 = vweird.f32 %v6948
    %vm6956 = vmor %vm6954, %vm6955
    %v6957 = vsel %vm6956, %v6948, %v6953
    %v6958 = vrsqrt.pop %v6936
    %v6959 = vmul.f32 %v6958, %v6936
    %v6960 = vmul.f32 %v6959, %v6958
    %v6961 = vmul.f32 0.5, %v6960
    %v6962 = vsub.f32 1.5, %v6961
    %v6963 = vmul.f32 %v6958, %v6962
    %vm6964 = vweird.f32 %v6936
    %vm6965 = vweird.f32 %v6958
    %vm6966 = vmor %vm6964, %vm6965
    %v6967 = vsel %vm6966, %v6958, %v6963
    %v6968 = vrsqrt.pop %v6937
    %v6969 = vmul.f32 %v6968, %v6937
    %v6970 = vmul.f32 %v6969, %v6968
    %v6971 = vmul.f32 0.5, %v6970
    %v6972 = vsub.f32 1.5, %v6971
    %v6973 = vmul.f32 %v6968, %v6972
    %vm6974 = vweird.f32 %v6937
    %vm6975 = vweird.f32 %v6968
    %vm6976 = vmor %vm6974, %vm6975
    %v6977 = vsel %vm6976, %v6968, %v6973
    %v6978 = vmul.f32 %v6910, %v6947
    %v6979 = vmul.f32 %v6911, %v6957
    %v6980 = vmul.f32 %v6912, %v6967
    %v6981 = vmul.f32 %v6913, %v6977
    %v6983 = vperm.slane %v6892, 0
    %v6985 = vmul.f32 %v6978, %v6983
    %v6986 = vmul.f32 %v6979, %v6983
    %v6987 = vmul.f32 %v6980, %v6983
    %v6988 = vmul.f32 %v6981, %v6983
    %v6990 = vperm.slane %v6893, 0
    %v6992 = vadd.f32 %v6985, %v6990
    %v6993 = vadd.f32 %v6986, %v6990
    %v6994 = vadd.f32 %v6987, %v6990
    %v6995 = vadd.f32 %v6988, %v6990
    %v6996 = vld [vmem:[%s97] sm:$0xf]
    %v6997 = vld [vmem:[%s97 + $0x4] sm:$0xf]
    %v6998 = vld [vmem:[%s97 + $0x8] sm:$0xf]
    %v6999 = vld [vmem:[%s97 + $0xc] sm:$0xf]
    %v7000 = vpack.c.bf16 %v6993, %v6992
    %v7001 = vpack.c.bf16 %v6995, %v6994
    %v7002 = vld [vmem:[#allocation25] sm:$0x1]
    %v7004 = vperm.slane %v7002, 0
    %v7010 = vunpack.c.l.b16 %v6996
    %v7011 = vunpack.c.l.b16 %v6997
    %v7012 = vunpack.c.l.b16 %v6998
    %v7013 = vunpack.c.l.b16 %v6999
    %v7014 = vpack.c.b16 %v7011, %v7010
    %v7015 = vpack.c.b16 %v7013, %v7012
    %v7019 = vsel %vm5804, %v7000, 0
    %v7022 = vsel %vm5804, %v7001, 0
    %7024 = vmatpush.bf16.msra.mxu0 0
    %7025 = vmatpush.bf16.msra.mxu0 0
    %7026 = vmatpush.bf16.msra.mxu0 0
    %7027 = vmatpush.bf16.msra.mxu0 0
    %7028 = vmatpush.bf16.msra.mxu0 0
    %7029 = vmatpush.bf16.msra.mxu0 0
    %7030 = vmatpush.bf16.msra.mxu0 %v7015
    %7031 = vmatpush.bf16.msra.mxu0 %v7014
    %7032 = vmatmul.bf16.gmra.mxu0 %v7019
    %v7033 = vpop.f32.mrf.mxu0
    %v7034 = vadd.f32 %v7004, %v7033
    %v7035 = vpop.f32.mrf.mxu0
    %v7036 = vadd.f32 %v7004, %v7035
    %7037 = vmatmul.bf16.gmra.mxu0 %v7022
    %v7038 = vpop.f32.mrf.mxu0
    %v7039 = vadd.f32 %v7004, %v7038
    %v7040 = vpop.f32.mrf.mxu0
    %v7041 = vadd.f32 %v7004, %v7040
    %7042 = vdwg.mxu0
    %v7043 = vmul.f32 %v7034, 0.35355338
    %v7044 = vmul.f32 %v7036, 0.35355338
    %v7045 = vmul.f32 %v7039, 0.35355338
    %v7046 = vmul.f32 %v7041, 0.35355338
    %v7047 = vpack.c.bf16 %v7044, %v7043
    %v7048 = vpack.c.bf16 %v7046, %v7045
    %v7049 = vpack.c.bf16 %v7036, %v7034
    %v7050 = vpack.c.bf16 %v7041, %v7039
    %v7051 = vld [vmem:[%s105] sm:$0xf]
    %v7052 = vld [vmem:[%s105 + $0x4] sm:$0xf]
    %v7053 = vld [vmem:[%s105 + $0x8] sm:$0xf]
    %v7054 = vld [vmem:[%s105 + $0xc] sm:$0xf]
    %v7055 = vunpack.c.l.bf16 %v7051
    %v7056 = vunpack.c.l.bf16 %v7052
    %v7057 = vunpack.c.l.bf16 %v7053
    %v7058 = vunpack.c.l.bf16 %v7054
    %7061 = vrot.lane.b32.xlu0 %v7049, 96
    %v7062 = vpop.permute.xlu0 %7061
    %7063 = vrot.lane.b32.xlu0 %v7050, 96
    %v7064 = vpop.permute.xlu0 %7063
    %v7066 = vsel %vm1265, %v7047, 0
    %v7069 = vsel %vm1265, %v7048, 0
    %v7072 = vsel %vm1265, %v7062, 0
    %v7075 = vsel %vm1265, %v7064, 0
    %7077 = vmatpush.bf16.xpose.msra.mxu0 0
    %7078 = vmatpush.bf16.xpose.msra.mxu0 0
    %7079 = vmatpush.bf16.xpose.msra.mxu0 0
    %7080 = vmatpush.bf16.xpose.msra.mxu0 0
    %7081 = vmatpush.bf16.xpose.msra.mxu0 0
    %7082 = vmatpush.bf16.xpose.msra.mxu0 0
    %7083 = vmatpush.bf16.xpose.msra.mxu0 %v7075
    %7084 = vmatpush.bf16.xpose.msra.mxu0 %v7072
    %7085 = vmatmul.bf16.gmra.mxu0 %v7066
    %v7086 = vpop.f32.mrf.mxu0
    %v7087 = vadd.f32 %v7055, %v7086
    %v7088 = vpop.f32.mrf.mxu0
    %v7089 = vadd.f32 %v7056, %v7088
    %7090 = vmatmul.bf16.gmra.mxu0 %v7069
    %v7091 = vpop.f32.mrf.mxu0
    %v7092 = vadd.f32 %v7057, %v7091
    %v7093 = vpop.f32.mrf.mxu0
    %v7094 = vadd.f32 %v7058, %v7093
    %7095 = vdwg.mxu0
    %v7096 = vsel %vm5804, %v7087, -inf
    %7097 = vmax.xlane.f32.xlu0 %v7096
    %v7098 = vpop.xlane.xlu0 %7097
    %v7099 = vsel %vm5804, %v7089, -inf
    %7100 = vmax.xlane.f32.xlu0 %v7099
    %v7101 = vpop.xlane.xlu0 %7100
    %v7102 = vsel %vm5804, %v7092, -inf
    %7103 = vmax.xlane.f32.xlu0 %v7102
    %v7104 = vpop.xlane.xlu0 %7103
    %v7105 = vsel %vm5804, %v7094, -inf
    %7106 = vmax.xlane.f32.xlu0 %v7105
    %v7107 = vpop.xlane.xlu0 %7106
    %v7108 = vsub.f32 %v7087, %v7098
    %v7109 = vsub.f32 %v7089, %v7101
    %v7110 = vsub.f32 %v7092, %v7104
    %v7111 = vsub.f32 %v7094, %v7107
    %v7112 = vmul.f32 %v7108, 1.442695
    %v7113 = vpow.pop %v7112
    %v7114 = vmul.f32 %v7109, 1.442695
    %v7115 = vpow.pop %v7114
    %v7116 = vmul.f32 %v7110, 1.442695
    %v7117 = vpow.pop %v7116
    %v7118 = vmul.f32 %v7111, 1.442695
    %v7119 = vpow.pop %v7118
    %v7120 = vsel %vm5804, %v7113, 0.0
    %7121 = vadd.xlane.f32.xlu0 %v7120
    %v7122 = vpop.xlane.xlu0 %7121
    %v7123 = vsel %vm5804, %v7115, 0.0
    %7124 = vadd.xlane.f32.xlu0 %v7123
    %v7125 = vpop.xlane.xlu0 %7124
    %v7126 = vsel %vm5804, %v7117, 0.0
    %7127 = vadd.xlane.f32.xlu0 %v7126
    %v7128 = vpop.xlane.xlu0 %7127
    %v7129 = vsel %vm5804, %v7119, 0.0
    %7130 = vadd.xlane.f32.xlu0 %v7129
    %v7131 = vpop.xlane.xlu0 %7130
    %v7132 = vrcp.pop %v7122
    %v7133 = vrcp.pop %v7125
    %v7134 = vrcp.pop %v7128
    %v7135 = vrcp.pop %v7131
    %v7136 = vmul.f32 %v7113, %v7132
    %v7137 = vmul.f32 %v7115, %v7133
    %v7138 = vmul.f32 %v7117, %v7134
    %v7139 = vmul.f32 %v7119, %v7135
    %v7140 = vpack.c.bf16 %v7137, %v7136
    %v7141 = vpack.c.bf16 %v7139, %v7138
    %7142 = vrot.lane.b32.xlu0 %v7049, 64
    %v7143 = vpop.permute.xlu0 %7142
    %7144 = vrot.lane.b32.xlu0 %v7050, 64
    %v7145 = vpop.permute.xlu0 %7144
    %v7149 = vsel %vm5804, %v7140, 0
    %v7152 = vsel %vm5804, %v7141, 0
    %7154 = vmatpush.bf16.msra.mxu0 0
    %7155 = vmatpush.bf16.msra.mxu0 0
    %7156 = vmatpush.bf16.msra.mxu0 0
    %7157 = vmatpush.bf16.msra.mxu0 0
    %7158 = vmatpush.bf16.msra.mxu0 0
    %7159 = vmatpush.bf16.msra.mxu0 0
    %7160 = vmatpush.bf16.msra.mxu0 %v7145
    %7161 = vmatpush.bf16.msra.mxu0 %v7143
    %7162 = vmatmul.bf16.gmra.mxu0 %v7149
    %v7163 = vpop.f32.mrf.mxu0
    %v7164 = vadd.f32 0.0, %v7163
    %v7165 = vpop.f32.mrf.mxu0
    %v7166 = vadd.f32 0.0, %v7165
    %7167 = vmatmul.bf16.gmra.mxu0 %v7152
    %v7168 = vpop.f32.mrf.mxu0
    %v7169 = vadd.f32 0.0, %v7168
    %v7170 = vpop.f32.mrf.mxu0
    %v7171 = vadd.f32 0.0, %v7170
    %7172 = vdwg.mxu0
    %v7173 = vld [vmem:[%s101] sm:$0xf]
    %v7174 = vpack.c.bf16 %v7166, %v7164
    %v7175 = vpack.c.bf16 %v7171, %v7169
    %s7176 = scalar_lea.vmem %s105, 16
    %v7177 = vld [vmem:[%s7176] sm:$0xf]
    %v7178 = vld [vmem:[%s7176 + $0x4] sm:$0xf]
    %v7179 = vld [vmem:[%s7176 + $0x8] sm:$0xf]
    %v7180 = vld [vmem:[%s7176 + $0xc] sm:$0xf]
    %v7181 = vunpack.c.l.bf16 %v7177
    %v7182 = vunpack.c.l.bf16 %v7178
    %v7183 = vunpack.c.l.bf16 %v7179
    %v7184 = vunpack.c.l.bf16 %v7180
    %7187 = vrot.lane.b32.xlu0 %v7047, 120
    %v7188 = vpop.permute.xlu0 %7187
    %7189 = vrot.lane.b32.xlu0 %v7048, 120
    %v7190 = vpop.permute.xlu0 %7189
    %7191 = vrot.lane.b32.xlu0 %v7049, 88
    %v7192 = vpop.permute.xlu0 %7191
    %7193 = vrot.lane.b32.xlu0 %v7050, 88
    %v7194 = vpop.permute.xlu0 %7193
    %v7196 = vsel %vm1265, %v7188, 0
    %v7199 = vsel %vm1265, %v7190, 0
    %v7202 = vsel %vm1265, %v7192, 0
    %v7205 = vsel %vm1265, %v7194, 0
    %7207 = vmatpush.bf16.xpose.msra.mxu0 0
    %7208 = vmatpush.bf16.xpose.msra.mxu0 0
    %7209 = vmatpush.bf16.xpose.msra.mxu0 0
    %7210 = vmatpush.bf16.xpose.msra.mxu0 0
    %7211 = vmatpush.bf16.xpose.msra.mxu0 0
    %7212 = vmatpush.bf16.xpose.msra.mxu0 0
    %7213 = vmatpush.bf16.xpose.msra.mxu0 %v7205
    %7214 = vmatpush.bf16.xpose.msra.mxu0 %v7202
    %7215 = vmatmul.bf16.gmra.mxu0 %v7196
    %v7216 = vpop.f32.mrf.mxu0
    %v7217 = vadd.f32 %v7181, %v7216
    %v7218 = vpop.f32.mrf.mxu0
    %v7219 = vadd.f32 %v7182, %v7218
    %7220 = vmatmul.bf16.gmra.mxu0 %v7199
    %v7221 = vpop.f32.mrf.mxu0
    %v7222 = vadd.f32 %v7183, %v7221
    %v7223 = vpop.f32.mrf.mxu0
    %v7224 = vadd.f32 %v7184, %v7223
    %7225 = vdwg.mxu0
    %v7226 = vsel %vm5804, %v7217, -inf
    %7227 = vmax.xlane.f32.xlu0 %v7226
    %v7228 = vpop.xlane.xlu0 %7227
    %v7229 = vsel %vm5804, %v7219, -inf
    %7230 = vmax.xlane.f32.xlu0 %v7229
    %v7231 = vpop.xlane.xlu0 %7230
    %v7232 = vsel %vm5804, %v7222, -inf
    %7233 = vmax.xlane.f32.xlu0 %v7232
    %v7234 = vpop.xlane.xlu0 %7233
    %v7235 = vsel %vm5804, %v7224, -inf
    %7236 = vmax.xlane.f32.xlu0 %v7235
    %v7237 = vpop.xlane.xlu0 %7236
    %v7238 = vsub.f32 %v7217, %v7228
    %v7239 = vsub.f32 %v7219, %v7231
    %v7240 = vsub.f32 %v7222, %v7234
    %v7241 = vsub.f32 %v7224, %v7237
    %v7242 = vmul.f32 %v7238, 1.442695
    %v7243 = vpow.pop %v7242
    %v7244 = vmul.f32 %v7239, 1.442695
    %v7245 = vpow.pop %v7244
    %v7246 = vmul.f32 %v7240, 1.442695
    %v7247 = vpow.pop %v7246
    %v7248 = vmul.f32 %v7241, 1.442695
    %v7249 = vpow.pop %v7248
    %v7250 = vsel %vm5804, %v7243, 0.0
    %7251 = vadd.xlane.f32.xlu0 %v7250
    %v7252 = vpop.xlane.xlu0 %7251
    %v7253 = vsel %vm5804, %v7245, 0.0
    %7254 = vadd.xlane.f32.xlu0 %v7253
    %v7255 = vpop.xlane.xlu0 %7254
    %v7256 = vsel %vm5804, %v7247, 0.0
    %7257 = vadd.xlane.f32.xlu0 %v7256
    %v7258 = vpop.xlane.xlu0 %7257
    %v7259 = vsel %vm5804, %v7249, 0.0
    %7260 = vadd.xlane.f32.xlu0 %v7259
    %v7261 = vpop.xlane.xlu0 %7260
    %v7262 = vrcp.pop %v7252
    %v7263 = vrcp.pop %v7255
    %v7264 = vrcp.pop %v7258
    %v7265 = vrcp.pop %v7261
    %v7266 = vmul.f32 %v7243, %v7262
    %v7267 = vmul.f32 %v7245, %v7263
    %v7268 = vmul.f32 %v7247, %v7264
    %v7269 = vmul.f32 %v7249, %v7265
    %v7270 = vpack.c.bf16 %v7267, %v7266
    %v7271 = vpack.c.bf16 %v7269, %v7268
    %7272 = vrot.lane.b32.xlu0 %v7049, 56
    %v7273 = vpop.permute.xlu0 %7272
    %7274 = vrot.lane.b32.xlu0 %v7050, 56
    %v7275 = vpop.permute.xlu0 %7274
    %v7279 = vsel %vm5804, %v7270, 0
    %v7282 = vsel %vm5804, %v7271, 0
    %7284 = vmatpush.bf16.msra.mxu0 0
    %7285 = vmatpush.bf16.msra.mxu0 0
    %7286 = vmatpush.bf16.msra.mxu0 0
    %7287 = vmatpush.bf16.msra.mxu0 0
    %7288 = vmatpush.bf16.msra.mxu0 0
    %7289 = vmatpush.bf16.msra.mxu0 0
    %7290 = vmatpush.bf16.msra.mxu0 %v7275
    %7291 = vmatpush.bf16.msra.mxu0 %v7273
    %7292 = vmatmul.bf16.gmra.mxu0 %v7279
    %v7293 = vpop.f32.mrf.mxu0
    %v7294 = vadd.f32 0.0, %v7293
    %v7295 = vpop.f32.mrf.mxu0
    %v7296 = vadd.f32 0.0, %v7295
    %7297 = vmatmul.bf16.gmra.mxu0 %v7282
    %v7298 = vpop.f32.mrf.mxu0
    %v7299 = vadd.f32 0.0, %v7298
    %v7300 = vpop.f32.mrf.mxu0
    %v7301 = vadd.f32 0.0, %v7300
    %7302 = vdwg.mxu0
    %v7303 = vld [vmem:[%s101 + $0x4] sm:$0xf]
    %v7304 = vpack.c.bf16 %v7296, %v7294
    %v7305 = vpack.c.bf16 %v7301, %v7299
    %v7307 = vsel %vm1265, %v7304, 0
    %v7310 = vsel %vm1265, %v7305, 0
    %v7313 = vsel %vm2025, %v7303, 0
    %7315 = vmatpush.bf16.msra.mxu0 0
    %7316 = vmatpush.bf16.msra.mxu0 0
    %7317 = vmatpush.bf16.msra.mxu0 0
    %7318 = vmatpush.bf16.msra.mxu0 0
    %7319 = vmatpush.bf16.msra.mxu0 0
    %7320 = vmatpush.bf16.msra.mxu0 0
    %7321 = vmatpush.bf16.msra.mxu0 0
    %7322 = vmatpush.bf16.msra.mxu0 %v7313
    %7323 = vmatmul.bf16.gmra.mxu0 %v7307
    %v7324 = vpop.f32.mrf.mxu0
    %v7325 = vadd.f32 0.0, %v7324
    %v7326 = vpop.f32.mrf.mxu0
    %v7327 = vadd.f32 0.0, %v7326
    %7328 = vmatmul.bf16.gmra.mxu0 %v7310
    %v7329 = vpop.f32.mrf.mxu0
    %v7330 = vadd.f32 0.0, %v7329
    %v7331 = vpop.f32.mrf.mxu0
    %v7332 = vadd.f32 0.0, %v7331
    %7333 = vdwg.mxu0
    %v7335 = vsel %vm1265, %v7174, 0
    %v7338 = vsel %vm1265, %v7175, 0
    %v7341 = vsel %vm2025, %v7173, 0
    %7343 = vmatpush.bf16.msra.mxu0 0
    %7344 = vmatpush.bf16.msra.mxu0 0
    %7345 = vmatpush.bf16.msra.mxu0 0
    %7346 = vmatpush.bf16.msra.mxu0 0
    %7347 = vmatpush.bf16.msra.mxu0 0
    %7348 = vmatpush.bf16.msra.mxu0 0
    %7349 = vmatpush.bf16.msra.mxu0 0
    %7350 = vmatpush.bf16.msra.mxu0 %v7341
    %7351 = vmatmul.bf16.gmra.mxu0 %v7335
    %v7352 = vpop.f32.mrf.mxu0
    %v7353 = vadd.f32 %v7325, %v7352
    %v7354 = vpop.f32.mrf.mxu0
    %v7355 = vadd.f32 %v7327, %v7354
    %7356 = vmatmul.bf16.gmra.mxu0 %v7338
    %v7357 = vpop.f32.mrf.mxu0
    %v7358 = vadd.f32 %v7330, %v7357
    %v7359 = vpop.f32.mrf.mxu0
    %v7360 = vadd.f32 %v7332, %v7359
    %7361 = vdwg.mxu0
    %s7362 = scalar_lea.vmem %s105, 32
    %v7363 = vld [vmem:[%s7362] sm:$0xf]
    %v7364 = vld [vmem:[%s7362 + $0x4] sm:$0xf]
    %v7365 = vld [vmem:[%s7362 + $0x8] sm:$0xf]
    %v7366 = vld [vmem:[%s7362 + $0xc] sm:$0xf]
    %v7367 = vunpack.c.l.bf16 %v7363
    %v7368 = vunpack.c.l.bf16 %v7364
    %v7369 = vunpack.c.l.bf16 %v7365
    %v7370 = vunpack.c.l.bf16 %v7366
    %7371 = vrot.lane.b32.xlu0 %v7047, 112
    %v7372 = vpop.permute.xlu0 %7371
    %7373 = vrot.lane.b32.xlu0 %v7048, 112
    %v7374 = vpop.permute.xlu0 %7373
    %7375 = vrot.lane.b32.xlu0 %v7049, 80
    %v7376 = vpop.permute.xlu0 %7375
    %7377 = vrot.lane.b32.xlu0 %v7050, 80
    %v7378 = vpop.permute.xlu0 %7377
    %v7380 = vsel %vm1265, %v7372, 0
    %v7383 = vsel %vm1265, %v7374, 0
    %v7386 = vsel %vm1265, %v7376, 0
    %v7389 = vsel %vm1265, %v7378, 0
    %7391 = vmatpush.bf16.xpose.msra.mxu0 0
    %7392 = vmatpush.bf16.xpose.msra.mxu0 0
    %7393 = vmatpush.bf16.xpose.msra.mxu0 0
    %7394 = vmatpush.bf16.xpose.msra.mxu0 0
    %7395 = vmatpush.bf16.xpose.msra.mxu0 0
    %7396 = vmatpush.bf16.xpose.msra.mxu0 0
    %7397 = vmatpush.bf16.xpose.msra.mxu0 %v7389
    %7398 = vmatpush.bf16.xpose.msra.mxu0 %v7386
    %7399 = vmatmul.bf16.gmra.mxu0 %v7380
    %v7400 = vpop.f32.mrf.mxu0
    %v7401 = vadd.f32 %v7367, %v7400
    %v7402 = vpop.f32.mrf.mxu0
    %v7403 = vadd.f32 %v7368, %v7402
    %7404 = vmatmul.bf16.gmra.mxu0 %v7383
    %v7405 = vpop.f32.mrf.mxu0
    %v7406 = vadd.f32 %v7369, %v7405
    %v7407 = vpop.f32.mrf.mxu0
    %v7408 = vadd.f32 %v7370, %v7407
    %7409 = vdwg.mxu0
    %v7410 = vsel %vm5804, %v7401, -inf
    %7411 = vmax.xlane.f32.xlu0 %v7410
    %v7412 = vpop.xlane.xlu0 %7411
    %v7413 = vsel %vm5804, %v7403, -inf
    %7414 = vmax.xlane.f32.xlu0 %v7413
    %v7415 = vpop.xlane.xlu0 %7414
    %v7416 = vsel %vm5804, %v7406, -inf
    %7417 = vmax.xlane.f32.xlu0 %v7416
    %v7418 = vpop.xlane.xlu0 %7417
    %v7419 = vsel %vm5804, %v7408, -inf
    %7420 = vmax.xlane.f32.xlu0 %v7419
    %v7421 = vpop.xlane.xlu0 %7420
    %v7422 = vsub.f32 %v7401, %v7412
    %v7423 = vsub.f32 %v7403, %v7415
    %v7424 = vsub.f32 %v7406, %v7418
    %v7425 = vsub.f32 %v7408, %v7421
    %v7426 = vmul.f32 %v7422, 1.442695
    %v7427 = vpow.pop %v7426
    %v7428 = vmul.f32 %v7423, 1.442695
    %v7429 = vpow.pop %v7428
    %v7430 = vmul.f32 %v7424, 1.442695
    %v7431 = vpow.pop %v7430
    %v7432 = vmul.f32 %v7425, 1.442695
    %v7433 = vpow.pop %v7432
    %v7434 = vsel %vm5804, %v7427, 0.0
    %7435 = vadd.xlane.f32.xlu0 %v7434
    %v7436 = vpop.xlane.xlu0 %7435
    %v7437 = vsel %vm5804, %v7429, 0.0
    %7438 = vadd.xlane.f32.xlu0 %v7437
    %v7439 = vpop.xlane.xlu0 %7438
    %v7440 = vsel %vm5804, %v7431, 0.0
    %7441 = vadd.xlane.f32.xlu0 %v7440
    %v7442 = vpop.xlane.xlu0 %7441
    %v7443 = vsel %vm5804, %v7433, 0.0
    %7444 = vadd.xlane.f32.xlu0 %v7443
    %v7445 = vpop.xlane.xlu0 %7444
    %v7446 = vrcp.pop %v7436
    %v7447 = vrcp.pop %v7439
    %v7448 = vrcp.pop %v7442
    %v7449 = vrcp.pop %v7445
    %v7450 = vmul.f32 %v7427, %v7446
    %v7451 = vmul.f32 %v7429, %v7447
    %v7452 = vmul.f32 %v7431, %v7448
    %v7453 = vmul.f32 %v7433, %v7449
    %v7454 = vpack.c.bf16 %v7451, %v7450
    %v7455 = vpack.c.bf16 %v7453, %v7452
    %7456 = vrot.lane.b32.xlu0 %v7049, 48
    %v7457 = vpop.permute.xlu0 %7456
    %7458 = vrot.lane.b32.xlu0 %v7050, 48
    %v7459 = vpop.permute.xlu0 %7458
    %v7463 = vsel %vm5804, %v7454, 0
    %v7466 = vsel %vm5804, %v7455, 0
    %7468 = vmatpush.bf16.msra.mxu0 0
    %7469 = vmatpush.bf16.msra.mxu0 0
    %7470 = vmatpush.bf16.msra.mxu0 0
    %7471 = vmatpush.bf16.msra.mxu0 0
    %7472 = vmatpush.bf16.msra.mxu0 0
    %7473 = vmatpush.bf16.msra.mxu0 0
    %7474 = vmatpush.bf16.msra.mxu0 %v7459
    %7475 = vmatpush.bf16.msra.mxu0 %v7457
    %7476 = vmatmul.bf16.gmra.mxu0 %v7463
    %v7477 = vpop.f32.mrf.mxu0
    %v7478 = vadd.f32 0.0, %v7477
    %v7479 = vpop.f32.mrf.mxu0
    %v7480 = vadd.f32 0.0, %v7479
    %7481 = vmatmul.bf16.gmra.mxu0 %v7466
    %v7482 = vpop.f32.mrf.mxu0
    %v7483 = vadd.f32 0.0, %v7482
    %v7484 = vpop.f32.mrf.mxu0
    %v7485 = vadd.f32 0.0, %v7484
    %7486 = vdwg.mxu0
    %v7487 = vld [vmem:[%s101 + $0x8] sm:$0xf]
    %v7488 = vpack.c.bf16 %v7480, %v7478
    %v7489 = vpack.c.bf16 %v7485, %v7483
    %v7491 = vsel %vm1265, %v7488, 0
    %v7494 = vsel %vm1265, %v7489, 0
    %v7497 = vsel %vm2025, %v7487, 0
    %7499 = vmatpush.bf16.msra.mxu0 0
    %7500 = vmatpush.bf16.msra.mxu0 0
    %7501 = vmatpush.bf16.msra.mxu0 0
    %7502 = vmatpush.bf16.msra.mxu0 0
    %7503 = vmatpush.bf16.msra.mxu0 0
    %7504 = vmatpush.bf16.msra.mxu0 0
    %7505 = vmatpush.bf16.msra.mxu0 0
    %7506 = vmatpush.bf16.msra.mxu0 %v7497
    %7507 = vmatmul.bf16.gmra.mxu0 %v7491
    %v7508 = vpop.f32.mrf.mxu0
    %v7509 = vadd.f32 0.0, %v7508
    %v7510 = vpop.f32.mrf.mxu0
    %v7511 = vadd.f32 0.0, %v7510
    %7512 = vmatmul.bf16.gmra.mxu0 %v7494
    %v7513 = vpop.f32.mrf.mxu0
    %v7514 = vadd.f32 0.0, %v7513
    %v7515 = vpop.f32.mrf.mxu0
    %v7516 = vadd.f32 0.0, %v7515
    %7517 = vdwg.mxu0
    %v7518 = vadd.f32 %v7353, %v7509
    %v7519 = vadd.f32 %v7355, %v7511
    %v7520 = vadd.f32 %v7358, %v7514
    %v7521 = vadd.f32 %v7360, %v7516
    %s7522 = scalar_lea.vmem %s105, 48
    %v7523 = vld [vmem:[%s7522] sm:$0xf]
    %v7524 = vld [vmem:[%s7522 + $0x4] sm:$0xf]
    %v7525 = vld [vmem:[%s7522 + $0x8] sm:$0xf]
    %v7526 = vld [vmem:[%s7522 + $0xc] sm:$0xf]
    %v7527 = vunpack.c.l.bf16 %v7523
    %v7528 = vunpack.c.l.bf16 %v7524
    %v7529 = vunpack.c.l.bf16 %v7525
    %v7530 = vunpack.c.l.bf16 %v7526
    %7531 = vrot.lane.b32.xlu0 %v7047, 104
    %v7532 = vpop.permute.xlu0 %7531
    %7533 = vrot.lane.b32.xlu0 %v7048, 104
    %v7534 = vpop.permute.xlu0 %7533
    %7535 = vrot.lane.b32.xlu0 %v7049, 72
    %v7536 = vpop.permute.xlu0 %7535
    %7537 = vrot.lane.b32.xlu0 %v7050, 72
    %v7538 = vpop.permute.xlu0 %7537
    %v7540 = vsel %vm1265, %v7532, 0
    %v7543 = vsel %vm1265, %v7534, 0
    %v7546 = vsel %vm1265, %v7536, 0
    %v7549 = vsel %vm1265, %v7538, 0
    %7551 = vmatpush.bf16.xpose.msra.mxu0 0
    %7552 = vmatpush.bf16.xpose.msra.mxu0 0
    %7553 = vmatpush.bf16.xpose.msra.mxu0 0
    %7554 = vmatpush.bf16.xpose.msra.mxu0 0
    %7555 = vmatpush.bf16.xpose.msra.mxu0 0
    %7556 = vmatpush.bf16.xpose.msra.mxu0 0
    %7557 = vmatpush.bf16.xpose.msra.mxu0 %v7549
    %7558 = vmatpush.bf16.xpose.msra.mxu0 %v7546
    %7559 = vmatmul.bf16.gmra.mxu0 %v7540
    %v7560 = vpop.f32.mrf.mxu0
    %v7561 = vadd.f32 %v7527, %v7560
    %v7562 = vpop.f32.mrf.mxu0
    %v7563 = vadd.f32 %v7528, %v7562
    %7564 = vmatmul.bf16.gmra.mxu0 %v7543
    %v7565 = vpop.f32.mrf.mxu0
    %v7566 = vadd.f32 %v7529, %v7565
    %v7567 = vpop.f32.mrf.mxu0
    %v7568 = vadd.f32 %v7530, %v7567
    %7569 = vdwg.mxu0
    %v7570 = vsel %vm5804, %v7561, -inf
    %7571 = vmax.xlane.f32.xlu0 %v7570
    %v7572 = vpop.xlane.xlu0 %7571
    %v7573 = vsel %vm5804, %v7563, -inf
    %7574 = vmax.xlane.f32.xlu0 %v7573
    %v7575 = vpop.xlane.xlu0 %7574
    %v7576 = vsel %vm5804, %v7566, -inf
    %7577 = vmax.xlane.f32.xlu0 %v7576
    %v7578 = vpop.xlane.xlu0 %7577
    %v7579 = vsel %vm5804, %v7568, -inf
    %7580 = vmax.xlane.f32.xlu0 %v7579
    %v7581 = vpop.xlane.xlu0 %7580
    %v7582 = vsub.f32 %v7561, %v7572
    %v7583 = vsub.f32 %v7563, %v7575
    %v7584 = vsub.f32 %v7566, %v7578
    %v7585 = vsub.f32 %v7568, %v7581
    %v7586 = vmul.f32 %v7582, 1.442695
    %v7587 = vpow.pop %v7586
    %v7588 = vmul.f32 %v7583, 1.442695
    %v7589 = vpow.pop %v7588
    %v7590 = vmul.f32 %v7584, 1.442695
    %v7591 = vpow.pop %v7590
    %v7592 = vmul.f32 %v7585, 1.442695
    %v7593 = vpow.pop %v7592
    %v7594 = vsel %vm5804, %v7587, 0.0
    %7595 = vadd.xlane.f32.xlu0 %v7594
    %v7596 = vpop.xlane.xlu0 %7595
    %v7597 = vsel %vm5804, %v7589, 0.0
    %7598 = vadd.xlane.f32.xlu0 %v7597
    %v7599 = vpop.xlane.xlu0 %7598
    %v7600 = vsel %vm5804, %v7591, 0.0
    %7601 = vadd.xlane.f32.xlu0 %v7600
    %v7602 = vpop.xlane.xlu0 %7601
    %v7603 = vsel %vm5804, %v7593, 0.0
    %7604 = vadd.xlane.f32.xlu0 %v7603
    %v7605 = vpop.xlane.xlu0 %7604
    %v7606 = vrcp.pop %v7596
    %v7607 = vrcp.pop %v7599
    %v7608 = vrcp.pop %v7602
    %v7609 = vrcp.pop %v7605
    %v7610 = vmul.f32 %v7587, %v7606
    %v7611 = vmul.f32 %v7589, %v7607
    %v7612 = vmul.f32 %v7591, %v7608
    %v7613 = vmul.f32 %v7593, %v7609
    %v7614 = vpack.c.bf16 %v7611, %v7610
    %v7615 = vpack.c.bf16 %v7613, %v7612
    %7616 = vrot.lane.b32.xlu0 %v7049, 40
    %v7617 = vpop.permute.xlu0 %7616
    %7618 = vrot.lane.b32.xlu0 %v7050, 40
    %v7619 = vpop.permute.xlu0 %7618
    %v7623 = vsel %vm5804, %v7614, 0
    %v7626 = vsel %vm5804, %v7615, 0
    %7628 = vmatpush.bf16.msra.mxu0 0
    %7629 = vmatpush.bf16.msra.mxu0 0
    %7630 = vmatpush.bf16.msra.mxu0 0
    %7631 = vmatpush.bf16.msra.mxu0 0
    %7632 = vmatpush.bf16.msra.mxu0 0
    %7633 = vmatpush.bf16.msra.mxu0 0
    %7634 = vmatpush.bf16.msra.mxu0 %v7619
    %7635 = vmatpush.bf16.msra.mxu0 %v7617
    %7636 = vmatmul.bf16.gmra.mxu0 %v7623
    %v7637 = vpop.f32.mrf.mxu0
    %v7638 = vadd.f32 0.0, %v7637
    %v7639 = vpop.f32.mrf.mxu0
    %v7640 = vadd.f32 0.0, %v7639
    %7641 = vmatmul.bf16.gmra.mxu0 %v7626
    %v7642 = vpop.f32.mrf.mxu0
    %v7643 = vadd.f32 0.0, %v7642
    %v7644 = vpop.f32.mrf.mxu0
    %v7645 = vadd.f32 0.0, %v7644
    %7646 = vdwg.mxu0
    %v7647 = vld [vmem:[%s101 + $0xc] sm:$0xf]
    %v7648 = vpack.c.bf16 %v7640, %v7638
    %v7649 = vpack.c.bf16 %v7645, %v7643
    %v7651 = vsel %vm1265, %v7648, 0
    %v7654 = vsel %vm1265, %v7649, 0
    %v7657 = vsel %vm2025, %v7647, 0
    %7659 = vmatpush.bf16.msra.mxu0 0
    %7660 = vmatpush.bf16.msra.mxu0 0
    %7661 = vmatpush.bf16.msra.mxu0 0
    %7662 = vmatpush.bf16.msra.mxu0 0
    %7663 = vmatpush.bf16.msra.mxu0 0
    %7664 = vmatpush.bf16.msra.mxu0 0
    %7665 = vmatpush.bf16.msra.mxu0 0
    %7666 = vmatpush.bf16.msra.mxu0 %v7657
    %7667 = vmatmul.bf16.gmra.mxu0 %v7651
    %v7668 = vpop.f32.mrf.mxu0
    %v7669 = vadd.f32 0.0, %v7668
    %v7670 = vpop.f32.mrf.mxu0
    %v7671 = vadd.f32 0.0, %v7670
    %7672 = vmatmul.bf16.gmra.mxu0 %v7654
    %v7673 = vpop.f32.mrf.mxu0
    %v7674 = vadd.f32 0.0, %v7673
    %v7675 = vpop.f32.mrf.mxu0
    %v7676 = vadd.f32 0.0, %v7675
    %7677 = vdwg.mxu0
    %v7678 = vadd.f32 %v7518, %v7669
    %v7679 = vadd.f32 %v7519, %v7671
    %v7680 = vadd.f32 %v7520, %v7674
    %v7681 = vadd.f32 %v7521, %v7676
    %v7682 = vadd.f32 %v6888, %v7678
    %v7683 = vadd.f32 %v6889, %v7679
    %v7684 = vadd.f32 %v6890, %v7680
    %v7685 = vadd.f32 %v6891, %v7681
    %v7686 = vld [vmem:[#allocation26] sm:$0x1]
    %v7688 = vperm.slane %v7686, 0
    %v7690 = vadd.f32 %v7682, %v7688
    %v7691 = vadd.f32 %v7683, %v7688
    %v7692 = vadd.f32 %v7684, %v7688
    %v7693 = vadd.f32 %v7685, %v7688
    %v7694 = vld [vmem:[#allocation28] sm:$0x1]
    %v7695 = vld [vmem:[#allocation29] sm:$0x1]
    %v7696 = vsel %vm5804, %v7690, 0.0
    %7697 = vadd.xlane.f32.xlu0 %v7696
    %v7698 = vpop.xlane.xlu0 %7697
    %v7699 = vsel %vm5804, %v7691, 0.0
    %7700 = vadd.xlane.f32.xlu0 %v7699
    %v7701 = vpop.xlane.xlu0 %7700
    %v7702 = vsel %vm5804, %v7692, 0.0
    %7703 = vadd.xlane.f32.xlu0 %v7702
    %v7704 = vpop.xlane.xlu0 %7703
    %v7705 = vsel %vm5804, %v7693, 0.0
    %7706 = vadd.xlane.f32.xlu0 %v7705
    %v7707 = vpop.xlane.xlu0 %7706
    %v7708 = vmul.f32 %v7698, %v5823
    %v7709 = vmul.f32 %v7701, %v5823
    %v7710 = vmul.f32 %v7704, %v5823
    %v7711 = vmul.f32 %v7707, %v5823
    %v7712 = vsub.f32 %v7690, %v7708
    %v7713 = vsub.f32 %v7691, %v7709
    %v7714 = vsub.f32 %v7692, %v7710
    %v7715 = vsub.f32 %v7693, %v7711
    %v7716 = vmul.f32 %v7712, %v7712
    %v7717 = vmul.f32 %v7713, %v7713
    %v7718 = vmul.f32 %v7714, %v7714
    %v7719 = vmul.f32 %v7715, %v7715
    %v7720 = vsel %vm5804, %v7716, 0.0
    %7721 = vadd.xlane.f32.xlu0 %v7720
    %v7722 = vpop.xlane.xlu0 %7721
    %v7723 = vsel %vm5804, %v7717, 0.0
    %7724 = vadd.xlane.f32.xlu0 %v7723
    %v7725 = vpop.xlane.xlu0 %7724
    %v7726 = vsel %vm5804, %v7718, 0.0
    %7727 = vadd.xlane.f32.xlu0 %v7726
    %v7728 = vpop.xlane.xlu0 %7727
    %v7729 = vsel %vm5804, %v7719, 0.0
    %7730 = vadd.xlane.f32.xlu0 %v7729
    %v7731 = vpop.xlane.xlu0 %7730
    %v7732 = vmul.f32 %v7722, %v5823
    %v7733 = vmul.f32 %v7725, %v5823
    %v7734 = vmul.f32 %v7728, %v5823
    %v7735 = vmul.f32 %v7731, %v5823
    %v7736 = vadd.f32 %v7732, 1e-05
    %v7737 = vadd.f32 %v7733, 1e-05
    %v7738 = vadd.f32 %v7734, 1e-05
    %v7739 = vadd.f32 %v7735, 1e-05
    %v7740 = vrsqrt.pop %v7736
    %v7741 = vmul.f32 %v7740, %v7736
    %v7742 = vmul.f32 %v7741, %v7740
    %v7743 = vmul.f32 0.5, %v7742
    %v7744 = vsub.f32 1.5, %v7743
    %v7745 = vmul.f32 %v7740, %v7744
    %vm7746 = vweird.f32 %v7736
    %vm7747 = vweird.f32 %v7740
    %vm7748 = vmor %vm7746, %vm7747
    %v7749 = vsel %vm7748, %v7740, %v7745
    %v7750 = vrsqrt.pop %v7737
    %v7751 = vmul.f32 %v7750, %v7737
    %v7752 = vmul.f32 %v7751, %v7750
    %v7753 = vmul.f32 0.5, %v7752
    %v7754 = vsub.f32 1.5, %v7753
    %v7755 = vmul.f32 %v7750, %v7754
    %vm7756 = vweird.f32 %v7737
    %vm7757 = vweird.f32 %v7750
    %vm7758 = vmor %vm7756, %vm7757
    %v7759 = vsel %vm7758, %v7750, %v7755
    %v7760 = vrsqrt.pop %v7738
    %v7761 = vmul.f32 %v7760, %v7738
    %v7762 = vmul.f32 %v7761, %v7760
    %v7763 = vmul.f32 0.5, %v7762
    %v7764 = vsub.f32 1.5, %v7763
    %v7765 = vmul.f32 %v7760, %v7764
    %vm7766 = vweird.f32 %v7738
    %vm7767 = vweird.f32 %v7760
    %vm7768 = vmor %vm7766, %vm7767
    %v7769 = vsel %vm7768, %v7760, %v7765
    %v7770 = vrsqrt.pop %v7739
    %v7771 = vmul.f32 %v7770, %v7739
    %v7772 = vmul.f32 %v7771, %v7770
    %v7773 = vmul.f32 0.5, %v7772
    %v7774 = vsub.f32 1.5, %v7773
    %v7775 = vmul.f32 %v7770, %v7774
    %vm7776 = vweird.f32 %v7739
    %vm7777 = vweird.f32 %v7770
    %vm7778 = vmor %vm7776, %vm7777
    %v7779 = vsel %vm7778, %v7770, %v7775
    %v7780 = vmul.f32 %v7712, %v7749
    %v7781 = vmul.f32 %v7713, %v7759
    %v7782 = vmul.f32 %v7714, %v7769
    %v7783 = vmul.f32 %v7715, %v7779
    %v7785 = vperm.slane %v7694, 0
    %v7787 = vmul.f32 %v7780, %v7785
    %v7788 = vmul.f32 %v7781, %v7785
    %v7789 = vmul.f32 %v7782, %v7785
    %v7790 = vmul.f32 %v7783, %v7785
    %v7792 = vperm.slane %v7695, 0
    %v7794 = vadd.f32 %v7787, %v7792
    %v7795 = vadd.f32 %v7788, %v7792
    %v7796 = vadd.f32 %v7789, %v7792
    %v7797 = vadd.f32 %v7790, %v7792
    %v7798 = vld [vmem:[%s111] sm:$0xf]
    %v7799 = vld [vmem:[%s111 + $0x4] sm:$0xf]
    %v7800 = vld [vmem:[%s111 + $0x8] sm:$0xf]
    %v7801 = vld [vmem:[%s111 + $0xc] sm:$0xf]
    %v7802 = vpack.c.bf16 %v7795, %v7794
    %v7803 = vpack.c.bf16 %v7797, %v7796
    %v7804 = vld [vmem:[#allocation31] sm:$0x1]
    %v7806 = vperm.slane %v7804, 0
    %v7812 = vunpack.c.l.b16 %v7798
    %v7813 = vunpack.c.l.b16 %v7799
    %v7814 = vunpack.c.l.b16 %v7800
    %v7815 = vunpack.c.l.b16 %v7801
    %v7816 = vpack.c.b16 %v7813, %v7812
    %v7817 = vpack.c.b16 %v7815, %v7814
    %v7821 = vsel %vm5804, %v7802, 0
    %v7824 = vsel %vm5804, %v7803, 0
    %7826 = vmatpush.bf16.msra.mxu0 0
    %7827 = vmatpush.bf16.msra.mxu0 0
    %7828 = vmatpush.bf16.msra.mxu0 0
    %7829 = vmatpush.bf16.msra.mxu0 0
    %7830 = vmatpush.bf16.msra.mxu0 0
    %7831 = vmatpush.bf16.msra.mxu0 0
    %7832 = vmatpush.bf16.msra.mxu0 %v7817
    %7833 = vmatpush.bf16.msra.mxu0 %v7816
    %7834 = vmatmul.bf16.gmra.mxu0 %v7821
    %v7835 = vpop.f32.mrf.mxu0
    %v7836 = vadd.f32 %v7806, %v7835
    %v7837 = vpop.f32.mrf.mxu0
    %v7838 = vadd.f32 %v7806, %v7837
    %7839 = vmatmul.bf16.gmra.mxu0 %v7824
    %v7840 = vpop.f32.mrf.mxu0
    %v7841 = vadd.f32 %v7806, %v7840
    %v7842 = vpop.f32.mrf.mxu0
    %v7843 = vadd.f32 %v7806, %v7842
    %7844 = vdwg.mxu0
    %v7845 = vmul.f32 %v7836, 0.5
    %v7846 = vmul.f32 %v7838, 0.5
    %v7847 = vmul.f32 %v7841, 0.5
    %v7848 = vmul.f32 %v7843, 0.5
    %v7849 = vmul.f32 %v7836, 0.044715
    %v7850 = vmul.f32 %v7838, 0.044715
    %v7851 = vmul.f32 %v7841, 0.044715
    %v7852 = vmul.f32 %v7843, 0.044715
    %v7853 = vmul.f32 %v7849, %v7836
    %v7854 = vmul.f32 %v7850, %v7838
    %v7855 = vmul.f32 %v7851, %v7841
    %v7856 = vmul.f32 %v7852, %v7843
    %v7857 = vmul.f32 %v7853, %v7836
    %v7858 = vmul.f32 %v7854, %v7838
    %v7859 = vmul.f32 %v7855, %v7841
    %v7860 = vmul.f32 %v7856, %v7843
    %v7861 = vadd.f32 %v7836, %v7857
    %v7862 = vadd.f32 %v7838, %v7858
    %v7863 = vadd.f32 %v7841, %v7859
    %v7864 = vadd.f32 %v7843, %v7860
    %v7865 = vmul.f32 %v7861, 0.7978846
    %v7866 = vmul.f32 %v7862, 0.7978846
    %v7867 = vmul.f32 %v7863, 0.7978846
    %v7868 = vmul.f32 %v7864, 0.7978846
    %v7869 = vtanh.pop %v7865
    %v7870 = vtanh.pop %v7866
    %v7871 = vtanh.pop %v7867
    %v7872 = vtanh.pop %v7868
    %v7873 = vadd.f32 %v7869, 1.0
    %v7874 = vadd.f32 %v7870, 1.0
    %v7875 = vadd.f32 %v7871, 1.0
    %v7876 = vadd.f32 %v7872, 1.0
    %v7877 = vmul.f32 %v7845, %v7873
    %v7878 = vmul.f32 %v7846, %v7874
    %v7879 = vmul.f32 %v7847, %v7875
    %v7880 = vmul.f32 %v7848, %v7876
    %v7881 = vld [vmem:[%s115] sm:$0xf]
    %v7882 = vld [vmem:[%s115 + $0x4] sm:$0xf]
    %v7883 = vld [vmem:[%s115 + $0x8] sm:$0xf]
    %v7884 = vld [vmem:[%s115 + $0xc] sm:$0xf]
    %v7885 = vld [vmem:[%s115 + $0x10] sm:$0xf]
    %v7886 = vld [vmem:[%s115 + $0x14] sm:$0xf]
    %v7887 = vld [vmem:[%s115 + $0x18] sm:$0xf]
    %v7888 = vld [vmem:[%s115 + $0x1c] sm:$0xf]
    %v7889 = vld [vmem:[%s115 + $0x20] sm:$0xf]
    %v7890 = vld [vmem:[%s115 + $0x24] sm:$0xf]
    %v7891 = vld [vmem:[%s115 + $0x28] sm:$0xf]
    %v7892 = vld [vmem:[%s115 + $0x2c] sm:$0xf]
    %v7893 = vld [vmem:[%s115 + $0x30] sm:$0xf]
    %v7894 = vld [vmem:[%s115 + $0x34] sm:$0xf]
    %v7895 = vld [vmem:[%s115 + $0x38] sm:$0xf]
    %v7896 = vld [vmem:[%s115 + $0x3c] sm:$0xf]
    %v7897 = vpack.c.bf16 %v7878, %v7877
    %v7898 = vpack.c.bf16 %v7880, %v7879
    %v7899 = vld [vmem:[#allocation32] sm:$0x1]
    %v7901 = vperm.slane %v7899, 0
    %v7919 = vunpack.c.l.b16 %v7881
    %v7920 = vunpack.c.l.b16 %v7882
    %v7921 = vunpack.c.l.b16 %v7883
    %v7922 = vunpack.c.l.b16 %v7884
    %v7923 = vunpack.c.l.b16 %v7885
    %v7924 = vunpack.c.l.b16 %v7886
    %v7925 = vunpack.c.l.b16 %v7887
    %v7926 = vunpack.c.l.b16 %v7888
    %v7927 = vunpack.c.l.b16 %v7889
    %v7928 = vunpack.c.l.b16 %v7890
    %v7929 = vunpack.c.l.b16 %v7891
    %v7930 = vunpack.c.l.b16 %v7892
    %v7931 = vunpack.c.l.b16 %v7893
    %v7932 = vunpack.c.l.b16 %v7894
    %v7933 = vunpack.c.l.b16 %v7895
    %v7934 = vunpack.c.l.b16 %v7896
    %v7935 = vpack.c.b16 %v7920, %v7919
    %v7936 = vpack.c.b16 %v7922, %v7921
    %v7937 = vpack.c.b16 %v7924, %v7923
    %v7938 = vpack.c.b16 %v7926, %v7925
    %v7939 = vpack.c.b16 %v7928, %v7927
    %v7940 = vpack.c.b16 %v7930, %v7929
    %v7941 = vpack.c.b16 %v7932, %v7931
    %v7942 = vpack.c.b16 %v7934, %v7933
    %7951 = vmatpush.bf16.msra.mxu0 %v7942
    %7952 = vmatpush.bf16.msra.mxu0 %v7941
    %7953 = vmatpush.bf16.msra.mxu0 %v7940
    %7954 = vmatpush.bf16.msra.mxu0 %v7939
    %7955 = vmatpush.bf16.msra.mxu0 %v7938
    %7956 = vmatpush.bf16.msra.mxu0 %v7937
    %7957 = vmatpush.bf16.msra.mxu0 %v7936
    %7958 = vmatpush.bf16.msra.mxu0 %v7935
    %7959 = vmatmul.bf16.gmra.mxu0 %v7897
    %v7960 = vpop.f32.mrf.mxu0
    %v7961 = vadd.f32 %v7901, %v7960
    %v7962 = vpop.f32.mrf.mxu0
    %v7963 = vadd.f32 %v7901, %v7962
    %7964 = vmatmul.bf16.gmra.mxu0 %v7898
    %v7965 = vpop.f32.mrf.mxu0
    %v7966 = vadd.f32 %v7901, %v7965
    %v7967 = vpop.f32.mrf.mxu0
    %v7968 = vadd.f32 %v7901, %v7967
    %7969 = vdwg.mxu0
    %v7970 = vadd.f32 %v7690, %v7961
    %v7971 = vadd.f32 %v7691, %v7963
    %v7972 = vadd.f32 %v7692, %v7966
    %v7973 = vadd.f32 %v7693, %v7968
    %v7974 = vld [vmem:[#allocation34] sm:$0x1]
    %v7975 = vld [vmem:[#allocation35] sm:$0x1]
    %v7976 = vsel %vm5804, %v7970, 0.0
    %7977 = vadd.xlane.f32.xlu0 %v7976
    %v7978 = vpop.xlane.xlu0 %7977
    %v7979 = vsel %vm5804, %v7971, 0.0
    %7980 = vadd.xlane.f32.xlu0 %v7979
    %v7981 = vpop.xlane.xlu0 %7980
    %v7982 = vsel %vm5804, %v7972, 0.0
    %7983 = vadd.xlane.f32.xlu0 %v7982
    %v7984 = vpop.xlane.xlu0 %7983
    %v7985 = vsel %vm5804, %v7973, 0.0
    %7986 = vadd.xlane.f32.xlu0 %v7985
    %v7987 = vpop.xlane.xlu0 %7986
    %v7988 = vmul.f32 %v7978, %v5823
    %v7989 = vmul.f32 %v7981, %v5823
    %v7990 = vmul.f32 %v7984, %v5823
    %v7991 = vmul.f32 %v7987, %v5823
    %v7992 = vsub.f32 %v7970, %v7988
    %v7993 = vsub.f32 %v7971, %v7989
    %v7994 = vsub.f32 %v7972, %v7990
    %v7995 = vsub.f32 %v7973, %v7991
    %v7996 = vmul.f32 %v7992, %v7992
    %v7997 = vmul.f32 %v7993, %v7993
    %v7998 = vmul.f32 %v7994, %v7994
    %v7999 = vmul.f32 %v7995, %v7995
    %v8000 = vsel %vm5804, %v7996, 0.0
    %8001 = vadd.xlane.f32.xlu0 %v8000
    %v8002 = vpop.xlane.xlu0 %8001
    %v8003 = vsel %vm5804, %v7997, 0.0
    %8004 = vadd.xlane.f32.xlu0 %v8003
    %v8005 = vpop.xlane.xlu0 %8004
    %v8006 = vsel %vm5804, %v7998, 0.0
    %8007 = vadd.xlane.f32.xlu0 %v8006
    %v8008 = vpop.xlane.xlu0 %8007
    %v8009 = vsel %vm5804, %v7999, 0.0
    %8010 = vadd.xlane.f32.xlu0 %v8009
    %v8011 = vpop.xlane.xlu0 %8010
    %v8012 = vmul.f32 %v8002, %v5823
    %v8013 = vmul.f32 %v8005, %v5823
    %v8014 = vmul.f32 %v8008, %v5823
    %v8015 = vmul.f32 %v8011, %v5823
    %v8016 = vadd.f32 %v8012, 1e-05
    %v8017 = vadd.f32 %v8013, 1e-05
    %v8018 = vadd.f32 %v8014, 1e-05
    %v8019 = vadd.f32 %v8015, 1e-05
    %v8020 = vrsqrt.pop %v8016
    %v8021 = vmul.f32 %v8020, %v8016
    %v8022 = vmul.f32 %v8021, %v8020
    %v8023 = vmul.f32 0.5, %v8022
    %v8024 = vsub.f32 1.5, %v8023
    %v8025 = vmul.f32 %v8020, %v8024
    %vm8026 = vweird.f32 %v8016
    %vm8027 = vweird.f32 %v8020
    %vm8028 = vmor %vm8026, %vm8027
    %v8029 = vsel %vm8028, %v8020, %v8025
    %v8030 = vrsqrt.pop %v8017
    %v8031 = vmul.f32 %v8030, %v8017
    %v8032 = vmul.f32 %v8031, %v8030
    %v8033 = vmul.f32 0.5, %v8032
    %v8034 = vsub.f32 1.5, %v8033
    %v8035 = vmul.f32 %v8030, %v8034
    %vm8036 = vweird.f32 %v8017
    %vm8037 = vweird.f32 %v8030
    %vm8038 = vmor %vm8036, %vm8037
    %v8039 = vsel %vm8038, %v8030, %v8035
    %v8040 = vrsqrt.pop %v8018
    %v8041 = vmul.f32 %v8040, %v8018
    %v8042 = vmul.f32 %v8041, %v8040
    %v8043 = vmul.f32 0.5, %v8042
    %v8044 = vsub.f32 1.5, %v8043
    %v8045 = vmul.f32 %v8040, %v8044
    %vm8046 = vweird.f32 %v8018
    %vm8047 = vweird.f32 %v8040
    %vm8048 = vmor %vm8046, %vm8047
    %v8049 = vsel %vm8048, %v8040, %v8045
    %v8050 = vrsqrt.pop %v8019
    %v8051 = vmul.f32 %v8050, %v8019
    %v8052 = vmul.f32 %v8051, %v8050
    %v8053 = vmul.f32 0.5, %v8052
    %v8054 = vsub.f32 1.5, %v8053
    %v8055 = vmul.f32 %v8050, %v8054
    %vm8056 = vweird.f32 %v8019
    %vm8057 = vweird.f32 %v8050
    %vm8058 = vmor %vm8056, %vm8057
    %v8059 = vsel %vm8058, %v8050, %v8055
    %v8060 = vmul.f32 %v7992, %v8029
    %v8061 = vmul.f32 %v7993, %v8039
    %v8062 = vmul.f32 %v7994, %v8049
    %v8063 = vmul.f32 %v7995, %v8059
    %v8065 = vperm.slane %v7974, 0
    %v8067 = vmul.f32 %v8060, %v8065
    %v8068 = vmul.f32 %v8061, %v8065
    %v8069 = vmul.f32 %v8062, %v8065
    %v8070 = vmul.f32 %v8063, %v8065
    %v8072 = vperm.slane %v7975, 0
    %v8074 = vadd.f32 %v8067, %v8072
    %v8075 = vadd.f32 %v8068, %v8072
    %v8076 = vadd.f32 %v8069, %v8072
    %v8077 = vadd.f32 %v8070, %v8072
    %v8078 = vld [vmem:[%s119] sm:$0x3]
    %v8080 = vsel %vm5804, %v8078, 0
    %8082 = vmatpush.msra.mxu0 0.0
    %8083 = vmatpush.msra.mxu0 0.0
    %8084 = vmatpush.msra.mxu0 0.0
    %8085 = vmatpush.msra.mxu0 0.0
    %8086 = vmatpush.msra.mxu0 0.0
    %8087 = vmatpush.msra.mxu0 0.0
    %8088 = vmatpush.msra.mxu0 0.0
    %8089 = vmatpush.msra.mxu0 0.0
    %8090 = vmatpush.msra.mxu0 0.0
    %8091 = vmatpush.msra.mxu0 0.0
    %8092 = vmatpush.msra.mxu0 0.0
    %8093 = vmatpush.msra.mxu0 0.0
    %8094 = vmatpush.msra.mxu0 %v8077
    %8095 = vmatpush.msra.mxu0 %v8076
    %8096 = vmatpush.msra.mxu0 %v8075
    %8097 = vmatpush.msra.mxu0 %v8074
    %8098 = vmatmul.f32.gmra.mxu0 %v8080
    %v8099 = vpop.f32.mrf.mxu0
    %v8100 = vadd.f32 0.0, %v8099
    %8101 = vdwg.mxu0
    %v8102 = vld [vmem:[%s125] sm:$0xf]
    %v8103 = vld [vmem:[%s125 + $0x4] sm:$0xf]
    %v8104 = vld [vmem:[%s125 + $0x8] sm:$0xf]
    %v8105 = vld [vmem:[%s125 + $0xc] sm:$0xf]
    %v8106 = vpack.c.bf16 %v8100, %v8100
    %v8107 = vld [vmem:[#allocation37] sm:$0x1]
    %v8109 = vperm.slane %v8107, 0
    %v8115 = vunpack.c.l.b16 %v8102
    %v8116 = vunpack.c.l.b16 %v8103
    %v8117 = vunpack.c.l.b16 %v8104
    %v8118 = vunpack.c.l.b16 %v8105
    %v8119 = vpack.c.b16 %v8116, %v8115
    %v8120 = vpack.c.b16 %v8118, %v8117
    %v8124 = vsel %vm5804, %v8106, 0
    %8126 = vmatpush.bf16.msra.mxu0 0
    %8127 = vmatpush.bf16.msra.mxu0 0
    %8128 = vmatpush.bf16.msra.mxu0 0
    %8129 = vmatpush.bf16.msra.mxu0 0
    %8130 = vmatpush.bf16.msra.mxu0 0
    %8131 = vmatpush.bf16.msra.mxu0 0
    %8132 = vmatpush.bf16.msra.mxu0 %v8120
    %8133 = vmatpush.bf16.msra.mxu0 %v8119
    %8134 = vmatmul.bf16.gmra.mxu0 %v8124
    %v8135 = vpop.f32.mrf.mxu0
    %v8136 = vadd.f32 %v8109, %v8135
    %v8137 = vpop.f32.mrf.mxu0
    %8138 = vdwg.mxu0
    %vm8139 = vcmask 74752
    %8140 = vst.msk [vmem:[#allocation38] sm:$0x3] %vm8139, %v8136
    // Predicated region
    $region350: #{swin_forward.1} parent=1 // pred_check
      _
    $region351: #{swin_forward.1} parent=1 // pred_check_branch
      %8142 = sbr.rel (0) target = $region353
    $region352: #{swin_forward.1} parent=1 // pred_region
      %8144 = vsyncadd [#allocation4], 0
      %s8146 = sshll.u32 [#allocation38], 4
      %s8147 = int_to_ptr.vmem [resolvable:$true] %s8146
      %s8148 = sshll.u32 %s129, 4
      %s8149 = int_to_ptr.hbm [resolvable:$true] %s8148
      %8151 = dma.vmem_to_hbm [thread:$0]  %s8147, 32, %s8149, [#allocation4]
    $region353: #{swin_forward.1} parent=1 // pred_fallthru
      _
    // Predicated region
    $region354: #{swin_forward.1} parent=1 // pred_check
      _
    $region355: #{swin_forward.1} parent=1 // pred_check_branch
      %8153 = sbr.rel (0) target = $region357
    $region356: #{swin_forward.1} parent=1 // pred_region
      %8155 = dma.done [#allocation4], 32
    $region357: #{swin_forward.1} parent=1 // pred_fallthru
      _
    %8156 = vsyncpa [#allocation3], 1
    %8157 = vsyncpa [#allocation6], 1
    %8158 = vsyncpa [#allocation9], 1
    %8159 = vsyncpa [#allocation12], 1
    %8160 = vsyncpa [#allocation15], 1
    %8161 = vsyncpa [#allocation18], 1
    %8162 = vsyncpa [#allocation21], 1
    %8163 = vsyncpa [#allocation24], 1
    %8164 = vsyncpa [#allocation27], 1
    %8165 = vsyncpa [#allocation30], 1
    %8166 = vsyncpa [#allocation33], 1
    %8167 = vsyncpa [#allocation36], 1
    %8168 = vsyncpa [#allocation4], 1

</llo_original>
